<compile_context>
chip_gen: v7x
topology: tpu7x:2x2x1
jax: 0.10.0
libtpu: 0.0.40
codegen_flags: <defaults>
</compile_context>

<pallas_src>
import functools
import math

import jax
import jax.numpy as jnp
from jax import lax
from jax.experimental import pallas as pl
from jax.experimental.pallas import tpu as pltpu

# ----------------------------- model hyperparams -----------------------------
VOCAB = 50
D_MODEL = 32
N_LAYERS = 2
HEADS = 4
D_K = D_MODEL // HEADS
D_FF = 2048          # FeedForward default d_ff in the reference module
EPS = 1e-6
B, T_TRG, S_SRC = 2, 8, 10


# ----------------------------- kernel helpers --------------------------------
def _layer_norm(t, alpha, bias, eps):
    # torch Norm: alpha * (x - mean) / (std_unbiased + eps) + bias
    mean = jnp.mean(t, axis=-1, keepdims=True)
    diff = t - mean
    var = jnp.sum(diff * diff, axis=-1, keepdims=True) / (t.shape[-1] - 1)
    inv = pl.reciprocal(jnp.sqrt(var) + eps, approx=False)       # EUP slot
    return alpha * diff * inv + bias


def _softmax_last(s):
    m = jnp.max(s, axis=-1, keepdims=True)
    p = jnp.exp(s - m)
    denom = jnp.sum(p, axis=-1, keepdims=True)
    return p * pl.reciprocal(denom, approx=False)                # EUP slot


# ----------------------------- fused decoder kernel --------------------------
def decoder_kernel(
    x_ref, e_ref, sb_ref, cb_ref,
    a1_ref, b1_ref, a2_ref, b2_ref, a3_ref, b3_ref,
    wqkv1_ref, bqkv1_ref, wo1_ref, bo1_ref,
    wq2_ref, bq2_ref, wkv2_ref, bkv2_ref, wo2_ref, bo2_ref,
    wf1_ref, bf1_ref, wf2t_ref, bf2_ref,
    af_ref, bf_ref,
    out_ref, attn_ref,
    x_scr, attn_scr,
    *, n_layers, batch, t_len, s_len, heads, d_k, d_model, eps,
):
    l = pl.program_id(0)
    scale = 1.0 / math.sqrt(d_k)

    @pl.when(l == 0)
    def _init():
        x_scr[...] = x_ref[...]                      # carried activation (B*T, D)
        attn_scr[...] = jnp.zeros_like(attn_scr)     # cross-attn accumulator

    x = x_scr[...]                                   # (B*T, D)
    sbias = sb_ref[...]                              # (B, T, T) additive mask bias
    cbias = cb_ref[...]                              # (B, 1, S_pad) additive mask bias

    # ----------------------------- self attention -----------------------------
    x2 = _layer_norm(x, a1_ref[...], b1_ref[...], eps)
    # ONE fused QKV projection: (B*T,32) @ (32,96)
    qkv = jnp.dot(x2, wqkv1_ref[...], preferred_element_type=jnp.float32) + bqkv1_ref[...]
    ctx_heads = []
    for h in range(heads):                           # static, H = 4
        c0 = h * d_k
        q_h = qkv[:, c0:c0 + d_k].reshape(batch, t_len, d_k)
        k_h = qkv[:, d_model + c0:d_model + c0 + d_k].reshape(batch, t_len, d_k)
        v_h = qkv[:, 2 * d_model + c0:2 * d_model + c0 + d_k].reshape(batch, t_len, d_k)
        s_h = jnp.einsum("btd,bsd->bts", q_h, k_h,
                         preferred_element_type=jnp.float32) * scale + sbias
        p_h = _softmax_last(s_h)
        c_h = jnp.einsum("bts,bsd->btd", p_h, v_h,
                         preferred_element_type=jnp.float32)
        ctx_heads.append(c_h.reshape(batch * t_len, d_k))
    ctx = jnp.concatenate(ctx_heads, axis=1)         # lane concat -> (B*T, D)
    # single full-width output projection
    x = x + jnp.dot(ctx, wo1_ref[...], preferred_element_type=jnp.float32) + bo1_ref[...]

    # ----------------------------- cross attention ----------------------------
    x2 = _layer_norm(x, a2_ref[...], b2_ref[...], eps)
    q = jnp.dot(x2, wq2_ref[...], preferred_element_type=jnp.float32) + bq2_ref[...]
    # K|V projected from the encoder output ONCE per layer (all batches at once)
    kv = jnp.dot(e_ref[...], wkv2_ref[...], preferred_element_type=jnp.float32) + bkv2_ref[...]
    ctx_heads = []
    for h in range(heads):
        c0 = h * d_k
        q_h = q[:, c0:c0 + d_k].reshape(batch, t_len, d_k)
        k_h = kv[:, c0:c0 + d_k].reshape(batch, s_len, d_k)
        v_h = kv[:, d_model + c0:d_model + c0 + d_k].reshape(batch, s_len, d_k)
        s_h = jnp.einsum("btd,bsd->bts", q_h, k_h,
                         preferred_element_type=jnp.float32) * scale + cbias
        p_h = _softmax_last(s_h)                     # (B, T, S_pad)
        attn_scr[h] = attn_scr[h] + p_h              # accumulate across layers
        c_h = jnp.einsum("bts,bsd->btd", p_h, v_h,
                         preferred_element_type=jnp.float32)
        ctx_heads.append(c_h.reshape(batch * t_len, d_k))
    ctx = jnp.concatenate(ctx_heads, axis=1)
    x = x + jnp.dot(ctx, wo2_ref[...], preferred_element_type=jnp.float32) + bo2_ref[...]

    # ------------------------------ feed forward ------------------------------
    x2 = _layer_norm(x, a3_ref[...], b3_ref[...], eps)
    h1 = jnp.dot(x2.astype(jnp.bfloat16), wf1_ref[...],        # bf16 weights
                 preferred_element_type=jnp.float32) + bf1_ref[...]
    h1 = jnp.maximum(h1, 0.0)
    # wf2 stored lane-dense as its transpose (32, 2048): contract rhs dim 1.
    ff = lax.dot_general(h1.astype(jnp.bfloat16), wf2t_ref[...],
                         dimension_numbers=(((1,), (1,)), ((), ())),
                         preferred_element_type=jnp.float32) + bf2_ref[...]
    x = x + ff

    x_scr[...] = x                                   # carry to next layer

    @pl.when(l == n_layers - 1)
    def _finalize():
        out_ref[...] = _layer_norm(x, af_ref[...], bf_ref[...], eps)
        attn_ref[...] = attn_scr[...] * (1.0 / n_layers)   # layer-averaged attn


# ----------------------------- parameter prep --------------------------------
def init_params(key):
    keys = iter(jax.random.split(key, 256))

    def lin(d_in, d_out):
        # stored pre-transposed: y = x @ W + b
        w = jax.random.normal(next(keys), (d_in, d_out), jnp.float32) * 0.05
        b = jax.random.normal(next(keys), (1, d_out), jnp.float32) * 0.02
        return w, b

    embed = jax.random.normal(next(keys), (VOCAB, D_MODEL), jnp.float32) * 0.1

    layers = []
    for _ in range(N_LAYERS):
        ones = jnp.ones((1, D_MODEL), jnp.float32)
        zeros = jnp.zeros((1, D_MODEL), jnp.float32)
        wq1, bq1 = lin(D_MODEL, D_MODEL); wk1, bk1 = lin(D_MODEL, D_MODEL)
        wv1, bv1 = lin(D_MODEL, D_MODEL); wo1, bo1 = lin(D_MODEL, D_MODEL)
        wq2, bq2 = lin(D_MODEL, D_MODEL); wk2, bk2 = lin(D_MODEL, D_MODEL)
        wv2, bv2 = lin(D_MODEL, D_MODEL); wo2, bo2 = lin(D_MODEL, D_MODEL)
        wf1, bf1 = lin(D_MODEL, D_FF); wf2, bf2 = lin(D_FF, D_MODEL)
        layers.append(dict(
            a1=ones, b1=zeros, a2=ones, b2=zeros, a3=ones, b3=zeros,
            wq1=wq1, bq1=bq1, wk1=wk1, bk1=bk1, wv1=wv1, bv1=bv1, wo1=wo1, bo1=bo1,
            wq2=wq2, bq2=bq2, wk2=wk2, bk2=bk2, wv2=wv2, bv2=bv2, wo2=wo2, bo2=bo2,
            wf1=wf1, bf1=bf1, wf2=wf2, bf2=bf2))

    alpha_f = jnp.ones((1, D_MODEL), jnp.float32)
    bias_f = jnp.zeros((1, D_MODEL), jnp.float32)
    return embed, layers, alpha_f, bias_f


def prepare_params(layers):
    """Stack per-layer params on a leading layer axis; fuse Q|K|V (self) and K|V
    (cross) projection weights; store FF weights bf16, wf2 lane-dense (transposed)."""
    def stack(fn):
        return jnp.stack([fn(p) for p in layers], axis=0)

    return [
        stack(lambda p: p["a1"]), stack(lambda p: p["b1"]),
        stack(lambda p: p["a2"]), stack(lambda p: p["b2"]),
        stack(lambda p: p["a3"]), stack(lambda p: p["b3"]),
        # fused QKV for self-attention -> (L, D, 3D)
        stack(lambda p: jnp.concatenate([p["wq1"], p["wk1"], p["wv1"]], axis=1)),
        stack(lambda p: jnp.concatenate([p["bq1"], p["bk1"], p["bv1"]], axis=1)),
        stack(lambda p: p["wo1"]), stack(lambda p: p["bo1"]),
        # cross attention: Q from x, fused K|V from encoder output -> (L, D, 2D)
        stack(lambda p: p["wq2"]), stack(lambda p: p["bq2"]),
        stack(lambda p: jnp.concatenate([p["wk2"], p["wv2"]], axis=1)),
        stack(lambda p: jnp.concatenate([p["bk2"], p["bv2"]], axis=1)),
        stack(lambda p: p["wo2"]), stack(lambda p: p["bo2"]),
        # FF weights: bf16; wf2 stored as its transpose (lane-dense 32 x 2048)
        stack(lambda p: p["wf1"].astype(jnp.bfloat16)),
        stack(lambda p: p["bf1"]),
        stack(lambda p: p["wf2"].T.astype(jnp.bfloat16)),
        stack(lambda p: p["bf2"]),
    ]


def positional_encoding(max_len, d_model):
    pos = jnp.arange(max_len, dtype=jnp.float32)[:, None]
    i = jnp.arange(0, d_model, 2, dtype=jnp.float32)[None, :]
    angle = pos / jnp.power(10000.0, i / d_model)
    pe = jnp.zeros((max_len, d_model), jnp.float32)
    pe = pe.at[:, 0::2].set(jnp.sin(angle))
    pe = pe.at[:, 1::2].set(jnp.cos(angle))
    return pe


# ----------------------------- decoder forward --------------------------------
def decoder_forward_pallas(trg, e_outputs, src_mask, trg_mask,
                           embed, stacked_params, alpha_f, bias_f):
    Bb, T = trg.shape
    S = e_outputs.shape[1]
    D = D_MODEL
    S_pad = ((S + 7) // 8) * 8            # sublane-aligned padded source length

    # Embedder + PositionalEncoder: thin XLA glue (gather); dropout = identity.
    x = jnp.take(embed, trg, axis=0) * math.sqrt(D)
    x = x + positional_encoding(T, D)[None]
    x_flat = x.reshape(Bb * T, D)                     # fold batch into rows

    # Pad + flatten encoder output so cross K/V is ONE projection per layer.
    e_flat = jnp.pad(e_outputs, ((0, 0), (0, S_pad - S), (0, 0))).reshape(Bb * S_pad, D)

    # Additive mask biases (mask==0 -> -1e9); pad columns are masked too.
    self_bias = (trg_mask - 1.0) * 1e9                                        # (B, T, T)
    cross_bias = (jnp.pad(src_mask, ((0, 0), (0, 0), (0, S_pad - S))) - 1.0) * 1e9  # (B,1,S_pad)

    kernel = functools.partial(
        decoder_kernel, n_layers=N_LAYERS, batch=Bb, t_len=T, s_len=S_pad,
        heads=HEADS, d_k=D_K, d_model=D, eps=EPS)

    def layer_spec(*tail):          # per-layer weight: block index follows l
        return pl.BlockSpec((None,) + tail, lambda l: (l,) + (0,) * len(tail))

    def const_spec(*shape):         # layer-invariant: same block every iteration
        return pl.BlockSpec(shape, lambda l: (0,) * len(shape))

    in_specs = [
        const_spec(Bb * T, D),                      # x
        const_spec(Bb * S_pad, D),                  # e (padded, flattened)
        const_spec(Bb, T, T),                       # self-attn mask bias
        const_spec(Bb, 1, S_pad),                   # cross-attn mask bias
        layer_spec(1, D), layer_spec(1, D),         # a1, b1
        layer_spec(1, D), layer_spec(1, D),         # a2, b2
        layer_spec(1, D), layer_spec(1, D),         # a3, b3
        layer_spec(D, 3 * D), layer_spec(1, 3 * D), # wqkv1, bqkv1
        layer_spec(D, D), layer_spec(1, D),         # wo1, bo1
        layer_spec(D, D), layer_spec(1, D),         # wq2, bq2
        layer_spec(D, 2 * D), layer_spec(1, 2 * D), # wkv2, bkv2
        layer_spec(D, D), layer_spec(1, D),         # wo2, bo2
        layer_spec(D, D_FF), layer_spec(1, D_FF),   # wf1 (bf16), bf1
        layer_spec(D, D_FF), layer_spec(1, D),      # wf2t (bf16), bf2
        const_spec(1, D), const_spec(1, D),         # final norm alpha, bias
    ]
    out_specs = [
        pl.BlockSpec((Bb * T, D), lambda l: (0, 0)),
        pl.BlockSpec((HEADS, Bb, T, S_pad), lambda l: (0, 0, 0, 0)),
    ]
    out_shape = [
        jax.ShapeDtypeStruct((Bb * T, D), jnp.float32),
        jax.ShapeDtypeStruct((HEADS, Bb, T, S_pad), jnp.float32),
    ]
    scratch_shapes = [
        pltpu.VMEM((Bb * T, D), jnp.float32),             # carried activation
        pltpu.VMEM((HEADS, Bb, T, S_pad), jnp.float32),   # cross-attn accumulator
    ]

    out_flat, attn_pad = pl.pallas_call(
        kernel,
        out_shape=out_shape,
        grid=(N_LAYERS,),
        in_specs=in_specs,
        out_specs=out_specs,
        scratch_shapes=scratch_shapes,
        compiler_params=pltpu.CompilerParams(
            dimension_semantics=("arbitrary",)),          # sequential layer axis
    )(x_flat, e_flat, self_bias, cross_bias, *stacked_params, alpha_f, bias_f)

    avg_attn = jnp.transpose(attn_pad, (1, 0, 2, 3))[:, :, :, :S]
    return out_flat.reshape(Bb, T, D), avg_attn


# ----------------------------------- main --------------------------------------
if __name__ == "__main__":
    key = jax.random.PRNGKey(0)
    k_param, k_trg, k_enc = jax.random.split(key, 3)

    embed, layers, alpha_f, bias_f = init_params(k_param)
    stacked_params = prepare_params(layers)

    trg = jax.random.randint(k_trg, (B, T_TRG), 0, VOCAB)
    e_outputs = jax.random.normal(k_enc, (B, S_SRC, D_MODEL), jnp.float32)

    # masks as 0/1 floats; masked positions where mask == 0
    src_mask = jnp.ones((B, 1, S_SRC), jnp.float32).at[:, :, -1].set(0.0)
    trg_mask = jnp.tril(jnp.ones((T_TRG, T_TRG), jnp.float32))[None].repeat(B, axis=0)

    out, avg_attn = decoder_forward_pallas(trg, e_outputs, src_mask, trg_mask,
                                           embed, stacked_params, alpha_f, bias_f)
    jax.block_until_ready((out, avg_attn))

    assert out.shape == (B, T_TRG, D_MODEL)
    assert avg_attn.shape == (B, HEADS, T_TRG, S_SRC)
    print("KERNEL_OK")
</pallas_src>

<mosaic_0001>
module attributes {stable_mosaic.version = 11 : i64} {
  func.func @decoder_kernel(%arg0: i32, %arg1: memref<16x32xf32, #tpu.memory_space<vmem>>, %arg2: memref<32x32xf32, #tpu.memory_space<vmem>>, %arg3: memref<2x8x8xf32, #tpu.memory_space<vmem>>, %arg4: memref<2x1x16xf32, #tpu.memory_space<vmem>>, %arg5: memref<1x1x32xf32, #tpu.memory_space<vmem>>, %arg6: memref<1x1x32xf32, #tpu.memory_space<vmem>>, %arg7: memref<1x1x32xf32, #tpu.memory_space<vmem>>, %arg8: memref<1x1x32xf32, #tpu.memory_space<vmem>>, %arg9: memref<1x1x32xf32, #tpu.memory_space<vmem>>, %arg10: memref<1x1x32xf32, #tpu.memory_space<vmem>>, %arg11: memref<1x32x96xf32, #tpu.memory_space<vmem>>, %arg12: memref<1x1x96xf32, #tpu.memory_space<vmem>>, %arg13: memref<1x32x32xf32, #tpu.memory_space<vmem>>, %arg14: memref<1x1x32xf32, #tpu.memory_space<vmem>>, %arg15: memref<1x32x32xf32, #tpu.memory_space<vmem>>, %arg16: memref<1x1x32xf32, #tpu.memory_space<vmem>>, %arg17: memref<1x32x64xf32, #tpu.memory_space<vmem>>, %arg18: memref<1x1x64xf32, #tpu.memory_space<vmem>>, %arg19: memref<1x32x32xf32, #tpu.memory_space<vmem>>, %arg20: memref<1x1x32xf32, #tpu.memory_space<vmem>>, %arg21: memref<1x32x2048xbf16, #tpu.memory_space<vmem>>, %arg22: memref<1x1x2048xf32, #tpu.memory_space<vmem>>, %arg23: memref<1x32x2048xbf16, #tpu.memory_space<vmem>>, %arg24: memref<1x1x32xf32, #tpu.memory_space<vmem>>, %arg25: memref<1x32xf32, #tpu.memory_space<vmem>>, %arg26: memref<1x32xf32, #tpu.memory_space<vmem>>, %arg27: memref<16x32xf32, #tpu.memory_space<vmem>>, %arg28: memref<4x2x8x16xf32, #tpu.memory_space<vmem>>, %arg29: memref<16x32xf32, #tpu.memory_space<vmem>>, %arg30: memref<4x2x8x16xf32, #tpu.memory_space<vmem>>) attributes {dimension_semantics = [#tpu.dimension_semantics<arbitrary>], iteration_bounds = array<i64: 2>, scalar_prefetch = 0 : i64, scratch_operands = 2 : i64, tpu.core_type = #tpu.core_type<tc>, window_params = [{pipeline_mode = #tpu.pipeline_mode<synchronous>, transform_indices = @transform_0, window_bounds = array<i64: 16, 32>}, {pipeline_mode = #tpu.pipeline_mode<synchronous>, transform_indices = @transform_1, window_bounds = array<i64: 32, 32>}, {pipeline_mode = #tpu.pipeline_mode<synchronous>, transform_indices = @transform_2, window_bounds = array<i64: 2, 8, 8>}, {pipeline_mode = #tpu.pipeline_mode<synchronous>, transform_indices = @transform_3, window_bounds = array<i64: 2, 1, 16>}, {transform_indices = @transform_4, window_bounds = array<i64: 1, 1, 32>}, {transform_indices = @transform_5, window_bounds = array<i64: 1, 1, 32>}, {transform_indices = @transform_6, window_bounds = array<i64: 1, 1, 32>}, {transform_indices = @transform_7, window_bounds = array<i64: 1, 1, 32>}, {transform_indices = @transform_8, window_bounds = array<i64: 1, 1, 32>}, {transform_indices = @transform_9, window_bounds = array<i64: 1, 1, 32>}, {transform_indices = @transform_10, window_bounds = array<i64: 1, 32, 96>}, {transform_indices = @transform_11, window_bounds = array<i64: 1, 1, 96>}, {transform_indices = @transform_12, window_bounds = array<i64: 1, 32, 32>}, {transform_indices = @transform_13, window_bounds = array<i64: 1, 1, 32>}, {transform_indices = @transform_14, window_bounds = array<i64: 1, 32, 32>}, {transform_indices = @transform_15, window_bounds = array<i64: 1, 1, 32>}, {transform_indices = @transform_16, window_bounds = array<i64: 1, 32, 64>}, {transform_indices = @transform_17, window_bounds = array<i64: 1, 1, 64>}, {transform_indices = @transform_18, window_bounds = array<i64: 1, 32, 32>}, {transform_indices = @transform_19, window_bounds = array<i64: 1, 1, 32>}, {transform_indices = @transform_20, window_bounds = array<i64: 1, 32, 2048>}, {transform_indices = @transform_21, window_bounds = array<i64: 1, 1, 2048>}, {transform_indices = @transform_22, window_bounds = array<i64: 1, 32, 2048>}, {transform_indices = @transform_23, window_bounds = array<i64: 1, 1, 32>}, {pipeline_mode = #tpu.pipeline_mode<synchronous>, transform_indices = @transform_24, window_bounds = array<i64: 1, 32>}, {pipeline_mode = #tpu.pipeline_mode<synchronous>, transform_indices = @transform_25, window_bounds = array<i64: 1, 32>}, {pipeline_mode = #tpu.pipeline_mode<synchronous>, transform_indices = @transform_26, window_bounds = array<i64: 16, 32>}, {pipeline_mode = #tpu.pipeline_mode<synchronous>, transform_indices = @transform_27, window_bounds = array<i64: 4, 2, 8, 16>}]} {
    %c0_i32 = arith.constant 0 : i32
    %0 = arith.cmpi eq, %arg0, %c0_i32 : i32
    %1 = arith.extui %0 : i1 to i32
    %c0_i32_0 = arith.constant 0 : i32
    %2 = arith.cmpi ne, %1, %c0_i32_0 : i32
    scf.if %2 {
      %c0_164 = arith.constant 0 : index
      %c0_165 = arith.constant 0 : index
      %348 = vector.load %arg1[%c0_164, %c0_165] : memref<16x32xf32, #tpu.memory_space<vmem>>, vector<16x32xf32>
      %c0_166 = arith.constant 0 : index
      %c0_167 = arith.constant 0 : index
      %349 = vector.load %arg29[%c0_166, %c0_167] : memref<16x32xf32, #tpu.memory_space<vmem>>, vector<16x32xf32>
      tpu.vector_store %arg29[%c0_166, %c0_167], %348 {strides = array<i32>} : memref<16x32xf32, #tpu.memory_space<vmem>>, vector<16x32xf32>,
      %cst_168 = arith.constant 0.000000e+00 : f32
      %350 = vector.broadcast %cst_168 : f32 to vector<4x2x8x16xf32>
      %c0_169 = arith.constant 0 : index
      %c0_170 = arith.constant 0 : index
      %c0_171 = arith.constant 0 : index
      %c0_172 = arith.constant 0 : index
      %351 = vector.load %arg30[%c0_169, %c0_170, %c0_171, %c0_172] : memref<4x2x8x16xf32, #tpu.memory_space<vmem>>, vector<4x2x8x16xf32>
      tpu.vector_store %arg30[%c0_169, %c0_170, %c0_171, %c0_172], %350 {strides = array<i32>} : memref<4x2x8x16xf32, #tpu.memory_space<vmem>>, vector<4x2x8x16xf32>,
    } else {
    }
    %c0 = arith.constant 0 : index
    %c0_1 = arith.constant 0 : index
    %3 = vector.load %arg29[%c0, %c0_1] : memref<16x32xf32, #tpu.memory_space<vmem>>, vector<16x32xf32>
    %c0_2 = arith.constant 0 : index
    %c0_3 = arith.constant 0 : index
    %c0_4 = arith.constant 0 : index
    %4 = vector.load %arg3[%c0_2, %c0_3, %c0_4] : memref<2x8x8xf32, #tpu.memory_space<vmem>>, vector<2x8x8xf32>
    %c0_5 = arith.constant 0 : index
    %c0_6 = arith.constant 0 : index
    %c0_7 = arith.constant 0 : index
    %5 = vector.load %arg4[%c0_5, %c0_6, %c0_7] : memref<2x1x16xf32, #tpu.memory_space<vmem>>, vector<2x1x16xf32>
    %c0_8 = arith.constant 0 : index
    %c0_9 = arith.constant 0 : index
    %c0_10 = arith.constant 0 : index
    %6 = vector.load %arg5[%c0_8, %c0_9, %c0_10] : memref<1x1x32xf32, #tpu.memory_space<vmem>>, vector<1x1x32xf32>
    %7 = vector.shape_cast %6 : vector<1x1x32xf32> to vector<1x32xf32>
    %c0_11 = arith.constant 0 : index
    %c0_12 = arith.constant 0 : index
    %c0_13 = arith.constant 0 : index
    %8 = vector.load %arg6[%c0_11, %c0_12, %c0_13] : memref<1x1x32xf32, #tpu.memory_space<vmem>>, vector<1x1x32xf32>
    %9 = vector.shape_cast %8 : vector<1x1x32xf32> to vector<1x32xf32>
    %cst = arith.constant dense<0.000000e+00> : vector<16xf32>
    %10 = vector.multi_reduction <add>, %3, %cst [1] : vector<16x32xf32> to vector<16xf32>
    %11 = vector.shape_cast %10 : vector<16xf32> to vector<16x1xf32>
    %cst_14 = arith.constant 3.200000e+01 : f32
    %12 = vector.broadcast %cst_14 : f32 to vector<16x1xf32>
    %13 = arith.divf %11, %12 : vector<16x1xf32>
    %14 = vector.broadcast %13 : vector<16x1xf32> to vector<16x32xf32>
    %15 = arith.subf %3, %14 : vector<16x32xf32>
    %16 = arith.mulf %15, %15 : vector<16x32xf32>
    %cst_15 = arith.constant dense<0.000000e+00> : vector<16xf32>
    %17 = vector.multi_reduction <add>, %16, %cst_15 [1] : vector<16x32xf32> to vector<16xf32>
    %18 = vector.shape_cast %17 : vector<16xf32> to vector<16x1xf32>
    %cst_16 = arith.constant 3.100000e+01 : f32
    %19 = vector.broadcast %cst_16 : f32 to vector<16x1xf32>
    %20 = arith.divf %18, %19 : vector<16x1xf32>
    %21 = math.sqrt %20 : vector<16x1xf32>
    %cst_17 = arith.constant 9.99999997E-7 : f32
    %22 = vector.broadcast %cst_17 : f32 to vector<16x1xf32>
    %23 = arith.addf %21, %22 : vector<16x1xf32>
    %24 = tpu.reciprocal %23 : vector<16x1xf32> -> vector<16x1xf32>
    %25 = vector.broadcast %7 : vector<1x32xf32> to vector<16x32xf32>
    %26 = arith.mulf %25, %15 : vector<16x32xf32>
    %27 = vector.broadcast %24 : vector<16x1xf32> to vector<16x32xf32>
    %28 = arith.mulf %26, %27 : vector<16x32xf32>
    %29 = vector.broadcast %9 : vector<1x32xf32> to vector<16x32xf32>
    %30 = arith.addf %28, %29 : vector<16x32xf32>
    %c0_18 = arith.constant 0 : index
    %c0_19 = arith.constant 0 : index
    %c0_20 = arith.constant 0 : index
    %31 = vector.load %arg11[%c0_18, %c0_19, %c0_20] : memref<1x32x96xf32, #tpu.memory_space<vmem>>, vector<1x32x96xf32>
    %32 = vector.shape_cast %31 : vector<1x32x96xf32> to vector<32x96xf32>
    %cst_21 = arith.constant dense<0.000000e+00> : vector<16x96xf32>
    %33 = tpu.matmul %30, %32, %cst_21 {dimension_numbers = #tpu.dot_dimension_numbers<[1], [0], [0], [1], [0, 0, 1, 1], [], []>} : vector<16x32xf32>, vector<32x96xf32>, vector<16x96xf32> -> vector<16x96xf32>
    %c0_22 = arith.constant 0 : index
    %c0_23 = arith.constant 0 : index
    %c0_24 = arith.constant 0 : index
    %34 = vector.load %arg12[%c0_22, %c0_23, %c0_24] : memref<1x1x96xf32, #tpu.memory_space<vmem>>, vector<1x1x96xf32>
    %35 = vector.shape_cast %34 : vector<1x1x96xf32> to vector<1x96xf32>
    %36 = vector.broadcast %35 : vector<1x96xf32> to vector<16x96xf32>
    %37 = arith.addf %33, %36 : vector<16x96xf32>
    %38 = vector.extract_strided_slice %37 {offsets = [0, 0], sizes = [16, 8], strides = [1, 1]} : vector<16x96xf32> to vector<16x8xf32>
    %39 = vector.shape_cast %38 : vector<16x8xf32> to vector<2x8x8xf32>
    %40 = vector.extract_strided_slice %37 {offsets = [0, 32], sizes = [16, 8], strides = [1, 1]} : vector<16x96xf32> to vector<16x8xf32>
    %41 = vector.shape_cast %40 : vector<16x8xf32> to vector<2x8x8xf32>
    %42 = vector.extract_strided_slice %37 {offsets = [0, 64], sizes = [16, 8], strides = [1, 1]} : vector<16x96xf32> to vector<16x8xf32>
    %43 = vector.shape_cast %42 : vector<16x8xf32> to vector<2x8x8xf32>
    "tpu.trace_start"() <{level = 10 : i32, message = "btd,bsd->bts"}> : () -> ()
    %cst_25 = arith.constant dense<0.000000e+00> : vector<2x8x8xf32>
    %44 = tpu.matmul %39, %41, %cst_25 {dimension_numbers = #tpu.dot_dimension_numbers<[2], [2], [1], [1], [0, 0, 0, 1, 1, 1], [0], [0]>} : vector<2x8x8xf32>, vector<2x8x8xf32>, vector<2x8x8xf32> -> vector<2x8x8xf32>
    "tpu.trace_stop"() : () -> ()
    %cst_26 = arith.constant 0.353553385 : f32
    %45 = vector.broadcast %cst_26 : f32 to vector<2x8x8xf32>
    %46 = arith.mulf %44, %45 : vector<2x8x8xf32>
    %47 = arith.addf %46, %4 : vector<2x8x8xf32>
    %cst_27 = arith.constant dense<0xFF800000> : vector<2x8xf32>
    %48 = vector.multi_reduction <maximumf>, %47, %cst_27 [2] : vector<2x8x8xf32> to vector<2x8xf32>
    %49 = vector.shape_cast %48 : vector<2x8xf32> to vector<2x8x1xf32>
    %50 = vector.broadcast %49 : vector<2x8x1xf32> to vector<2x8x8xf32>
    %51 = arith.subf %47, %50 : vector<2x8x8xf32>
    %52 = math.exp %51 : vector<2x8x8xf32>
    %cst_28 = arith.constant dense<0.000000e+00> : vector<2x8xf32>
    %53 = vector.multi_reduction <add>, %52, %cst_28 [2] : vector<2x8x8xf32> to vector<2x8xf32>
    %54 = vector.shape_cast %53 : vector<2x8xf32> to vector<2x8x1xf32>
    %55 = tpu.reciprocal %54 : vector<2x8x1xf32> -> vector<2x8x1xf32>
    %56 = vector.broadcast %55 : vector<2x8x1xf32> to vector<2x8x8xf32>
    %57 = arith.mulf %52, %56 : vector<2x8x8xf32>
    "tpu.trace_start"() <{level = 10 : i32, message = "bts,bsd->btd"}> : () -> ()
    %cst_29 = arith.constant dense<0.000000e+00> : vector<2x8x8xf32>
    %58 = tpu.matmul %57, %43, %cst_29 {dimension_numbers = #tpu.dot_dimension_numbers<[2], [1], [1], [2], [0, 0, 0, 1, 1, 2], [0], [0]>} : vector<2x8x8xf32>, vector<2x8x8xf32>, vector<2x8x8xf32> -> vector<2x8x8xf32>
    "tpu.trace_stop"() : () -> ()
    %59 = vector.shape_cast %58 : vector<2x8x8xf32> to vector<16x8xf32>
    %60 = vector.extract_strided_slice %37 {offsets = [0, 8], sizes = [16, 8], strides = [1, 1]} : vector<16x96xf32> to vector<16x8xf32>
    %61 = vector.shape_cast %60 : vector<16x8xf32> to vector<2x8x8xf32>
    %62 = vector.extract_strided_slice %37 {offsets = [0, 40], sizes = [16, 8], strides = [1, 1]} : vector<16x96xf32> to vector<16x8xf32>
    %63 = vector.shape_cast %62 : vector<16x8xf32> to vector<2x8x8xf32>
    %64 = vector.extract_strided_slice %37 {offsets = [0, 72], sizes = [16, 8], strides = [1, 1]} : vector<16x96xf32> to vector<16x8xf32>
    %65 = vector.shape_cast %64 : vector<16x8xf32> to vector<2x8x8xf32>
    "tpu.trace_start"() <{level = 10 : i32, message = "btd,bsd->bts"}> : () -> ()
    %cst_30 = arith.constant dense<0.000000e+00> : vector<2x8x8xf32>
    %66 = tpu.matmul %61, %63, %cst_30 {dimension_numbers = #tpu.dot_dimension_numbers<[2], [2], [1], [1], [0, 0, 0, 1, 1, 1], [0], [0]>} : vector<2x8x8xf32>, vector<2x8x8xf32>, vector<2x8x8xf32> -> vector<2x8x8xf32>
    "tpu.trace_stop"() : () -> ()
    %cst_31 = arith.constant 0.353553385 : f32
    %67 = vector.broadcast %cst_31 : f32 to vector<2x8x8xf32>
    %68 = arith.mulf %66, %67 : vector<2x8x8xf32>
    %69 = arith.addf %68, %4 : vector<2x8x8xf32>
    %cst_32 = arith.constant dense<0xFF800000> : vector<2x8xf32>
    %70 = vector.multi_reduction <maximumf>, %69, %cst_32 [2] : vector<2x8x8xf32> to vector<2x8xf32>
    %71 = vector.shape_cast %70 : vector<2x8xf32> to vector<2x8x1xf32>
    %72 = vector.broadcast %71 : vector<2x8x1xf32> to vector<2x8x8xf32>
    %73 = arith.subf %69, %72 : vector<2x8x8xf32>
    %74 = math.exp %73 : vector<2x8x8xf32>
    %cst_33 = arith.constant dense<0.000000e+00> : vector<2x8xf32>
    %75 = vector.multi_reduction <add>, %74, %cst_33 [2] : vector<2x8x8xf32> to vector<2x8xf32>
    %76 = vector.shape_cast %75 : vector<2x8xf32> to vector<2x8x1xf32>
    %77 = tpu.reciprocal %76 : vector<2x8x1xf32> -> vector<2x8x1xf32>
    %78 = vector.broadcast %77 : vector<2x8x1xf32> to vector<2x8x8xf32>
    %79 = arith.mulf %74, %78 : vector<2x8x8xf32>
    "tpu.trace_start"() <{level = 10 : i32, message = "bts,bsd->btd"}> : () -> ()
    %cst_34 = arith.constant dense<0.000000e+00> : vector<2x8x8xf32>
    %80 = tpu.matmul %79, %65, %cst_34 {dimension_numbers = #tpu.dot_dimension_numbers<[2], [1], [1], [2], [0, 0, 0, 1, 1, 2], [0], [0]>} : vector<2x8x8xf32>, vector<2x8x8xf32>, vector<2x8x8xf32> -> vector<2x8x8xf32>
    "tpu.trace_stop"() : () -> ()
    %81 = vector.shape_cast %80 : vector<2x8x8xf32> to vector<16x8xf32>
    %82 = vector.extract_strided_slice %37 {offsets = [0, 16], sizes = [16, 8], strides = [1, 1]} : vector<16x96xf32> to vector<16x8xf32>
    %83 = vector.shape_cast %82 : vector<16x8xf32> to vector<2x8x8xf32>
    %84 = vector.extract_strided_slice %37 {offsets = [0, 48], sizes = [16, 8], strides = [1, 1]} : vector<16x96xf32> to vector<16x8xf32>
    %85 = vector.shape_cast %84 : vector<16x8xf32> to vector<2x8x8xf32>
    %86 = vector.extract_strided_slice %37 {offsets = [0, 80], sizes = [16, 8], strides = [1, 1]} : vector<16x96xf32> to vector<16x8xf32>
    %87 = vector.shape_cast %86 : vector<16x8xf32> to vector<2x8x8xf32>
    "tpu.trace_start"() <{level = 10 : i32, message = "btd,bsd->bts"}> : () -> ()
    %cst_35 = arith.constant dense<0.000000e+00> : vector<2x8x8xf32>
    %88 = tpu.matmul %83, %85, %cst_35 {dimension_numbers = #tpu.dot_dimension_numbers<[2], [2], [1], [1], [0, 0, 0, 1, 1, 1], [0], [0]>} : vector<2x8x8xf32>, vector<2x8x8xf32>, vector<2x8x8xf32> -> vector<2x8x8xf32>
    "tpu.trace_stop"() : () -> ()
    %cst_36 = arith.constant 0.353553385 : f32
    %89 = vector.broadcast %cst_36 : f32 to vector<2x8x8xf32>
    %90 = arith.mulf %88, %89 : vector<2x8x8xf32>
    %91 = arith.addf %90, %4 : vector<2x8x8xf32>
    %cst_37 = arith.constant dense<0xFF800000> : vector<2x8xf32>
    %92 = vector.multi_reduction <maximumf>, %91, %cst_37 [2] : vector<2x8x8xf32> to vector<2x8xf32>
    %93 = vector.shape_cast %92 : vector<2x8xf32> to vector<2x8x1xf32>
    %94 = vector.broadcast %93 : vector<2x8x1xf32> to vector<2x8x8xf32>
    %95 = arith.subf %91, %94 : vector<2x8x8xf32>
    %96 = math.exp %95 : vector<2x8x8xf32>
    %cst_38 = arith.constant dense<0.000000e+00> : vector<2x8xf32>
    %97 = vector.multi_reduction <add>, %96, %cst_38 [2] : vector<2x8x8xf32> to vector<2x8xf32>
    %98 = vector.shape_cast %97 : vector<2x8xf32> to vector<2x8x1xf32>
    %99 = tpu.reciprocal %98 : vector<2x8x1xf32> -> vector<2x8x1xf32>
    %100 = vector.broadcast %99 : vector<2x8x1xf32> to vector<2x8x8xf32>
    %101 = arith.mulf %96, %100 : vector<2x8x8xf32>
    "tpu.trace_start"() <{level = 10 : i32, message = "bts,bsd->btd"}> : () -> ()
    %cst_39 = arith.constant dense<0.000000e+00> : vector<2x8x8xf32>
    %102 = tpu.matmul %101, %87, %cst_39 {dimension_numbers = #tpu.dot_dimension_numbers<[2], [1], [1], [2], [0, 0, 0, 1, 1, 2], [0], [0]>} : vector<2x8x8xf32>, vector<2x8x8xf32>, vector<2x8x8xf32> -> vector<2x8x8xf32>
    "tpu.trace_stop"() : () -> ()
    %103 = vector.shape_cast %102 : vector<2x8x8xf32> to vector<16x8xf32>
    %104 = vector.extract_strided_slice %37 {offsets = [0, 24], sizes = [16, 8], strides = [1, 1]} : vector<16x96xf32> to vector<16x8xf32>
    %105 = vector.shape_cast %104 : vector<16x8xf32> to vector<2x8x8xf32>
    %106 = vector.extract_strided_slice %37 {offsets = [0, 56], sizes = [16, 8], strides = [1, 1]} : vector<16x96xf32> to vector<16x8xf32>
    %107 = vector.shape_cast %106 : vector<16x8xf32> to vector<2x8x8xf32>
    %108 = vector.extract_strided_slice %37 {offsets = [0, 88], sizes = [16, 8], strides = [1, 1]} : vector<16x96xf32> to vector<16x8xf32>
    %109 = vector.shape_cast %108 : vector<16x8xf32> to vector<2x8x8xf32>
    "tpu.trace_start"() <{level = 10 : i32, message = "btd,bsd->bts"}> : () -> ()
    %cst_40 = arith.constant dense<0.000000e+00> : vector<2x8x8xf32>
    %110 = tpu.matmul %105, %107, %cst_40 {dimension_numbers = #tpu.dot_dimension_numbers<[2], [2], [1], [1], [0, 0, 0, 1, 1, 1], [0], [0]>} : vector<2x8x8xf32>, vector<2x8x8xf32>, vector<2x8x8xf32> -> vector<2x8x8xf32>
    "tpu.trace_stop"() : () -> ()
    %cst_41 = arith.constant 0.353553385 : f32
    %111 = vector.broadcast %cst_41 : f32 to vector<2x8x8xf32>
    %112 = arith.mulf %110, %111 : vector<2x8x8xf32>
    %113 = arith.addf %112, %4 : vector<2x8x8xf32>
    %cst_42 = arith.constant dense<0xFF800000> : vector<2x8xf32>
    %114 = vector.multi_reduction <maximumf>, %113, %cst_42 [2] : vector<2x8x8xf32> to vector<2x8xf32>
    %115 = vector.shape_cast %114 : vector<2x8xf32> to vector<2x8x1xf32>
    %116 = vector.broadcast %115 : vector<2x8x1xf32> to vector<2x8x8xf32>
    %117 = arith.subf %113, %116 : vector<2x8x8xf32>
    %118 = math.exp %117 : vector<2x8x8xf32>
    %cst_43 = arith.constant dense<0.000000e+00> : vector<2x8xf32>
    %119 = vector.multi_reduction <add>, %118, %cst_43 [2] : vector<2x8x8xf32> to vector<2x8xf32>
    %120 = vector.shape_cast %119 : vector<2x8xf32> to vector<2x8x1xf32>
    %121 = tpu.reciprocal %120 : vector<2x8x1xf32> -> vector<2x8x1xf32>
    %122 = vector.broadcast %121 : vector<2x8x1xf32> to vector<2x8x8xf32>
    %123 = arith.mulf %118, %122 : vector<2x8x8xf32>
    "tpu.trace_start"() <{level = 10 : i32, message = "bts,bsd->btd"}> : () -> ()
    %cst_44 = arith.constant dense<0.000000e+00> : vector<2x8x8xf32>
    %124 = tpu.matmul %123, %109, %cst_44 {dimension_numbers = #tpu.dot_dimension_numbers<[2], [1], [1], [2], [0, 0, 0, 1, 1, 2], [0], [0]>} : vector<2x8x8xf32>, vector<2x8x8xf32>, vector<2x8x8xf32> -> vector<2x8x8xf32>
    "tpu.trace_stop"() : () -> ()
    %125 = vector.shape_cast %124 : vector<2x8x8xf32> to vector<16x8xf32>
    %126 = tpu.concatenate %59, %81, %103, %125 in 1 : vector<16x8xf32>, vector<16x8xf32>, vector<16x8xf32>, vector<16x8xf32> -> vector<16x32xf32>
    %c0_45 = arith.constant 0 : index
    %c0_46 = arith.constant 0 : index
    %c0_47 = arith.constant 0 : index
    %127 = vector.load %arg13[%c0_45, %c0_46, %c0_47] : memref<1x32x32xf32, #tpu.memory_space<vmem>>, vector<1x32x32xf32>
    %128 = vector.shape_cast %127 : vector<1x32x32xf32> to vector<32x32xf32>
    %cst_48 = arith.constant dense<0.000000e+00> : vector<16x32xf32>
    %129 = tpu.matmul %126, %128, %cst_48 {dimension_numbers = #tpu.dot_dimension_numbers<[1], [0], [0], [1], [0, 0, 1, 1], [], []>} : vector<16x32xf32>, vector<32x32xf32>, vector<16x32xf32> -> vector<16x32xf32>
    %130 = arith.addf %3, %129 : vector<16x32xf32>
    %c0_49 = arith.constant 0 : index
    %c0_50 = arith.constant 0 : index
    %c0_51 = arith.constant 0 : index
    %131 = vector.load %arg14[%c0_49, %c0_50, %c0_51] : memref<1x1x32xf32, #tpu.memory_space<vmem>>, vector<1x1x32xf32>
    %132 = vector.shape_cast %131 : vector<1x1x32xf32> to vector<1x32xf32>
    %133 = vector.broadcast %132 : vector<1x32xf32> to vector<16x32xf32>
    %134 = arith.addf %130, %133 : vector<16x32xf32>
    %c0_52 = arith.constant 0 : index
    %c0_53 = arith.constant 0 : index
    %c0_54 = arith.constant 0 : index
    %135 = vector.load %arg7[%c0_52, %c0_53, %c0_54] : memref<1x1x32xf32, #tpu.memory_space<vmem>>, vector<1x1x32xf32>
    %136 = vector.shape_cast %135 : vector<1x1x32xf32> to vector<1x32xf32>
    %c0_55 = arith.constant 0 : index
    %c0_56 = arith.constant 0 : index
    %c0_57 = arith.constant 0 : index
    %137 = vector.load %arg8[%c0_55, %c0_56, %c0_57] : memref<1x1x32xf32, #tpu.memory_space<vmem>>, vector<1x1x32xf32>
    %138 = vector.shape_cast %137 : vector<1x1x32xf32> to vector<1x32xf32>
    %cst_58 = arith.constant dense<0.000000e+00> : vector<16xf32>
    %139 = vector.multi_reduction <add>, %134, %cst_58 [1] : vector<16x32xf32> to vector<16xf32>
    %140 = vector.shape_cast %139 : vector<16xf32> to vector<16x1xf32>
    %cst_59 = arith.constant 3.200000e+01 : f32
    %141 = vector.broadcast %cst_59 : f32 to vector<16x1xf32>
    %142 = arith.divf %140, %141 : vector<16x1xf32>
    %143 = vector.broadcast %142 : vector<16x1xf32> to vector<16x32xf32>
    %144 = arith.subf %134, %143 : vector<16x32xf32>
    %145 = arith.mulf %144, %144 : vector<16x32xf32>
    %cst_60 = arith.constant dense<0.000000e+00> : vector<16xf32>
    %146 = vector.multi_reduction <add>, %145, %cst_60 [1] : vector<16x32xf32> to vector<16xf32>
    %147 = vector.shape_cast %146 : vector<16xf32> to vector<16x1xf32>
    %cst_61 = arith.constant 3.100000e+01 : f32
    %148 = vector.broadcast %cst_61 : f32 to vector<16x1xf32>
    %149 = arith.divf %147, %148 : vector<16x1xf32>
    %150 = math.sqrt %149 : vector<16x1xf32>
    %cst_62 = arith.constant 9.99999997E-7 : f32
    %151 = vector.broadcast %cst_62 : f32 to vector<16x1xf32>
    %152 = arith.addf %150, %151 : vector<16x1xf32>
    %153 = tpu.reciprocal %152 : vector<16x1xf32> -> vector<16x1xf32>
    %154 = vector.broadcast %136 : vector<1x32xf32> to vector<16x32xf32>
    %155 = arith.mulf %154, %144 : vector<16x32xf32>
    %156 = vector.broadcast %153 : vector<16x1xf32> to vector<16x32xf32>
    %157 = arith.mulf %155, %156 : vector<16x32xf32>
    %158 = vector.broadcast %138 : vector<1x32xf32> to vector<16x32xf32>
    %159 = arith.addf %157, %158 : vector<16x32xf32>
    %c0_63 = arith.constant 0 : index
    %c0_64 = arith.constant 0 : index
    %c0_65 = arith.constant 0 : index
    %160 = vector.load %arg15[%c0_63, %c0_64, %c0_65] : memref<1x32x32xf32, #tpu.memory_space<vmem>>, vector<1x32x32xf32>
    %161 = vector.shape_cast %160 : vector<1x32x32xf32> to vector<32x32xf32>
    %cst_66 = arith.constant dense<0.000000e+00> : vector<16x32xf32>
    %162 = tpu.matmul %159, %161, %cst_66 {dimension_numbers = #tpu.dot_dimension_numbers<[1], [0], [0], [1], [0, 0, 1, 1], [], []>} : vector<16x32xf32>, vector<32x32xf32>, vector<16x32xf32> -> vector<16x32xf32>
    %c0_67 = arith.constant 0 : index
    %c0_68 = arith.constant 0 : index
    %c0_69 = arith.constant 0 : index
    %163 = vector.load %arg16[%c0_67, %c0_68, %c0_69] : memref<1x1x32xf32, #tpu.memory_space<vmem>>, vector<1x1x32xf32>
    %164 = vector.shape_cast %163 : vector<1x1x32xf32> to vector<1x32xf32>
    %165 = vector.broadcast %164 : vector<1x32xf32> to vector<16x32xf32>
    %166 = arith.addf %162, %165 : vector<16x32xf32>
    %c0_70 = arith.constant 0 : index
    %c0_71 = arith.constant 0 : index
    %167 = vector.load %arg2[%c0_70, %c0_71] : memref<32x32xf32, #tpu.memory_space<vmem>>, vector<32x32xf32>
    %c0_72 = arith.constant 0 : index
    %c0_73 = arith.constant 0 : index
    %c0_74 = arith.constant 0 : index
    %168 = vector.load %arg17[%c0_72, %c0_73, %c0_74] : memref<1x32x64xf32, #tpu.memory_space<vmem>>, vector<1x32x64xf32>
    %169 = vector.shape_cast %168 : vector<1x32x64xf32> to vector<32x64xf32>
    %cst_75 = arith.constant dense<0.000000e+00> : vector<32x64xf32>
    %170 = tpu.matmul %167, %169, %cst_75 {dimension_numbers = #tpu.dot_dimension_numbers<[1], [0], [0], [1], [0, 0, 1, 1], [], []>} : vector<32x32xf32>, vector<32x64xf32>, vector<32x64xf32> -> vector<32x64xf32>
    %c0_76 = arith.constant 0 : index
    %c0_77 = arith.constant 0 : index
    %c0_78 = arith.constant 0 : index
    %171 = vector.load %arg18[%c0_76, %c0_77, %c0_78] : memref<1x1x64xf32, #tpu.memory_space<vmem>>, vector<1x1x64xf32>
    %172 = vector.shape_cast %171 : vector<1x1x64xf32> to vector<1x64xf32>
    %173 = vector.broadcast %172 : vector<1x64xf32> to vector<32x64xf32>
    %174 = arith.addf %170, %173 : vector<32x64xf32>
    %175 = vector.extract_strided_slice %166 {offsets = [0, 0], sizes = [16, 8], strides = [1, 1]} : vector<16x32xf32> to vector<16x8xf32>
    %176 = vector.shape_cast %175 : vector<16x8xf32> to vector<2x8x8xf32>
    %177 = vector.extract_strided_slice %174 {offsets = [0, 0], sizes = [32, 8], strides = [1, 1]} : vector<32x64xf32> to vector<32x8xf32>
    %178 = vector.shape_cast %177 : vector<32x8xf32> to vector<2x16x8xf32>
    %179 = vector.extract_strided_slice %174 {offsets = [0, 32], sizes = [32, 8], strides = [1, 1]} : vector<32x64xf32> to vector<32x8xf32>
    %180 = vector.shape_cast %179 : vector<32x8xf32> to vector<2x16x8xf32>
    "tpu.trace_start"() <{level = 10 : i32, message = "btd,bsd->bts"}> : () -> ()
    %cst_79 = arith.constant dense<0.000000e+00> : vector<2x8x16xf32>
    %181 = tpu.matmul %176, %178, %cst_79 {dimension_numbers = #tpu.dot_dimension_numbers<[2], [2], [1], [1], [0, 0, 0, 1, 1, 1], [0], [0]>} : vector<2x8x8xf32>, vector<2x16x8xf32>, vector<2x8x16xf32> -> vector<2x8x16xf32>
    "tpu.trace_stop"() : () -> ()
    %cst_80 = arith.constant 0.353553385 : f32
    %182 = vector.broadcast %cst_80 : f32 to vector<2x8x16xf32>
    %183 = arith.mulf %181, %182 : vector<2x8x16xf32>
    %184 = vector.broadcast %5 : vector<2x1x16xf32> to vector<2x8x16xf32>
    %185 = arith.addf %183, %184 : vector<2x8x16xf32>
    %cst_81 = arith.constant dense<0xFF800000> : vector<2x8xf32>
    %186 = vector.multi_reduction <maximumf>, %185, %cst_81 [2] : vector<2x8x16xf32> to vector<2x8xf32>
    %187 = vector.shape_cast %186 : vector<2x8xf32> to vector<2x8x1xf32>
    %188 = vector.broadcast %187 : vector<2x8x1xf32> to vector<2x8x16xf32>
    %189 = arith.subf %185, %188 : vector<2x8x16xf32>
    %190 = math.exp %189 : vector<2x8x16xf32>
    %cst_82 = arith.constant dense<0.000000e+00> : vector<2x8xf32>
    %191 = vector.multi_reduction <add>, %190, %cst_82 [2] : vector<2x8x16xf32> to vector<2x8xf32>
    %192 = vector.shape_cast %191 : vector<2x8xf32> to vector<2x8x1xf32>
    %193 = tpu.reciprocal %192 : vector<2x8x1xf32> -> vector<2x8x1xf32>
    %194 = vector.broadcast %193 : vector<2x8x1xf32> to vector<2x8x16xf32>
    %195 = arith.mulf %190, %194 : vector<2x8x16xf32>
    %c0_83 = arith.constant 0 : index
    %c0_84 = arith.constant 0 : index
    %c0_85 = arith.constant 0 : index
    %c0_86 = arith.constant 0 : index
    %196 = vector.load %arg30[%c0_83, %c0_84, %c0_85, %c0_86] : memref<4x2x8x16xf32, #tpu.memory_space<vmem>>, vector<1x2x8x16xf32>
    %197 = vector.shape_cast %196 : vector<1x2x8x16xf32> to vector<2x8x16xf32>
    %198 = arith.addf %197, %195 : vector<2x8x16xf32>
    %c0_87 = arith.constant 0 : index
    %c0_88 = arith.constant 0 : index
    %c0_89 = arith.constant 0 : index
    %c0_90 = arith.constant 0 : index
    %199 = vector.load %arg30[%c0_87, %c0_88, %c0_89, %c0_90] : memref<4x2x8x16xf32, #tpu.memory_space<vmem>>, vector<1x2x8x16xf32>
    %200 = vector.shape_cast %199 : vector<1x2x8x16xf32> to vector<2x8x16xf32>
    %201 = vector.shape_cast %198 : vector<2x8x16xf32> to vector<1x2x8x16xf32>
    tpu.vector_store %arg30[%c0_87, %c0_88, %c0_89, %c0_90], %201 {strides = array<i32>} : memref<4x2x8x16xf32, #tpu.memory_space<vmem>>, vector<1x2x8x16xf32>,
    "tpu.trace_start"() <{level = 10 : i32, message = "bts,bsd->btd"}> : () -> ()
    %cst_91 = arith.constant dense<0.000000e+00> : vector<2x8x8xf32>
    %202 = tpu.matmul %195, %180, %cst_91 {dimension_numbers = #tpu.dot_dimension_numbers<[2], [1], [1], [2], [0, 0, 0, 1, 1, 2], [0], [0]>} : vector<2x8x16xf32>, vector<2x16x8xf32>, vector<2x8x8xf32> -> vector<2x8x8xf32>
    "tpu.trace_stop"() : () -> ()
    %203 = vector.shape_cast %202 : vector<2x8x8xf32> to vector<16x8xf32>
    %204 = vector.extract_strided_slice %166 {offsets = [0, 8], sizes = [16, 8], strides = [1, 1]} : vector<16x32xf32> to vector<16x8xf32>
    %205 = vector.shape_cast %204 : vector<16x8xf32> to vector<2x8x8xf32>
    %206 = vector.extract_strided_slice %174 {offsets = [0, 8], sizes = [32, 8], strides = [1, 1]} : vector<32x64xf32> to vector<32x8xf32>
    %207 = vector.shape_cast %206 : vector<32x8xf32> to vector<2x16x8xf32>
    %208 = vector.extract_strided_slice %174 {offsets = [0, 40], sizes = [32, 8], strides = [1, 1]} : vector<32x64xf32> to vector<32x8xf32>
    %209 = vector.shape_cast %208 : vector<32x8xf32> to vector<2x16x8xf32>
    "tpu.trace_start"() <{level = 10 : i32, message = "btd,bsd->bts"}> : () -> ()
    %cst_92 = arith.constant dense<0.000000e+00> : vector<2x8x16xf32>
    %210 = tpu.matmul %205, %207, %cst_92 {dimension_numbers = #tpu.dot_dimension_numbers<[2], [2], [1], [1], [0, 0, 0, 1, 1, 1], [0], [0]>} : vector<2x8x8xf32>, vector<2x16x8xf32>, vector<2x8x16xf32> -> vector<2x8x16xf32>
    "tpu.trace_stop"() : () -> ()
    %cst_93 = arith.constant 0.353553385 : f32
    %211 = vector.broadcast %cst_93 : f32 to vector<2x8x16xf32>
    %212 = arith.mulf %210, %211 : vector<2x8x16xf32>
    %213 = vector.broadcast %5 : vector<2x1x16xf32> to vector<2x8x16xf32>
    %214 = arith.addf %212, %213 : vector<2x8x16xf32>
    %cst_94 = arith.constant dense<0xFF800000> : vector<2x8xf32>
    %215 = vector.multi_reduction <maximumf>, %214, %cst_94 [2] : vector<2x8x16xf32> to vector<2x8xf32>
    %216 = vector.shape_cast %215 : vector<2x8xf32> to vector<2x8x1xf32>
    %217 = vector.broadcast %216 : vector<2x8x1xf32> to vector<2x8x16xf32>
    %218 = arith.subf %214, %217 : vector<2x8x16xf32>
    %219 = math.exp %218 : vector<2x8x16xf32>
    %cst_95 = arith.constant dense<0.000000e+00> : vector<2x8xf32>
    %220 = vector.multi_reduction <add>, %219, %cst_95 [2] : vector<2x8x16xf32> to vector<2x8xf32>
    %221 = vector.shape_cast %220 : vector<2x8xf32> to vector<2x8x1xf32>
    %222 = tpu.reciprocal %221 : vector<2x8x1xf32> -> vector<2x8x1xf32>
    %223 = vector.broadcast %222 : vector<2x8x1xf32> to vector<2x8x16xf32>
    %224 = arith.mulf %219, %223 : vector<2x8x16xf32>
    %c1 = arith.constant 1 : index
    %c0_96 = arith.constant 0 : index
    %c0_97 = arith.constant 0 : index
    %c0_98 = arith.constant 0 : index
    %225 = vector.load %arg30[%c1, %c0_96, %c0_97, %c0_98] : memref<4x2x8x16xf32, #tpu.memory_space<vmem>>, vector<1x2x8x16xf32>
    %226 = vector.shape_cast %225 : vector<1x2x8x16xf32> to vector<2x8x16xf32>
    %227 = arith.addf %226, %224 : vector<2x8x16xf32>
    %c1_99 = arith.constant 1 : index
    %c0_100 = arith.constant 0 : index
    %c0_101 = arith.constant 0 : index
    %c0_102 = arith.constant 0 : index
    %228 = vector.load %arg30[%c1_99, %c0_100, %c0_101, %c0_102] : memref<4x2x8x16xf32, #tpu.memory_space<vmem>>, vector<1x2x8x16xf32>
    %229 = vector.shape_cast %228 : vector<1x2x8x16xf32> to vector<2x8x16xf32>
    %230 = vector.shape_cast %227 : vector<2x8x16xf32> to vector<1x2x8x16xf32>
    tpu.vector_store %arg30[%c1_99, %c0_100, %c0_101, %c0_102], %230 {strides = array<i32>} : memref<4x2x8x16xf32, #tpu.memory_space<vmem>>, vector<1x2x8x16xf32>,
    "tpu.trace_start"() <{level = 10 : i32, message = "bts,bsd->btd"}> : () -> ()
    %cst_103 = arith.constant dense<0.000000e+00> : vector<2x8x8xf32>
    %231 = tpu.matmul %224, %209, %cst_103 {dimension_numbers = #tpu.dot_dimension_numbers<[2], [1], [1], [2], [0, 0, 0, 1, 1, 2], [0], [0]>} : vector<2x8x16xf32>, vector<2x16x8xf32>, vector<2x8x8xf32> -> vector<2x8x8xf32>
    "tpu.trace_stop"() : () -> ()
    %232 = vector.shape_cast %231 : vector<2x8x8xf32> to vector<16x8xf32>
    %233 = vector.extract_strided_slice %166 {offsets = [0, 16], sizes = [16, 8], strides = [1, 1]} : vector<16x32xf32> to vector<16x8xf32>
    %234 = vector.shape_cast %233 : vector<16x8xf32> to vector<2x8x8xf32>
    %235 = vector.extract_strided_slice %174 {offsets = [0, 16], sizes = [32, 8], strides = [1, 1]} : vector<32x64xf32> to vector<32x8xf32>
    %236 = vector.shape_cast %235 : vector<32x8xf32> to vector<2x16x8xf32>
    %237 = vector.extract_strided_slice %174 {offsets = [0, 48], sizes = [32, 8], strides = [1, 1]} : vector<32x64xf32> to vector<32x8xf32>
    %238 = vector.shape_cast %237 : vector<32x8xf32> to vector<2x16x8xf32>
    "tpu.trace_start"() <{level = 10 : i32, message = "btd,bsd->bts"}> : () -> ()
    %cst_104 = arith.constant dense<0.000000e+00> : vector<2x8x16xf32>
    %239 = tpu.matmul %234, %236, %cst_104 {dimension_numbers = #tpu.dot_dimension_numbers<[2], [2], [1], [1], [0, 0, 0, 1, 1, 1], [0], [0]>} : vector<2x8x8xf32>, vector<2x16x8xf32>, vector<2x8x16xf32> -> vector<2x8x16xf32>
    "tpu.trace_stop"() : () -> ()
    %cst_105 = arith.constant 0.353553385 : f32
    %240 = vector.broadcast %cst_105 : f32 to vector<2x8x16xf32>
    %241 = arith.mulf %239, %240 : vector<2x8x16xf32>
    %242 = vector.broadcast %5 : vector<2x1x16xf32> to vector<2x8x16xf32>
    %243 = arith.addf %241, %242 : vector<2x8x16xf32>
    %cst_106 = arith.constant dense<0xFF800000> : vector<2x8xf32>
    %244 = vector.multi_reduction <maximumf>, %243, %cst_106 [2] : vector<2x8x16xf32> to vector<2x8xf32>
    %245 = vector.shape_cast %244 : vector<2x8xf32> to vector<2x8x1xf32>
    %246 = vector.broadcast %245 : vector<2x8x1xf32> to vector<2x8x16xf32>
    %247 = arith.subf %243, %246 : vector<2x8x16xf32>
    %248 = math.exp %247 : vector<2x8x16xf32>
    %cst_107 = arith.constant dense<0.000000e+00> : vector<2x8xf32>
    %249 = vector.multi_reduction <add>, %248, %cst_107 [2] : vector<2x8x16xf32> to vector<2x8xf32>
    %250 = vector.shape_cast %249 : vector<2x8xf32> to vector<2x8x1xf32>
    %251 = tpu.reciprocal %250 : vector<2x8x1xf32> -> vector<2x8x1xf32>
    %252 = vector.broadcast %251 : vector<2x8x1xf32> to vector<2x8x16xf32>
    %253 = arith.mulf %248, %252 : vector<2x8x16xf32>
    %c2 = arith.constant 2 : index
    %c0_108 = arith.constant 0 : index
    %c0_109 = arith.constant 0 : index
    %c0_110 = arith.constant 0 : index
    %254 = vector.load %arg30[%c2, %c0_108, %c0_109, %c0_110] : memref<4x2x8x16xf32, #tpu.memory_space<vmem>>, vector<1x2x8x16xf32>
    %255 = vector.shape_cast %254 : vector<1x2x8x16xf32> to vector<2x8x16xf32>
    %256 = arith.addf %255, %253 : vector<2x8x16xf32>
    %c2_111 = arith.constant 2 : index
    %c0_112 = arith.constant 0 : index
    %c0_113 = arith.constant 0 : index
    %c0_114 = arith.constant 0 : index
    %257 = vector.load %arg30[%c2_111, %c0_112, %c0_113, %c0_114] : memref<4x2x8x16xf32, #tpu.memory_space<vmem>>, vector<1x2x8x16xf32>
    %258 = vector.shape_cast %257 : vector<1x2x8x16xf32> to vector<2x8x16xf32>
    %259 = vector.shape_cast %256 : vector<2x8x16xf32> to vector<1x2x8x16xf32>
    tpu.vector_store %arg30[%c2_111, %c0_112, %c0_113, %c0_114], %259 {strides = array<i32>} : memref<4x2x8x16xf32, #tpu.memory_space<vmem>>, vector<1x2x8x16xf32>,
    "tpu.trace_start"() <{level = 10 : i32, message = "bts,bsd->btd"}> : () -> ()
    %cst_115 = arith.constant dense<0.000000e+00> : vector<2x8x8xf32>
    %260 = tpu.matmul %253, %238, %cst_115 {dimension_numbers = #tpu.dot_dimension_numbers<[2], [1], [1], [2], [0, 0, 0, 1, 1, 2], [0], [0]>} : vector<2x8x16xf32>, vector<2x16x8xf32>, vector<2x8x8xf32> -> vector<2x8x8xf32>
    "tpu.trace_stop"() : () -> ()
    %261 = vector.shape_cast %260 : vector<2x8x8xf32> to vector<16x8xf32>
    %262 = vector.extract_strided_slice %166 {offsets = [0, 24], sizes = [16, 8], strides = [1, 1]} : vector<16x32xf32> to vector<16x8xf32>
    %263 = vector.shape_cast %262 : vector<16x8xf32> to vector<2x8x8xf32>
    %264 = vector.extract_strided_slice %174 {offsets = [0, 24], sizes = [32, 8], strides = [1, 1]} : vector<32x64xf32> to vector<32x8xf32>
    %265 = vector.shape_cast %264 : vector<32x8xf32> to vector<2x16x8xf32>
    %266 = vector.extract_strided_slice %174 {offsets = [0, 56], sizes = [32, 8], strides = [1, 1]} : vector<32x64xf32> to vector<32x8xf32>
    %267 = vector.shape_cast %266 : vector<32x8xf32> to vector<2x16x8xf32>
    "tpu.trace_start"() <{level = 10 : i32, message = "btd,bsd->bts"}> : () -> ()
    %cst_116 = arith.constant dense<0.000000e+00> : vector<2x8x16xf32>
    %268 = tpu.matmul %263, %265, %cst_116 {dimension_numbers = #tpu.dot_dimension_numbers<[2], [2], [1], [1], [0, 0, 0, 1, 1, 1], [0], [0]>} : vector<2x8x8xf32>, vector<2x16x8xf32>, vector<2x8x16xf32> -> vector<2x8x16xf32>
    "tpu.trace_stop"() : () -> ()
    %cst_117 = arith.constant 0.353553385 : f32
    %269 = vector.broadcast %cst_117 : f32 to vector<2x8x16xf32>
    %270 = arith.mulf %268, %269 : vector<2x8x16xf32>
    %271 = vector.broadcast %5 : vector<2x1x16xf32> to vector<2x8x16xf32>
    %272 = arith.addf %270, %271 : vector<2x8x16xf32>
    %cst_118 = arith.constant dense<0xFF800000> : vector<2x8xf32>
    %273 = vector.multi_reduction <maximumf>, %272, %cst_118 [2] : vector<2x8x16xf32> to vector<2x8xf32>
    %274 = vector.shape_cast %273 : vector<2x8xf32> to vector<2x8x1xf32>
    %275 = vector.broadcast %274 : vector<2x8x1xf32> to vector<2x8x16xf32>
    %276 = arith.subf %272, %275 : vector<2x8x16xf32>
    %277 = math.exp %276 : vector<2x8x16xf32>
    %cst_119 = arith.constant dense<0.000000e+00> : vector<2x8xf32>
    %278 = vector.multi_reduction <add>, %277, %cst_119 [2] : vector<2x8x16xf32> to vector<2x8xf32>
    %279 = vector.shape_cast %278 : vector<2x8xf32> to vector<2x8x1xf32>
    %280 = tpu.reciprocal %279 : vector<2x8x1xf32> -> vector<2x8x1xf32>
    %281 = vector.broadcast %280 : vector<2x8x1xf32> to vector<2x8x16xf32>
    %282 = arith.mulf %277, %281 : vector<2x8x16xf32>
    %c3 = arith.constant 3 : index
    %c0_120 = arith.constant 0 : index
    %c0_121 = arith.constant 0 : index
    %c0_122 = arith.constant 0 : index
    %283 = vector.load %arg30[%c3, %c0_120, %c0_121, %c0_122] : memref<4x2x8x16xf32, #tpu.memory_space<vmem>>, vector<1x2x8x16xf32>
    %284 = vector.shape_cast %283 : vector<1x2x8x16xf32> to vector<2x8x16xf32>
    %285 = arith.addf %284, %282 : vector<2x8x16xf32>
    %c3_123 = arith.constant 3 : index
    %c0_124 = arith.constant 0 : index
    %c0_125 = arith.constant 0 : index
    %c0_126 = arith.constant 0 : index
    %286 = vector.load %arg30[%c3_123, %c0_124, %c0_125, %c0_126] : memref<4x2x8x16xf32, #tpu.memory_space<vmem>>, vector<1x2x8x16xf32>
    %287 = vector.shape_cast %286 : vector<1x2x8x16xf32> to vector<2x8x16xf32>
    %288 = vector.shape_cast %285 : vector<2x8x16xf32> to vector<1x2x8x16xf32>
    tpu.vector_store %arg30[%c3_123, %c0_124, %c0_125, %c0_126], %288 {strides = array<i32>} : memref<4x2x8x16xf32, #tpu.memory_space<vmem>>, vector<1x2x8x16xf32>,
    "tpu.trace_start"() <{level = 10 : i32, message = "bts,bsd->btd"}> : () -> ()
    %cst_127 = arith.constant dense<0.000000e+00> : vector<2x8x8xf32>
    %289 = tpu.matmul %282, %267, %cst_127 {dimension_numbers = #tpu.dot_dimension_numbers<[2], [1], [1], [2], [0, 0, 0, 1, 1, 2], [0], [0]>} : vector<2x8x16xf32>, vector<2x16x8xf32>, vector<2x8x8xf32> -> vector<2x8x8xf32>
    "tpu.trace_stop"() : () -> ()
    %290 = vector.shape_cast %289 : vector<2x8x8xf32> to vector<16x8xf32>
    %291 = tpu.concatenate %203, %232, %261, %290 in 1 : vector<16x8xf32>, vector<16x8xf32>, vector<16x8xf32>, vector<16x8xf32> -> vector<16x32xf32>
    %c0_128 = arith.constant 0 : index
    %c0_129 = arith.constant 0 : index
    %c0_130 = arith.constant 0 : index
    %292 = vector.load %arg19[%c0_128, %c0_129, %c0_130] : memref<1x32x32xf32, #tpu.memory_space<vmem>>, vector<1x32x32xf32>
    %293 = vector.shape_cast %292 : vector<1x32x32xf32> to vector<32x32xf32>
    %cst_131 = arith.constant dense<0.000000e+00> : vector<16x32xf32>
    %294 = tpu.matmul %291, %293, %cst_131 {dimension_numbers = #tpu.dot_dimension_numbers<[1], [0], [0], [1], [0, 0, 1, 1], [], []>} : vector<16x32xf32>, vector<32x32xf32>, vector<16x32xf32> -> vector<16x32xf32>
    %295 = arith.addf %134, %294 : vector<16x32xf32>
    %c0_132 = arith.constant 0 : index
    %c0_133 = arith.constant 0 : index
    %c0_134 = arith.constant 0 : index
    %296 = vector.load %arg20[%c0_132, %c0_133, %c0_134] : memref<1x1x32xf32, #tpu.memory_space<vmem>>, vector<1x1x32xf32>
    %297 = vector.shape_cast %296 : vector<1x1x32xf32> to vector<1x32xf32>
    %298 = vector.broadcast %297 : vector<1x32xf32> to vector<16x32xf32>
    %299 = arith.addf %295, %298 : vector<16x32xf32>
    %c0_135 = arith.constant 0 : index
    %c0_136 = arith.constant 0 : index
    %c0_137 = arith.constant 0 : index
    %300 = vector.load %arg9[%c0_135, %c0_136, %c0_137] : memref<1x1x32xf32, #tpu.memory_space<vmem>>, vector<1x1x32xf32>
    %301 = vector.shape_cast %300 : vector<1x1x32xf32> to vector<1x32xf32>
    %c0_138 = arith.constant 0 : index
    %c0_139 = arith.constant 0 : index
    %c0_140 = arith.constant 0 : index
    %302 = vector.load %arg10[%c0_138, %c0_139, %c0_140] : memref<1x1x32xf32, #tpu.memory_space<vmem>>, vector<1x1x32xf32>
    %303 = vector.shape_cast %302 : vector<1x1x32xf32> to vector<1x32xf32>
    %cst_141 = arith.constant dense<0.000000e+00> : vector<16xf32>
    %304 = vector.multi_reduction <add>, %299, %cst_141 [1] : vector<16x32xf32> to vector<16xf32>
    %305 = vector.shape_cast %304 : vector<16xf32> to vector<16x1xf32>
    %cst_142 = arith.constant 3.200000e+01 : f32
    %306 = vector.broadcast %cst_142 : f32 to vector<16x1xf32>
    %307 = arith.divf %305, %306 : vector<16x1xf32>
    %308 = vector.broadcast %307 : vector<16x1xf32> to vector<16x32xf32>
    %309 = arith.subf %299, %308 : vector<16x32xf32>
    %310 = arith.mulf %309, %309 : vector<16x32xf32>
    %cst_143 = arith.constant dense<0.000000e+00> : vector<16xf32>
    %311 = vector.multi_reduction <add>, %310, %cst_143 [1] : vector<16x32xf32> to vector<16xf32>
    %312 = vector.shape_cast %311 : vector<16xf32> to vector<16x1xf32>
    %cst_144 = arith.constant 3.100000e+01 : f32
    %313 = vector.broadcast %cst_144 : f32 to vector<16x1xf32>
    %314 = arith.divf %312, %313 : vector<16x1xf32>
    %315 = math.sqrt %314 : vector<16x1xf32>
    %cst_145 = arith.constant 9.99999997E-7 : f32
    %316 = vector.broadcast %cst_145 : f32 to vector<16x1xf32>
    %317 = arith.addf %315, %316 : vector<16x1xf32>
    %318 = tpu.reciprocal %317 : vector<16x1xf32> -> vector<16x1xf32>
    %319 = vector.broadcast %301 : vector<1x32xf32> to vector<16x32xf32>
    %320 = arith.mulf %319, %309 : vector<16x32xf32>
    %321 = vector.broadcast %318 : vector<16x1xf32> to vector<16x32xf32>
    %322 = arith.mulf %320, %321 : vector<16x32xf32>
    %323 = vector.broadcast %303 : vector<1x32xf32> to vector<16x32xf32>
    %324 = arith.addf %322, %323 : vector<16x32xf32>
    %325 = arith.truncf %324 : vector<16x32xf32> to vector<16x32xbf16>
    %c0_146 = arith.constant 0 : index
    %c0_147 = arith.constant 0 : index
    %c0_148 = arith.constant 0 : index
    %326 = vector.load %arg21[%c0_146, %c0_147, %c0_148] : memref<1x32x2048xbf16, #tpu.memory_space<vmem>>, vector<1x32x2048xbf16>
    %327 = vector.shape_cast %326 : vector<1x32x2048xbf16> to vector<32x2048xbf16>
    %cst_149 = arith.constant dense<0.000000e+00> : vector<16x2048xf32>
    %328 = tpu.matmul %325, %327, %cst_149 {dimension_numbers = #tpu.dot_dimension_numbers<[1], [0], [0], [1], [0, 0, 1, 1], [], []>} : vector<16x32xbf16>, vector<32x2048xbf16>, vector<16x2048xf32> -> vector<16x2048xf32>
    %c0_150 = arith.constant 0 : index
    %c0_151 = arith.constant 0 : index
    %c0_152 = arith.constant 0 : index
    %329 = vector.load %arg22[%c0_150, %c0_151, %c0_152] : memref<1x1x2048xf32, #tpu.memory_space<vmem>>, vector<1x1x2048xf32>
    %330 = vector.shape_cast %329 : vector<1x1x2048xf32> to vector<1x2048xf32>
    %331 = vector.broadcast %330 : vector<1x2048xf32> to vector<16x2048xf32>
    %332 = arith.addf %328, %331 : vector<16x2048xf32>
    %cst_153 = arith.constant 0.000000e+00 : f32
    %333 = vector.broadcast %cst_153 : f32 to vector<16x2048xf32>
    %334 = arith.maximumf %332, %333 : vector<16x2048xf32>
    %335 = arith.truncf %334 : vector<16x2048xf32> to vector<16x2048xbf16>
    %c0_154 = arith.constant 0 : index
    %c0_155 = arith.constant 0 : index
    %c0_156 = arith.constant 0 : index
    %336 = vector.load %arg23[%c0_154, %c0_155, %c0_156] : memref<1x32x2048xbf16, #tpu.memory_space<vmem>>, vector<1x32x2048xbf16>
    %337 = vector.shape_cast %336 : vector<1x32x2048xbf16> to vector<32x2048xbf16>
    %cst_157 = arith.constant dense<0.000000e+00> : vector<16x32xf32>
    %338 = tpu.matmul %335, %337, %cst_157 {dimension_numbers = #tpu.dot_dimension_numbers<[1], [1], [0], [0], [0, 0, 1, 0], [], []>} : vector<16x2048xbf16>, vector<32x2048xbf16>, vector<16x32xf32> -> vector<16x32xf32>
    %c0_158 = arith.constant 0 : index
    %c0_159 = arith.constant 0 : index
    %c0_160 = arith.constant 0 : index
    %339 = vector.load %arg24[%c0_158, %c0_159, %c0_160] : memref<1x1x32xf32, #tpu.memory_space<vmem>>, vector<1x1x32xf32>
    %340 = vector.shape_cast %339 : vector<1x1x32xf32> to vector<1x32xf32>
    %341 = vector.broadcast %340 : vector<1x32xf32> to vector<16x32xf32>
    %342 = arith.addf %338, %341 : vector<16x32xf32>
    %343 = arith.addf %299, %342 : vector<16x32xf32>
    %c0_161 = arith.constant 0 : index
    %c0_162 = arith.constant 0 : index
    %344 = vector.load %arg29[%c0_161, %c0_162] : memref<16x32xf32, #tpu.memory_space<vmem>>, vector<16x32xf32>
    tpu.vector_store %arg29[%c0_161, %c0_162], %343 {strides = array<i32>} : memref<16x32xf32, #tpu.memory_space<vmem>>, vector<16x32xf32>,
    %c1_i32 = arith.constant 1 : i32
    %345 = arith.cmpi eq, %arg0, %c1_i32 : i32
    %346 = arith.extui %345 : i1 to i32
    %c0_i32_163 = arith.constant 0 : i32
    %347 = arith.cmpi ne, %346, %c0_i32_163 : i32
    scf.if %347 {
      %c0_164 = arith.constant 0 : index
      %c0_165 = arith.constant 0 : index
      %348 = vector.load %arg25[%c0_164, %c0_165] : memref<1x32xf32, #tpu.memory_space<vmem>>, vector<1x32xf32>
      %c0_166 = arith.constant 0 : index
      %c0_167 = arith.constant 0 : index
      %349 = vector.load %arg26[%c0_166, %c0_167] : memref<1x32xf32, #tpu.memory_space<vmem>>, vector<1x32xf32>
      %cst_168 = arith.constant dense<0.000000e+00> : vector<16xf32>
      %350 = vector.multi_reduction <add>, %343, %cst_168 [1] : vector<16x32xf32> to vector<16xf32>
      %351 = vector.shape_cast %350 : vector<16xf32> to vector<16x1xf32>
      %cst_169 = arith.constant 3.200000e+01 : f32
      %352 = vector.broadcast %cst_169 : f32 to vector<16x1xf32>
      %353 = arith.divf %351, %352 : vector<16x1xf32>
      %354 = vector.broadcast %353 : vector<16x1xf32> to vector<16x32xf32>
      %355 = arith.subf %343, %354 : vector<16x32xf32>
      %356 = arith.mulf %355, %355 : vector<16x32xf32>
      %cst_170 = arith.constant dense<0.000000e+00> : vector<16xf32>
      %357 = vector.multi_reduction <add>, %356, %cst_170 [1] : vector<16x32xf32> to vector<16xf32>
      %358 = vector.shape_cast %357 : vector<16xf32> to vector<16x1xf32>
      %cst_171 = arith.constant 3.100000e+01 : f32
      %359 = vector.broadcast %cst_171 : f32 to vector<16x1xf32>
      %360 = arith.divf %358, %359 : vector<16x1xf32>
      %361 = math.sqrt %360 : vector<16x1xf32>
      %cst_172 = arith.constant 9.99999997E-7 : f32
      %362 = vector.broadcast %cst_172 : f32 to vector<16x1xf32>
      %363 = arith.addf %361, %362 : vector<16x1xf32>
      %364 = tpu.reciprocal %363 : vector<16x1xf32> -> vector<16x1xf32>
      %365 = vector.broadcast %348 : vector<1x32xf32> to vector<16x32xf32>
      %366 = arith.mulf %365, %355 : vector<16x32xf32>
      %367 = vector.broadcast %364 : vector<16x1xf32> to vector<16x32xf32>
      %368 = arith.mulf %366, %367 : vector<16x32xf32>
      %369 = vector.broadcast %349 : vector<1x32xf32> to vector<16x32xf32>
      %370 = arith.addf %368, %369 : vector<16x32xf32>
      %c0_173 = arith.constant 0 : index
      %c0_174 = arith.constant 0 : index
      %371 = vector.load %arg27[%c0_173, %c0_174] : memref<16x32xf32, #tpu.memory_space<vmem>>, vector<16x32xf32>
      tpu.vector_store %arg27[%c0_173, %c0_174], %370 {strides = array<i32>} : memref<16x32xf32, #tpu.memory_space<vmem>>, vector<16x32xf32>,
      %c0_175 = arith.constant 0 : index
      %c0_176 = arith.constant 0 : index
      %c0_177 = arith.constant 0 : index
      %c0_178 = arith.constant 0 : index
      %372 = vector.load %arg30[%c0_175, %c0_176, %c0_177, %c0_178] : memref<4x2x8x16xf32, #tpu.memory_space<vmem>>, vector<4x2x8x16xf32>
      %cst_179 = arith.constant 5.000000e-01 : f32
      %373 = vector.broadcast %cst_179 : f32 to vector<4x2x8x16xf32>
      %374 = arith.mulf %372, %373 : vector<4x2x8x16xf32>
      %c0_180 = arith.constant 0 : index
      %c0_181 = arith.constant 0 : index
      %c0_182 = arith.constant 0 : index
      %c0_183 = arith.constant 0 : index
      %375 = vector.load %arg28[%c0_180, %c0_181, %c0_182, %c0_183] : memref<4x2x8x16xf32, #tpu.memory_space<vmem>>, vector<4x2x8x16xf32>
      tpu.vector_store %arg28[%c0_180, %c0_181, %c0_182, %c0_183], %374 {strides = array<i32>} : memref<4x2x8x16xf32, #tpu.memory_space<vmem>>, vector<4x2x8x16xf32>,
    } else {
    }
    return
  }
  func.func @transform_0(%arg0: i32) -> (i32, i32) {
    %c0_i32 = arith.constant 0 : i32
    %c0_i32_0 = arith.constant 0 : i32
    %c0_i32_1 = arith.constant 0 : i32
    return %c0_i32, %c0_i32_0 : i32, i32
  }
  func.func @transform_1(%arg0: i32) -> (i32, i32) {
    %c0_i32 = arith.constant 0 : i32
    %c0_i32_0 = arith.constant 0 : i32
    %c0_i32_1 = arith.constant 0 : i32
    return %c0_i32, %c0_i32_0 : i32, i32
  }
  func.func @transform_2(%arg0: i32) -> (i32, i32, i32) {
    %c0_i32 = arith.constant 0 : i32
    %c0_i32_0 = arith.constant 0 : i32
    %c0_i32_1 = arith.constant 0 : i32
    %c0_i32_2 = arith.constant 0 : i32
    return %c0_i32, %c0_i32_0, %c0_i32_1 : i32, i32, i32
  }
  func.func @transform_3(%arg0: i32) -> (i32, i32, i32) {
    %c0_i32 = arith.constant 0 : i32
    %c0_i32_0 = arith.constant 0 : i32
    %c0_i32_1 = arith.constant 0 : i32
    %c0_i32_2 = arith.constant 0 : i32
    return %c0_i32, %c0_i32_0, %c0_i32_1 : i32, i32, i32
  }
  func.func @transform_4(%arg0: i32) -> (i32, i32, i32) {
    %c0_i32 = arith.constant 0 : i32
    %c0_i32_0 = arith.constant 0 : i32
    %c0_i32_1 = arith.constant 0 : i32
    return %arg0, %c0_i32, %c0_i32_0 : i32, i32, i32
  }
  func.func @transform_5(%arg0: i32) -> (i32, i32, i32) {
    %c0_i32 = arith.constant 0 : i32
    %c0_i32_0 = arith.constant 0 : i32
    %c0_i32_1 = arith.constant 0 : i32
    return %arg0, %c0_i32, %c0_i32_0 : i32, i32, i32
  }
  func.func @transform_6(%arg0: i32) -> (i32, i32, i32) {
    %c0_i32 = arith.constant 0 : i32
    %c0_i32_0 = arith.constant 0 : i32
    %c0_i32_1 = arith.constant 0 : i32
    return %arg0, %c0_i32, %c0_i32_0 : i32, i32, i32
  }
  func.func @transform_7(%arg0: i32) -> (i32, i32, i32) {
    %c0_i32 = arith.constant 0 : i32
    %c0_i32_0 = arith.constant 0 : i32
    %c0_i32_1 = arith.constant 0 : i32
    return %arg0, %c0_i32, %c0_i32_0 : i32, i32, i32
  }
  func.func @transform_8(%arg0: i32) -> (i32, i32, i32) {
    %c0_i32 = arith.constant 0 : i32
    %c0_i32_0 = arith.constant 0 : i32
    %c0_i32_1 = arith.constant 0 : i32
    return %arg0, %c0_i32, %c0_i32_0 : i32, i32, i32
  }
  func.func @transform_9(%arg0: i32) -> (i32, i32, i32) {
    %c0_i32 = arith.constant 0 : i32
    %c0_i32_0 = arith.constant 0 : i32
    %c0_i32_1 = arith.constant 0 : i32
    return %arg0, %c0_i32, %c0_i32_0 : i32, i32, i32
  }
  func.func @transform_10(%arg0: i32) -> (i32, i32, i32) {
    %c0_i32 = arith.constant 0 : i32
    %c0_i32_0 = arith.constant 0 : i32
    %c0_i32_1 = arith.constant 0 : i32
    return %arg0, %c0_i32, %c0_i32_0 : i32, i32, i32
  }
  func.func @transform_11(%arg0: i32) -> (i32, i32, i32) {
    %c0_i32 = arith.constant 0 : i32
    %c0_i32_0 = arith.constant 0 : i32
    %c0_i32_1 = arith.constant 0 : i32
    return %arg0, %c0_i32, %c0_i32_0 : i32, i32, i32
  }
  func.func @transform_12(%arg0: i32) -> (i32, i32, i32) {
    %c0_i32 = arith.constant 0 : i32
    %c0_i32_0 = arith.constant 0 : i32
    %c0_i32_1 = arith.constant 0 : i32
    return %arg0, %c0_i32, %c0_i32_0 : i32, i32, i32
  }
  func.func @transform_13(%arg0: i32) -> (i32, i32, i32) {
    %c0_i32 = arith.constant 0 : i32
    %c0_i32_0 = arith.constant 0 : i32
    %c0_i32_1 = arith.constant 0 : i32
    return %arg0, %c0_i32, %c0_i32_0 : i32, i32, i32
  }
  func.func @transform_14(%arg0: i32) -> (i32, i32, i32) {
    %c0_i32 = arith.constant 0 : i32
    %c0_i32_0 = arith.constant 0 : i32
    %c0_i32_1 = arith.constant 0 : i32
    return %arg0, %c0_i32, %c0_i32_0 : i32, i32, i32
  }
  func.func @transform_15(%arg0: i32) -> (i32, i32, i32) {
    %c0_i32 = arith.constant 0 : i32
    %c0_i32_0 = arith.constant 0 : i32
    %c0_i32_1 = arith.constant 0 : i32
    return %arg0, %c0_i32, %c0_i32_0 : i32, i32, i32
  }
  func.func @transform_16(%arg0: i32) -> (i32, i32, i32) {
    %c0_i32 = arith.constant 0 : i32
    %c0_i32_0 = arith.constant 0 : i32
    %c0_i32_1 = arith.constant 0 : i32
    return %arg0, %c0_i32, %c0_i32_0 : i32, i32, i32
  }
  func.func @transform_17(%arg0: i32) -> (i32, i32, i32) {
    %c0_i32 = arith.constant 0 : i32
    %c0_i32_0 = arith.constant 0 : i32
    %c0_i32_1 = arith.constant 0 : i32
    return %arg0, %c0_i32, %c0_i32_0 : i32, i32, i32
  }
  func.func @transform_18(%arg0: i32) -> (i32, i32, i32) {
    %c0_i32 = arith.constant 0 : i32
    %c0_i32_0 = arith.constant 0 : i32
    %c0_i32_1 = arith.constant 0 : i32
    return %arg0, %c0_i32, %c0_i32_0 : i32, i32, i32
  }
  func.func @transform_19(%arg0: i32) -> (i32, i32, i32) {
    %c0_i32 = arith.constant 0 : i32
    %c0_i32_0 = arith.constant 0 : i32
    %c0_i32_1 = arith.constant 0 : i32
    return %arg0, %c0_i32, %c0_i32_0 : i32, i32, i32
  }
  func.func @transform_20(%arg0: i32) -> (i32, i32, i32) {
    %c0_i32 = arith.constant 0 : i32
    %c0_i32_0 = arith.constant 0 : i32
    %c0_i32_1 = arith.constant 0 : i32
    return %arg0, %c0_i32, %c0_i32_0 : i32, i32, i32
  }
  func.func @transform_21(%arg0: i32) -> (i32, i32, i32) {
    %c0_i32 = arith.constant 0 : i32
    %c0_i32_0 = arith.constant 0 : i32
    %c0_i32_1 = arith.constant 0 : i32
    return %arg0, %c0_i32, %c0_i32_0 : i32, i32, i32
  }
  func.func @transform_22(%arg0: i32) -> (i32, i32, i32) {
    %c0_i32 = arith.constant 0 : i32
    %c0_i32_0 = arith.constant 0 : i32
    %c0_i32_1 = arith.constant 0 : i32
    return %arg0, %c0_i32, %c0_i32_0 : i32, i32, i32
  }
  func.func @transform_23(%arg0: i32) -> (i32, i32, i32) {
    %c0_i32 = arith.constant 0 : i32
    %c0_i32_0 = arith.constant 0 : i32
    %c0_i32_1 = arith.constant 0 : i32
    return %arg0, %c0_i32, %c0_i32_0 : i32, i32, i32
  }
  func.func @transform_24(%arg0: i32) -> (i32, i32) {
    %c0_i32 = arith.constant 0 : i32
    %c0_i32_0 = arith.constant 0 : i32
    %c0_i32_1 = arith.constant 0 : i32
    return %c0_i32, %c0_i32_0 : i32, i32
  }
  func.func @transform_25(%arg0: i32) -> (i32, i32) {
    %c0_i32 = arith.constant 0 : i32
    %c0_i32_0 = arith.constant 0 : i32
    %c0_i32_1 = arith.constant 0 : i32
    return %c0_i32, %c0_i32_0 : i32, i32
  }
  func.func @transform_26(%arg0: i32) -> (i32, i32) {
    %c0_i32 = arith.constant 0 : i32
    %c0_i32_0 = arith.constant 0 : i32
    %c0_i32_1 = arith.constant 0 : i32
    return %c0_i32, %c0_i32_0 : i32, i32
  }
  func.func @transform_27(%arg0: i32) -> (i32, i32, i32, i32) {
    %c0_i32 = arith.constant 0 : i32
    %c0_i32_0 = arith.constant 0 : i32
    %c0_i32_1 = arith.constant 0 : i32
    %c0_i32_2 = arith.constant 0 : i32
    %c0_i32_3 = arith.constant 0 : i32
    return %c0_i32, %c0_i32_0, %c0_i32_1, %c0_i32_2 : i32, i32, i32, i32
  }
}

</mosaic_0001>

<llo_original>
// kernel: tpu_custom_call.1
$region0: #{tpu_custom_call.1}
  #allocation0 [shape = 'u32[]', space=smem, size = 0x4, offset = 0x4, fixed_abs, tag = 'smem constant byte address 0x4 - core index']
  #allocation1 [shape = 'u32[144,128]{1,0:T(1,128)}', space=vmem, size = 0x12000, scoped, tag = 'internal scratch']
  #allocation2 [shape = 'f32[16,32]{1,0:T(8,128)}', space=vmem, size = 0x2000, scoped, tag = 'scratch operand']
  #allocation3 [shape = 'f32[4,2,8,16]{3,2,1,0:T(8,128)}', space=vmem, size = 0x8000, scoped, tag = 'scratch operand']
  %s0 = inlined_call_operand.hbm [shape: f32[16,32], index: 0, kind: input, shape index: {}]
  %s1 = inlined_call_operand.hbm [shape: f32[32,32], index: 1, kind: input, shape index: {}]
  %s2 = inlined_call_operand.hbm [shape: f32[2,8,8], index: 2, kind: input, shape index: {}]
  %s3 = inlined_call_operand.vmem [shape: f32[2,1,16], index: 3, kind: input, shape index: {}]
  %s4 = inlined_call_operand.vmem [shape: f32[2,1,32], index: 4, kind: input, shape index: {}]
  %s5 = inlined_call_operand.hbm [shape: f32[2,1,32], index: 5, kind: input, shape index: {}]
  %s6 = inlined_call_operand.hbm [shape: f32[2,1,32], index: 6, kind: input, shape index: {}]
  %s7 = inlined_call_operand.hbm [shape: f32[2,1,32], index: 7, kind: input, shape index: {}]
  %s8 = inlined_call_operand.hbm [shape: f32[2,1,32], index: 8, kind: input, shape index: {}]
  %s9 = inlined_call_operand.hbm [shape: f32[2,1,32], index: 9, kind: input, shape index: {}]
  %s10 = inlined_call_operand.hbm [shape: f32[2,32,96], index: 10, kind: input, shape index: {}]
  %s11 = inlined_call_operand.hbm [shape: f32[2,1,96], index: 11, kind: input, shape index: {}]
  %s12 = inlined_call_operand.hbm [shape: f32[2,32,32], index: 12, kind: input, shape index: {}]
  %s13 = inlined_call_operand.hbm [shape: f32[2,1,32], index: 13, kind: input, shape index: {}]
  %s14 = inlined_call_operand.hbm [shape: f32[2,32,32], index: 14, kind: input, shape index: {}]
  %s15 = inlined_call_operand.hbm [shape: f32[2,1,32], index: 15, kind: input, shape index: {}]
  %s16 = inlined_call_operand.hbm [shape: f32[2,32,64], index: 16, kind: input, shape index: {}]
  %s17 = inlined_call_operand.hbm [shape: f32[2,1,64], index: 17, kind: input, shape index: {}]
  %s18 = inlined_call_operand.vmem [shape: f32[2,32,32], index: 18, kind: input, shape index: {}]
  %s19 = inlined_call_operand.vmem [shape: f32[2,1,32], index: 19, kind: input, shape index: {}]
  %s20 = inlined_call_operand.hbm [shape: bf16[2,32,2048], index: 20, kind: input, shape index: {}]
  %s21 = inlined_call_operand.hbm [shape: f32[2,1,2048], index: 21, kind: input, shape index: {}]
  %s22 = inlined_call_operand.hbm [shape: bf16[2,32,2048], index: 22, kind: input, shape index: {}]
  %s23 = inlined_call_operand.vmem [shape: f32[2,1,32], index: 23, kind: input, shape index: {}]
  %s24 = inlined_call_operand.vmem [shape: f32[1,32], index: 24, kind: input, shape index: {}]
  %s25 = inlined_call_operand.vmem [shape: f32[1,32], index: 25, kind: input, shape index: {}]
  %s26 = inlined_call_operand.hbm [shape: f32[16,32], index: 26, kind: output, shape index: {0}]
  %s27 = inlined_call_operand.hbm [shape: f32[4,2,8,16], index: 27, kind: output, shape index: {1}]
  %28 = xla_tuple %s26, %s27
  %s29 = sld [smem:[#allocation0]]
  $region229: #{tpu_custom_call.1} parent=0
    _
  %s31 = ssub.s32 1, %s29
  %s32 = scalar_select 0, %s31, %s29
  $region1: #{tpu_custom_call.1} parent=0
    #allocation4 [shape = 'u8[8192]{0}', space=vmem, size = 0x2000, scoped, tag = 'input window, operand 0, single buffered']
    #allocation5 [shape = 's32[2]{0}', space=sflag, size = 0x8, scoped, tag = 'scoped memory for tpu_custom_call.1']
    #allocation6 [shape = 's32[2]{0}', space=sflag, size = 0x8, scoped, tag = 'scoped memory for tpu_custom_call.1']
    #allocation7 [shape = 'u8[16384]{0}', space=vmem, size = 0x4000, scoped, tag = 'input window, operand 1, single buffered']
    #allocation8 [shape = 's32[1]{0}', space=sflag, size = 0x4, scoped, tag = 'scoped memory for tpu_custom_call.1']
    #allocation9 [shape = 'u8[8192]{0}', space=vmem, size = 0x2000, scoped, tag = 'input window, operand 2, single buffered']
    #allocation10 [shape = 'u8[1024]{0}', space=vmem, size = 0x400, scoped, tag = 'input window, operand 5']
    #allocation11 [shape = 's32[2]{0}', space=sflag, size = 0x8, scoped, tag = 'scoped memory for tpu_custom_call.1']
    #allocation12 [shape = 'u8[1024]{0}', space=vmem, size = 0x400, scoped, tag = 'input window, operand 6']
    #allocation13 [shape = 'u8[1024]{0}', space=vmem, size = 0x400, scoped, tag = 'input window, operand 7']
    #allocation14 [shape = 's32[2]{0}', space=sflag, size = 0x8, scoped, tag = 'scoped memory for tpu_custom_call.1']
    #allocation15 [shape = 'u8[1024]{0}', space=vmem, size = 0x400, scoped, tag = 'input window, operand 8']
    #allocation16 [shape = 'u8[1024]{0}', space=vmem, size = 0x400, scoped, tag = 'input window, operand 9']
    #allocation17 [shape = 's32[2]{0}', space=sflag, size = 0x8, scoped, tag = 'scoped memory for tpu_custom_call.1']
    #allocation18 [shape = 'u8[32768]{0}', space=vmem, size = 0x8000, scoped, tag = 'input window, operand 10']
    #allocation19 [shape = 'u8[1024]{0}', space=vmem, size = 0x400, scoped, tag = 'input window, operand 11']
    #allocation20 [shape = 's32[2]{0}', space=sflag, size = 0x8, scoped, tag = 'scoped memory for tpu_custom_call.1']
    #allocation21 [shape = 'u8[32768]{0}', space=vmem, size = 0x8000, scoped, tag = 'input window, operand 12']
    #allocation22 [shape = 'u8[1024]{0}', space=vmem, size = 0x400, scoped, tag = 'input window, operand 13']
    #allocation23 [shape = 's32[2]{0}', space=sflag, size = 0x8, scoped, tag = 'scoped memory for tpu_custom_call.1']
    #allocation24 [shape = 'u8[32768]{0}', space=vmem, size = 0x8000, scoped, tag = 'input window, operand 14']
    #allocation25 [shape = 'u8[1024]{0}', space=vmem, size = 0x400, scoped, tag = 'input window, operand 15']
    #allocation26 [shape = 's32[2]{0}', space=sflag, size = 0x8, scoped, tag = 'scoped memory for tpu_custom_call.1']
    #allocation27 [shape = 'u8[32768]{0}', space=vmem, size = 0x8000, scoped, tag = 'input window, operand 16']
    #allocation28 [shape = 'u8[1024]{0}', space=vmem, size = 0x400, scoped, tag = 'input window, operand 17']
    #allocation29 [shape = 's32[2]{0}', space=sflag, size = 0x8, scoped, tag = 'scoped memory for tpu_custom_call.1']
    #allocation30 [shape = 'u8[262144]{0}', space=vmem, size = 0x40000, scoped, tag = 'input window, operand 20']
    #allocation31 [shape = 'u8[16384]{0}', space=vmem, size = 0x4000, scoped, tag = 'input window, operand 21']
    #allocation32 [shape = 's32[2]{0}', space=sflag, size = 0x8, scoped, tag = 'scoped memory for tpu_custom_call.1']
    #allocation33 [shape = 'u8[262144]{0}', space=vmem, size = 0x40000, scoped, tag = 'input window, operand 22']
    #allocation34 [shape = 'u8[8192]{0}', space=vmem, size = 0x2000, scoped, tag = 'output window, operand 0, single buffered']
    #allocation35 [shape = 'u8[32768]{0}', space=vmem, size = 0x8000, scoped, tag = 'output window, operand 1, single buffered']
    #allocation36 [shape = 's32[1]{0}', space=sflag, size = 0x4, scoped, tag = 'scoped memory for tpu_custom_call.1']
    %33 = vsyncpa [#allocation5], 0
    %34 = vsyncpa [#allocation8], 0
    %35 = vsyncpa [#allocation11], 0
    %s36 = scalar_lea.sflag [#allocation11], 1
    %37 = vsyncpa %s36, 0
    %38 = vsyncpa [#allocation14], 0
    %s39 = scalar_lea.sflag [#allocation14], 1
    %40 = vsyncpa %s39, 0
    %41 = vsyncpa [#allocation17], 0
    %s42 = scalar_lea.sflag [#allocation17], 1
    %43 = vsyncpa %s42, 0
    %44 = vsyncpa [#allocation20], 0
    %s45 = scalar_lea.sflag [#allocation20], 1
    %46 = vsyncpa %s45, 0
    %47 = vsyncpa [#allocation23], 0
    %s48 = scalar_lea.sflag [#allocation23], 1
    %49 = vsyncpa %s48, 0
    %50 = vsyncpa [#allocation26], 0
    %s51 = scalar_lea.sflag [#allocation26], 1
    %52 = vsyncpa %s51, 0
    %53 = vsyncpa [#allocation29], 0
    %s54 = scalar_lea.sflag [#allocation29], 1
    %55 = vsyncpa %s54, 0
    %56 = vsyncpa [#allocation32], 0
    %s57 = scalar_lea.sflag [#allocation32], 1
    %58 = vsyncpa %s57, 0
    %59 = vsyncpa [#allocation6], 0
    %60 = vsyncpa [#allocation36], 0
    loop: start=0, step=1, limit=4
    $region2: #{tpu_custom_call.1} parent=1 // loop_pre_header
      _
    $region3: #{tpu_custom_call.1} parent=1 // loop_header
      %s62 = sphi 0, %s66
      %p63 = scmp.ge.s32.totalorder %s62, 4
      %s70 = sphi 0, %s70
      %s72 = sphi 0, %s70
      %s73 = sphi 0, %s72
      %s87 = sphi 0, %s73
      %s91 = sphi 0, %s91
      %s93 = sphi 0, %s91
      %s94 = sphi 0, %s93
      %s108 = sphi 0, %s94
      %s112 = sphi 0, %s112
      %s114 = sphi 0, %s112
      %s115 = sphi 0, %s114
      %s129 = sphi 0, %s115
      %s133 = sphi 0, %s133
      %s135 = sphi 0, %s133
      %s136 = sphi 0, %s135
      %s150 = sphi 0, %s136
      %s156 = sphi 0, %s158
      %s159 = sphi 0, %s156
      %s160 = sphi 0, %s159
      %s176 = sphi 0, %s160
      %s182 = sphi 0, %s184
      %s185 = sphi 0, %s182
      %s186 = sphi 0, %s185
      %s202 = sphi 0, %s186
      %s208 = sphi 0, %s210
      %s211 = sphi 0, %s208
      %s212 = sphi 0, %s211
      %s228 = sphi 0, %s212
      %s234 = sphi 0, %s236
      %s237 = sphi 0, %s234
      %s238 = sphi 0, %s237
      %s254 = sphi 0, %s238
      %s260 = sphi 0, %s262
      %s263 = sphi 0, %s260
      %s264 = sphi 0, %s263
      %s280 = sphi 0, %s264
      %s286 = sphi 0, %s288
      %s289 = sphi 0, %s286
      %s290 = sphi 0, %s289
      %s306 = sphi 0, %s290
      %s312 = sphi 0, %s314
      %s315 = sphi 0, %s312
      %s316 = sphi 0, %s315
      %s332 = sphi 0, %s316
      %s338 = sphi 0, %s340
      %s341 = sphi 0, %s338
      %s342 = sphi 0, %s341
      %s358 = sphi 0, %s342
      %s364 = sphi 0, %s366
      %s367 = sphi 0, %s364
      %s368 = sphi 0, %s367
      %s384 = sphi 0, %s368
      %s390 = sphi 0, %s392
      %s393 = sphi 0, %s390
      %s394 = sphi 0, %s393
      %s410 = sphi 0, %s394
      %s416 = sphi 0, %s418
      %s419 = sphi 0, %s416
      %s420 = sphi 0, %s419
      %s436 = sphi 0, %s420
      %s442 = sphi 0, %s444
      %s445 = sphi 0, %s442
      %s446 = sphi 0, %s445
      %s462 = sphi 0, %s446
      %s468 = sphi 0, %s470
      %s471 = sphi 0, %s468
      %s472 = sphi 0, %s471
      %s488 = sphi 0, %s472
      %s494 = sphi 0, %s496
      %s497 = sphi 0, %s494
      %s498 = sphi 0, %s497
      %s514 = sphi 0, %s498
      %s520 = sphi 0, %s522
      %s523 = sphi 0, %s520
      %s524 = sphi 0, %s523
      %s540 = sphi 0, %s524
      %s546 = sphi 0, %s548
      %s549 = sphi 0, %s546
      %s550 = sphi 0, %s549
      %s566 = sphi 0, %s550
      %s572 = sphi 0, %s574
      %s575 = sphi 0, %s572
      %s576 = sphi 0, %s575
      %s592 = sphi 0, %s576
      %s598 = sphi 0, %s600
      %s601 = sphi 0, %s598
      %s602 = sphi 0, %s601
      %s618 = sphi 0, %s602
      %s624 = sphi 0, %s626
      %s627 = sphi 0, %s624
      %s628 = sphi 0, %s627
      %s644 = sphi 0, %s628
      %s650 = sphi 0, %s652
      %s653 = sphi 0, %s650
      %s654 = sphi 0, %s653
      %s670 = sphi 0, %s654
      %s674 = sphi 0, %s674
      %s676 = sphi 0, %s674
      %s677 = sphi 0, %s676
      %s691 = sphi 0, %s677
      %s695 = sphi 0, %s695
      %s697 = sphi 0, %s695
      %s698 = sphi 0, %s697
      %s712 = sphi 0, %s698
      %s716 = sphi 0, %s716
      %s718 = sphi 0, %s716
      %s719 = sphi 0, %s718
      %s733 = sphi 0, %s719
      %s737 = sphi 0, %s737
      %s739 = sphi 0, %s737
      %s740 = sphi 0, %s739
      %s754 = sphi 0, %s740
    $region4: #{tpu_custom_call.1} parent=1 // loop_header_branch
      %65 = sbr.rel (%p63) target = $region8
    $region5: #{tpu_custom_call.1} parent=1 // loop_body
      %s67 = ssub.s32 %s62, 1
      %s68 = ssub.s32 %s62, 2
      %s69 = sadd.s32 %s62, 1
      %s71 = sadd.s32 %s70, 1
      %p74 = scmp.eq.s32.totalorder %s62, 1
      %p75 = scmp.ne.s32.totalorder %s70, %s72
      %p76 = scmp.eq.s32.totalorder %s62, 0
      %p77 = por %p75, %p76
      %p78 = scmp.ne.s32.totalorder %s70, %s72
      %p79 = scmp.eq.s32.totalorder %s67, 1
      %p80 = por %p78, %p79
      %p81 = scmp.ne.s32.totalorder %s72, %s73
      %p82 = scmp.eq.s32.totalorder %s67, 0
      %p83 = por %p81, %p82
      %p84 = scmp.ne.s32.totalorder %s72, %s73
      %p85 = scmp.eq.s32.totalorder %s68, 1
      %p86 = por %p84, %p85
      %p88 = scmp.ne.s32.totalorder %s73, %s87
      %p89 = scmp.eq.s32.totalorder %s68, 0
      %p90 = por %p88, %p89
      %s92 = sadd.s32 %s91, 1
      %p95 = scmp.eq.s32.totalorder %s62, 1
      %p96 = scmp.ne.s32.totalorder %s91, %s93
      %p97 = scmp.eq.s32.totalorder %s62, 0
      %p98 = por %p96, %p97
      %p99 = scmp.ne.s32.totalorder %s91, %s93
      %p100 = scmp.eq.s32.totalorder %s67, 1
      %p101 = por %p99, %p100
      %p102 = scmp.ne.s32.totalorder %s93, %s94
      %p103 = scmp.eq.s32.totalorder %s67, 0
      %p104 = por %p102, %p103
      %p105 = scmp.ne.s32.totalorder %s93, %s94
      %p106 = scmp.eq.s32.totalorder %s68, 1
      %p107 = por %p105, %p106
      %p109 = scmp.ne.s32.totalorder %s94, %s108
      %p110 = scmp.eq.s32.totalorder %s68, 0
      %p111 = por %p109, %p110
      %s113 = sadd.s32 %s112, 1
      %p116 = scmp.eq.s32.totalorder %s62, 1
      %p117 = scmp.ne.s32.totalorder %s112, %s114
      %p118 = scmp.eq.s32.totalorder %s62, 0
      %p119 = por %p117, %p118
      %p120 = scmp.ne.s32.totalorder %s112, %s114
      %p121 = scmp.eq.s32.totalorder %s67, 1
      %p122 = por %p120, %p121
      %p123 = scmp.ne.s32.totalorder %s114, %s115
      %p124 = scmp.eq.s32.totalorder %s67, 0
      %p125 = por %p123, %p124
      %p126 = scmp.ne.s32.totalorder %s114, %s115
      %p127 = scmp.eq.s32.totalorder %s68, 1
      %p128 = por %p126, %p127
      %p130 = scmp.ne.s32.totalorder %s115, %s129
      %p131 = scmp.eq.s32.totalorder %s68, 0
      %p132 = por %p130, %p131
      %s134 = sadd.s32 %s133, 1
      %p137 = scmp.eq.s32.totalorder %s62, 1
      %p138 = scmp.ne.s32.totalorder %s133, %s135
      %p139 = scmp.eq.s32.totalorder %s62, 0
      %p140 = por %p138, %p139
      %p141 = scmp.ne.s32.totalorder %s133, %s135
      %p142 = scmp.eq.s32.totalorder %s67, 1
      %p143 = por %p141, %p142
      %p144 = scmp.ne.s32.totalorder %s135, %s136
      %p145 = scmp.eq.s32.totalorder %s67, 0
      %p146 = por %p144, %p145
      %p147 = scmp.ne.s32.totalorder %s135, %s136
      %p148 = scmp.eq.s32.totalorder %s68, 1
      %p149 = por %p147, %p148
      %p151 = scmp.ne.s32.totalorder %s136, %s150
      %p152 = scmp.eq.s32.totalorder %s68, 0
      %p153 = por %p151, %p152
      %s154 = ssub.s32 %s62, %s69
      %p155 = scmp.eq.s32.totalorder %s154, 0
      %s157 = sadd.s32 %s156, 1
      %s158 = scalar_select %p155, %s156, %s157
      %p161 = pneg %p155
      %p162 = scmp.eq.s32.totalorder %s62, 1
      %p163 = por %p161, %p162
      %p164 = scmp.ne.s32.totalorder %s156, %s159
      %p165 = scmp.eq.s32.totalorder %s62, 0
      %p166 = por %p164, %p165
      %p167 = scmp.ne.s32.totalorder %s156, %s159
      %p168 = scmp.eq.s32.totalorder %s67, 1
      %p169 = por %p167, %p168
      %p170 = scmp.ne.s32.totalorder %s159, %s160
      %p171 = scmp.eq.s32.totalorder %s67, 0
      %p172 = por %p170, %p171
      %p173 = scmp.ne.s32.totalorder %s159, %s160
      %p174 = scmp.eq.s32.totalorder %s68, 1
      %p175 = por %p173, %p174
      %p177 = scmp.ne.s32.totalorder %s160, %s176
      %p178 = scmp.eq.s32.totalorder %s68, 0
      %p179 = por %p177, %p178
      %s180 = ssub.s32 %s62, %s69
      %p181 = scmp.eq.s32.totalorder %s180, 0
      %s183 = sadd.s32 %s182, 1
      %s184 = scalar_select %p181, %s182, %s183
      %p187 = pneg %p181
      %p188 = scmp.eq.s32.totalorder %s62, 1
      %p189 = por %p187, %p188
      %p190 = scmp.ne.s32.totalorder %s182, %s185
      %p191 = scmp.eq.s32.totalorder %s62, 0
      %p192 = por %p190, %p191
      %p193 = scmp.ne.s32.totalorder %s182, %s185
      %p194 = scmp.eq.s32.totalorder %s67, 1
      %p195 = por %p193, %p194
      %p196 = scmp.ne.s32.totalorder %s185, %s186
      %p197 = scmp.eq.s32.totalorder %s67, 0
      %p198 = por %p196, %p197
      %p199 = scmp.ne.s32.totalorder %s185, %s186
      %p200 = scmp.eq.s32.totalorder %s68, 1
      %p201 = por %p199, %p200
      %p203 = scmp.ne.s32.totalorder %s186, %s202
      %p204 = scmp.eq.s32.totalorder %s68, 0
      %p205 = por %p203, %p204
      %s206 = ssub.s32 %s62, %s69
      %p207 = scmp.eq.s32.totalorder %s206, 0
      %s209 = sadd.s32 %s208, 1
      %s210 = scalar_select %p207, %s208, %s209
      %p213 = pneg %p207
      %p214 = scmp.eq.s32.totalorder %s62, 1
      %p215 = por %p213, %p214
      %p216 = scmp.ne.s32.totalorder %s208, %s211
      %p217 = scmp.eq.s32.totalorder %s62, 0
      %p218 = por %p216, %p217
      %p219 = scmp.ne.s32.totalorder %s208, %s211
      %p220 = scmp.eq.s32.totalorder %s67, 1
      %p221 = por %p219, %p220
      %p222 = scmp.ne.s32.totalorder %s211, %s212
      %p223 = scmp.eq.s32.totalorder %s67, 0
      %p224 = por %p222, %p223
      %p225 = scmp.ne.s32.totalorder %s211, %s212
      %p226 = scmp.eq.s32.totalorder %s68, 1
      %p227 = por %p225, %p226
      %p229 = scmp.ne.s32.totalorder %s212, %s228
      %p230 = scmp.eq.s32.totalorder %s68, 0
      %p231 = por %p229, %p230
      %s232 = ssub.s32 %s62, %s69
      %p233 = scmp.eq.s32.totalorder %s232, 0
      %s235 = sadd.s32 %s234, 1
      %s236 = scalar_select %p233, %s234, %s235
      %p239 = pneg %p233
      %p240 = scmp.eq.s32.totalorder %s62, 1
      %p241 = por %p239, %p240
      %p242 = scmp.ne.s32.totalorder %s234, %s237
      %p243 = scmp.eq.s32.totalorder %s62, 0
      %p244 = por %p242, %p243
      %p245 = scmp.ne.s32.totalorder %s234, %s237
      %p246 = scmp.eq.s32.totalorder %s67, 1
      %p247 = por %p245, %p246
      %p248 = scmp.ne.s32.totalorder %s237, %s238
      %p249 = scmp.eq.s32.totalorder %s67, 0
      %p250 = por %p248, %p249
      %p251 = scmp.ne.s32.totalorder %s237, %s238
      %p252 = scmp.eq.s32.totalorder %s68, 1
      %p253 = por %p251, %p252
      %p255 = scmp.ne.s32.totalorder %s238, %s254
      %p256 = scmp.eq.s32.totalorder %s68, 0
      %p257 = por %p255, %p256
      %s258 = ssub.s32 %s62, %s69
      %p259 = scmp.eq.s32.totalorder %s258, 0
      %s261 = sadd.s32 %s260, 1
      %s262 = scalar_select %p259, %s260, %s261
      %p265 = pneg %p259
      %p266 = scmp.eq.s32.totalorder %s62, 1
      %p267 = por %p265, %p266
      %p268 = scmp.ne.s32.totalorder %s260, %s263
      %p269 = scmp.eq.s32.totalorder %s62, 0
      %p270 = por %p268, %p269
      %p271 = scmp.ne.s32.totalorder %s260, %s263
      %p272 = scmp.eq.s32.totalorder %s67, 1
      %p273 = por %p271, %p272
      %p274 = scmp.ne.s32.totalorder %s263, %s264
      %p275 = scmp.eq.s32.totalorder %s67, 0
      %p276 = por %p274, %p275
      %p277 = scmp.ne.s32.totalorder %s263, %s264
      %p278 = scmp.eq.s32.totalorder %s68, 1
      %p279 = por %p277, %p278
      %p281 = scmp.ne.s32.totalorder %s264, %s280
      %p282 = scmp.eq.s32.totalorder %s68, 0
      %p283 = por %p281, %p282
      %s284 = ssub.s32 %s62, %s69
      %p285 = scmp.eq.s32.totalorder %s284, 0
      %s287 = sadd.s32 %s286, 1
      %s288 = scalar_select %p285, %s286, %s287
      %p291 = pneg %p285
      %p292 = scmp.eq.s32.totalorder %s62, 1
      %p293 = por %p291, %p292
      %p294 = scmp.ne.s32.totalorder %s286, %s289
      %p295 = scmp.eq.s32.totalorder %s62, 0
      %p296 = por %p294, %p295
      %p297 = scmp.ne.s32.totalorder %s286, %s289
      %p298 = scmp.eq.s32.totalorder %s67, 1
      %p299 = por %p297, %p298
      %p300 = scmp.ne.s32.totalorder %s289, %s290
      %p301 = scmp.eq.s32.totalorder %s67, 0
      %p302 = por %p300, %p301
      %p303 = scmp.ne.s32.totalorder %s289, %s290
      %p304 = scmp.eq.s32.totalorder %s68, 1
      %p305 = por %p303, %p304
      %p307 = scmp.ne.s32.totalorder %s290, %s306
      %p308 = scmp.eq.s32.totalorder %s68, 0
      %p309 = por %p307, %p308
      %s310 = ssub.s32 %s62, %s69
      %p311 = scmp.eq.s32.totalorder %s310, 0
      %s313 = sadd.s32 %s312, 1
      %s314 = scalar_select %p311, %s312, %s313
      %p317 = pneg %p311
      %p318 = scmp.eq.s32.totalorder %s62, 1
      %p319 = por %p317, %p318
      %p320 = scmp.ne.s32.totalorder %s312, %s315
      %p321 = scmp.eq.s32.totalorder %s62, 0
      %p322 = por %p320, %p321
      %p323 = scmp.ne.s32.totalorder %s312, %s315
      %p324 = scmp.eq.s32.totalorder %s67, 1
      %p325 = por %p323, %p324
      %p326 = scmp.ne.s32.totalorder %s315, %s316
      %p327 = scmp.eq.s32.totalorder %s67, 0
      %p328 = por %p326, %p327
      %p329 = scmp.ne.s32.totalorder %s315, %s316
      %p330 = scmp.eq.s32.totalorder %s68, 1
      %p331 = por %p329, %p330
      %p333 = scmp.ne.s32.totalorder %s316, %s332
      %p334 = scmp.eq.s32.totalorder %s68, 0
      %p335 = por %p333, %p334
      %s336 = ssub.s32 %s62, %s69
      %p337 = scmp.eq.s32.totalorder %s336, 0
      %s339 = sadd.s32 %s338, 1
      %s340 = scalar_select %p337, %s338, %s339
      %p343 = pneg %p337
      %p344 = scmp.eq.s32.totalorder %s62, 1
      %p345 = por %p343, %p344
      %p346 = scmp.ne.s32.totalorder %s338, %s341
      %p347 = scmp.eq.s32.totalorder %s62, 0
      %p348 = por %p346, %p347
      %p349 = scmp.ne.s32.totalorder %s338, %s341
      %p350 = scmp.eq.s32.totalorder %s67, 1
      %p351 = por %p349, %p350
      %p352 = scmp.ne.s32.totalorder %s341, %s342
      %p353 = scmp.eq.s32.totalorder %s67, 0
      %p354 = por %p352, %p353
      %p355 = scmp.ne.s32.totalorder %s341, %s342
      %p356 = scmp.eq.s32.totalorder %s68, 1
      %p357 = por %p355, %p356
      %p359 = scmp.ne.s32.totalorder %s342, %s358
      %p360 = scmp.eq.s32.totalorder %s68, 0
      %p361 = por %p359, %p360
      %s362 = ssub.s32 %s62, %s69
      %p363 = scmp.eq.s32.totalorder %s362, 0
      %s365 = sadd.s32 %s364, 1
      %s366 = scalar_select %p363, %s364, %s365
      %p369 = pneg %p363
      %p370 = scmp.eq.s32.totalorder %s62, 1
      %p371 = por %p369, %p370
      %p372 = scmp.ne.s32.totalorder %s364, %s367
      %p373 = scmp.eq.s32.totalorder %s62, 0
      %p374 = por %p372, %p373
      %p375 = scmp.ne.s32.totalorder %s364, %s367
      %p376 = scmp.eq.s32.totalorder %s67, 1
      %p377 = por %p375, %p376
      %p378 = scmp.ne.s32.totalorder %s367, %s368
      %p379 = scmp.eq.s32.totalorder %s67, 0
      %p380 = por %p378, %p379
      %p381 = scmp.ne.s32.totalorder %s367, %s368
      %p382 = scmp.eq.s32.totalorder %s68, 1
      %p383 = por %p381, %p382
      %p385 = scmp.ne.s32.totalorder %s368, %s384
      %p386 = scmp.eq.s32.totalorder %s68, 0
      %p387 = por %p385, %p386
      %s388 = ssub.s32 %s62, %s69
      %p389 = scmp.eq.s32.totalorder %s388, 0
      %s391 = sadd.s32 %s390, 1
      %s392 = scalar_select %p389, %s390, %s391
      %p395 = pneg %p389
      %p396 = scmp.eq.s32.totalorder %s62, 1
      %p397 = por %p395, %p396
      %p398 = scmp.ne.s32.totalorder %s390, %s393
      %p399 = scmp.eq.s32.totalorder %s62, 0
      %p400 = por %p398, %p399
      %p401 = scmp.ne.s32.totalorder %s390, %s393
      %p402 = scmp.eq.s32.totalorder %s67, 1
      %p403 = por %p401, %p402
      %p404 = scmp.ne.s32.totalorder %s393, %s394
      %p405 = scmp.eq.s32.totalorder %s67, 0
      %p406 = por %p404, %p405
      %p407 = scmp.ne.s32.totalorder %s393, %s394
      %p408 = scmp.eq.s32.totalorder %s68, 1
      %p409 = por %p407, %p408
      %p411 = scmp.ne.s32.totalorder %s394, %s410
      %p412 = scmp.eq.s32.totalorder %s68, 0
      %p413 = por %p411, %p412
      %s414 = ssub.s32 %s62, %s69
      %p415 = scmp.eq.s32.totalorder %s414, 0
      %s417 = sadd.s32 %s416, 1
      %s418 = scalar_select %p415, %s416, %s417
      %p421 = pneg %p415
      %p422 = scmp.eq.s32.totalorder %s62, 1
      %p423 = por %p421, %p422
      %p424 = scmp.ne.s32.totalorder %s416, %s419
      %p425 = scmp.eq.s32.totalorder %s62, 0
      %p426 = por %p424, %p425
      %p427 = scmp.ne.s32.totalorder %s416, %s419
      %p428 = scmp.eq.s32.totalorder %s67, 1
      %p429 = por %p427, %p428
      %p430 = scmp.ne.s32.totalorder %s419, %s420
      %p431 = scmp.eq.s32.totalorder %s67, 0
      %p432 = por %p430, %p431
      %p433 = scmp.ne.s32.totalorder %s419, %s420
      %p434 = scmp.eq.s32.totalorder %s68, 1
      %p435 = por %p433, %p434
      %p437 = scmp.ne.s32.totalorder %s420, %s436
      %p438 = scmp.eq.s32.totalorder %s68, 0
      %p439 = por %p437, %p438
      %s440 = ssub.s32 %s62, %s69
      %p441 = scmp.eq.s32.totalorder %s440, 0
      %s443 = sadd.s32 %s442, 1
      %s444 = scalar_select %p441, %s442, %s443
      %p447 = pneg %p441
      %p448 = scmp.eq.s32.totalorder %s62, 1
      %p449 = por %p447, %p448
      %p450 = scmp.ne.s32.totalorder %s442, %s445
      %p451 = scmp.eq.s32.totalorder %s62, 0
      %p452 = por %p450, %p451
      %p453 = scmp.ne.s32.totalorder %s442, %s445
      %p454 = scmp.eq.s32.totalorder %s67, 1
      %p455 = por %p453, %p454
      %p456 = scmp.ne.s32.totalorder %s445, %s446
      %p457 = scmp.eq.s32.totalorder %s67, 0
      %p458 = por %p456, %p457
      %p459 = scmp.ne.s32.totalorder %s445, %s446
      %p460 = scmp.eq.s32.totalorder %s68, 1
      %p461 = por %p459, %p460
      %p463 = scmp.ne.s32.totalorder %s446, %s462
      %p464 = scmp.eq.s32.totalorder %s68, 0
      %p465 = por %p463, %p464
      %s466 = ssub.s32 %s62, %s69
      %p467 = scmp.eq.s32.totalorder %s466, 0
      %s469 = sadd.s32 %s468, 1
      %s470 = scalar_select %p467, %s468, %s469
      %p473 = pneg %p467
      %p474 = scmp.eq.s32.totalorder %s62, 1
      %p475 = por %p473, %p474
      %p476 = scmp.ne.s32.totalorder %s468, %s471
      %p477 = scmp.eq.s32.totalorder %s62, 0
      %p478 = por %p476, %p477
      %p479 = scmp.ne.s32.totalorder %s468, %s471
      %p480 = scmp.eq.s32.totalorder %s67, 1
      %p481 = por %p479, %p480
      %p482 = scmp.ne.s32.totalorder %s471, %s472
      %p483 = scmp.eq.s32.totalorder %s67, 0
      %p484 = por %p482, %p483
      %p485 = scmp.ne.s32.totalorder %s471, %s472
      %p486 = scmp.eq.s32.totalorder %s68, 1
      %p487 = por %p485, %p486
      %p489 = scmp.ne.s32.totalorder %s472, %s488
      %p490 = scmp.eq.s32.totalorder %s68, 0
      %p491 = por %p489, %p490
      %s492 = ssub.s32 %s62, %s69
      %p493 = scmp.eq.s32.totalorder %s492, 0
      %s495 = sadd.s32 %s494, 1
      %s496 = scalar_select %p493, %s494, %s495
      %p499 = pneg %p493
      %p500 = scmp.eq.s32.totalorder %s62, 1
      %p501 = por %p499, %p500
      %p502 = scmp.ne.s32.totalorder %s494, %s497
      %p503 = scmp.eq.s32.totalorder %s62, 0
      %p504 = por %p502, %p503
      %p505 = scmp.ne.s32.totalorder %s494, %s497
      %p506 = scmp.eq.s32.totalorder %s67, 1
      %p507 = por %p505, %p506
      %p508 = scmp.ne.s32.totalorder %s497, %s498
      %p509 = scmp.eq.s32.totalorder %s67, 0
      %p510 = por %p508, %p509
      %p511 = scmp.ne.s32.totalorder %s497, %s498
      %p512 = scmp.eq.s32.totalorder %s68, 1
      %p513 = por %p511, %p512
      %p515 = scmp.ne.s32.totalorder %s498, %s514
      %p516 = scmp.eq.s32.totalorder %s68, 0
      %p517 = por %p515, %p516
      %s518 = ssub.s32 %s62, %s69
      %p519 = scmp.eq.s32.totalorder %s518, 0
      %s521 = sadd.s32 %s520, 1
      %s522 = scalar_select %p519, %s520, %s521
      %p525 = pneg %p519
      %p526 = scmp.eq.s32.totalorder %s62, 1
      %p527 = por %p525, %p526
      %p528 = scmp.ne.s32.totalorder %s520, %s523
      %p529 = scmp.eq.s32.totalorder %s62, 0
      %p530 = por %p528, %p529
      %p531 = scmp.ne.s32.totalorder %s520, %s523
      %p532 = scmp.eq.s32.totalorder %s67, 1
      %p533 = por %p531, %p532
      %p534 = scmp.ne.s32.totalorder %s523, %s524
      %p535 = scmp.eq.s32.totalorder %s67, 0
      %p536 = por %p534, %p535
      %p537 = scmp.ne.s32.totalorder %s523, %s524
      %p538 = scmp.eq.s32.totalorder %s68, 1
      %p539 = por %p537, %p538
      %p541 = scmp.ne.s32.totalorder %s524, %s540
      %p542 = scmp.eq.s32.totalorder %s68, 0
      %p543 = por %p541, %p542
      %s544 = ssub.s32 %s62, %s69
      %p545 = scmp.eq.s32.totalorder %s544, 0
      %s547 = sadd.s32 %s546, 1
      %s548 = scalar_select %p545, %s546, %s547
      %p551 = pneg %p545
      %p552 = scmp.eq.s32.totalorder %s62, 1
      %p553 = por %p551, %p552
      %p554 = scmp.ne.s32.totalorder %s546, %s549
      %p555 = scmp.eq.s32.totalorder %s62, 0
      %p556 = por %p554, %p555
      %p557 = scmp.ne.s32.totalorder %s546, %s549
      %p558 = scmp.eq.s32.totalorder %s67, 1
      %p559 = por %p557, %p558
      %p560 = scmp.ne.s32.totalorder %s549, %s550
      %p561 = scmp.eq.s32.totalorder %s67, 0
      %p562 = por %p560, %p561
      %p563 = scmp.ne.s32.totalorder %s549, %s550
      %p564 = scmp.eq.s32.totalorder %s68, 1
      %p565 = por %p563, %p564
      %p567 = scmp.ne.s32.totalorder %s550, %s566
      %p568 = scmp.eq.s32.totalorder %s68, 0
      %p569 = por %p567, %p568
      %s570 = ssub.s32 %s62, %s69
      %p571 = scmp.eq.s32.totalorder %s570, 0
      %s573 = sadd.s32 %s572, 1
      %s574 = scalar_select %p571, %s572, %s573
      %p577 = pneg %p571
      %p578 = scmp.eq.s32.totalorder %s62, 1
      %p579 = por %p577, %p578
      %p580 = scmp.ne.s32.totalorder %s572, %s575
      %p581 = scmp.eq.s32.totalorder %s62, 0
      %p582 = por %p580, %p581
      %p583 = scmp.ne.s32.totalorder %s572, %s575
      %p584 = scmp.eq.s32.totalorder %s67, 1
      %p585 = por %p583, %p584
      %p586 = scmp.ne.s32.totalorder %s575, %s576
      %p587 = scmp.eq.s32.totalorder %s67, 0
      %p588 = por %p586, %p587
      %p589 = scmp.ne.s32.totalorder %s575, %s576
      %p590 = scmp.eq.s32.totalorder %s68, 1
      %p591 = por %p589, %p590
      %p593 = scmp.ne.s32.totalorder %s576, %s592
      %p594 = scmp.eq.s32.totalorder %s68, 0
      %p595 = por %p593, %p594
      %s596 = ssub.s32 %s62, %s69
      %p597 = scmp.eq.s32.totalorder %s596, 0
      %s599 = sadd.s32 %s598, 1
      %s600 = scalar_select %p597, %s598, %s599
      %p603 = pneg %p597
      %p604 = scmp.eq.s32.totalorder %s62, 1
      %p605 = por %p603, %p604
      %p606 = scmp.ne.s32.totalorder %s598, %s601
      %p607 = scmp.eq.s32.totalorder %s62, 0
      %p608 = por %p606, %p607
      %p609 = scmp.ne.s32.totalorder %s598, %s601
      %p610 = scmp.eq.s32.totalorder %s67, 1
      %p611 = por %p609, %p610
      %p612 = scmp.ne.s32.totalorder %s601, %s602
      %p613 = scmp.eq.s32.totalorder %s67, 0
      %p614 = por %p612, %p613
      %p615 = scmp.ne.s32.totalorder %s601, %s602
      %p616 = scmp.eq.s32.totalorder %s68, 1
      %p617 = por %p615, %p616
      %p619 = scmp.ne.s32.totalorder %s602, %s618
      %p620 = scmp.eq.s32.totalorder %s68, 0
      %p621 = por %p619, %p620
      %s622 = ssub.s32 %s62, %s69
      %p623 = scmp.eq.s32.totalorder %s622, 0
      %s625 = sadd.s32 %s624, 1
      %s626 = scalar_select %p623, %s624, %s625
      %p629 = pneg %p623
      %p630 = scmp.eq.s32.totalorder %s62, 1
      %p631 = por %p629, %p630
      %p632 = scmp.ne.s32.totalorder %s624, %s627
      %p633 = scmp.eq.s32.totalorder %s62, 0
      %p634 = por %p632, %p633
      %p635 = scmp.ne.s32.totalorder %s624, %s627
      %p636 = scmp.eq.s32.totalorder %s67, 1
      %p637 = por %p635, %p636
      %p638 = scmp.ne.s32.totalorder %s627, %s628
      %p639 = scmp.eq.s32.totalorder %s67, 0
      %p640 = por %p638, %p639
      %p641 = scmp.ne.s32.totalorder %s627, %s628
      %p642 = scmp.eq.s32.totalorder %s68, 1
      %p643 = por %p641, %p642
      %p645 = scmp.ne.s32.totalorder %s628, %s644
      %p646 = scmp.eq.s32.totalorder %s68, 0
      %p647 = por %p645, %p646
      %s648 = ssub.s32 %s62, %s69
      %p649 = scmp.eq.s32.totalorder %s648, 0
      %s651 = sadd.s32 %s650, 1
      %s652 = scalar_select %p649, %s650, %s651
      %p655 = pneg %p649
      %p656 = scmp.eq.s32.totalorder %s62, 1
      %p657 = por %p655, %p656
      %p658 = scmp.ne.s32.totalorder %s650, %s653
      %p659 = scmp.eq.s32.totalorder %s62, 0
      %p660 = por %p658, %p659
      %p661 = scmp.ne.s32.totalorder %s650, %s653
      %p662 = scmp.eq.s32.totalorder %s67, 1
      %p663 = por %p661, %p662
      %p664 = scmp.ne.s32.totalorder %s653, %s654
      %p665 = scmp.eq.s32.totalorder %s67, 0
      %p666 = por %p664, %p665
      %p667 = scmp.ne.s32.totalorder %s653, %s654
      %p668 = scmp.eq.s32.totalorder %s68, 1
      %p669 = por %p667, %p668
      %p671 = scmp.ne.s32.totalorder %s654, %s670
      %p672 = scmp.eq.s32.totalorder %s68, 0
      %p673 = por %p671, %p672
      %s675 = sadd.s32 %s674, 1
      %p678 = scmp.eq.s32.totalorder %s62, 1
      %p679 = scmp.ne.s32.totalorder %s674, %s676
      %p680 = scmp.eq.s32.totalorder %s62, 0
      %p681 = por %p679, %p680
      %p682 = scmp.ne.s32.totalorder %s674, %s676
      %p683 = scmp.eq.s32.totalorder %s67, 1
      %p684 = por %p682, %p683
      %p685 = scmp.ne.s32.totalorder %s676, %s677
      %p686 = scmp.eq.s32.totalorder %s67, 0
      %p687 = por %p685, %p686
      %p688 = scmp.ne.s32.totalorder %s676, %s677
      %p689 = scmp.eq.s32.totalorder %s68, 1
      %p690 = por %p688, %p689
      %p692 = scmp.ne.s32.totalorder %s677, %s691
      %p693 = scmp.eq.s32.totalorder %s68, 0
      %p694 = por %p692, %p693
      %s696 = sadd.s32 %s695, 1
      %p699 = scmp.eq.s32.totalorder %s62, 1
      %p700 = scmp.ne.s32.totalorder %s695, %s697
      %p701 = scmp.eq.s32.totalorder %s62, 0
      %p702 = por %p700, %p701
      %p703 = scmp.ne.s32.totalorder %s695, %s697
      %p704 = scmp.eq.s32.totalorder %s67, 1
      %p705 = por %p703, %p704
      %p706 = scmp.ne.s32.totalorder %s697, %s698
      %p707 = scmp.eq.s32.totalorder %s67, 0
      %p708 = por %p706, %p707
      %p709 = scmp.ne.s32.totalorder %s697, %s698
      %p710 = scmp.eq.s32.totalorder %s68, 1
      %p711 = por %p709, %p710
      %p713 = scmp.ne.s32.totalorder %s698, %s712
      %p714 = scmp.eq.s32.totalorder %s68, 0
      %p715 = por %p713, %p714
      %s717 = sadd.s32 %s716, 1
      %p720 = scmp.eq.s32.totalorder %s62, 1
      %p721 = scmp.ne.s32.totalorder %s716, %s718
      %p722 = scmp.eq.s32.totalorder %s62, 0
      %p723 = por %p721, %p722
      %p724 = scmp.ne.s32.totalorder %s716, %s718
      %p725 = scmp.eq.s32.totalorder %s67, 1
      %p726 = por %p724, %p725
      %p727 = scmp.ne.s32.totalorder %s718, %s719
      %p728 = scmp.eq.s32.totalorder %s67, 0
      %p729 = por %p727, %p728
      %p730 = scmp.ne.s32.totalorder %s718, %s719
      %p731 = scmp.eq.s32.totalorder %s68, 1
      %p732 = por %p730, %p731
      %p734 = scmp.ne.s32.totalorder %s719, %s733
      %p735 = scmp.eq.s32.totalorder %s68, 0
      %p736 = por %p734, %p735
      %s738 = sadd.s32 %s737, 1
      %p741 = scmp.eq.s32.totalorder %s62, 1
      %p742 = scmp.ne.s32.totalorder %s737, %s739
      %p743 = scmp.eq.s32.totalorder %s62, 0
      %p744 = por %p742, %p743
      %p745 = scmp.ne.s32.totalorder %s737, %s739
      %p746 = scmp.eq.s32.totalorder %s67, 1
      %p747 = por %p745, %p746
      %p748 = scmp.ne.s32.totalorder %s739, %s740
      %p749 = scmp.eq.s32.totalorder %s67, 0
      %p750 = por %p748, %p749
      %p751 = scmp.ne.s32.totalorder %s739, %s740
      %p752 = scmp.eq.s32.totalorder %s68, 1
      %p753 = por %p751, %p752
      %p755 = scmp.ne.s32.totalorder %s740, %s754
      %p756 = scmp.eq.s32.totalorder %s68, 0
      %p757 = por %p755, %p756
      %p758 = scmp.le.s32.totalorder 1, %s62
      %p759 = scmp.lt.s32.totalorder %s62, 3
      %p760 = pnand %p758, %p759
      %p761 = pneg %p760
      // Predicated region
      $region9: #{tpu_custom_call.1} parent=5 // pred_check
        _
      $region10: #{tpu_custom_call.1} parent=5 // pred_check_branch
        %763 = sbr.rel (%p760) target = $region12
      $region11: #{tpu_custom_call.1} parent=5 // pred_region
        %s764 = ssub.s32 %s62, 1
        // Predicated region
        $region13: #{tpu_custom_call.1} parent=11 // pred_check
          %p765 = pneg %p83
        $region14: #{tpu_custom_call.1} parent=11 // pred_check_branch
          %767 = sbr.rel (%p765) target = $region16
        $region15: #{tpu_custom_call.1} parent=11 // pred_region
          %s769 = ssub.s32 256, 256
          %770 = vsyncadd [#allocation5], %s769
          %s771 = sshll.u32 [#allocation4], 4
          %s772 = int_to_ptr.vmem [resolvable:$true] %s771
          %777 = dma.hbm_to_vmem [thread:$0]  %s0, 256, %s772, [#allocation5], 128, 128, 8
        $region16: #{tpu_custom_call.1} parent=11 // pred_fallthru
          _
        // Predicated region
        $region17: #{tpu_custom_call.1} parent=11 // pred_check
          %p778 = pneg %p104
        $region18: #{tpu_custom_call.1} parent=11 // pred_check_branch
          %780 = sbr.rel (%p778) target = $region20
        $region19: #{tpu_custom_call.1} parent=11 // pred_region
          %s782 = ssub.s32 512, 512
          %783 = vsyncadd [#allocation8], %s782
          %s784 = sshll.u32 [#allocation7], 4
          %s785 = int_to_ptr.vmem [resolvable:$true] %s784
          %790 = dma.hbm_to_vmem [thread:$0]  %s1, 512, %s785, [#allocation8], 128, 128, 8
        $region20: #{tpu_custom_call.1} parent=11 // pred_fallthru
          _
        // Predicated region
        $region21: #{tpu_custom_call.1} parent=11 // pred_check
          %p791 = pneg %p125
        $region22: #{tpu_custom_call.1} parent=11 // pred_check_branch
          %793 = sbr.rel (%p791) target = $region24
        $region23: #{tpu_custom_call.1} parent=11 // pred_region
          %s795 = ssub.s32 256, 256
          %796 = vsyncadd [#allocation8], %s795
          %s797 = sshll.u32 [#allocation9], 4
          %s798 = int_to_ptr.vmem [resolvable:$true] %s797
          %803 = dma.hbm_to_vmem [thread:$0]  %s2, 256, %s798, [#allocation8], 128, 128, 8
        $region24: #{tpu_custom_call.1} parent=11 // pred_fallthru
          _
        // Predicated region
        $region25: #{tpu_custom_call.1} parent=11 // pred_check
          %p804 = pneg %p146
        $region26: #{tpu_custom_call.1} parent=11 // pred_check_branch
          %806 = sbr.rel (%p804) target = $region28
        $region27: #{tpu_custom_call.1} parent=11 // pred_region
          _
        $region28: #{tpu_custom_call.1} parent=11 // pred_fallthru
          _
        // Predicated region
        $region29: #{tpu_custom_call.1} parent=11 // pred_check
          %p807 = pneg %p687
        $region30: #{tpu_custom_call.1} parent=11 // pred_check_branch
          %809 = sbr.rel (%p807) target = $region32
        $region31: #{tpu_custom_call.1} parent=11 // pred_region
          _
        $region32: #{tpu_custom_call.1} parent=11 // pred_fallthru
          _
        // Predicated region
        $region33: #{tpu_custom_call.1} parent=11 // pred_check
          %p810 = pneg %p708
        $region34: #{tpu_custom_call.1} parent=11 // pred_check_branch
          %812 = sbr.rel (%p810) target = $region36
        $region35: #{tpu_custom_call.1} parent=11 // pred_region
          _
        $region36: #{tpu_custom_call.1} parent=11 // pred_fallthru
          _
      $region12: #{tpu_custom_call.1} parent=5 // pred_fallthru
        _
      %p813 = scmp.lt.s32.totalorder %s62, 2
      // Predicated region
      $region37: #{tpu_custom_call.1} parent=5 // pred_check
        %p814 = pneg %p813
      $region38: #{tpu_custom_call.1} parent=5 // pred_check_branch
        %816 = sbr.rel (%p814) target = $region40
      $region39: #{tpu_custom_call.1} parent=5 // pred_region
        // Predicated region
        $region41: #{tpu_custom_call.1} parent=39 // pred_check
          %p817 = pneg %p166
        $region42: #{tpu_custom_call.1} parent=39 // pred_check_branch
          %819 = sbr.rel (%p817) target = $region44
        $region43: #{tpu_custom_call.1} parent=39 // pred_region
          %p820 = scmp.lt.s32.totalorder %s62, 1
          %s821 = scalar_select %p820, %s62, 1
          %s822 = scalar_lea.vmem %s4, %s821
        $region44: #{tpu_custom_call.1} parent=39 // pred_fallthru
          _
        // Predicated region
        $region45: #{tpu_custom_call.1} parent=39 // pred_check
          %p823 = pneg %p192
        $region46: #{tpu_custom_call.1} parent=39 // pred_check_branch
          %825 = sbr.rel (%p823) target = $region48
        $region47: #{tpu_custom_call.1} parent=39 // pred_region
          %s826 = sand.u32 %s62, 1
          %s827 = scalar_lea.sflag [#allocation11], %s826
          %s828 = sand.u32 %s182, 1
          %s829 = scalar_lea.vmem [#allocation10], %s828
          %s831 = ssub.s32 16, 16
          %832 = vsyncadd %s827, %s831
          %s833 = smul.addr %s62, 16
          %s834 = scalar_lea.hbm %s5, %s833
          %s836 = sshll.u32 %s829, 4
          %s837 = int_to_ptr.vmem [resolvable:$true] %s836
          %839 = dma.hbm_to_vmem [thread:$0]  %s834, 16, %s837, %s827
        $region48: #{tpu_custom_call.1} parent=39 // pred_fallthru
          _
        // Predicated region
        $region49: #{tpu_custom_call.1} parent=39 // pred_check
          %p840 = pneg %p218
        $region50: #{tpu_custom_call.1} parent=39 // pred_check_branch
          %842 = sbr.rel (%p840) target = $region52
        $region51: #{tpu_custom_call.1} parent=39 // pred_region
          %s843 = sand.u32 %s62, 1
          %s844 = scalar_lea.sflag [#allocation11], %s843
          %s845 = sand.u32 %s208, 1
          %s846 = scalar_lea.vmem [#allocation12], %s845
          %s848 = ssub.s32 16, 16
          %849 = vsyncadd %s844, %s848
          %s850 = smul.addr %s62, 16
          %s851 = scalar_lea.hbm %s6, %s850
          %s853 = sshll.u32 %s846, 4
          %s854 = int_to_ptr.vmem [resolvable:$true] %s853
          %856 = dma.hbm_to_vmem [thread:$0]  %s851, 16, %s854, %s844
        $region52: #{tpu_custom_call.1} parent=39 // pred_fallthru
          _
        // Predicated region
        $region53: #{tpu_custom_call.1} parent=39 // pred_check
          %p857 = pneg %p244
        $region54: #{tpu_custom_call.1} parent=39 // pred_check_branch
          %859 = sbr.rel (%p857) target = $region56
        $region55: #{tpu_custom_call.1} parent=39 // pred_region
          %s860 = sand.u32 %s62, 1
          %s861 = scalar_lea.sflag [#allocation14], %s860
          %s862 = sand.u32 %s234, 1
          %s863 = scalar_lea.vmem [#allocation13], %s862
          %s865 = ssub.s32 16, 16
          %866 = vsyncadd %s861, %s865
          %s867 = smul.addr %s62, 16
          %s868 = scalar_lea.hbm %s7, %s867
          %s870 = sshll.u32 %s863, 4
          %s871 = int_to_ptr.vmem [resolvable:$true] %s870
          %873 = dma.hbm_to_vmem [thread:$0]  %s868, 16, %s871, %s861
        $region56: #{tpu_custom_call.1} parent=39 // pred_fallthru
          _
        // Predicated region
        $region57: #{tpu_custom_call.1} parent=39 // pred_check
          %p874 = pneg %p270
        $region58: #{tpu_custom_call.1} parent=39 // pred_check_branch
          %876 = sbr.rel (%p874) target = $region60
        $region59: #{tpu_custom_call.1} parent=39 // pred_region
          %s877 = sand.u32 %s62, 1
          %s878 = scalar_lea.sflag [#allocation14], %s877
          %s879 = sand.u32 %s260, 1
          %s880 = scalar_lea.vmem [#allocation15], %s879
          %s882 = ssub.s32 16, 16
          %883 = vsyncadd %s878, %s882
          %s884 = smul.addr %s62, 16
          %s885 = scalar_lea.hbm %s8, %s884
          %s887 = sshll.u32 %s880, 4
          %s888 = int_to_ptr.vmem [resolvable:$true] %s887
          %890 = dma.hbm_to_vmem [thread:$0]  %s885, 16, %s888, %s878
        $region60: #{tpu_custom_call.1} parent=39 // pred_fallthru
          _
        // Predicated region
        $region61: #{tpu_custom_call.1} parent=39 // pred_check
          %p891 = pneg %p296
        $region62: #{tpu_custom_call.1} parent=39 // pred_check_branch
          %893 = sbr.rel (%p891) target = $region64
        $region63: #{tpu_custom_call.1} parent=39 // pred_region
          %s894 = sand.u32 %s62, 1
          %s895 = scalar_lea.sflag [#allocation17], %s894
          %s896 = sand.u32 %s286, 1
          %s897 = scalar_lea.vmem [#allocation16], %s896
          %s899 = ssub.s32 16, 16
          %900 = vsyncadd %s895, %s899
          %s901 = smul.addr %s62, 16
          %s902 = scalar_lea.hbm %s9, %s901
          %s904 = sshll.u32 %s897, 4
          %s905 = int_to_ptr.vmem [resolvable:$true] %s904
          %907 = dma.hbm_to_vmem [thread:$0]  %s902, 16, %s905, %s895
        $region64: #{tpu_custom_call.1} parent=39 // pred_fallthru
          _
        // Predicated region
        $region65: #{tpu_custom_call.1} parent=39 // pred_check
          %p908 = pneg %p322
        $region66: #{tpu_custom_call.1} parent=39 // pred_check_branch
          %910 = sbr.rel (%p908) target = $region68
        $region67: #{tpu_custom_call.1} parent=39 // pred_region
          %s911 = sand.u32 %s62, 1
          %s912 = scalar_lea.sflag [#allocation17], %s911
          %s913 = sand.u32 %s312, 1
          %s914 = smul.addr %s913, 32
          %s915 = scalar_lea.vmem [#allocation18], %s914
          %s917 = ssub.s32 512, 512
          %918 = vsyncadd %s912, %s917
          %s919 = smul.addr %s62, 4
          %s920 = smul.addr %s919, 128
          %s921 = scalar_lea.hbm %s10, %s920
          %s922 = sshll.u32 %s915, 4
          %s923 = int_to_ptr.vmem [resolvable:$true] %s922
          %928 = dma.hbm_to_vmem [thread:$0]  %s921, 512, %s923, %s912, 128, 128, 8
        $region68: #{tpu_custom_call.1} parent=39 // pred_fallthru
          _
        // Predicated region
        $region69: #{tpu_custom_call.1} parent=39 // pred_check
          %p929 = pneg %p348
        $region70: #{tpu_custom_call.1} parent=39 // pred_check_branch
          %931 = sbr.rel (%p929) target = $region72
        $region71: #{tpu_custom_call.1} parent=39 // pred_region
          %s932 = sand.u32 %s62, 1
          %s933 = scalar_lea.sflag [#allocation20], %s932
          %s934 = sand.u32 %s338, 1
          %s935 = scalar_lea.vmem [#allocation19], %s934
          %s937 = ssub.s32 16, 16
          %938 = vsyncadd %s933, %s937
          %s939 = smul.addr %s62, 16
          %s940 = scalar_lea.hbm %s11, %s939
          %s942 = sshll.u32 %s935, 4
          %s943 = int_to_ptr.vmem [resolvable:$true] %s942
          %945 = dma.hbm_to_vmem [thread:$0]  %s940, 16, %s943, %s933
        $region72: #{tpu_custom_call.1} parent=39 // pred_fallthru
          _
        // Predicated region
        $region73: #{tpu_custom_call.1} parent=39 // pred_check
          %p946 = pneg %p374
        $region74: #{tpu_custom_call.1} parent=39 // pred_check_branch
          %948 = sbr.rel (%p946) target = $region76
        $region75: #{tpu_custom_call.1} parent=39 // pred_region
          %s949 = sand.u32 %s62, 1
          %s950 = scalar_lea.sflag [#allocation20], %s949
          %s951 = sand.u32 %s364, 1
          %s952 = smul.addr %s951, 32
          %s953 = scalar_lea.vmem [#allocation21], %s952
          %s955 = ssub.s32 512, 512
          %956 = vsyncadd %s950, %s955
          %s957 = smul.addr %s62, 4
          %s958 = smul.addr %s957, 128
          %s959 = scalar_lea.hbm %s12, %s958
          %s960 = sshll.u32 %s953, 4
          %s961 = int_to_ptr.vmem [resolvable:$true] %s960
          %966 = dma.hbm_to_vmem [thread:$0]  %s959, 512, %s961, %s950, 128, 128, 8
        $region76: #{tpu_custom_call.1} parent=39 // pred_fallthru
          _
        // Predicated region
        $region77: #{tpu_custom_call.1} parent=39 // pred_check
          %p967 = pneg %p400
        $region78: #{tpu_custom_call.1} parent=39 // pred_check_branch
          %969 = sbr.rel (%p967) target = $region80
        $region79: #{tpu_custom_call.1} parent=39 // pred_region
          %s970 = sand.u32 %s62, 1
          %s971 = scalar_lea.sflag [#allocation23], %s970
          %s972 = sand.u32 %s390, 1
          %s973 = scalar_lea.vmem [#allocation22], %s972
          %s975 = ssub.s32 16, 16
          %976 = vsyncadd %s971, %s975
          %s977 = smul.addr %s62, 16
          %s978 = scalar_lea.hbm %s13, %s977
          %s980 = sshll.u32 %s973, 4
          %s981 = int_to_ptr.vmem [resolvable:$true] %s980
          %983 = dma.hbm_to_vmem [thread:$0]  %s978, 16, %s981, %s971
        $region80: #{tpu_custom_call.1} parent=39 // pred_fallthru
          _
        // Predicated region
        $region81: #{tpu_custom_call.1} parent=39 // pred_check
          %p984 = pneg %p426
        $region82: #{tpu_custom_call.1} parent=39 // pred_check_branch
          %986 = sbr.rel (%p984) target = $region84
        $region83: #{tpu_custom_call.1} parent=39 // pred_region
          %s987 = sand.u32 %s62, 1
          %s988 = scalar_lea.sflag [#allocation23], %s987
          %s989 = sand.u32 %s416, 1
          %s990 = smul.addr %s989, 32
          %s991 = scalar_lea.vmem [#allocation24], %s990
          %s993 = ssub.s32 512, 512
          %994 = vsyncadd %s988, %s993
          %s995 = smul.addr %s62, 4
          %s996 = smul.addr %s995, 128
          %s997 = scalar_lea.hbm %s14, %s996
          %s998 = sshll.u32 %s991, 4
          %s999 = int_to_ptr.vmem [resolvable:$true] %s998
          %1004 = dma.hbm_to_vmem [thread:$0]  %s997, 512, %s999, %s988, 128, 128, 8
        $region84: #{tpu_custom_call.1} parent=39 // pred_fallthru
          _
        // Predicated region
        $region85: #{tpu_custom_call.1} parent=39 // pred_check
          %p1005 = pneg %p452
        $region86: #{tpu_custom_call.1} parent=39 // pred_check_branch
          %1007 = sbr.rel (%p1005) target = $region88
        $region87: #{tpu_custom_call.1} parent=39 // pred_region
          %s1008 = sand.u32 %s62, 1
          %s1009 = scalar_lea.sflag [#allocation26], %s1008
          %s1010 = sand.u32 %s442, 1
          %s1011 = scalar_lea.vmem [#allocation25], %s1010
          %s1013 = ssub.s32 16, 16
          %1014 = vsyncadd %s1009, %s1013
          %s1015 = smul.addr %s62, 16
          %s1016 = scalar_lea.hbm %s15, %s1015
          %s1018 = sshll.u32 %s1011, 4
          %s1019 = int_to_ptr.vmem [resolvable:$true] %s1018
          %1021 = dma.hbm_to_vmem [thread:$0]  %s1016, 16, %s1019, %s1009
        $region88: #{tpu_custom_call.1} parent=39 // pred_fallthru
          _
        // Predicated region
        $region89: #{tpu_custom_call.1} parent=39 // pred_check
          %p1022 = pneg %p478
        $region90: #{tpu_custom_call.1} parent=39 // pred_check_branch
          %1024 = sbr.rel (%p1022) target = $region92
        $region91: #{tpu_custom_call.1} parent=39 // pred_region
          %s1025 = sand.u32 %s62, 1
          %s1026 = scalar_lea.sflag [#allocation26], %s1025
          %s1027 = sand.u32 %s468, 1
          %s1028 = smul.addr %s1027, 32
          %s1029 = scalar_lea.vmem [#allocation27], %s1028
          %s1031 = ssub.s32 512, 512
          %1032 = vsyncadd %s1026, %s1031
          %s1033 = smul.addr %s62, 4
          %s1034 = smul.addr %s1033, 128
          %s1035 = scalar_lea.hbm %s16, %s1034
          %s1036 = sshll.u32 %s1029, 4
          %s1037 = int_to_ptr.vmem [resolvable:$true] %s1036
          %1042 = dma.hbm_to_vmem [thread:$0]  %s1035, 512, %s1037, %s1026, 128, 128, 8
        $region92: #{tpu_custom_call.1} parent=39 // pred_fallthru
          _
        // Predicated region
        $region93: #{tpu_custom_call.1} parent=39 // pred_check
          %p1043 = pneg %p504
        $region94: #{tpu_custom_call.1} parent=39 // pred_check_branch
          %1045 = sbr.rel (%p1043) target = $region96
        $region95: #{tpu_custom_call.1} parent=39 // pred_region
          %s1046 = sand.u32 %s62, 1
          %s1047 = scalar_lea.sflag [#allocation29], %s1046
          %s1048 = sand.u32 %s494, 1
          %s1049 = scalar_lea.vmem [#allocation28], %s1048
          %s1051 = ssub.s32 16, 16
          %1052 = vsyncadd %s1047, %s1051
          %s1053 = smul.addr %s62, 16
          %s1054 = scalar_lea.hbm %s17, %s1053
          %s1056 = sshll.u32 %s1049, 4
          %s1057 = int_to_ptr.vmem [resolvable:$true] %s1056
          %1059 = dma.hbm_to_vmem [thread:$0]  %s1054, 16, %s1057, %s1047
        $region96: #{tpu_custom_call.1} parent=39 // pred_fallthru
          _
        // Predicated region
        $region97: #{tpu_custom_call.1} parent=39 // pred_check
          %p1060 = pneg %p530
        $region98: #{tpu_custom_call.1} parent=39 // pred_check_branch
          %1062 = sbr.rel (%p1060) target = $region100
        $region99: #{tpu_custom_call.1} parent=39 // pred_region
          %p1063 = scmp.lt.s32.totalorder %s62, 1
          %s1064 = scalar_select %p1063, %s62, 1
          %s1065 = smul.addr %s1064, 4
          %s1066 = smul.addr %s1065, 8
          %s1067 = scalar_lea.vmem %s18, %s1066
        $region100: #{tpu_custom_call.1} parent=39 // pred_fallthru
          _
        // Predicated region
        $region101: #{tpu_custom_call.1} parent=39 // pred_check
          %p1068 = pneg %p556
        $region102: #{tpu_custom_call.1} parent=39 // pred_check_branch
          %1070 = sbr.rel (%p1068) target = $region104
        $region103: #{tpu_custom_call.1} parent=39 // pred_region
          %p1071 = scmp.lt.s32.totalorder %s62, 1
          %s1072 = scalar_select %p1071, %s62, 1
          %s1073 = scalar_lea.vmem %s19, %s1072
        $region104: #{tpu_custom_call.1} parent=39 // pred_fallthru
          _
        // Predicated region
        $region105: #{tpu_custom_call.1} parent=39 // pred_check
          %p1074 = pneg %p582
        $region106: #{tpu_custom_call.1} parent=39 // pred_check_branch
          %1076 = sbr.rel (%p1074) target = $region108
        $region107: #{tpu_custom_call.1} parent=39 // pred_region
          %s1077 = sand.u32 %s62, 1
          %s1078 = scalar_lea.sflag [#allocation29], %s1077
          %s1079 = sand.u32 %s572, 1
          %s1080 = smul.addr %s1079, 256
          %s1081 = scalar_lea.vmem [#allocation30], %s1080
          %s1083 = ssub.s32 4096, 4096
          %1084 = vsyncadd %s1078, %s1083
          %s1085 = smul.addr %s62, 64
          %s1086 = smul.addr %s1085, 64
          %s1087 = scalar_lea.hbm %s20, %s1086
          %s1088 = sshll.u32 %s1081, 4
          %s1089 = int_to_ptr.vmem [resolvable:$true] %s1088
          %1094 = dma.hbm_to_vmem [thread:$0]  %s1087, 4096, %s1089, %s1078, 1024, 1024, 64
        $region108: #{tpu_custom_call.1} parent=39 // pred_fallthru
          _
        // Predicated region
        $region109: #{tpu_custom_call.1} parent=39 // pred_check
          %p1095 = pneg %p608
        $region110: #{tpu_custom_call.1} parent=39 // pred_check_branch
          %1097 = sbr.rel (%p1095) target = $region112
        $region111: #{tpu_custom_call.1} parent=39 // pred_region
          %s1098 = sand.u32 %s62, 1
          %s1099 = scalar_lea.sflag [#allocation32], %s1098
          %s1100 = sand.u32 %s598, 1
          %s1101 = smul.addr %s1100, 16
          %s1102 = scalar_lea.vmem [#allocation31], %s1101
          %s1104 = ssub.s32 256, 256
          %1105 = vsyncadd %s1099, %s1104
          %s1106 = smul.addr %s62, 16
          %s1107 = smul.addr %s1106, 16
          %s1108 = scalar_lea.hbm %s21, %s1107
          %s1110 = sshll.u32 %s1102, 4
          %s1111 = int_to_ptr.vmem [resolvable:$true] %s1110
          %1113 = dma.hbm_to_vmem [thread:$0]  %s1108, 256, %s1111, %s1099
        $region112: #{tpu_custom_call.1} parent=39 // pred_fallthru
          _
        // Predicated region
        $region113: #{tpu_custom_call.1} parent=39 // pred_check
          %p1114 = pneg %p634
        $region114: #{tpu_custom_call.1} parent=39 // pred_check_branch
          %1116 = sbr.rel (%p1114) target = $region116
        $region115: #{tpu_custom_call.1} parent=39 // pred_region
          %s1117 = sand.u32 %s62, 1
          %s1118 = scalar_lea.sflag [#allocation32], %s1117
          %s1119 = sand.u32 %s624, 1
          %s1120 = smul.addr %s1119, 256
          %s1121 = scalar_lea.vmem [#allocation33], %s1120
          %s1123 = ssub.s32 4096, 4096
          %1124 = vsyncadd %s1118, %s1123
          %s1125 = smul.addr %s62, 64
          %s1126 = smul.addr %s1125, 64
          %s1127 = scalar_lea.hbm %s22, %s1126
          %s1128 = sshll.u32 %s1121, 4
          %s1129 = int_to_ptr.vmem [resolvable:$true] %s1128
          %1134 = dma.hbm_to_vmem [thread:$0]  %s1127, 4096, %s1129, %s1118, 1024, 1024, 64
        $region116: #{tpu_custom_call.1} parent=39 // pred_fallthru
          _
        // Predicated region
        $region117: #{tpu_custom_call.1} parent=39 // pred_check
          %p1135 = pneg %p660
        $region118: #{tpu_custom_call.1} parent=39 // pred_check_branch
          %1137 = sbr.rel (%p1135) target = $region120
        $region119: #{tpu_custom_call.1} parent=39 // pred_region
          %p1138 = scmp.lt.s32.totalorder %s62, 1
          %s1139 = scalar_select %p1138, %s62, 1
          %s1140 = scalar_lea.vmem %s23, %s1139
        $region120: #{tpu_custom_call.1} parent=39 // pred_fallthru
          _
      $region40: #{tpu_custom_call.1} parent=5 // pred_fallthru
        _
      %p1141 = scmp.le.s32.totalorder 1, %s62
      %p1142 = scmp.lt.s32.totalorder %s62, 3
      %p1143 = pnand %p1141, %p1142
      %p1144 = pneg %p1143
      // Predicated region
      $region121: #{tpu_custom_call.1} parent=5 // pred_check
        _
      $region122: #{tpu_custom_call.1} parent=5 // pred_check_branch
        %1146 = sbr.rel (%p1143) target = $region124
      $region123: #{tpu_custom_call.1} parent=5 // pred_region
        %s1147 = ssub.s32 %s62, 1
        // Predicated region
        $region125: #{tpu_custom_call.1} parent=123 // pred_check
          %p1148 = pneg %p83
        $region126: #{tpu_custom_call.1} parent=123 // pred_check_branch
          %1150 = sbr.rel (%p1148) target = $region128
        $region127: #{tpu_custom_call.1} parent=123 // pred_region
          %1151 = dma.done [#allocation5], 256
        $region128: #{tpu_custom_call.1} parent=123 // pred_fallthru
          _
        // Predicated region
        $region129: #{tpu_custom_call.1} parent=123 // pred_check
          %p1152 = pneg %p104
        $region130: #{tpu_custom_call.1} parent=123 // pred_check_branch
          %1154 = sbr.rel (%p1152) target = $region132
        $region131: #{tpu_custom_call.1} parent=123 // pred_region
          %1155 = dma.done [#allocation8], 512
        $region132: #{tpu_custom_call.1} parent=123 // pred_fallthru
          _
        // Predicated region
        $region133: #{tpu_custom_call.1} parent=123 // pred_check
          %p1156 = pneg %p125
        $region134: #{tpu_custom_call.1} parent=123 // pred_check_branch
          %1158 = sbr.rel (%p1156) target = $region136
        $region135: #{tpu_custom_call.1} parent=123 // pred_region
          %1159 = dma.done [#allocation8], 256
        $region136: #{tpu_custom_call.1} parent=123 // pred_fallthru
          _
        %s1160 = sand.u32 %s67, 1
        %s1161 = scalar_lea.sflag [#allocation11], %s1160
        %s1162 = sand.u32 %s185, 1
        %s1163 = scalar_lea.vmem [#allocation10], %s1162
        // Predicated region
        $region137: #{tpu_custom_call.1} parent=123 // pred_check
          %p1164 = pneg %p198
        $region138: #{tpu_custom_call.1} parent=123 // pred_check_branch
          %1166 = sbr.rel (%p1164) target = $region140
        $region139: #{tpu_custom_call.1} parent=123 // pred_region
          %1167 = dma.done %s1161, 16
        $region140: #{tpu_custom_call.1} parent=123 // pred_fallthru
          _
        %s1168 = sand.u32 %s67, 1
        %s1169 = scalar_lea.sflag [#allocation11], %s1168
        %s1170 = sand.u32 %s211, 1
        %s1171 = scalar_lea.vmem [#allocation12], %s1170
        // Predicated region
        $region141: #{tpu_custom_call.1} parent=123 // pred_check
          %p1172 = pneg %p224
        $region142: #{tpu_custom_call.1} parent=123 // pred_check_branch
          %1174 = sbr.rel (%p1172) target = $region144
        $region143: #{tpu_custom_call.1} parent=123 // pred_region
          %1175 = dma.done %s1169, 16
        $region144: #{tpu_custom_call.1} parent=123 // pred_fallthru
          _
        %s1176 = sand.u32 %s67, 1
        %s1177 = scalar_lea.sflag [#allocation14], %s1176
        %s1178 = sand.u32 %s237, 1
        %s1179 = scalar_lea.vmem [#allocation13], %s1178
        // Predicated region
        $region145: #{tpu_custom_call.1} parent=123 // pred_check
          %p1180 = pneg %p250
        $region146: #{tpu_custom_call.1} parent=123 // pred_check_branch
          %1182 = sbr.rel (%p1180) target = $region148
        $region147: #{tpu_custom_call.1} parent=123 // pred_region
          %1183 = dma.done %s1177, 16
        $region148: #{tpu_custom_call.1} parent=123 // pred_fallthru
          _
        %s1184 = sand.u32 %s67, 1
        %s1185 = scalar_lea.sflag [#allocation14], %s1184
        %s1186 = sand.u32 %s263, 1
        %s1187 = scalar_lea.vmem [#allocation15], %s1186
        // Predicated region
        $region149: #{tpu_custom_call.1} parent=123 // pred_check
          %p1188 = pneg %p276
        $region150: #{tpu_custom_call.1} parent=123 // pred_check_branch
          %1190 = sbr.rel (%p1188) target = $region152
        $region151: #{tpu_custom_call.1} parent=123 // pred_region
          %1191 = dma.done %s1185, 16
        $region152: #{tpu_custom_call.1} parent=123 // pred_fallthru
          _
        %s1192 = sand.u32 %s67, 1
        %s1193 = scalar_lea.sflag [#allocation17], %s1192
        %s1194 = sand.u32 %s289, 1
        %s1195 = scalar_lea.vmem [#allocation16], %s1194
        // Predicated region
        $region153: #{tpu_custom_call.1} parent=123 // pred_check
          %p1196 = pneg %p302
        $region154: #{tpu_custom_call.1} parent=123 // pred_check_branch
          %1198 = sbr.rel (%p1196) target = $region156
        $region155: #{tpu_custom_call.1} parent=123 // pred_region
          %1199 = dma.done %s1193, 16
        $region156: #{tpu_custom_call.1} parent=123 // pred_fallthru
          _
        %s1200 = sand.u32 %s67, 1
        %s1201 = scalar_lea.sflag [#allocation17], %s1200
        %s1202 = sand.u32 %s315, 1
        %s1203 = smul.addr %s1202, 32
        %s1204 = scalar_lea.vmem [#allocation18], %s1203
        // Predicated region
        $region157: #{tpu_custom_call.1} parent=123 // pred_check
          %p1205 = pneg %p328
        $region158: #{tpu_custom_call.1} parent=123 // pred_check_branch
          %1207 = sbr.rel (%p1205) target = $region160
        $region159: #{tpu_custom_call.1} parent=123 // pred_region
          %1208 = dma.done %s1201, 512
        $region160: #{tpu_custom_call.1} parent=123 // pred_fallthru
          _
        %s1209 = sand.u32 %s67, 1
        %s1210 = scalar_lea.sflag [#allocation20], %s1209
        %s1211 = sand.u32 %s341, 1
        %s1212 = scalar_lea.vmem [#allocation19], %s1211
        // Predicated region
        $region161: #{tpu_custom_call.1} parent=123 // pred_check
          %p1213 = pneg %p354
        $region162: #{tpu_custom_call.1} parent=123 // pred_check_branch
          %1215 = sbr.rel (%p1213) target = $region164
        $region163: #{tpu_custom_call.1} parent=123 // pred_region
          %1216 = dma.done %s1210, 16
        $region164: #{tpu_custom_call.1} parent=123 // pred_fallthru
          _
        %s1217 = sand.u32 %s67, 1
        %s1218 = scalar_lea.sflag [#allocation20], %s1217
        %s1219 = sand.u32 %s367, 1
        %s1220 = smul.addr %s1219, 32
        %s1221 = scalar_lea.vmem [#allocation21], %s1220
        // Predicated region
        $region165: #{tpu_custom_call.1} parent=123 // pred_check
          %p1222 = pneg %p380
        $region166: #{tpu_custom_call.1} parent=123 // pred_check_branch
          %1224 = sbr.rel (%p1222) target = $region168
        $region167: #{tpu_custom_call.1} parent=123 // pred_region
          %1225 = dma.done %s1218, 512
        $region168: #{tpu_custom_call.1} parent=123 // pred_fallthru
          _
        %s1226 = sand.u32 %s67, 1
        %s1227 = scalar_lea.sflag [#allocation23], %s1226
        %s1228 = sand.u32 %s393, 1
        %s1229 = scalar_lea.vmem [#allocation22], %s1228
        // Predicated region
        $region169: #{tpu_custom_call.1} parent=123 // pred_check
          %p1230 = pneg %p406
        $region170: #{tpu_custom_call.1} parent=123 // pred_check_branch
          %1232 = sbr.rel (%p1230) target = $region172
        $region171: #{tpu_custom_call.1} parent=123 // pred_region
          %1233 = dma.done %s1227, 16
        $region172: #{tpu_custom_call.1} parent=123 // pred_fallthru
          _
        %s1234 = sand.u32 %s67, 1
        %s1235 = scalar_lea.sflag [#allocation23], %s1234
        %s1236 = sand.u32 %s419, 1
        %s1237 = smul.addr %s1236, 32
        %s1238 = scalar_lea.vmem [#allocation24], %s1237
        // Predicated region
        $region173: #{tpu_custom_call.1} parent=123 // pred_check
          %p1239 = pneg %p432
        $region174: #{tpu_custom_call.1} parent=123 // pred_check_branch
          %1241 = sbr.rel (%p1239) target = $region176
        $region175: #{tpu_custom_call.1} parent=123 // pred_region
          %1242 = dma.done %s1235, 512
        $region176: #{tpu_custom_call.1} parent=123 // pred_fallthru
          _
        %s1243 = sand.u32 %s67, 1
        %s1244 = scalar_lea.sflag [#allocation26], %s1243
        %s1245 = sand.u32 %s445, 1
        %s1246 = scalar_lea.vmem [#allocation25], %s1245
        // Predicated region
        $region177: #{tpu_custom_call.1} parent=123 // pred_check
          %p1247 = pneg %p458
        $region178: #{tpu_custom_call.1} parent=123 // pred_check_branch
          %1249 = sbr.rel (%p1247) target = $region180
        $region179: #{tpu_custom_call.1} parent=123 // pred_region
          %1250 = dma.done %s1244, 16
        $region180: #{tpu_custom_call.1} parent=123 // pred_fallthru
          _
        %s1251 = sand.u32 %s67, 1
        %s1252 = scalar_lea.sflag [#allocation26], %s1251
        %s1253 = sand.u32 %s471, 1
        %s1254 = smul.addr %s1253, 32
        %s1255 = scalar_lea.vmem [#allocation27], %s1254
        // Predicated region
        $region181: #{tpu_custom_call.1} parent=123 // pred_check
          %p1256 = pneg %p484
        $region182: #{tpu_custom_call.1} parent=123 // pred_check_branch
          %1258 = sbr.rel (%p1256) target = $region184
        $region183: #{tpu_custom_call.1} parent=123 // pred_region
          %1259 = dma.done %s1252, 512
        $region184: #{tpu_custom_call.1} parent=123 // pred_fallthru
          _
        %s1260 = sand.u32 %s67, 1
        %s1261 = scalar_lea.sflag [#allocation29], %s1260
        %s1262 = sand.u32 %s497, 1
        %s1263 = scalar_lea.vmem [#allocation28], %s1262
        // Predicated region
        $region185: #{tpu_custom_call.1} parent=123 // pred_check
          %p1264 = pneg %p510
        $region186: #{tpu_custom_call.1} parent=123 // pred_check_branch
          %1266 = sbr.rel (%p1264) target = $region188
        $region187: #{tpu_custom_call.1} parent=123 // pred_region
          %1267 = dma.done %s1261, 16
        $region188: #{tpu_custom_call.1} parent=123 // pred_fallthru
          _
        %s1268 = sand.u32 %s67, 1
        %s1269 = scalar_lea.sflag [#allocation29], %s1268
        %s1270 = sand.u32 %s575, 1
        %s1271 = smul.addr %s1270, 256
        %s1272 = scalar_lea.vmem [#allocation30], %s1271
        // Predicated region
        $region189: #{tpu_custom_call.1} parent=123 // pred_check
          %p1273 = pneg %p588
        $region190: #{tpu_custom_call.1} parent=123 // pred_check_branch
          %1275 = sbr.rel (%p1273) target = $region192
        $region191: #{tpu_custom_call.1} parent=123 // pred_region
          %1276 = dma.done %s1269, 4096
        $region192: #{tpu_custom_call.1} parent=123 // pred_fallthru
          _
        %s1277 = sand.u32 %s67, 1
        %s1278 = scalar_lea.sflag [#allocation32], %s1277
        %s1279 = sand.u32 %s601, 1
        %s1280 = smul.addr %s1279, 16
        %s1281 = scalar_lea.vmem [#allocation31], %s1280
        // Predicated region
        $region193: #{tpu_custom_call.1} parent=123 // pred_check
          %p1282 = pneg %p614
        $region194: #{tpu_custom_call.1} parent=123 // pred_check_branch
          %1284 = sbr.rel (%p1282) target = $region196
        $region195: #{tpu_custom_call.1} parent=123 // pred_region
          %1285 = dma.done %s1278, 256
        $region196: #{tpu_custom_call.1} parent=123 // pred_fallthru
          _
        %s1286 = sand.u32 %s67, 1
        %s1287 = scalar_lea.sflag [#allocation32], %s1286
        %s1288 = sand.u32 %s627, 1
        %s1289 = smul.addr %s1288, 256
        %s1290 = scalar_lea.vmem [#allocation33], %s1289
        // Predicated region
        $region197: #{tpu_custom_call.1} parent=123 // pred_check
          %p1291 = pneg %p640
        $region198: #{tpu_custom_call.1} parent=123 // pred_check_branch
          %1293 = sbr.rel (%p1291) target = $region200
        $region199: #{tpu_custom_call.1} parent=123 // pred_region
          %1294 = dma.done %s1287, 4096
        $region200: #{tpu_custom_call.1} parent=123 // pred_fallthru
          _
        %p1295 = pneg %p83
        %p1296 = pneg %p80
        %p1297 = pneg %p104
        %p1298 = pneg %p101
        %p1299 = pneg %p125
        %p1300 = pneg %p122
        %p1301 = pneg %p146
        %p1302 = pneg %p143
        %p1303 = scmp.lt.s32.totalorder %s67, 1
        %s1304 = scalar_select %p1303, %s67, 1
        %s1305 = scalar_lea.vmem %s4, %s1304
        %p1306 = pneg %p172
        %p1307 = pneg %p169
        %s1308 = sand.u32 %s67, 1
        %s1309 = scalar_lea.sflag [#allocation11], %s1308
        %s1310 = sand.u32 %s185, 1
        %s1311 = scalar_lea.vmem [#allocation10], %s1310
        %p1312 = pneg %p198
        %p1313 = pneg %p195
        %s1314 = sand.u32 %s67, 1
        %s1315 = scalar_lea.sflag [#allocation11], %s1314
        %s1316 = sand.u32 %s211, 1
        %s1317 = scalar_lea.vmem [#allocation12], %s1316
        %p1318 = pneg %p224
        %p1319 = pneg %p221
        %s1320 = sand.u32 %s67, 1
        %s1321 = scalar_lea.sflag [#allocation14], %s1320
        %s1322 = sand.u32 %s237, 1
        %s1323 = scalar_lea.vmem [#allocation13], %s1322
        %p1324 = pneg %p250
        %p1325 = pneg %p247
        %s1326 = sand.u32 %s67, 1
        %s1327 = scalar_lea.sflag [#allocation14], %s1326
        %s1328 = sand.u32 %s263, 1
        %s1329 = scalar_lea.vmem [#allocation15], %s1328
        %p1330 = pneg %p276
        %p1331 = pneg %p273
        %s1332 = sand.u32 %s67, 1
        %s1333 = scalar_lea.sflag [#allocation17], %s1332
        %s1334 = sand.u32 %s289, 1
        %s1335 = scalar_lea.vmem [#allocation16], %s1334
        %p1336 = pneg %p302
        %p1337 = pneg %p299
        %s1338 = sand.u32 %s67, 1
        %s1339 = scalar_lea.sflag [#allocation17], %s1338
        %s1340 = sand.u32 %s315, 1
        %s1341 = smul.addr %s1340, 32
        %s1342 = scalar_lea.vmem [#allocation18], %s1341
        %p1343 = pneg %p328
        %p1344 = pneg %p325
        %s1345 = sand.u32 %s67, 1
        %s1346 = scalar_lea.sflag [#allocation20], %s1345
        %s1347 = sand.u32 %s341, 1
        %s1348 = scalar_lea.vmem [#allocation19], %s1347
        %p1349 = pneg %p354
        %p1350 = pneg %p351
        %s1351 = sand.u32 %s67, 1
        %s1352 = scalar_lea.sflag [#allocation20], %s1351
        %s1353 = sand.u32 %s367, 1
        %s1354 = smul.addr %s1353, 32
        %s1355 = scalar_lea.vmem [#allocation21], %s1354
        %p1356 = pneg %p380
        %p1357 = pneg %p377
        %s1358 = sand.u32 %s67, 1
        %s1359 = scalar_lea.sflag [#allocation23], %s1358
        %s1360 = sand.u32 %s393, 1
        %s1361 = scalar_lea.vmem [#allocation22], %s1360
        %p1362 = pneg %p406
        %p1363 = pneg %p403
        %s1364 = sand.u32 %s67, 1
        %s1365 = scalar_lea.sflag [#allocation23], %s1364
        %s1366 = sand.u32 %s419, 1
        %s1367 = smul.addr %s1366, 32
        %s1368 = scalar_lea.vmem [#allocation24], %s1367
        %p1369 = pneg %p432
        %p1370 = pneg %p429
        %s1371 = sand.u32 %s67, 1
        %s1372 = scalar_lea.sflag [#allocation26], %s1371
        %s1373 = sand.u32 %s445, 1
        %s1374 = scalar_lea.vmem [#allocation25], %s1373
        %p1375 = pneg %p458
        %p1376 = pneg %p455
        %s1377 = sand.u32 %s67, 1
        %s1378 = scalar_lea.sflag [#allocation26], %s1377
        %s1379 = sand.u32 %s471, 1
        %s1380 = smul.addr %s1379, 32
        %s1381 = scalar_lea.vmem [#allocation27], %s1380
        %p1382 = pneg %p484
        %p1383 = pneg %p481
        %s1384 = sand.u32 %s67, 1
        %s1385 = scalar_lea.sflag [#allocation29], %s1384
        %s1386 = sand.u32 %s497, 1
        %s1387 = scalar_lea.vmem [#allocation28], %s1386
        %p1388 = pneg %p510
        %p1389 = pneg %p507
        %p1390 = scmp.lt.s32.totalorder %s67, 1
        %s1391 = scalar_select %p1390, %s67, 1
        %s1392 = smul.addr %s1391, 4
        %s1393 = smul.addr %s1392, 8
        %s1394 = scalar_lea.vmem %s18, %s1393
        %p1395 = pneg %p536
        %p1396 = pneg %p533
        %p1397 = scmp.lt.s32.totalorder %s67, 1
        %s1398 = scalar_select %p1397, %s67, 1
        %s1399 = scalar_lea.vmem %s19, %s1398
        %p1400 = pneg %p562
        %p1401 = pneg %p559
        %s1402 = sand.u32 %s67, 1
        %s1403 = scalar_lea.sflag [#allocation29], %s1402
        %s1404 = sand.u32 %s575, 1
        %s1405 = smul.addr %s1404, 256
        %s1406 = scalar_lea.vmem [#allocation30], %s1405
        %p1407 = pneg %p588
        %p1408 = pneg %p585
        %s1409 = sand.u32 %s67, 1
        %s1410 = scalar_lea.sflag [#allocation32], %s1409
        %s1411 = sand.u32 %s601, 1
        %s1412 = smul.addr %s1411, 16
        %s1413 = scalar_lea.vmem [#allocation31], %s1412
        %p1414 = pneg %p614
        %p1415 = pneg %p611
        %s1416 = sand.u32 %s67, 1
        %s1417 = scalar_lea.sflag [#allocation32], %s1416
        %s1418 = sand.u32 %s627, 1
        %s1419 = smul.addr %s1418, 256
        %s1420 = scalar_lea.vmem [#allocation33], %s1419
        %p1421 = pneg %p640
        %p1422 = pneg %p637
        %p1423 = scmp.lt.s32.totalorder %s67, 1
        %s1424 = scalar_select %p1423, %s67, 1
        %s1425 = scalar_lea.vmem %s23, %s1424
        %p1426 = pneg %p666
        %p1427 = pneg %p663
        %p1428 = pneg %p687
        %p1429 = pneg %p684
        %p1430 = pneg %p708
        %p1431 = pneg %p705
        %p1432 = pneg %p729
        %p1433 = pneg %p726
        %p1434 = pneg %p750
        %p1435 = pneg %p747
        %p1436 = scmp.lt.s32.totalorder %s67, 1
        %s1437 = scalar_select %p1436, %s67, 1
        %s1438 = scalar_lea.vmem %s4, %s1437
        %p1439 = scmp.lt.s32.totalorder %s67, 1
        %s1440 = scalar_select %p1439, %s67, 1
        %s1441 = smul.addr %s1440, 4
        %s1442 = smul.addr %s1441, 8
        %s1443 = scalar_lea.vmem %s18, %s1442
        %p1444 = scmp.lt.s32.totalorder %s67, 1
        %s1445 = scalar_select %p1444, %s67, 1
        %s1446 = scalar_lea.vmem %s19, %s1445
        %p1447 = scmp.lt.s32.totalorder %s67, 1
        %s1448 = scalar_select %p1447, %s67, 1
        %s1449 = scalar_lea.vmem %s23, %s1448
        %p1451 = scmp.eq.s32.totalorder %s67, 0
        // Predicated region
        $region201: #{tpu_custom_call.1} parent=123 // pred_check
          %p1452 = pneg %p1451
        $region202: #{tpu_custom_call.1} parent=123 // pred_check_branch
          %1454 = sbr.rel (%p1452) target = $region204
        $region203: #{tpu_custom_call.1} parent=123 // pred_region
          %v1455 = vld [vmem:[#allocation4] sm:$0xff]
          %v1456 = vld [vmem:[#allocation4 + $0x8] sm:$0xff]
          %vm1457 = vcmask 261120
          %1458 = vst.msk [vmem:[#allocation2] sm:$0xff] %vm1457, %v1455
          %1459 = vst.msk [vmem:[#allocation2 + $0x8] sm:$0xff] %vm1457, %v1456
          %vm1460 = vcmask 130048
          %1461 = vst.msk [vmem:[#allocation3] sm:$0xff] %vm1460, 0.0
          %1462 = vst.msk [vmem:[#allocation3 + $0x8] sm:$0xff] %vm1460, 0.0
          %1463 = vst.msk [vmem:[#allocation3 + $0x10] sm:$0xff] %vm1460, 0.0
          %1464 = vst.msk [vmem:[#allocation3 + $0x18] sm:$0xff] %vm1460, 0.0
          %1465 = vst.msk [vmem:[#allocation3 + $0x20] sm:$0xff] %vm1460, 0.0
          %1466 = vst.msk [vmem:[#allocation3 + $0x28] sm:$0xff] %vm1460, 0.0
          %1467 = vst.msk [vmem:[#allocation3 + $0x30] sm:$0xff] %vm1460, 0.0
          %1468 = vst.msk [vmem:[#allocation3 + $0x38] sm:$0xff] %vm1460, 0.0
        $region204: #{tpu_custom_call.1} parent=123 // pred_fallthru
          _
        %v1469 = vld [vmem:[#allocation2] sm:$0xff]
        %v1470 = vld [vmem:[#allocation2 + $0x8] sm:$0xff]
        %v1471 = vld [vmem:[#allocation9] sm:$0xff]
        %v1472 = vld [vmem:[#allocation9 + $0x8] sm:$0xff]
        %v1473 = vld [vmem:[%s3] sm:$0x1]
        %v1474 = vld [vmem:[%s3 + $0x1] sm:$0x1]
        %v1475 = vld [vmem:[%s1438] sm:$0x1]
        %v1476 = vld [vmem:[%s1163] sm:$0x1]
        %vm1477 = vcmask 261120
        %v1478 = vsel %vm1477, %v1469, 0.0
        %1479 = vadd.xlane.f32.xlu0 %v1478
        %v1480 = vpop.xlane.xlu0 %1479
        %v1481 = vsel %vm1477, %v1470, 0.0
        %1482 = vadd.xlane.f32.xlu0 %v1481
        %v1483 = vpop.xlane.xlu0 %1482
        %v1484 = vrcp.pop 32.0
        %v1485 = vmul.f32 %v1480, %v1484
        %v1486 = vmul.f32 %v1483, %v1484
        %v1487 = vsub.f32 %v1469, %v1485
        %v1488 = vsub.f32 %v1470, %v1486
        %v1489 = vmul.f32 %v1487, %v1487
        %v1490 = vmul.f32 %v1488, %v1488
        %v1491 = vsel %vm1477, %v1489, 0.0
        %1492 = vadd.xlane.f32.xlu0 %v1491
        %v1493 = vpop.xlane.xlu0 %1492
        %v1494 = vsel %vm1477, %v1490, 0.0
        %1495 = vadd.xlane.f32.xlu0 %v1494
        %v1496 = vpop.xlane.xlu0 %1495
        %v1497 = vrcp.pop 31.0
        %v1498 = vmul.f32 %v1493, %v1497
        %v1499 = vmul.f32 %v1496, %v1497
        %v1500 = vrsqrt.pop %v1498
        %v1501 = vmul.f32 %v1498, %v1500
        %vm1502 = vcmp.eq.f32.partialorder %v1498, inf
        %v1503 = vsel %vm1502, %v1498, %v1501
        %vm1504 = vcmp.eq.f32.partialorder %v1498, 0.0
        %v1505 = vand.u32 %v1498, 2147483648
        %v1506 = vsel %vm1504, %v1505, %v1503
        %v1507 = vrsqrt.pop %v1499
        %v1508 = vmul.f32 %v1499, %v1507
        %vm1509 = vcmp.eq.f32.partialorder %v1499, inf
        %v1510 = vsel %vm1509, %v1499, %v1508
        %vm1511 = vcmp.eq.f32.partialorder %v1499, 0.0
        %v1512 = vand.u32 %v1499, 2147483648
        %v1513 = vsel %vm1511, %v1512, %v1510
        %v1514 = vadd.f32 %v1506, 1e-06
        %v1515 = vadd.f32 %v1513, 1e-06
        %v1516 = vrcp.pop %v1514
        %v1517 = vrcp.pop %v1515
        %v1519 = vlaneseq
        %v1520 = vshrl.u32 %v1519, 7
        %v1521 = vsub.s32 0, %v1520
        %v1522 = vrot.slane %v1475, %v1521
        %v1524 = vmul.f32 %v1522, %v1487
        %v1525 = vmul.f32 %v1522, %v1488
        %v1526 = vmul.f32 %v1524, %v1516
        %v1527 = vmul.f32 %v1525, %v1517
        %v1529 = vlaneseq
        %v1530 = vshrl.u32 %v1529, 7
        %v1531 = vsub.s32 0, %v1530
        %v1532 = vrot.slane %v1476, %v1531
        %v1534 = vadd.f32 %v1526, %v1532
        %v1535 = vadd.f32 %v1527, %v1532
        %v1536 = vld [vmem:[%s1204] sm:$0xff]
        %v1537 = vld [vmem:[%s1204 + $0x8] sm:$0xff]
        %v1538 = vld [vmem:[%s1204 + $0x10] sm:$0xff]
        %v1539 = vld [vmem:[%s1204 + $0x18] sm:$0xff]
        %v1540 = vld [vmem:[%s1212] sm:$0x1]
        %v1542 = vlaneseq
        %v1543 = vshrl.u32 %v1542, 7
        %v1544 = vsub.s32 0, %v1543
        %v1545 = vrot.slane %v1540, %v1544
        %v1548 = vsel %vm1477, %v1534, 0
        %v1551 = vsel %vm1477, %v1535, 0
        %1553 = vmatprep.subr.mxu0 0.0
        %1554 = vmatpush1.msra.mxu0 %v1536
        %1555 = vmatprep.subr.mxu0 0.0
        %1556 = vmatpush1.msra.mxu0 %v1537
        %1557 = vmatprep.subr.mxu0 0.0
        %1558 = vmatpush1.msra.mxu0 %v1538
        %1559 = vmatprep.subr.mxu0 0.0
        %1560 = vmatpush1.msra.mxu0 %v1539
        %1561 = vmatprep.subr.mxu0 0.0
        %1562 = vmatpush1.msra.mxu0 0.0
        %1563 = vmatprep.subr.mxu0 0.0
        %1564 = vmatpush1.msra.mxu0 0.0
        %1565 = vmatprep.subr.mxu0 0.0
        %1566 = vmatpush1.msra.mxu0 0.0
        %1567 = vmatprep.subr.mxu0 0.0
        %1568 = vmatpush1.msra.mxu0 0.0
        %1569 = vmatprep.subr.mxu0 0.0
        %1570 = vmatpush1.msra.mxu0 0.0
        %1571 = vmatprep.subr.mxu0 0.0
        %1572 = vmatpush1.msra.mxu0 0.0
        %1573 = vmatprep.subr.mxu0 0.0
        %1574 = vmatpush1.msra.mxu0 0.0
        %1575 = vmatprep.subr.mxu0 0.0
        %1576 = vmatpush1.msra.mxu0 0.0
        %1577 = vmatprep.subr.mxu0 0.0
        %1578 = vmatpush1.msra.mxu0 0.0
        %1579 = vmatprep.subr.mxu0 0.0
        %1580 = vmatpush1.msra.mxu0 0.0
        %1581 = vmatprep.subr.mxu0 0.0
        %1582 = vmatpush1.msra.mxu0 0.0
        %1583 = vmatprep.subr.mxu0 0.0
        %1584 = vmatpush1.msra.mxu0 0.0
        %1585 = vmatprep.subr.mxu0 0.0
        %1586 = vmatpush1.msra.mxu0 0.0
        %1587 = vmatprep.subr.mxu0 0.0
        %1588 = vmatpush1.msra.mxu0 0.0
        %1589 = vmatprep.subr.mxu0 0.0
        %1590 = vmatpush1.msra.mxu0 0.0
        %1591 = vmatprep.subr.mxu0 0.0
        %1592 = vmatpush1.msra.mxu0 0.0
        %1593 = vmatprep.subr.mxu0 0.0
        %1594 = vmatpush1.msra.mxu0 0.0
        %1595 = vmatprep.subr.mxu0 0.0
        %1596 = vmatpush1.msra.mxu0 0.0
        %1597 = vmatprep.subr.mxu0 0.0
        %1598 = vmatpush1.msra.mxu0 0.0
        %1599 = vmatprep.subr.mxu0 0.0
        %1600 = vmatpush1.msra.mxu0 0.0
        %1601 = vmatprep.subr.mxu0 0.0
        %1602 = vmatpush1.msra.mxu0 0.0
        %1603 = vmatprep.subr.mxu0 0.0
        %1604 = vmatpush1.msra.mxu0 0.0
        %1605 = vmatprep.subr.mxu0 0.0
        %1606 = vmatpush1.msra.mxu0 0.0
        %1607 = vmatprep.subr.mxu0 0.0
        %1608 = vmatpush1.msra.mxu0 0.0
        %1609 = vmatprep.subr.mxu0 0.0
        %1610 = vmatpush1.msra.mxu0 0.0
        %1611 = vmatprep.subr.mxu0 0.0
        %1612 = vmatpush1.msra.mxu0 0.0
        %1613 = vmatprep.subr.mxu0 0.0
        %1614 = vmatpush1.msra.mxu0 0.0
        %1615 = vmatprep.subr.mxu0 0.0
        %1616 = vmatpush1.msra.mxu0 0.0
        %1617 = vmatprep.mubr.f32.mxu0 0.0
        %1618 = vmatmul.mubr.f32.gmra.mrb[0].mxu0 %v1548
        %v1619 = vpop.f32.mrb[0].mxu0
        %v1620 = vadd.f32 %v1545, %v1619
        %v1621 = vpop.f32.mrb[0].mxu0
        %1622 = vmatprep.mubr.f32.mxu0 0.0
        %1623 = vmatmul.mubr.f32.gmra.mrb[0].mxu0 %v1551
        %v1624 = vpop.f32.mrb[0].mxu0
        %v1625 = vadd.f32 %v1545, %v1624
        %v1626 = vpop.f32.mrb[0].mxu0
        %1627 = vdwg.mxu0
        %1629 = vrot.lane.b32.xlu0 %v1620, 96
        %v1630 = vpop.permute.xlu0 %1629
        %vm1631 = vcmask 64512
        %v1632 = vsel %vm1631, %v1620, 0
        %v1634 = vsel %vm1631, %v1630, 0
        %1636 = vmatprep.subr.mxu0 0.0
        %1637 = vmatpush1.xpose.msra.mxu0 %v1634
        %1638 = vmatprep.subr.mxu0 0.0
        %1639 = vmatpush1.xpose.msra.mxu0 0.0
        %1640 = vmatprep.subr.mxu0 0.0
        %1641 = vmatpush1.xpose.msra.mxu0 0.0
        %1642 = vmatprep.subr.mxu0 0.0
        %1643 = vmatpush1.xpose.msra.mxu0 0.0
        %1644 = vmatprep.subr.mxu0 0.0
        %1645 = vmatpush1.xpose.msra.mxu0 0.0
        %1646 = vmatprep.subr.mxu0 0.0
        %1647 = vmatpush1.xpose.msra.mxu0 0.0
        %1648 = vmatprep.subr.mxu0 0.0
        %1649 = vmatpush1.xpose.msra.mxu0 0.0
        %1650 = vmatprep.subr.mxu0 0.0
        %1651 = vmatpush1.xpose.msra.mxu0 0.0
        %1652 = vmatprep.subr.mxu0 0.0
        %1653 = vmatpush1.xpose.msra.mxu0 0.0
        %1654 = vmatprep.subr.mxu0 0.0
        %1655 = vmatpush1.xpose.msra.mxu0 0.0
        %1656 = vmatprep.subr.mxu0 0.0
        %1657 = vmatpush1.xpose.msra.mxu0 0.0
        %1658 = vmatprep.subr.mxu0 0.0
        %1659 = vmatpush1.xpose.msra.mxu0 0.0
        %1660 = vmatprep.subr.mxu0 0.0
        %1661 = vmatpush1.xpose.msra.mxu0 0.0
        %1662 = vmatprep.subr.mxu0 0.0
        %1663 = vmatpush1.xpose.msra.mxu0 0.0
        %1664 = vmatprep.subr.mxu0 0.0
        %1665 = vmatpush1.xpose.msra.mxu0 0.0
        %1666 = vmatprep.subr.mxu0 0.0
        %1667 = vmatpush1.xpose.msra.mxu0 0.0
        %1668 = vmatprep.subr.mxu0 0.0
        %1669 = vmatpush1.xpose.msra.mxu0 0.0
        %1670 = vmatprep.subr.mxu0 0.0
        %1671 = vmatpush1.xpose.msra.mxu0 0.0
        %1672 = vmatprep.subr.mxu0 0.0
        %1673 = vmatpush1.xpose.msra.mxu0 0.0
        %1674 = vmatprep.subr.mxu0 0.0
        %1675 = vmatpush1.xpose.msra.mxu0 0.0
        %1676 = vmatprep.subr.mxu0 0.0
        %1677 = vmatpush1.xpose.msra.mxu0 0.0
        %1678 = vmatprep.subr.mxu0 0.0
        %1679 = vmatpush1.xpose.msra.mxu0 0.0
        %1680 = vmatprep.subr.mxu0 0.0
        %1681 = vmatpush1.xpose.msra.mxu0 0.0
        %1682 = vmatprep.subr.mxu0 0.0
        %1683 = vmatpush1.xpose.msra.mxu0 0.0
        %1684 = vmatprep.subr.mxu0 0.0
        %1685 = vmatpush1.xpose.msra.mxu0 0.0
        %1686 = vmatprep.subr.mxu0 0.0
        %1687 = vmatpush1.xpose.msra.mxu0 0.0
        %1688 = vmatprep.subr.mxu0 0.0
        %1689 = vmatpush1.xpose.msra.mxu0 0.0
        %1690 = vmatprep.subr.mxu0 0.0
        %1691 = vmatpush1.xpose.msra.mxu0 0.0
        %1692 = vmatprep.subr.mxu0 0.0
        %1693 = vmatpush1.xpose.msra.mxu0 0.0
        %1694 = vmatprep.subr.mxu0 0.0
        %1695 = vmatpush1.xpose.msra.mxu0 0.0
        %1696 = vmatprep.subr.mxu0 0.0
        %1697 = vmatpush1.xpose.msra.mxu0 0.0
        %1698 = vmatprep.subr.mxu0 0.0
        %1699 = vmatpush1.xpose.msra.mxu0 0.0
        %1700 = vmatprep.mubr.f32.mxu0 0.0
        %1701 = vmatmul.mubr.f32.gmra.mrb[0].mxu0 %v1632
        %v1702 = vpop.f32.mrb[0].mxu0
        %v1703 = vadd.f32 0.0, %v1702
        %v1704 = vpop.f32.mrb[0].mxu0
        %1705 = vdwg.mxu0
        %1707 = vrot.lane.b32.xlu0 %v1625, 96
        %v1708 = vpop.permute.xlu0 %1707
        %v1709 = vsel %vm1631, %v1625, 0
        %v1711 = vsel %vm1631, %v1708, 0
        %1713 = vmatprep.subr.mxu0 0.0
        %1714 = vmatpush1.xpose.msra.mxu0 %v1711
        %1715 = vmatprep.subr.mxu0 0.0
        %1716 = vmatpush1.xpose.msra.mxu0 0.0
        %1717 = vmatprep.subr.mxu0 0.0
        %1718 = vmatpush1.xpose.msra.mxu0 0.0
        %1719 = vmatprep.subr.mxu0 0.0
        %1720 = vmatpush1.xpose.msra.mxu0 0.0
        %1721 = vmatprep.subr.mxu0 0.0
        %1722 = vmatpush1.xpose.msra.mxu0 0.0
        %1723 = vmatprep.subr.mxu0 0.0
        %1724 = vmatpush1.xpose.msra.mxu0 0.0
        %1725 = vmatprep.subr.mxu0 0.0
        %1726 = vmatpush1.xpose.msra.mxu0 0.0
        %1727 = vmatprep.subr.mxu0 0.0
        %1728 = vmatpush1.xpose.msra.mxu0 0.0
        %1729 = vmatprep.subr.mxu0 0.0
        %1730 = vmatpush1.xpose.msra.mxu0 0.0
        %1731 = vmatprep.subr.mxu0 0.0
        %1732 = vmatpush1.xpose.msra.mxu0 0.0
        %1733 = vmatprep.subr.mxu0 0.0
        %1734 = vmatpush1.xpose.msra.mxu0 0.0
        %1735 = vmatprep.subr.mxu0 0.0
        %1736 = vmatpush1.xpose.msra.mxu0 0.0
        %1737 = vmatprep.subr.mxu0 0.0
        %1738 = vmatpush1.xpose.msra.mxu0 0.0
        %1739 = vmatprep.subr.mxu0 0.0
        %1740 = vmatpush1.xpose.msra.mxu0 0.0
        %1741 = vmatprep.subr.mxu0 0.0
        %1742 = vmatpush1.xpose.msra.mxu0 0.0
        %1743 = vmatprep.subr.mxu0 0.0
        %1744 = vmatpush1.xpose.msra.mxu0 0.0
        %1745 = vmatprep.subr.mxu0 0.0
        %1746 = vmatpush1.xpose.msra.mxu0 0.0
        %1747 = vmatprep.subr.mxu0 0.0
        %1748 = vmatpush1.xpose.msra.mxu0 0.0
        %1749 = vmatprep.subr.mxu0 0.0
        %1750 = vmatpush1.xpose.msra.mxu0 0.0
        %1751 = vmatprep.subr.mxu0 0.0
        %1752 = vmatpush1.xpose.msra.mxu0 0.0
        %1753 = vmatprep.subr.mxu0 0.0
        %1754 = vmatpush1.xpose.msra.mxu0 0.0
        %1755 = vmatprep.subr.mxu0 0.0
        %1756 = vmatpush1.xpose.msra.mxu0 0.0
        %1757 = vmatprep.subr.mxu0 0.0
        %1758 = vmatpush1.xpose.msra.mxu0 0.0
        %1759 = vmatprep.subr.mxu0 0.0
        %1760 = vmatpush1.xpose.msra.mxu0 0.0
        %1761 = vmatprep.subr.mxu0 0.0
        %1762 = vmatpush1.xpose.msra.mxu0 0.0
        %1763 = vmatprep.subr.mxu0 0.0
        %1764 = vmatpush1.xpose.msra.mxu0 0.0
        %1765 = vmatprep.subr.mxu0 0.0
        %1766 = vmatpush1.xpose.msra.mxu0 0.0
        %1767 = vmatprep.subr.mxu0 0.0
        %1768 = vmatpush1.xpose.msra.mxu0 0.0
        %1769 = vmatprep.subr.mxu0 0.0
        %1770 = vmatpush1.xpose.msra.mxu0 0.0
        %1771 = vmatprep.subr.mxu0 0.0
        %1772 = vmatpush1.xpose.msra.mxu0 0.0
        %1773 = vmatprep.subr.mxu0 0.0
        %1774 = vmatpush1.xpose.msra.mxu0 0.0
        %1775 = vmatprep.subr.mxu0 0.0
        %1776 = vmatpush1.xpose.msra.mxu0 0.0
        %1777 = vmatprep.mubr.f32.mxu0 0.0
        %1778 = vmatmul.mubr.f32.gmra.mrb[0].mxu0 %v1709
        %v1779 = vpop.f32.mrb[0].mxu0
        %v1780 = vadd.f32 0.0, %v1779
        %v1781 = vpop.f32.mrb[0].mxu0
        %1782 = vdwg.mxu0
        %v1783 = vmul.f32 %v1703, 0.35355338
        %v1784 = vmul.f32 %v1780, 0.35355338
        %v1785 = vadd.f32 %v1783, %v1471
        %v1786 = vadd.f32 %v1784, %v1472
        %v1787 = vsel %vm1631, %v1785, -inf
        %1788 = vmax.xlane.f32.xlu0 %v1787
        %v1789 = vpop.xlane.xlu0 %1788
        %v1790 = vsel %vm1631, %v1786, -inf
        %1791 = vmax.xlane.f32.xlu0 %v1790
        %v1792 = vpop.xlane.xlu0 %1791
        %v1793 = vsub.f32 %v1785, %v1789
        %v1794 = vsub.f32 %v1786, %v1792
        %v1795 = vmul.f32 %v1793, 1.442695
        %v1796 = vpow.pop %v1795
        %v1797 = vmul.f32 %v1794, 1.442695
        %v1798 = vpow.pop %v1797
        %v1799 = vsel %vm1631, %v1796, 0.0
        %1800 = vadd.xlane.f32.xlu0 %v1799
        %v1801 = vpop.xlane.xlu0 %1800
        %v1802 = vsel %vm1631, %v1798, 0.0
        %1803 = vadd.xlane.f32.xlu0 %v1802
        %v1804 = vpop.xlane.xlu0 %1803
        %v1805 = vrcp.pop %v1801
        %v1806 = vrcp.pop %v1804
        %v1807 = vmul.f32 %v1796, %v1805
        %v1808 = vmul.f32 %v1798, %v1806
        %1809 = vrot.lane.b32.xlu0 %v1620, 64
        %v1810 = vpop.permute.xlu0 %1809
        %v1813 = vsel %vm1631, %v1807, 0
        %1815 = vmatprep.subr.mxu0 0.0
        %1816 = vmatpush1.msra.mxu0 %v1810
        %1817 = vmatprep.subr.mxu0 0.0
        %1818 = vmatpush1.msra.mxu0 0.0
        %1819 = vmatprep.subr.mxu0 0.0
        %1820 = vmatpush1.msra.mxu0 0.0
        %1821 = vmatprep.subr.mxu0 0.0
        %1822 = vmatpush1.msra.mxu0 0.0
        %1823 = vmatprep.subr.mxu0 0.0
        %1824 = vmatpush1.msra.mxu0 0.0
        %1825 = vmatprep.subr.mxu0 0.0
        %1826 = vmatpush1.msra.mxu0 0.0
        %1827 = vmatprep.subr.mxu0 0.0
        %1828 = vmatpush1.msra.mxu0 0.0
        %1829 = vmatprep.subr.mxu0 0.0
        %1830 = vmatpush1.msra.mxu0 0.0
        %1831 = vmatprep.subr.mxu0 0.0
        %1832 = vmatpush1.msra.mxu0 0.0
        %1833 = vmatprep.subr.mxu0 0.0
        %1834 = vmatpush1.msra.mxu0 0.0
        %1835 = vmatprep.subr.mxu0 0.0
        %1836 = vmatpush1.msra.mxu0 0.0
        %1837 = vmatprep.subr.mxu0 0.0
        %1838 = vmatpush1.msra.mxu0 0.0
        %1839 = vmatprep.subr.mxu0 0.0
        %1840 = vmatpush1.msra.mxu0 0.0
        %1841 = vmatprep.subr.mxu0 0.0
        %1842 = vmatpush1.msra.mxu0 0.0
        %1843 = vmatprep.subr.mxu0 0.0
        %1844 = vmatpush1.msra.mxu0 0.0
        %1845 = vmatprep.subr.mxu0 0.0
        %1846 = vmatpush1.msra.mxu0 0.0
        %1847 = vmatprep.subr.mxu0 0.0
        %1848 = vmatpush1.msra.mxu0 0.0
        %1849 = vmatprep.subr.mxu0 0.0
        %1850 = vmatpush1.msra.mxu0 0.0
        %1851 = vmatprep.subr.mxu0 0.0
        %1852 = vmatpush1.msra.mxu0 0.0
        %1853 = vmatprep.subr.mxu0 0.0
        %1854 = vmatpush1.msra.mxu0 0.0
        %1855 = vmatprep.subr.mxu0 0.0
        %1856 = vmatpush1.msra.mxu0 0.0
        %1857 = vmatprep.subr.mxu0 0.0
        %1858 = vmatpush1.msra.mxu0 0.0
        %1859 = vmatprep.subr.mxu0 0.0
        %1860 = vmatpush1.msra.mxu0 0.0
        %1861 = vmatprep.subr.mxu0 0.0
        %1862 = vmatpush1.msra.mxu0 0.0
        %1863 = vmatprep.subr.mxu0 0.0
        %1864 = vmatpush1.msra.mxu0 0.0
        %1865 = vmatprep.subr.mxu0 0.0
        %1866 = vmatpush1.msra.mxu0 0.0
        %1867 = vmatprep.subr.mxu0 0.0
        %1868 = vmatpush1.msra.mxu0 0.0
        %1869 = vmatprep.subr.mxu0 0.0
        %1870 = vmatpush1.msra.mxu0 0.0
        %1871 = vmatprep.subr.mxu0 0.0
        %1872 = vmatpush1.msra.mxu0 0.0
        %1873 = vmatprep.subr.mxu0 0.0
        %1874 = vmatpush1.msra.mxu0 0.0
        %1875 = vmatprep.subr.mxu0 0.0
        %1876 = vmatpush1.msra.mxu0 0.0
        %1877 = vmatprep.subr.mxu0 0.0
        %1878 = vmatpush1.msra.mxu0 0.0
        %1879 = vmatprep.mubr.f32.mxu0 0.0
        %1880 = vmatmul.mubr.f32.gmra.mrb[0].mxu0 %v1813
        %v1881 = vpop.f32.mrb[0].mxu0
        %v1882 = vadd.f32 0.0, %v1881
        %v1883 = vpop.f32.mrb[0].mxu0
        %1884 = vdwg.mxu0
        %1885 = vrot.lane.b32.xlu0 %v1625, 64
        %v1886 = vpop.permute.xlu0 %1885
        %v1889 = vsel %vm1631, %v1808, 0
        %1891 = vmatprep.subr.mxu0 0.0
        %1892 = vmatpush1.msra.mxu0 %v1886
        %1893 = vmatprep.subr.mxu0 0.0
        %1894 = vmatpush1.msra.mxu0 0.0
        %1895 = vmatprep.subr.mxu0 0.0
        %1896 = vmatpush1.msra.mxu0 0.0
        %1897 = vmatprep.subr.mxu0 0.0
        %1898 = vmatpush1.msra.mxu0 0.0
        %1899 = vmatprep.subr.mxu0 0.0
        %1900 = vmatpush1.msra.mxu0 0.0
        %1901 = vmatprep.subr.mxu0 0.0
        %1902 = vmatpush1.msra.mxu0 0.0
        %1903 = vmatprep.subr.mxu0 0.0
        %1904 = vmatpush1.msra.mxu0 0.0
        %1905 = vmatprep.subr.mxu0 0.0
        %1906 = vmatpush1.msra.mxu0 0.0
        %1907 = vmatprep.subr.mxu0 0.0
        %1908 = vmatpush1.msra.mxu0 0.0
        %1909 = vmatprep.subr.mxu0 0.0
        %1910 = vmatpush1.msra.mxu0 0.0
        %1911 = vmatprep.subr.mxu0 0.0
        %1912 = vmatpush1.msra.mxu0 0.0
        %1913 = vmatprep.subr.mxu0 0.0
        %1914 = vmatpush1.msra.mxu0 0.0
        %1915 = vmatprep.subr.mxu0 0.0
        %1916 = vmatpush1.msra.mxu0 0.0
        %1917 = vmatprep.subr.mxu0 0.0
        %1918 = vmatpush1.msra.mxu0 0.0
        %1919 = vmatprep.subr.mxu0 0.0
        %1920 = vmatpush1.msra.mxu0 0.0
        %1921 = vmatprep.subr.mxu0 0.0
        %1922 = vmatpush1.msra.mxu0 0.0
        %1923 = vmatprep.subr.mxu0 0.0
        %1924 = vmatpush1.msra.mxu0 0.0
        %1925 = vmatprep.subr.mxu0 0.0
        %1926 = vmatpush1.msra.mxu0 0.0
        %1927 = vmatprep.subr.mxu0 0.0
        %1928 = vmatpush1.msra.mxu0 0.0
        %1929 = vmatprep.subr.mxu0 0.0
        %1930 = vmatpush1.msra.mxu0 0.0
        %1931 = vmatprep.subr.mxu0 0.0
        %1932 = vmatpush1.msra.mxu0 0.0
        %1933 = vmatprep.subr.mxu0 0.0
        %1934 = vmatpush1.msra.mxu0 0.0
        %1935 = vmatprep.subr.mxu0 0.0
        %1936 = vmatpush1.msra.mxu0 0.0
        %1937 = vmatprep.subr.mxu0 0.0
        %1938 = vmatpush1.msra.mxu0 0.0
        %1939 = vmatprep.subr.mxu0 0.0
        %1940 = vmatpush1.msra.mxu0 0.0
        %1941 = vmatprep.subr.mxu0 0.0
        %1942 = vmatpush1.msra.mxu0 0.0
        %1943 = vmatprep.subr.mxu0 0.0
        %1944 = vmatpush1.msra.mxu0 0.0
        %1945 = vmatprep.subr.mxu0 0.0
        %1946 = vmatpush1.msra.mxu0 0.0
        %1947 = vmatprep.subr.mxu0 0.0
        %1948 = vmatpush1.msra.mxu0 0.0
        %1949 = vmatprep.subr.mxu0 0.0
        %1950 = vmatpush1.msra.mxu0 0.0
        %1951 = vmatprep.subr.mxu0 0.0
        %1952 = vmatpush1.msra.mxu0 0.0
        %1953 = vmatprep.subr.mxu0 0.0
        %1954 = vmatpush1.msra.mxu0 0.0
        %1955 = vmatprep.mubr.f32.mxu0 0.0
        %1956 = vmatmul.mubr.f32.gmra.mrb[0].mxu0 %v1889
        %v1957 = vpop.f32.mrb[0].mxu0
        %v1958 = vadd.f32 0.0, %v1957
        %v1959 = vpop.f32.mrb[0].mxu0
        %1960 = vdwg.mxu0
        %1961 = vrot.lane.b32.xlu0 %v1620, 120
        %v1962 = vpop.permute.xlu0 %1961
        %1963 = vrot.lane.b32.xlu0 %v1620, 88
        %v1964 = vpop.permute.xlu0 %1963
        %v1965 = vsel %vm1631, %v1962, 0
        %v1967 = vsel %vm1631, %v1964, 0
        %1969 = vmatprep.subr.mxu0 0.0
        %1970 = vmatpush1.xpose.msra.mxu0 %v1967
        %1971 = vmatprep.subr.mxu0 0.0
        %1972 = vmatpush1.xpose.msra.mxu0 0.0
        %1973 = vmatprep.subr.mxu0 0.0
        %1974 = vmatpush1.xpose.msra.mxu0 0.0
        %1975 = vmatprep.subr.mxu0 0.0
        %1976 = vmatpush1.xpose.msra.mxu0 0.0
        %1977 = vmatprep.subr.mxu0 0.0
        %1978 = vmatpush1.xpose.msra.mxu0 0.0
        %1979 = vmatprep.subr.mxu0 0.0
        %1980 = vmatpush1.xpose.msra.mxu0 0.0
        %1981 = vmatprep.subr.mxu0 0.0
        %1982 = vmatpush1.xpose.msra.mxu0 0.0
        %1983 = vmatprep.subr.mxu0 0.0
        %1984 = vmatpush1.xpose.msra.mxu0 0.0
        %1985 = vmatprep.subr.mxu0 0.0
        %1986 = vmatpush1.xpose.msra.mxu0 0.0
        %1987 = vmatprep.subr.mxu0 0.0
        %1988 = vmatpush1.xpose.msra.mxu0 0.0
        %1989 = vmatprep.subr.mxu0 0.0
        %1990 = vmatpush1.xpose.msra.mxu0 0.0
        %1991 = vmatprep.subr.mxu0 0.0
        %1992 = vmatpush1.xpose.msra.mxu0 0.0
        %1993 = vmatprep.subr.mxu0 0.0
        %1994 = vmatpush1.xpose.msra.mxu0 0.0
        %1995 = vmatprep.subr.mxu0 0.0
        %1996 = vmatpush1.xpose.msra.mxu0 0.0
        %1997 = vmatprep.subr.mxu0 0.0
        %1998 = vmatpush1.xpose.msra.mxu0 0.0
        %1999 = vmatprep.subr.mxu0 0.0
        %2000 = vmatpush1.xpose.msra.mxu0 0.0
        %2001 = vmatprep.subr.mxu0 0.0
        %2002 = vmatpush1.xpose.msra.mxu0 0.0
        %2003 = vmatprep.subr.mxu0 0.0
        %2004 = vmatpush1.xpose.msra.mxu0 0.0
        %2005 = vmatprep.subr.mxu0 0.0
        %2006 = vmatpush1.xpose.msra.mxu0 0.0
        %2007 = vmatprep.subr.mxu0 0.0
        %2008 = vmatpush1.xpose.msra.mxu0 0.0
        %2009 = vmatprep.subr.mxu0 0.0
        %2010 = vmatpush1.xpose.msra.mxu0 0.0
        %2011 = vmatprep.subr.mxu0 0.0
        %2012 = vmatpush1.xpose.msra.mxu0 0.0
        %2013 = vmatprep.subr.mxu0 0.0
        %2014 = vmatpush1.xpose.msra.mxu0 0.0
        %2015 = vmatprep.subr.mxu0 0.0
        %2016 = vmatpush1.xpose.msra.mxu0 0.0
        %2017 = vmatprep.subr.mxu0 0.0
        %2018 = vmatpush1.xpose.msra.mxu0 0.0
        %2019 = vmatprep.subr.mxu0 0.0
        %2020 = vmatpush1.xpose.msra.mxu0 0.0
        %2021 = vmatprep.subr.mxu0 0.0
        %2022 = vmatpush1.xpose.msra.mxu0 0.0
        %2023 = vmatprep.subr.mxu0 0.0
        %2024 = vmatpush1.xpose.msra.mxu0 0.0
        %2025 = vmatprep.subr.mxu0 0.0
        %2026 = vmatpush1.xpose.msra.mxu0 0.0
        %2027 = vmatprep.subr.mxu0 0.0
        %2028 = vmatpush1.xpose.msra.mxu0 0.0
        %2029 = vmatprep.subr.mxu0 0.0
        %2030 = vmatpush1.xpose.msra.mxu0 0.0
        %2031 = vmatprep.subr.mxu0 0.0
        %2032 = vmatpush1.xpose.msra.mxu0 0.0
        %2033 = vmatprep.mubr.f32.mxu0 0.0
        %2034 = vmatmul.mubr.f32.gmra.mrb[0].mxu0 %v1965
        %v2035 = vpop.f32.mrb[0].mxu0
        %v2036 = vadd.f32 0.0, %v2035
        %v2037 = vpop.f32.mrb[0].mxu0
        %2038 = vdwg.mxu0
        %2039 = vrot.lane.b32.xlu0 %v1625, 120
        %v2040 = vpop.permute.xlu0 %2039
        %2041 = vrot.lane.b32.xlu0 %v1625, 88
        %v2042 = vpop.permute.xlu0 %2041
        %v2043 = vsel %vm1631, %v2040, 0
        %v2045 = vsel %vm1631, %v2042, 0
        %2047 = vmatprep.subr.mxu0 0.0
        %2048 = vmatpush1.xpose.msra.mxu0 %v2045
        %2049 = vmatprep.subr.mxu0 0.0
        %2050 = vmatpush1.xpose.msra.mxu0 0.0
        %2051 = vmatprep.subr.mxu0 0.0
        %2052 = vmatpush1.xpose.msra.mxu0 0.0
        %2053 = vmatprep.subr.mxu0 0.0
        %2054 = vmatpush1.xpose.msra.mxu0 0.0
        %2055 = vmatprep.subr.mxu0 0.0
        %2056 = vmatpush1.xpose.msra.mxu0 0.0
        %2057 = vmatprep.subr.mxu0 0.0
        %2058 = vmatpush1.xpose.msra.mxu0 0.0
        %2059 = vmatprep.subr.mxu0 0.0
        %2060 = vmatpush1.xpose.msra.mxu0 0.0
        %2061 = vmatprep.subr.mxu0 0.0
        %2062 = vmatpush1.xpose.msra.mxu0 0.0
        %2063 = vmatprep.subr.mxu0 0.0
        %2064 = vmatpush1.xpose.msra.mxu0 0.0
        %2065 = vmatprep.subr.mxu0 0.0
        %2066 = vmatpush1.xpose.msra.mxu0 0.0
        %2067 = vmatprep.subr.mxu0 0.0
        %2068 = vmatpush1.xpose.msra.mxu0 0.0
        %2069 = vmatprep.subr.mxu0 0.0
        %2070 = vmatpush1.xpose.msra.mxu0 0.0
        %2071 = vmatprep.subr.mxu0 0.0
        %2072 = vmatpush1.xpose.msra.mxu0 0.0
        %2073 = vmatprep.subr.mxu0 0.0
        %2074 = vmatpush1.xpose.msra.mxu0 0.0
        %2075 = vmatprep.subr.mxu0 0.0
        %2076 = vmatpush1.xpose.msra.mxu0 0.0
        %2077 = vmatprep.subr.mxu0 0.0
        %2078 = vmatpush1.xpose.msra.mxu0 0.0
        %2079 = vmatprep.subr.mxu0 0.0
        %2080 = vmatpush1.xpose.msra.mxu0 0.0
        %2081 = vmatprep.subr.mxu0 0.0
        %2082 = vmatpush1.xpose.msra.mxu0 0.0
        %2083 = vmatprep.subr.mxu0 0.0
        %2084 = vmatpush1.xpose.msra.mxu0 0.0
        %2085 = vmatprep.subr.mxu0 0.0
        %2086 = vmatpush1.xpose.msra.mxu0 0.0
        %2087 = vmatprep.subr.mxu0 0.0
        %2088 = vmatpush1.xpose.msra.mxu0 0.0
        %2089 = vmatprep.subr.mxu0 0.0
        %2090 = vmatpush1.xpose.msra.mxu0 0.0
        %2091 = vmatprep.subr.mxu0 0.0
        %2092 = vmatpush1.xpose.msra.mxu0 0.0
        %2093 = vmatprep.subr.mxu0 0.0
        %2094 = vmatpush1.xpose.msra.mxu0 0.0
        %2095 = vmatprep.subr.mxu0 0.0
        %2096 = vmatpush1.xpose.msra.mxu0 0.0
        %2097 = vmatprep.subr.mxu0 0.0
        %2098 = vmatpush1.xpose.msra.mxu0 0.0
        %2099 = vmatprep.subr.mxu0 0.0
        %2100 = vmatpush1.xpose.msra.mxu0 0.0
        %2101 = vmatprep.subr.mxu0 0.0
        %2102 = vmatpush1.xpose.msra.mxu0 0.0
        %2103 = vmatprep.subr.mxu0 0.0
        %2104 = vmatpush1.xpose.msra.mxu0 0.0
        %2105 = vmatprep.subr.mxu0 0.0
        %2106 = vmatpush1.xpose.msra.mxu0 0.0
        %2107 = vmatprep.subr.mxu0 0.0
        %2108 = vmatpush1.xpose.msra.mxu0 0.0
        %2109 = vmatprep.subr.mxu0 0.0
        %2110 = vmatpush1.xpose.msra.mxu0 0.0
        %2111 = vmatprep.mubr.f32.mxu0 0.0
        %2112 = vmatmul.mubr.f32.gmra.mrb[0].mxu0 %v2043
        %v2113 = vpop.f32.mrb[0].mxu0
        %v2114 = vadd.f32 0.0, %v2113
        %v2115 = vpop.f32.mrb[0].mxu0
        %2116 = vdwg.mxu0
        %v2117 = vmul.f32 %v2036, 0.35355338
        %v2118 = vmul.f32 %v2114, 0.35355338
        %v2119 = vadd.f32 %v2117, %v1471
        %v2120 = vadd.f32 %v2118, %v1472
        %v2121 = vsel %vm1631, %v2119, -inf
        %2122 = vmax.xlane.f32.xlu0 %v2121
        %v2123 = vpop.xlane.xlu0 %2122
        %v2124 = vsel %vm1631, %v2120, -inf
        %2125 = vmax.xlane.f32.xlu0 %v2124
        %v2126 = vpop.xlane.xlu0 %2125
        %v2127 = vsub.f32 %v2119, %v2123
        %v2128 = vsub.f32 %v2120, %v2126
        %v2129 = vmul.f32 %v2127, 1.442695
        %v2130 = vpow.pop %v2129
        %v2131 = vmul.f32 %v2128, 1.442695
        %v2132 = vpow.pop %v2131
        %v2133 = vsel %vm1631, %v2130, 0.0
        %2134 = vadd.xlane.f32.xlu0 %v2133
        %v2135 = vpop.xlane.xlu0 %2134
        %v2136 = vsel %vm1631, %v2132, 0.0
        %2137 = vadd.xlane.f32.xlu0 %v2136
        %v2138 = vpop.xlane.xlu0 %2137
        %v2139 = vrcp.pop %v2135
        %v2140 = vrcp.pop %v2138
        %v2141 = vmul.f32 %v2130, %v2139
        %v2142 = vmul.f32 %v2132, %v2140
        %2143 = vrot.lane.b32.xlu0 %v1620, 56
        %v2144 = vpop.permute.xlu0 %2143
        %v2147 = vsel %vm1631, %v2141, 0
        %2149 = vmatprep.subr.mxu0 0.0
        %2150 = vmatpush1.msra.mxu0 %v2144
        %2151 = vmatprep.subr.mxu0 0.0
        %2152 = vmatpush1.msra.mxu0 0.0
        %2153 = vmatprep.subr.mxu0 0.0
        %2154 = vmatpush1.msra.mxu0 0.0
        %2155 = vmatprep.subr.mxu0 0.0
        %2156 = vmatpush1.msra.mxu0 0.0
        %2157 = vmatprep.subr.mxu0 0.0
        %2158 = vmatpush1.msra.mxu0 0.0
        %2159 = vmatprep.subr.mxu0 0.0
        %2160 = vmatpush1.msra.mxu0 0.0
        %2161 = vmatprep.subr.mxu0 0.0
        %2162 = vmatpush1.msra.mxu0 0.0
        %2163 = vmatprep.subr.mxu0 0.0
        %2164 = vmatpush1.msra.mxu0 0.0
        %2165 = vmatprep.subr.mxu0 0.0
        %2166 = vmatpush1.msra.mxu0 0.0
        %2167 = vmatprep.subr.mxu0 0.0
        %2168 = vmatpush1.msra.mxu0 0.0
        %2169 = vmatprep.subr.mxu0 0.0
        %2170 = vmatpush1.msra.mxu0 0.0
        %2171 = vmatprep.subr.mxu0 0.0
        %2172 = vmatpush1.msra.mxu0 0.0
        %2173 = vmatprep.subr.mxu0 0.0
        %2174 = vmatpush1.msra.mxu0 0.0
        %2175 = vmatprep.subr.mxu0 0.0
        %2176 = vmatpush1.msra.mxu0 0.0
        %2177 = vmatprep.subr.mxu0 0.0
        %2178 = vmatpush1.msra.mxu0 0.0
        %2179 = vmatprep.subr.mxu0 0.0
        %2180 = vmatpush1.msra.mxu0 0.0
        %2181 = vmatprep.subr.mxu0 0.0
        %2182 = vmatpush1.msra.mxu0 0.0
        %2183 = vmatprep.subr.mxu0 0.0
        %2184 = vmatpush1.msra.mxu0 0.0
        %2185 = vmatprep.subr.mxu0 0.0
        %2186 = vmatpush1.msra.mxu0 0.0
        %2187 = vmatprep.subr.mxu0 0.0
        %2188 = vmatpush1.msra.mxu0 0.0
        %2189 = vmatprep.subr.mxu0 0.0
        %2190 = vmatpush1.msra.mxu0 0.0
        %2191 = vmatprep.subr.mxu0 0.0
        %2192 = vmatpush1.msra.mxu0 0.0
        %2193 = vmatprep.subr.mxu0 0.0
        %2194 = vmatpush1.msra.mxu0 0.0
        %2195 = vmatprep.subr.mxu0 0.0
        %2196 = vmatpush1.msra.mxu0 0.0
        %2197 = vmatprep.subr.mxu0 0.0
        %2198 = vmatpush1.msra.mxu0 0.0
        %2199 = vmatprep.subr.mxu0 0.0
        %2200 = vmatpush1.msra.mxu0 0.0
        %2201 = vmatprep.subr.mxu0 0.0
        %2202 = vmatpush1.msra.mxu0 0.0
        %2203 = vmatprep.subr.mxu0 0.0
        %2204 = vmatpush1.msra.mxu0 0.0
        %2205 = vmatprep.subr.mxu0 0.0
        %2206 = vmatpush1.msra.mxu0 0.0
        %2207 = vmatprep.subr.mxu0 0.0
        %2208 = vmatpush1.msra.mxu0 0.0
        %2209 = vmatprep.subr.mxu0 0.0
        %2210 = vmatpush1.msra.mxu0 0.0
        %2211 = vmatprep.subr.mxu0 0.0
        %2212 = vmatpush1.msra.mxu0 0.0
        %2213 = vmatprep.mubr.f32.mxu0 0.0
        %2214 = vmatmul.mubr.f32.gmra.mrb[0].mxu0 %v2147
        %v2215 = vpop.f32.mrb[0].mxu0
        %v2216 = vadd.f32 0.0, %v2215
        %v2217 = vpop.f32.mrb[0].mxu0
        %2218 = vdwg.mxu0
        %2219 = vrot.lane.b32.xlu0 %v1625, 56
        %v2220 = vpop.permute.xlu0 %2219
        %v2223 = vsel %vm1631, %v2142, 0
        %2225 = vmatprep.subr.mxu0 0.0
        %2226 = vmatpush1.msra.mxu0 %v2220
        %2227 = vmatprep.subr.mxu0 0.0
        %2228 = vmatpush1.msra.mxu0 0.0
        %2229 = vmatprep.subr.mxu0 0.0
        %2230 = vmatpush1.msra.mxu0 0.0
        %2231 = vmatprep.subr.mxu0 0.0
        %2232 = vmatpush1.msra.mxu0 0.0
        %2233 = vmatprep.subr.mxu0 0.0
        %2234 = vmatpush1.msra.mxu0 0.0
        %2235 = vmatprep.subr.mxu0 0.0
        %2236 = vmatpush1.msra.mxu0 0.0
        %2237 = vmatprep.subr.mxu0 0.0
        %2238 = vmatpush1.msra.mxu0 0.0
        %2239 = vmatprep.subr.mxu0 0.0
        %2240 = vmatpush1.msra.mxu0 0.0
        %2241 = vmatprep.subr.mxu0 0.0
        %2242 = vmatpush1.msra.mxu0 0.0
        %2243 = vmatprep.subr.mxu0 0.0
        %2244 = vmatpush1.msra.mxu0 0.0
        %2245 = vmatprep.subr.mxu0 0.0
        %2246 = vmatpush1.msra.mxu0 0.0
        %2247 = vmatprep.subr.mxu0 0.0
        %2248 = vmatpush1.msra.mxu0 0.0
        %2249 = vmatprep.subr.mxu0 0.0
        %2250 = vmatpush1.msra.mxu0 0.0
        %2251 = vmatprep.subr.mxu0 0.0
        %2252 = vmatpush1.msra.mxu0 0.0
        %2253 = vmatprep.subr.mxu0 0.0
        %2254 = vmatpush1.msra.mxu0 0.0
        %2255 = vmatprep.subr.mxu0 0.0
        %2256 = vmatpush1.msra.mxu0 0.0
        %2257 = vmatprep.subr.mxu0 0.0
        %2258 = vmatpush1.msra.mxu0 0.0
        %2259 = vmatprep.subr.mxu0 0.0
        %2260 = vmatpush1.msra.mxu0 0.0
        %2261 = vmatprep.subr.mxu0 0.0
        %2262 = vmatpush1.msra.mxu0 0.0
        %2263 = vmatprep.subr.mxu0 0.0
        %2264 = vmatpush1.msra.mxu0 0.0
        %2265 = vmatprep.subr.mxu0 0.0
        %2266 = vmatpush1.msra.mxu0 0.0
        %2267 = vmatprep.subr.mxu0 0.0
        %2268 = vmatpush1.msra.mxu0 0.0
        %2269 = vmatprep.subr.mxu0 0.0
        %2270 = vmatpush1.msra.mxu0 0.0
        %2271 = vmatprep.subr.mxu0 0.0
        %2272 = vmatpush1.msra.mxu0 0.0
        %2273 = vmatprep.subr.mxu0 0.0
        %2274 = vmatpush1.msra.mxu0 0.0
        %2275 = vmatprep.subr.mxu0 0.0
        %2276 = vmatpush1.msra.mxu0 0.0
        %2277 = vmatprep.subr.mxu0 0.0
        %2278 = vmatpush1.msra.mxu0 0.0
        %2279 = vmatprep.subr.mxu0 0.0
        %2280 = vmatpush1.msra.mxu0 0.0
        %2281 = vmatprep.subr.mxu0 0.0
        %2282 = vmatpush1.msra.mxu0 0.0
        %2283 = vmatprep.subr.mxu0 0.0
        %2284 = vmatpush1.msra.mxu0 0.0
        %2285 = vmatprep.subr.mxu0 0.0
        %2286 = vmatpush1.msra.mxu0 0.0
        %2287 = vmatprep.subr.mxu0 0.0
        %2288 = vmatpush1.msra.mxu0 0.0
        %2289 = vmatprep.mubr.f32.mxu0 0.0
        %2290 = vmatmul.mubr.f32.gmra.mrb[0].mxu0 %v2223
        %v2291 = vpop.f32.mrb[0].mxu0
        %v2292 = vadd.f32 0.0, %v2291
        %v2293 = vpop.f32.mrb[0].mxu0
        %2294 = vdwg.mxu0
        %2295 = vrot.lane.b32.xlu0 %v1620, 112
        %v2296 = vpop.permute.xlu0 %2295
        %2297 = vrot.lane.b32.xlu0 %v1620, 80
        %v2298 = vpop.permute.xlu0 %2297
        %v2299 = vsel %vm1631, %v2296, 0
        %v2301 = vsel %vm1631, %v2298, 0
        %2303 = vmatprep.subr.mxu0 0.0
        %2304 = vmatpush1.xpose.msra.mxu0 %v2301
        %2305 = vmatprep.subr.mxu0 0.0
        %2306 = vmatpush1.xpose.msra.mxu0 0.0
        %2307 = vmatprep.subr.mxu0 0.0
        %2308 = vmatpush1.xpose.msra.mxu0 0.0
        %2309 = vmatprep.subr.mxu0 0.0
        %2310 = vmatpush1.xpose.msra.mxu0 0.0
        %2311 = vmatprep.subr.mxu0 0.0
        %2312 = vmatpush1.xpose.msra.mxu0 0.0
        %2313 = vmatprep.subr.mxu0 0.0
        %2314 = vmatpush1.xpose.msra.mxu0 0.0
        %2315 = vmatprep.subr.mxu0 0.0
        %2316 = vmatpush1.xpose.msra.mxu0 0.0
        %2317 = vmatprep.subr.mxu0 0.0
        %2318 = vmatpush1.xpose.msra.mxu0 0.0
        %2319 = vmatprep.subr.mxu0 0.0
        %2320 = vmatpush1.xpose.msra.mxu0 0.0
        %2321 = vmatprep.subr.mxu0 0.0
        %2322 = vmatpush1.xpose.msra.mxu0 0.0
        %2323 = vmatprep.subr.mxu0 0.0
        %2324 = vmatpush1.xpose.msra.mxu0 0.0
        %2325 = vmatprep.subr.mxu0 0.0
        %2326 = vmatpush1.xpose.msra.mxu0 0.0
        %2327 = vmatprep.subr.mxu0 0.0
        %2328 = vmatpush1.xpose.msra.mxu0 0.0
        %2329 = vmatprep.subr.mxu0 0.0
        %2330 = vmatpush1.xpose.msra.mxu0 0.0
        %2331 = vmatprep.subr.mxu0 0.0
        %2332 = vmatpush1.xpose.msra.mxu0 0.0
        %2333 = vmatprep.subr.mxu0 0.0
        %2334 = vmatpush1.xpose.msra.mxu0 0.0
        %2335 = vmatprep.subr.mxu0 0.0
        %2336 = vmatpush1.xpose.msra.mxu0 0.0
        %2337 = vmatprep.subr.mxu0 0.0
        %2338 = vmatpush1.xpose.msra.mxu0 0.0
        %2339 = vmatprep.subr.mxu0 0.0
        %2340 = vmatpush1.xpose.msra.mxu0 0.0
        %2341 = vmatprep.subr.mxu0 0.0
        %2342 = vmatpush1.xpose.msra.mxu0 0.0
        %2343 = vmatprep.subr.mxu0 0.0
        %2344 = vmatpush1.xpose.msra.mxu0 0.0
        %2345 = vmatprep.subr.mxu0 0.0
        %2346 = vmatpush1.xpose.msra.mxu0 0.0
        %2347 = vmatprep.subr.mxu0 0.0
        %2348 = vmatpush1.xpose.msra.mxu0 0.0
        %2349 = vmatprep.subr.mxu0 0.0
        %2350 = vmatpush1.xpose.msra.mxu0 0.0
        %2351 = vmatprep.subr.mxu0 0.0
        %2352 = vmatpush1.xpose.msra.mxu0 0.0
        %2353 = vmatprep.subr.mxu0 0.0
        %2354 = vmatpush1.xpose.msra.mxu0 0.0
        %2355 = vmatprep.subr.mxu0 0.0
        %2356 = vmatpush1.xpose.msra.mxu0 0.0
        %2357 = vmatprep.subr.mxu0 0.0
        %2358 = vmatpush1.xpose.msra.mxu0 0.0
        %2359 = vmatprep.subr.mxu0 0.0
        %2360 = vmatpush1.xpose.msra.mxu0 0.0
        %2361 = vmatprep.subr.mxu0 0.0
        %2362 = vmatpush1.xpose.msra.mxu0 0.0
        %2363 = vmatprep.subr.mxu0 0.0
        %2364 = vmatpush1.xpose.msra.mxu0 0.0
        %2365 = vmatprep.subr.mxu0 0.0
        %2366 = vmatpush1.xpose.msra.mxu0 0.0
        %2367 = vmatprep.mubr.f32.mxu0 0.0
        %2368 = vmatmul.mubr.f32.gmra.mrb[0].mxu0 %v2299
        %v2369 = vpop.f32.mrb[0].mxu0
        %v2370 = vadd.f32 0.0, %v2369
        %v2371 = vpop.f32.mrb[0].mxu0
        %2372 = vdwg.mxu0
        %2373 = vrot.lane.b32.xlu0 %v1625, 112
        %v2374 = vpop.permute.xlu0 %2373
        %2375 = vrot.lane.b32.xlu0 %v1625, 80
        %v2376 = vpop.permute.xlu0 %2375
        %v2377 = vsel %vm1631, %v2374, 0
        %v2379 = vsel %vm1631, %v2376, 0
        %2381 = vmatprep.subr.mxu0 0.0
        %2382 = vmatpush1.xpose.msra.mxu0 %v2379
        %2383 = vmatprep.subr.mxu0 0.0
        %2384 = vmatpush1.xpose.msra.mxu0 0.0
        %2385 = vmatprep.subr.mxu0 0.0
        %2386 = vmatpush1.xpose.msra.mxu0 0.0
        %2387 = vmatprep.subr.mxu0 0.0
        %2388 = vmatpush1.xpose.msra.mxu0 0.0
        %2389 = vmatprep.subr.mxu0 0.0
        %2390 = vmatpush1.xpose.msra.mxu0 0.0
        %2391 = vmatprep.subr.mxu0 0.0
        %2392 = vmatpush1.xpose.msra.mxu0 0.0
        %2393 = vmatprep.subr.mxu0 0.0
        %2394 = vmatpush1.xpose.msra.mxu0 0.0
        %2395 = vmatprep.subr.mxu0 0.0
        %2396 = vmatpush1.xpose.msra.mxu0 0.0
        %2397 = vmatprep.subr.mxu0 0.0
        %2398 = vmatpush1.xpose.msra.mxu0 0.0
        %2399 = vmatprep.subr.mxu0 0.0
        %2400 = vmatpush1.xpose.msra.mxu0 0.0
        %2401 = vmatprep.subr.mxu0 0.0
        %2402 = vmatpush1.xpose.msra.mxu0 0.0
        %2403 = vmatprep.subr.mxu0 0.0
        %2404 = vmatpush1.xpose.msra.mxu0 0.0
        %2405 = vmatprep.subr.mxu0 0.0
        %2406 = vmatpush1.xpose.msra.mxu0 0.0
        %2407 = vmatprep.subr.mxu0 0.0
        %2408 = vmatpush1.xpose.msra.mxu0 0.0
        %2409 = vmatprep.subr.mxu0 0.0
        %2410 = vmatpush1.xpose.msra.mxu0 0.0
        %2411 = vmatprep.subr.mxu0 0.0
        %2412 = vmatpush1.xpose.msra.mxu0 0.0
        %2413 = vmatprep.subr.mxu0 0.0
        %2414 = vmatpush1.xpose.msra.mxu0 0.0
        %2415 = vmatprep.subr.mxu0 0.0
        %2416 = vmatpush1.xpose.msra.mxu0 0.0
        %2417 = vmatprep.subr.mxu0 0.0
        %2418 = vmatpush1.xpose.msra.mxu0 0.0
        %2419 = vmatprep.subr.mxu0 0.0
        %2420 = vmatpush1.xpose.msra.mxu0 0.0
        %2421 = vmatprep.subr.mxu0 0.0
        %2422 = vmatpush1.xpose.msra.mxu0 0.0
        %2423 = vmatprep.subr.mxu0 0.0
        %2424 = vmatpush1.xpose.msra.mxu0 0.0
        %2425 = vmatprep.subr.mxu0 0.0
        %2426 = vmatpush1.xpose.msra.mxu0 0.0
        %2427 = vmatprep.subr.mxu0 0.0
        %2428 = vmatpush1.xpose.msra.mxu0 0.0
        %2429 = vmatprep.subr.mxu0 0.0
        %2430 = vmatpush1.xpose.msra.mxu0 0.0
        %2431 = vmatprep.subr.mxu0 0.0
        %2432 = vmatpush1.xpose.msra.mxu0 0.0
        %2433 = vmatprep.subr.mxu0 0.0
        %2434 = vmatpush1.xpose.msra.mxu0 0.0
        %2435 = vmatprep.subr.mxu0 0.0
        %2436 = vmatpush1.xpose.msra.mxu0 0.0
        %2437 = vmatprep.subr.mxu0 0.0
        %2438 = vmatpush1.xpose.msra.mxu0 0.0
        %2439 = vmatprep.subr.mxu0 0.0
        %2440 = vmatpush1.xpose.msra.mxu0 0.0
        %2441 = vmatprep.subr.mxu0 0.0
        %2442 = vmatpush1.xpose.msra.mxu0 0.0
        %2443 = vmatprep.subr.mxu0 0.0
        %2444 = vmatpush1.xpose.msra.mxu0 0.0
        %2445 = vmatprep.mubr.f32.mxu0 0.0
        %2446 = vmatmul.mubr.f32.gmra.mrb[0].mxu0 %v2377
        %v2447 = vpop.f32.mrb[0].mxu0
        %v2448 = vadd.f32 0.0, %v2447
        %v2449 = vpop.f32.mrb[0].mxu0
        %2450 = vdwg.mxu0
        %v2451 = vmul.f32 %v2370, 0.35355338
        %v2452 = vmul.f32 %v2448, 0.35355338
        %v2453 = vadd.f32 %v2451, %v1471
        %v2454 = vadd.f32 %v2452, %v1472
        %v2455 = vsel %vm1631, %v2453, -inf
        %2456 = vmax.xlane.f32.xlu0 %v2455
        %v2457 = vpop.xlane.xlu0 %2456
        %v2458 = vsel %vm1631, %v2454, -inf
        %2459 = vmax.xlane.f32.xlu0 %v2458
        %v2460 = vpop.xlane.xlu0 %2459
        %v2461 = vsub.f32 %v2453, %v2457
        %v2462 = vsub.f32 %v2454, %v2460
        %v2463 = vmul.f32 %v2461, 1.442695
        %v2464 = vpow.pop %v2463
        %v2465 = vmul.f32 %v2462, 1.442695
        %v2466 = vpow.pop %v2465
        %v2467 = vsel %vm1631, %v2464, 0.0
        %2468 = vadd.xlane.f32.xlu0 %v2467
        %v2469 = vpop.xlane.xlu0 %2468
        %v2470 = vsel %vm1631, %v2466, 0.0
        %2471 = vadd.xlane.f32.xlu0 %v2470
        %v2472 = vpop.xlane.xlu0 %2471
        %v2473 = vrcp.pop %v2469
        %v2474 = vrcp.pop %v2472
        %v2475 = vmul.f32 %v2464, %v2473
        %v2476 = vmul.f32 %v2466, %v2474
        %2477 = vrot.lane.b32.xlu0 %v1620, 48
        %v2478 = vpop.permute.xlu0 %2477
        %v2481 = vsel %vm1631, %v2475, 0
        %2483 = vmatprep.subr.mxu0 0.0
        %2484 = vmatpush1.msra.mxu0 %v2478
        %2485 = vmatprep.subr.mxu0 0.0
        %2486 = vmatpush1.msra.mxu0 0.0
        %2487 = vmatprep.subr.mxu0 0.0
        %2488 = vmatpush1.msra.mxu0 0.0
        %2489 = vmatprep.subr.mxu0 0.0
        %2490 = vmatpush1.msra.mxu0 0.0
        %2491 = vmatprep.subr.mxu0 0.0
        %2492 = vmatpush1.msra.mxu0 0.0
        %2493 = vmatprep.subr.mxu0 0.0
        %2494 = vmatpush1.msra.mxu0 0.0
        %2495 = vmatprep.subr.mxu0 0.0
        %2496 = vmatpush1.msra.mxu0 0.0
        %2497 = vmatprep.subr.mxu0 0.0
        %2498 = vmatpush1.msra.mxu0 0.0
        %2499 = vmatprep.subr.mxu0 0.0
        %2500 = vmatpush1.msra.mxu0 0.0
        %2501 = vmatprep.subr.mxu0 0.0
        %2502 = vmatpush1.msra.mxu0 0.0
        %2503 = vmatprep.subr.mxu0 0.0
        %2504 = vmatpush1.msra.mxu0 0.0
        %2505 = vmatprep.subr.mxu0 0.0
        %2506 = vmatpush1.msra.mxu0 0.0
        %2507 = vmatprep.subr.mxu0 0.0
        %2508 = vmatpush1.msra.mxu0 0.0
        %2509 = vmatprep.subr.mxu0 0.0
        %2510 = vmatpush1.msra.mxu0 0.0
        %2511 = vmatprep.subr.mxu0 0.0
        %2512 = vmatpush1.msra.mxu0 0.0
        %2513 = vmatprep.subr.mxu0 0.0
        %2514 = vmatpush1.msra.mxu0 0.0
        %2515 = vmatprep.subr.mxu0 0.0
        %2516 = vmatpush1.msra.mxu0 0.0
        %2517 = vmatprep.subr.mxu0 0.0
        %2518 = vmatpush1.msra.mxu0 0.0
        %2519 = vmatprep.subr.mxu0 0.0
        %2520 = vmatpush1.msra.mxu0 0.0
        %2521 = vmatprep.subr.mxu0 0.0
        %2522 = vmatpush1.msra.mxu0 0.0
        %2523 = vmatprep.subr.mxu0 0.0
        %2524 = vmatpush1.msra.mxu0 0.0
        %2525 = vmatprep.subr.mxu0 0.0
        %2526 = vmatpush1.msra.mxu0 0.0
        %2527 = vmatprep.subr.mxu0 0.0
        %2528 = vmatpush1.msra.mxu0 0.0
        %2529 = vmatprep.subr.mxu0 0.0
        %2530 = vmatpush1.msra.mxu0 0.0
        %2531 = vmatprep.subr.mxu0 0.0
        %2532 = vmatpush1.msra.mxu0 0.0
        %2533 = vmatprep.subr.mxu0 0.0
        %2534 = vmatpush1.msra.mxu0 0.0
        %2535 = vmatprep.subr.mxu0 0.0
        %2536 = vmatpush1.msra.mxu0 0.0
        %2537 = vmatprep.subr.mxu0 0.0
        %2538 = vmatpush1.msra.mxu0 0.0
        %2539 = vmatprep.subr.mxu0 0.0
        %2540 = vmatpush1.msra.mxu0 0.0
        %2541 = vmatprep.subr.mxu0 0.0
        %2542 = vmatpush1.msra.mxu0 0.0
        %2543 = vmatprep.subr.mxu0 0.0
        %2544 = vmatpush1.msra.mxu0 0.0
        %2545 = vmatprep.subr.mxu0 0.0
        %2546 = vmatpush1.msra.mxu0 0.0
        %2547 = vmatprep.mubr.f32.mxu0 0.0
        %2548 = vmatmul.mubr.f32.gmra.mrb[0].mxu0 %v2481
        %v2549 = vpop.f32.mrb[0].mxu0
        %v2550 = vadd.f32 0.0, %v2549
        %v2551 = vpop.f32.mrb[0].mxu0
        %2552 = vdwg.mxu0
        %2553 = vrot.lane.b32.xlu0 %v1625, 48
        %v2554 = vpop.permute.xlu0 %2553
        %v2557 = vsel %vm1631, %v2476, 0
        %2559 = vmatprep.subr.mxu0 0.0
        %2560 = vmatpush1.msra.mxu0 %v2554
        %2561 = vmatprep.subr.mxu0 0.0
        %2562 = vmatpush1.msra.mxu0 0.0
        %2563 = vmatprep.subr.mxu0 0.0
        %2564 = vmatpush1.msra.mxu0 0.0
        %2565 = vmatprep.subr.mxu0 0.0
        %2566 = vmatpush1.msra.mxu0 0.0
        %2567 = vmatprep.subr.mxu0 0.0
        %2568 = vmatpush1.msra.mxu0 0.0
        %2569 = vmatprep.subr.mxu0 0.0
        %2570 = vmatpush1.msra.mxu0 0.0
        %2571 = vmatprep.subr.mxu0 0.0
        %2572 = vmatpush1.msra.mxu0 0.0
        %2573 = vmatprep.subr.mxu0 0.0
        %2574 = vmatpush1.msra.mxu0 0.0
        %2575 = vmatprep.subr.mxu0 0.0
        %2576 = vmatpush1.msra.mxu0 0.0
        %2577 = vmatprep.subr.mxu0 0.0
        %2578 = vmatpush1.msra.mxu0 0.0
        %2579 = vmatprep.subr.mxu0 0.0
        %2580 = vmatpush1.msra.mxu0 0.0
        %2581 = vmatprep.subr.mxu0 0.0
        %2582 = vmatpush1.msra.mxu0 0.0
        %2583 = vmatprep.subr.mxu0 0.0
        %2584 = vmatpush1.msra.mxu0 0.0
        %2585 = vmatprep.subr.mxu0 0.0
        %2586 = vmatpush1.msra.mxu0 0.0
        %2587 = vmatprep.subr.mxu0 0.0
        %2588 = vmatpush1.msra.mxu0 0.0
        %2589 = vmatprep.subr.mxu0 0.0
        %2590 = vmatpush1.msra.mxu0 0.0
        %2591 = vmatprep.subr.mxu0 0.0
        %2592 = vmatpush1.msra.mxu0 0.0
        %2593 = vmatprep.subr.mxu0 0.0
        %2594 = vmatpush1.msra.mxu0 0.0
        %2595 = vmatprep.subr.mxu0 0.0
        %2596 = vmatpush1.msra.mxu0 0.0
        %2597 = vmatprep.subr.mxu0 0.0
        %2598 = vmatpush1.msra.mxu0 0.0
        %2599 = vmatprep.subr.mxu0 0.0
        %2600 = vmatpush1.msra.mxu0 0.0
        %2601 = vmatprep.subr.mxu0 0.0
        %2602 = vmatpush1.msra.mxu0 0.0
        %2603 = vmatprep.subr.mxu0 0.0
        %2604 = vmatpush1.msra.mxu0 0.0
        %2605 = vmatprep.subr.mxu0 0.0
        %2606 = vmatpush1.msra.mxu0 0.0
        %2607 = vmatprep.subr.mxu0 0.0
        %2608 = vmatpush1.msra.mxu0 0.0
        %2609 = vmatprep.subr.mxu0 0.0
        %2610 = vmatpush1.msra.mxu0 0.0
        %2611 = vmatprep.subr.mxu0 0.0
        %2612 = vmatpush1.msra.mxu0 0.0
        %2613 = vmatprep.subr.mxu0 0.0
        %2614 = vmatpush1.msra.mxu0 0.0
        %2615 = vmatprep.subr.mxu0 0.0
        %2616 = vmatpush1.msra.mxu0 0.0
        %2617 = vmatprep.subr.mxu0 0.0
        %2618 = vmatpush1.msra.mxu0 0.0
        %2619 = vmatprep.subr.mxu0 0.0
        %2620 = vmatpush1.msra.mxu0 0.0
        %2621 = vmatprep.subr.mxu0 0.0
        %2622 = vmatpush1.msra.mxu0 0.0
        %2623 = vmatprep.mubr.f32.mxu0 0.0
        %2624 = vmatmul.mubr.f32.gmra.mrb[0].mxu0 %v2557
        %v2625 = vpop.f32.mrb[0].mxu0
        %v2626 = vadd.f32 0.0, %v2625
        %v2627 = vpop.f32.mrb[0].mxu0
        %2628 = vdwg.mxu0
        %2629 = vrot.lane.b32.xlu0 %v1620, 104
        %v2630 = vpop.permute.xlu0 %2629
        %2631 = vrot.lane.b32.xlu0 %v1620, 72
        %v2632 = vpop.permute.xlu0 %2631
        %v2633 = vsel %vm1631, %v2630, 0
        %v2635 = vsel %vm1631, %v2632, 0
        %2637 = vmatprep.subr.mxu0 0.0
        %2638 = vmatpush1.xpose.msra.mxu0 %v2635
        %2639 = vmatprep.subr.mxu0 0.0
        %2640 = vmatpush1.xpose.msra.mxu0 0.0
        %2641 = vmatprep.subr.mxu0 0.0
        %2642 = vmatpush1.xpose.msra.mxu0 0.0
        %2643 = vmatprep.subr.mxu0 0.0
        %2644 = vmatpush1.xpose.msra.mxu0 0.0
        %2645 = vmatprep.subr.mxu0 0.0
        %2646 = vmatpush1.xpose.msra.mxu0 0.0
        %2647 = vmatprep.subr.mxu0 0.0
        %2648 = vmatpush1.xpose.msra.mxu0 0.0
        %2649 = vmatprep.subr.mxu0 0.0
        %2650 = vmatpush1.xpose.msra.mxu0 0.0
        %2651 = vmatprep.subr.mxu0 0.0
        %2652 = vmatpush1.xpose.msra.mxu0 0.0
        %2653 = vmatprep.subr.mxu0 0.0
        %2654 = vmatpush1.xpose.msra.mxu0 0.0
        %2655 = vmatprep.subr.mxu0 0.0
        %2656 = vmatpush1.xpose.msra.mxu0 0.0
        %2657 = vmatprep.subr.mxu0 0.0
        %2658 = vmatpush1.xpose.msra.mxu0 0.0
        %2659 = vmatprep.subr.mxu0 0.0
        %2660 = vmatpush1.xpose.msra.mxu0 0.0
        %2661 = vmatprep.subr.mxu0 0.0
        %2662 = vmatpush1.xpose.msra.mxu0 0.0
        %2663 = vmatprep.subr.mxu0 0.0
        %2664 = vmatpush1.xpose.msra.mxu0 0.0
        %2665 = vmatprep.subr.mxu0 0.0
        %2666 = vmatpush1.xpose.msra.mxu0 0.0
        %2667 = vmatprep.subr.mxu0 0.0
        %2668 = vmatpush1.xpose.msra.mxu0 0.0
        %2669 = vmatprep.subr.mxu0 0.0
        %2670 = vmatpush1.xpose.msra.mxu0 0.0
        %2671 = vmatprep.subr.mxu0 0.0
        %2672 = vmatpush1.xpose.msra.mxu0 0.0
        %2673 = vmatprep.subr.mxu0 0.0
        %2674 = vmatpush1.xpose.msra.mxu0 0.0
        %2675 = vmatprep.subr.mxu0 0.0
        %2676 = vmatpush1.xpose.msra.mxu0 0.0
        %2677 = vmatprep.subr.mxu0 0.0
        %2678 = vmatpush1.xpose.msra.mxu0 0.0
        %2679 = vmatprep.subr.mxu0 0.0
        %2680 = vmatpush1.xpose.msra.mxu0 0.0
        %2681 = vmatprep.subr.mxu0 0.0
        %2682 = vmatpush1.xpose.msra.mxu0 0.0
        %2683 = vmatprep.subr.mxu0 0.0
        %2684 = vmatpush1.xpose.msra.mxu0 0.0
        %2685 = vmatprep.subr.mxu0 0.0
        %2686 = vmatpush1.xpose.msra.mxu0 0.0
        %2687 = vmatprep.subr.mxu0 0.0
        %2688 = vmatpush1.xpose.msra.mxu0 0.0
        %2689 = vmatprep.subr.mxu0 0.0
        %2690 = vmatpush1.xpose.msra.mxu0 0.0
        %2691 = vmatprep.subr.mxu0 0.0
        %2692 = vmatpush1.xpose.msra.mxu0 0.0
        %2693 = vmatprep.subr.mxu0 0.0
        %2694 = vmatpush1.xpose.msra.mxu0 0.0
        %2695 = vmatprep.subr.mxu0 0.0
        %2696 = vmatpush1.xpose.msra.mxu0 0.0
        %2697 = vmatprep.subr.mxu0 0.0
        %2698 = vmatpush1.xpose.msra.mxu0 0.0
        %2699 = vmatprep.subr.mxu0 0.0
        %2700 = vmatpush1.xpose.msra.mxu0 0.0
        %2701 = vmatprep.mubr.f32.mxu0 0.0
        %2702 = vmatmul.mubr.f32.gmra.mrb[0].mxu0 %v2633
        %v2703 = vpop.f32.mrb[0].mxu0
        %v2704 = vadd.f32 0.0, %v2703
        %v2705 = vpop.f32.mrb[0].mxu0
        %2706 = vdwg.mxu0
        %2707 = vrot.lane.b32.xlu0 %v1625, 104
        %v2708 = vpop.permute.xlu0 %2707
        %2709 = vrot.lane.b32.xlu0 %v1625, 72
        %v2710 = vpop.permute.xlu0 %2709
        %v2711 = vsel %vm1631, %v2708, 0
        %v2713 = vsel %vm1631, %v2710, 0
        %2715 = vmatprep.subr.mxu0 0.0
        %2716 = vmatpush1.xpose.msra.mxu0 %v2713
        %2717 = vmatprep.subr.mxu0 0.0
        %2718 = vmatpush1.xpose.msra.mxu0 0.0
        %2719 = vmatprep.subr.mxu0 0.0
        %2720 = vmatpush1.xpose.msra.mxu0 0.0
        %2721 = vmatprep.subr.mxu0 0.0
        %2722 = vmatpush1.xpose.msra.mxu0 0.0
        %2723 = vmatprep.subr.mxu0 0.0
        %2724 = vmatpush1.xpose.msra.mxu0 0.0
        %2725 = vmatprep.subr.mxu0 0.0
        %2726 = vmatpush1.xpose.msra.mxu0 0.0
        %2727 = vmatprep.subr.mxu0 0.0
        %2728 = vmatpush1.xpose.msra.mxu0 0.0
        %2729 = vmatprep.subr.mxu0 0.0
        %2730 = vmatpush1.xpose.msra.mxu0 0.0
        %2731 = vmatprep.subr.mxu0 0.0
        %2732 = vmatpush1.xpose.msra.mxu0 0.0
        %2733 = vmatprep.subr.mxu0 0.0
        %2734 = vmatpush1.xpose.msra.mxu0 0.0
        %2735 = vmatprep.subr.mxu0 0.0
        %2736 = vmatpush1.xpose.msra.mxu0 0.0
        %2737 = vmatprep.subr.mxu0 0.0
        %2738 = vmatpush1.xpose.msra.mxu0 0.0
        %2739 = vmatprep.subr.mxu0 0.0
        %2740 = vmatpush1.xpose.msra.mxu0 0.0
        %2741 = vmatprep.subr.mxu0 0.0
        %2742 = vmatpush1.xpose.msra.mxu0 0.0
        %2743 = vmatprep.subr.mxu0 0.0
        %2744 = vmatpush1.xpose.msra.mxu0 0.0
        %2745 = vmatprep.subr.mxu0 0.0
        %2746 = vmatpush1.xpose.msra.mxu0 0.0
        %2747 = vmatprep.subr.mxu0 0.0
        %2748 = vmatpush1.xpose.msra.mxu0 0.0
        %2749 = vmatprep.subr.mxu0 0.0
        %2750 = vmatpush1.xpose.msra.mxu0 0.0
        %2751 = vmatprep.subr.mxu0 0.0
        %2752 = vmatpush1.xpose.msra.mxu0 0.0
        %2753 = vmatprep.subr.mxu0 0.0
        %2754 = vmatpush1.xpose.msra.mxu0 0.0
        %2755 = vmatprep.subr.mxu0 0.0
        %2756 = vmatpush1.xpose.msra.mxu0 0.0
        %2757 = vmatprep.subr.mxu0 0.0
        %2758 = vmatpush1.xpose.msra.mxu0 0.0
        %2759 = vmatprep.subr.mxu0 0.0
        %2760 = vmatpush1.xpose.msra.mxu0 0.0
        %2761 = vmatprep.subr.mxu0 0.0
        %2762 = vmatpush1.xpose.msra.mxu0 0.0
        %2763 = vmatprep.subr.mxu0 0.0
        %2764 = vmatpush1.xpose.msra.mxu0 0.0
        %2765 = vmatprep.subr.mxu0 0.0
        %2766 = vmatpush1.xpose.msra.mxu0 0.0
        %2767 = vmatprep.subr.mxu0 0.0
        %2768 = vmatpush1.xpose.msra.mxu0 0.0
        %2769 = vmatprep.subr.mxu0 0.0
        %2770 = vmatpush1.xpose.msra.mxu0 0.0
        %2771 = vmatprep.subr.mxu0 0.0
        %2772 = vmatpush1.xpose.msra.mxu0 0.0
        %2773 = vmatprep.subr.mxu0 0.0
        %2774 = vmatpush1.xpose.msra.mxu0 0.0
        %2775 = vmatprep.subr.mxu0 0.0
        %2776 = vmatpush1.xpose.msra.mxu0 0.0
        %2777 = vmatprep.subr.mxu0 0.0
        %2778 = vmatpush1.xpose.msra.mxu0 0.0
        %2779 = vmatprep.mubr.f32.mxu0 0.0
        %2780 = vmatmul.mubr.f32.gmra.mrb[0].mxu0 %v2711
        %v2781 = vpop.f32.mrb[0].mxu0
        %v2782 = vadd.f32 0.0, %v2781
        %v2783 = vpop.f32.mrb[0].mxu0
        %2784 = vdwg.mxu0
        %v2785 = vmul.f32 %v2704, 0.35355338
        %v2786 = vmul.f32 %v2782, 0.35355338
        %v2787 = vadd.f32 %v2785, %v1471
        %v2788 = vadd.f32 %v2786, %v1472
        %v2789 = vsel %vm1631, %v2787, -inf
        %2790 = vmax.xlane.f32.xlu0 %v2789
        %v2791 = vpop.xlane.xlu0 %2790
        %v2792 = vsel %vm1631, %v2788, -inf
        %2793 = vmax.xlane.f32.xlu0 %v2792
        %v2794 = vpop.xlane.xlu0 %2793
        %v2795 = vsub.f32 %v2787, %v2791
        %v2796 = vsub.f32 %v2788, %v2794
        %v2797 = vmul.f32 %v2795, 1.442695
        %v2798 = vpow.pop %v2797
        %v2799 = vmul.f32 %v2796, 1.442695
        %v2800 = vpow.pop %v2799
        %v2801 = vsel %vm1631, %v2798, 0.0
        %2802 = vadd.xlane.f32.xlu0 %v2801
        %v2803 = vpop.xlane.xlu0 %2802
        %v2804 = vsel %vm1631, %v2800, 0.0
        %2805 = vadd.xlane.f32.xlu0 %v2804
        %v2806 = vpop.xlane.xlu0 %2805
        %v2807 = vrcp.pop %v2803
        %v2808 = vrcp.pop %v2806
        %v2809 = vmul.f32 %v2798, %v2807
        %v2810 = vmul.f32 %v2800, %v2808
        %2811 = vrot.lane.b32.xlu0 %v1620, 40
        %v2812 = vpop.permute.xlu0 %2811
        %v2815 = vsel %vm1631, %v2809, 0
        %2817 = vmatprep.subr.mxu0 0.0
        %2818 = vmatpush1.msra.mxu0 %v2812
        %2819 = vmatprep.subr.mxu0 0.0
        %2820 = vmatpush1.msra.mxu0 0.0
        %2821 = vmatprep.subr.mxu0 0.0
        %2822 = vmatpush1.msra.mxu0 0.0
        %2823 = vmatprep.subr.mxu0 0.0
        %2824 = vmatpush1.msra.mxu0 0.0
        %2825 = vmatprep.subr.mxu0 0.0
        %2826 = vmatpush1.msra.mxu0 0.0
        %2827 = vmatprep.subr.mxu0 0.0
        %2828 = vmatpush1.msra.mxu0 0.0
        %2829 = vmatprep.subr.mxu0 0.0
        %2830 = vmatpush1.msra.mxu0 0.0
        %2831 = vmatprep.subr.mxu0 0.0
        %2832 = vmatpush1.msra.mxu0 0.0
        %2833 = vmatprep.subr.mxu0 0.0
        %2834 = vmatpush1.msra.mxu0 0.0
        %2835 = vmatprep.subr.mxu0 0.0
        %2836 = vmatpush1.msra.mxu0 0.0
        %2837 = vmatprep.subr.mxu0 0.0
        %2838 = vmatpush1.msra.mxu0 0.0
        %2839 = vmatprep.subr.mxu0 0.0
        %2840 = vmatpush1.msra.mxu0 0.0
        %2841 = vmatprep.subr.mxu0 0.0
        %2842 = vmatpush1.msra.mxu0 0.0
        %2843 = vmatprep.subr.mxu0 0.0
        %2844 = vmatpush1.msra.mxu0 0.0
        %2845 = vmatprep.subr.mxu0 0.0
        %2846 = vmatpush1.msra.mxu0 0.0
        %2847 = vmatprep.subr.mxu0 0.0
        %2848 = vmatpush1.msra.mxu0 0.0
        %2849 = vmatprep.subr.mxu0 0.0
        %2850 = vmatpush1.msra.mxu0 0.0
        %2851 = vmatprep.subr.mxu0 0.0
        %2852 = vmatpush1.msra.mxu0 0.0
        %2853 = vmatprep.subr.mxu0 0.0
        %2854 = vmatpush1.msra.mxu0 0.0
        %2855 = vmatprep.subr.mxu0 0.0
        %2856 = vmatpush1.msra.mxu0 0.0
        %2857 = vmatprep.subr.mxu0 0.0
        %2858 = vmatpush1.msra.mxu0 0.0
        %2859 = vmatprep.subr.mxu0 0.0
        %2860 = vmatpush1.msra.mxu0 0.0
        %2861 = vmatprep.subr.mxu0 0.0
        %2862 = vmatpush1.msra.mxu0 0.0
        %2863 = vmatprep.subr.mxu0 0.0
        %2864 = vmatpush1.msra.mxu0 0.0
        %2865 = vmatprep.subr.mxu0 0.0
        %2866 = vmatpush1.msra.mxu0 0.0
        %2867 = vmatprep.subr.mxu0 0.0
        %2868 = vmatpush1.msra.mxu0 0.0
        %2869 = vmatprep.subr.mxu0 0.0
        %2870 = vmatpush1.msra.mxu0 0.0
        %2871 = vmatprep.subr.mxu0 0.0
        %2872 = vmatpush1.msra.mxu0 0.0
        %2873 = vmatprep.subr.mxu0 0.0
        %2874 = vmatpush1.msra.mxu0 0.0
        %2875 = vmatprep.subr.mxu0 0.0
        %2876 = vmatpush1.msra.mxu0 0.0
        %2877 = vmatprep.subr.mxu0 0.0
        %2878 = vmatpush1.msra.mxu0 0.0
        %2879 = vmatprep.subr.mxu0 0.0
        %2880 = vmatpush1.msra.mxu0 0.0
        %2881 = vmatprep.mubr.f32.mxu0 0.0
        %2882 = vmatmul.mubr.f32.gmra.mrb[0].mxu0 %v2815
        %v2883 = vpop.f32.mrb[0].mxu0
        %v2884 = vadd.f32 0.0, %v2883
        %v2885 = vpop.f32.mrb[0].mxu0
        %2886 = vdwg.mxu0
        %2887 = vrot.lane.b32.xlu0 %v1625, 40
        %v2888 = vpop.permute.xlu0 %2887
        %v2891 = vsel %vm1631, %v2810, 0
        %2893 = vmatprep.subr.mxu0 0.0
        %2894 = vmatpush1.msra.mxu0 %v2888
        %2895 = vmatprep.subr.mxu0 0.0
        %2896 = vmatpush1.msra.mxu0 0.0
        %2897 = vmatprep.subr.mxu0 0.0
        %2898 = vmatpush1.msra.mxu0 0.0
        %2899 = vmatprep.subr.mxu0 0.0
        %2900 = vmatpush1.msra.mxu0 0.0
        %2901 = vmatprep.subr.mxu0 0.0
        %2902 = vmatpush1.msra.mxu0 0.0
        %2903 = vmatprep.subr.mxu0 0.0
        %2904 = vmatpush1.msra.mxu0 0.0
        %2905 = vmatprep.subr.mxu0 0.0
        %2906 = vmatpush1.msra.mxu0 0.0
        %2907 = vmatprep.subr.mxu0 0.0
        %2908 = vmatpush1.msra.mxu0 0.0
        %2909 = vmatprep.subr.mxu0 0.0
        %2910 = vmatpush1.msra.mxu0 0.0
        %2911 = vmatprep.subr.mxu0 0.0
        %2912 = vmatpush1.msra.mxu0 0.0
        %2913 = vmatprep.subr.mxu0 0.0
        %2914 = vmatpush1.msra.mxu0 0.0
        %2915 = vmatprep.subr.mxu0 0.0
        %2916 = vmatpush1.msra.mxu0 0.0
        %2917 = vmatprep.subr.mxu0 0.0
        %2918 = vmatpush1.msra.mxu0 0.0
        %2919 = vmatprep.subr.mxu0 0.0
        %2920 = vmatpush1.msra.mxu0 0.0
        %2921 = vmatprep.subr.mxu0 0.0
        %2922 = vmatpush1.msra.mxu0 0.0
        %2923 = vmatprep.subr.mxu0 0.0
        %2924 = vmatpush1.msra.mxu0 0.0
        %2925 = vmatprep.subr.mxu0 0.0
        %2926 = vmatpush1.msra.mxu0 0.0
        %2927 = vmatprep.subr.mxu0 0.0
        %2928 = vmatpush1.msra.mxu0 0.0
        %2929 = vmatprep.subr.mxu0 0.0
        %2930 = vmatpush1.msra.mxu0 0.0
        %2931 = vmatprep.subr.mxu0 0.0
        %2932 = vmatpush1.msra.mxu0 0.0
        %2933 = vmatprep.subr.mxu0 0.0
        %2934 = vmatpush1.msra.mxu0 0.0
        %2935 = vmatprep.subr.mxu0 0.0
        %2936 = vmatpush1.msra.mxu0 0.0
        %2937 = vmatprep.subr.mxu0 0.0
        %2938 = vmatpush1.msra.mxu0 0.0
        %2939 = vmatprep.subr.mxu0 0.0
        %2940 = vmatpush1.msra.mxu0 0.0
        %2941 = vmatprep.subr.mxu0 0.0
        %2942 = vmatpush1.msra.mxu0 0.0
        %2943 = vmatprep.subr.mxu0 0.0
        %2944 = vmatpush1.msra.mxu0 0.0
        %2945 = vmatprep.subr.mxu0 0.0
        %2946 = vmatpush1.msra.mxu0 0.0
        %2947 = vmatprep.subr.mxu0 0.0
        %2948 = vmatpush1.msra.mxu0 0.0
        %2949 = vmatprep.subr.mxu0 0.0
        %2950 = vmatpush1.msra.mxu0 0.0
        %2951 = vmatprep.subr.mxu0 0.0
        %2952 = vmatpush1.msra.mxu0 0.0
        %2953 = vmatprep.subr.mxu0 0.0
        %2954 = vmatpush1.msra.mxu0 0.0
        %2955 = vmatprep.subr.mxu0 0.0
        %2956 = vmatpush1.msra.mxu0 0.0
        %2957 = vmatprep.mubr.f32.mxu0 0.0
        %2958 = vmatmul.mubr.f32.gmra.mrb[0].mxu0 %v2891
        %v2959 = vpop.f32.mrb[0].mxu0
        %v2960 = vadd.f32 0.0, %v2959
        %v2961 = vpop.f32.mrb[0].mxu0
        %2962 = vdwg.mxu0
        %2965 = vrot.lane.b32.xlu0 %v2216, 8
        %v2966 = vpop.permute.xlu0 %2965
        %2967 = vrot.lane.b32.xlu0 %v2292, 8
        %v2968 = vpop.permute.xlu0 %2967
        %2973 = vrot.lane.b32.xlu0 %v2550, 16
        %v2974 = vpop.permute.xlu0 %2973
        %2975 = vrot.lane.b32.xlu0 %v2626, 16
        %v2976 = vpop.permute.xlu0 %2975
        %2981 = vrot.lane.b32.xlu0 %v2884, 24
        %v2982 = vpop.permute.xlu0 %2981
        %2983 = vrot.lane.b32.xlu0 %v2960, 24
        %v2984 = vpop.permute.xlu0 %2983
        %v2987 = vsel %vm1631, %v1882, %v2966
        %v2988 = vsel %vm1631, %v1958, %v2968
        %vm2989 = vcmask 130048
        %v2990 = vsel %vm2989, %v2987, %v2974
        %v2991 = vsel %vm2989, %v2988, %v2976
        %vm2992 = vcmask 195584
        %v2993 = vsel %vm2992, %v2990, %v2982
        %v2994 = vsel %vm2992, %v2991, %v2984
        %v2995 = vld [vmem:[%s1221] sm:$0xff]
        %v2996 = vld [vmem:[%s1221 + $0x8] sm:$0xff]
        %v2997 = vld [vmem:[%s1221 + $0x10] sm:$0xff]
        %v2998 = vld [vmem:[%s1221 + $0x18] sm:$0xff]
        %v3000 = vsel %vm1477, %v2993, 0
        %v3003 = vsel %vm1477, %v2994, 0
        %3005 = vmatprep.subr.mxu0 0.0
        %3006 = vmatpush1.msra.mxu0 %v2995
        %3007 = vmatprep.subr.mxu0 0.0
        %3008 = vmatpush1.msra.mxu0 %v2996
        %3009 = vmatprep.subr.mxu0 0.0
        %3010 = vmatpush1.msra.mxu0 %v2997
        %3011 = vmatprep.subr.mxu0 0.0
        %3012 = vmatpush1.msra.mxu0 %v2998
        %3013 = vmatprep.subr.mxu0 0.0
        %3014 = vmatpush1.msra.mxu0 0.0
        %3015 = vmatprep.subr.mxu0 0.0
        %3016 = vmatpush1.msra.mxu0 0.0
        %3017 = vmatprep.subr.mxu0 0.0
        %3018 = vmatpush1.msra.mxu0 0.0
        %3019 = vmatprep.subr.mxu0 0.0
        %3020 = vmatpush1.msra.mxu0 0.0
        %3021 = vmatprep.subr.mxu0 0.0
        %3022 = vmatpush1.msra.mxu0 0.0
        %3023 = vmatprep.subr.mxu0 0.0
        %3024 = vmatpush1.msra.mxu0 0.0
        %3025 = vmatprep.subr.mxu0 0.0
        %3026 = vmatpush1.msra.mxu0 0.0
        %3027 = vmatprep.subr.mxu0 0.0
        %3028 = vmatpush1.msra.mxu0 0.0
        %3029 = vmatprep.subr.mxu0 0.0
        %3030 = vmatpush1.msra.mxu0 0.0
        %3031 = vmatprep.subr.mxu0 0.0
        %3032 = vmatpush1.msra.mxu0 0.0
        %3033 = vmatprep.subr.mxu0 0.0
        %3034 = vmatpush1.msra.mxu0 0.0
        %3035 = vmatprep.subr.mxu0 0.0
        %3036 = vmatpush1.msra.mxu0 0.0
        %3037 = vmatprep.subr.mxu0 0.0
        %3038 = vmatpush1.msra.mxu0 0.0
        %3039 = vmatprep.subr.mxu0 0.0
        %3040 = vmatpush1.msra.mxu0 0.0
        %3041 = vmatprep.subr.mxu0 0.0
        %3042 = vmatpush1.msra.mxu0 0.0
        %3043 = vmatprep.subr.mxu0 0.0
        %3044 = vmatpush1.msra.mxu0 0.0
        %3045 = vmatprep.subr.mxu0 0.0
        %3046 = vmatpush1.msra.mxu0 0.0
        %3047 = vmatprep.subr.mxu0 0.0
        %3048 = vmatpush1.msra.mxu0 0.0
        %3049 = vmatprep.subr.mxu0 0.0
        %3050 = vmatpush1.msra.mxu0 0.0
        %3051 = vmatprep.subr.mxu0 0.0
        %3052 = vmatpush1.msra.mxu0 0.0
        %3053 = vmatprep.subr.mxu0 0.0
        %3054 = vmatpush1.msra.mxu0 0.0
        %3055 = vmatprep.subr.mxu0 0.0
        %3056 = vmatpush1.msra.mxu0 0.0
        %3057 = vmatprep.subr.mxu0 0.0
        %3058 = vmatpush1.msra.mxu0 0.0
        %3059 = vmatprep.subr.mxu0 0.0
        %3060 = vmatpush1.msra.mxu0 0.0
        %3061 = vmatprep.subr.mxu0 0.0
        %3062 = vmatpush1.msra.mxu0 0.0
        %3063 = vmatprep.subr.mxu0 0.0
        %3064 = vmatpush1.msra.mxu0 0.0
        %3065 = vmatprep.subr.mxu0 0.0
        %3066 = vmatpush1.msra.mxu0 0.0
        %3067 = vmatprep.subr.mxu0 0.0
        %3068 = vmatpush1.msra.mxu0 0.0
        %3069 = vmatprep.mubr.f32.mxu0 0.0
        %3070 = vmatmul.mubr.f32.gmra.mrb[0].mxu0 %v3000
        %v3071 = vpop.f32.mrb[0].mxu0
        %v3072 = vadd.f32 0.0, %v3071
        %v3073 = vpop.f32.mrb[0].mxu0
        %3074 = vmatprep.mubr.f32.mxu0 0.0
        %3075 = vmatmul.mubr.f32.gmra.mrb[0].mxu0 %v3003
        %v3076 = vpop.f32.mrb[0].mxu0
        %v3077 = vadd.f32 0.0, %v3076
        %v3078 = vpop.f32.mrb[0].mxu0
        %3079 = vdwg.mxu0
        %v3080 = vadd.f32 %v1469, %v3072
        %v3081 = vadd.f32 %v1470, %v3077
        %v3082 = vld [vmem:[%s1229] sm:$0x1]
        %v3084 = vlaneseq
        %v3085 = vshrl.u32 %v3084, 7
        %v3086 = vsub.s32 0, %v3085
        %v3087 = vrot.slane %v3082, %v3086
        %v3089 = vadd.f32 %v3080, %v3087
        %v3090 = vadd.f32 %v3081, %v3087
        %v3091 = vld [vmem:[%s1171] sm:$0x1]
        %v3092 = vld [vmem:[%s1179] sm:$0x1]
        %v3093 = vsel %vm1477, %v3089, 0.0
        %3094 = vadd.xlane.f32.xlu0 %v3093
        %v3095 = vpop.xlane.xlu0 %3094
        %v3096 = vsel %vm1477, %v3090, 0.0
        %3097 = vadd.xlane.f32.xlu0 %v3096
        %v3098 = vpop.xlane.xlu0 %3097
        %v3099 = vmul.f32 %v3095, %v1484
        %v3100 = vmul.f32 %v3098, %v1484
        %v3101 = vsub.f32 %v3089, %v3099
        %v3102 = vsub.f32 %v3090, %v3100
        %v3103 = vmul.f32 %v3101, %v3101
        %v3104 = vmul.f32 %v3102, %v3102
        %v3105 = vsel %vm1477, %v3103, 0.0
        %3106 = vadd.xlane.f32.xlu0 %v3105
        %v3107 = vpop.xlane.xlu0 %3106
        %v3108 = vsel %vm1477, %v3104, 0.0
        %3109 = vadd.xlane.f32.xlu0 %v3108
        %v3110 = vpop.xlane.xlu0 %3109
        %v3111 = vmul.f32 %v3107, %v1497
        %v3112 = vmul.f32 %v3110, %v1497
        %v3113 = vrsqrt.pop %v3111
        %v3114 = vmul.f32 %v3111, %v3113
        %vm3115 = vcmp.eq.f32.partialorder %v3111, inf
        %v3116 = vsel %vm3115, %v3111, %v3114
        %vm3117 = vcmp.eq.f32.partialorder %v3111, 0.0
        %v3118 = vand.u32 %v3111, 2147483648
        %v3119 = vsel %vm3117, %v3118, %v3116
        %v3120 = vrsqrt.pop %v3112
        %v3121 = vmul.f32 %v3112, %v3120
        %vm3122 = vcmp.eq.f32.partialorder %v3112, inf
        %v3123 = vsel %vm3122, %v3112, %v3121
        %vm3124 = vcmp.eq.f32.partialorder %v3112, 0.0
        %v3125 = vand.u32 %v3112, 2147483648
        %v3126 = vsel %vm3124, %v3125, %v3123
        %v3127 = vadd.f32 %v3119, 1e-06
        %v3128 = vadd.f32 %v3126, 1e-06
        %v3129 = vrcp.pop %v3127
        %v3130 = vrcp.pop %v3128
        %v3132 = vlaneseq
        %v3133 = vshrl.u32 %v3132, 7
        %v3134 = vsub.s32 0, %v3133
        %v3135 = vrot.slane %v3091, %v3134
        %v3137 = vmul.f32 %v3135, %v3101
        %v3138 = vmul.f32 %v3135, %v3102
        %v3139 = vmul.f32 %v3137, %v3129
        %v3140 = vmul.f32 %v3138, %v3130
        %v3142 = vlaneseq
        %v3143 = vshrl.u32 %v3142, 7
        %v3144 = vsub.s32 0, %v3143
        %v3145 = vrot.slane %v3092, %v3144
        %v3147 = vadd.f32 %v3139, %v3145
        %v3148 = vadd.f32 %v3140, %v3145
        %v3149 = vld [vmem:[%s1238] sm:$0xff]
        %v3150 = vld [vmem:[%s1238 + $0x8] sm:$0xff]
        %v3151 = vld [vmem:[%s1238 + $0x10] sm:$0xff]
        %v3152 = vld [vmem:[%s1238 + $0x18] sm:$0xff]
        %v3153 = vld [vmem:[%s1246] sm:$0x1]
        %v3155 = vlaneseq
        %v3156 = vshrl.u32 %v3155, 7
        %v3157 = vsub.s32 0, %v3156
        %v3158 = vrot.slane %v3153, %v3157
        %v3161 = vsel %vm1477, %v3147, 0
        %v3164 = vsel %vm1477, %v3148, 0
        %3166 = vmatprep.subr.mxu0 0.0
        %3167 = vmatpush1.msra.mxu0 %v3149
        %3168 = vmatprep.subr.mxu0 0.0
        %3169 = vmatpush1.msra.mxu0 %v3150
        %3170 = vmatprep.subr.mxu0 0.0
        %3171 = vmatpush1.msra.mxu0 %v3151
        %3172 = vmatprep.subr.mxu0 0.0
        %3173 = vmatpush1.msra.mxu0 %v3152
        %3174 = vmatprep.subr.mxu0 0.0
        %3175 = vmatpush1.msra.mxu0 0.0
        %3176 = vmatprep.subr.mxu0 0.0
        %3177 = vmatpush1.msra.mxu0 0.0
        %3178 = vmatprep.subr.mxu0 0.0
        %3179 = vmatpush1.msra.mxu0 0.0
        %3180 = vmatprep.subr.mxu0 0.0
        %3181 = vmatpush1.msra.mxu0 0.0
        %3182 = vmatprep.subr.mxu0 0.0
        %3183 = vmatpush1.msra.mxu0 0.0
        %3184 = vmatprep.subr.mxu0 0.0
        %3185 = vmatpush1.msra.mxu0 0.0
        %3186 = vmatprep.subr.mxu0 0.0
        %3187 = vmatpush1.msra.mxu0 0.0
        %3188 = vmatprep.subr.mxu0 0.0
        %3189 = vmatpush1.msra.mxu0 0.0
        %3190 = vmatprep.subr.mxu0 0.0
        %3191 = vmatpush1.msra.mxu0 0.0
        %3192 = vmatprep.subr.mxu0 0.0
        %3193 = vmatpush1.msra.mxu0 0.0
        %3194 = vmatprep.subr.mxu0 0.0
        %3195 = vmatpush1.msra.mxu0 0.0
        %3196 = vmatprep.subr.mxu0 0.0
        %3197 = vmatpush1.msra.mxu0 0.0
        %3198 = vmatprep.subr.mxu0 0.0
        %3199 = vmatpush1.msra.mxu0 0.0
        %3200 = vmatprep.subr.mxu0 0.0
        %3201 = vmatpush1.msra.mxu0 0.0
        %3202 = vmatprep.subr.mxu0 0.0
        %3203 = vmatpush1.msra.mxu0 0.0
        %3204 = vmatprep.subr.mxu0 0.0
        %3205 = vmatpush1.msra.mxu0 0.0
        %3206 = vmatprep.subr.mxu0 0.0
        %3207 = vmatpush1.msra.mxu0 0.0
        %3208 = vmatprep.subr.mxu0 0.0
        %3209 = vmatpush1.msra.mxu0 0.0
        %3210 = vmatprep.subr.mxu0 0.0
        %3211 = vmatpush1.msra.mxu0 0.0
        %3212 = vmatprep.subr.mxu0 0.0
        %3213 = vmatpush1.msra.mxu0 0.0
        %3214 = vmatprep.subr.mxu0 0.0
        %3215 = vmatpush1.msra.mxu0 0.0
        %3216 = vmatprep.subr.mxu0 0.0
        %3217 = vmatpush1.msra.mxu0 0.0
        %3218 = vmatprep.subr.mxu0 0.0
        %3219 = vmatpush1.msra.mxu0 0.0
        %3220 = vmatprep.subr.mxu0 0.0
        %3221 = vmatpush1.msra.mxu0 0.0
        %3222 = vmatprep.subr.mxu0 0.0
        %3223 = vmatpush1.msra.mxu0 0.0
        %3224 = vmatprep.subr.mxu0 0.0
        %3225 = vmatpush1.msra.mxu0 0.0
        %3226 = vmatprep.subr.mxu0 0.0
        %3227 = vmatpush1.msra.mxu0 0.0
        %3228 = vmatprep.subr.mxu0 0.0
        %3229 = vmatpush1.msra.mxu0 0.0
        %3230 = vmatprep.mubr.f32.mxu0 0.0
        %3231 = vmatmul.mubr.f32.gmra.mrb[0].mxu0 %v3161
        %v3232 = vpop.f32.mrb[0].mxu0
        %v3233 = vadd.f32 %v3158, %v3232
        %v3234 = vpop.f32.mrb[0].mxu0
        %3235 = vmatprep.mubr.f32.mxu0 0.0
        %3236 = vmatmul.mubr.f32.gmra.mrb[0].mxu0 %v3164
        %v3237 = vpop.f32.mrb[0].mxu0
        %v3238 = vadd.f32 %v3158, %v3237
        %v3239 = vpop.f32.mrb[0].mxu0
        %3240 = vdwg.mxu0
        %v3241 = vld [vmem:[#allocation7] sm:$0xff]
        %v3242 = vld [vmem:[#allocation7 + $0x8] sm:$0xff]
        %v3243 = vld [vmem:[#allocation7 + $0x10] sm:$0xff]
        %v3244 = vld [vmem:[#allocation7 + $0x18] sm:$0xff]
        %v3245 = vld [vmem:[%s1255] sm:$0xff]
        %v3246 = vld [vmem:[%s1255 + $0x8] sm:$0xff]
        %v3247 = vld [vmem:[%s1255 + $0x10] sm:$0xff]
        %v3248 = vld [vmem:[%s1255 + $0x18] sm:$0xff]
        %v3249 = vld [vmem:[%s1263] sm:$0x1]
        %v3251 = vlaneseq
        %v3252 = vshrl.u32 %v3251, 7
        %v3253 = vsub.s32 0, %v3252
        %v3254 = vrot.slane %v3249, %v3253
        %v3257 = vsel %vm1477, %v3241, 0
        %v3260 = vsel %vm1477, %v3242, 0
        %v3263 = vsel %vm1477, %v3243, 0
        %v3266 = vsel %vm1477, %v3244, 0
        %3268 = vmatprep.subr.mxu0 0.0
        %3269 = vmatpush1.msra.mxu0 %v3245
        %3270 = vmatprep.subr.mxu0 0.0
        %3271 = vmatpush1.msra.mxu0 %v3246
        %3272 = vmatprep.subr.mxu0 0.0
        %3273 = vmatpush1.msra.mxu0 %v3247
        %3274 = vmatprep.subr.mxu0 0.0
        %3275 = vmatpush1.msra.mxu0 %v3248
        %3276 = vmatprep.subr.mxu0 0.0
        %3277 = vmatpush1.msra.mxu0 0.0
        %3278 = vmatprep.subr.mxu0 0.0
        %3279 = vmatpush1.msra.mxu0 0.0
        %3280 = vmatprep.subr.mxu0 0.0
        %3281 = vmatpush1.msra.mxu0 0.0
        %3282 = vmatprep.subr.mxu0 0.0
        %3283 = vmatpush1.msra.mxu0 0.0
        %3284 = vmatprep.subr.mxu0 0.0
        %3285 = vmatpush1.msra.mxu0 0.0
        %3286 = vmatprep.subr.mxu0 0.0
        %3287 = vmatpush1.msra.mxu0 0.0
        %3288 = vmatprep.subr.mxu0 0.0
        %3289 = vmatpush1.msra.mxu0 0.0
        %3290 = vmatprep.subr.mxu0 0.0
        %3291 = vmatpush1.msra.mxu0 0.0
        %3292 = vmatprep.subr.mxu0 0.0
        %3293 = vmatpush1.msra.mxu0 0.0
        %3294 = vmatprep.subr.mxu0 0.0
        %3295 = vmatpush1.msra.mxu0 0.0
        %3296 = vmatprep.subr.mxu0 0.0
        %3297 = vmatpush1.msra.mxu0 0.0
        %3298 = vmatprep.subr.mxu0 0.0
        %3299 = vmatpush1.msra.mxu0 0.0
        %3300 = vmatprep.subr.mxu0 0.0
        %3301 = vmatpush1.msra.mxu0 0.0
        %3302 = vmatprep.subr.mxu0 0.0
        %3303 = vmatpush1.msra.mxu0 0.0
        %3304 = vmatprep.subr.mxu0 0.0
        %3305 = vmatpush1.msra.mxu0 0.0
        %3306 = vmatprep.subr.mxu0 0.0
        %3307 = vmatpush1.msra.mxu0 0.0
        %3308 = vmatprep.subr.mxu0 0.0
        %3309 = vmatpush1.msra.mxu0 0.0
        %3310 = vmatprep.subr.mxu0 0.0
        %3311 = vmatpush1.msra.mxu0 0.0
        %3312 = vmatprep.subr.mxu0 0.0
        %3313 = vmatpush1.msra.mxu0 0.0
        %3314 = vmatprep.subr.mxu0 0.0
        %3315 = vmatpush1.msra.mxu0 0.0
        %3316 = vmatprep.subr.mxu0 0.0
        %3317 = vmatpush1.msra.mxu0 0.0
        %3318 = vmatprep.subr.mxu0 0.0
        %3319 = vmatpush1.msra.mxu0 0.0
        %3320 = vmatprep.subr.mxu0 0.0
        %3321 = vmatpush1.msra.mxu0 0.0
        %3322 = vmatprep.subr.mxu0 0.0
        %3323 = vmatpush1.msra.mxu0 0.0
        %3324 = vmatprep.subr.mxu0 0.0
        %3325 = vmatpush1.msra.mxu0 0.0
        %3326 = vmatprep.subr.mxu0 0.0
        %3327 = vmatpush1.msra.mxu0 0.0
        %3328 = vmatprep.subr.mxu0 0.0
        %3329 = vmatpush1.msra.mxu0 0.0
        %3330 = vmatprep.subr.mxu0 0.0
        %3331 = vmatpush1.msra.mxu0 0.0
        %3332 = vmatprep.mubr.f32.mxu0 0.0
        %3333 = vmatmul.mubr.f32.gmra.mrb[0].mxu0 %v3257
        %v3334 = vpop.f32.mrb[0].mxu0
        %v3335 = vadd.f32 %v3254, %v3334
        %v3336 = vpop.f32.mrb[0].mxu0
        %3337 = vmatprep.mubr.f32.mxu0 0.0
        %3338 = vmatmul.mubr.f32.gmra.mrb[0].mxu0 %v3260
        %v3339 = vpop.f32.mrb[0].mxu0
        %v3340 = vadd.f32 %v3254, %v3339
        %v3341 = vpop.f32.mrb[0].mxu0
        %3342 = vmatprep.mubr.f32.mxu0 0.0
        %3343 = vmatmul.mubr.f32.gmra.mrb[0].mxu0 %v3263
        %v3344 = vpop.f32.mrb[0].mxu0
        %v3345 = vadd.f32 %v3254, %v3344
        %v3346 = vpop.f32.mrb[0].mxu0
        %3347 = vmatprep.mubr.f32.mxu0 0.0
        %3348 = vmatmul.mubr.f32.gmra.mrb[0].mxu0 %v3266
        %v3349 = vpop.f32.mrb[0].mxu0
        %v3350 = vadd.f32 %v3254, %v3349
        %v3351 = vpop.f32.mrb[0].mxu0
        %3352 = vdwg.mxu0
        %v3354 = vsel %vm1631, %v3233, 0
        %v3357 = vsel %vm1631, %v3335, 0
        %v3360 = vsel %vm1631, %v3340, 0
        %3362 = vmatprep.subr.mxu0 0.0
        %3363 = vmatpush1.xpose.msra.mxu0 %v3357
        %3364 = vmatprep.subr.mxu0 0.0
        %3365 = vmatpush1.xpose.msra.mxu0 %v3360
        %3366 = vmatprep.subr.mxu0 0.0
        %3367 = vmatpush1.xpose.msra.mxu0 0.0
        %3368 = vmatprep.subr.mxu0 0.0
        %3369 = vmatpush1.xpose.msra.mxu0 0.0
        %3370 = vmatprep.subr.mxu0 0.0
        %3371 = vmatpush1.xpose.msra.mxu0 0.0
        %3372 = vmatprep.subr.mxu0 0.0
        %3373 = vmatpush1.xpose.msra.mxu0 0.0
        %3374 = vmatprep.subr.mxu0 0.0
        %3375 = vmatpush1.xpose.msra.mxu0 0.0
        %3376 = vmatprep.subr.mxu0 0.0
        %3377 = vmatpush1.xpose.msra.mxu0 0.0
        %3378 = vmatprep.subr.mxu0 0.0
        %3379 = vmatpush1.xpose.msra.mxu0 0.0
        %3380 = vmatprep.subr.mxu0 0.0
        %3381 = vmatpush1.xpose.msra.mxu0 0.0
        %3382 = vmatprep.subr.mxu0 0.0
        %3383 = vmatpush1.xpose.msra.mxu0 0.0
        %3384 = vmatprep.subr.mxu0 0.0
        %3385 = vmatpush1.xpose.msra.mxu0 0.0
        %3386 = vmatprep.subr.mxu0 0.0
        %3387 = vmatpush1.xpose.msra.mxu0 0.0
        %3388 = vmatprep.subr.mxu0 0.0
        %3389 = vmatpush1.xpose.msra.mxu0 0.0
        %3390 = vmatprep.subr.mxu0 0.0
        %3391 = vmatpush1.xpose.msra.mxu0 0.0
        %3392 = vmatprep.subr.mxu0 0.0
        %3393 = vmatpush1.xpose.msra.mxu0 0.0
        %3394 = vmatprep.subr.mxu0 0.0
        %3395 = vmatpush1.xpose.msra.mxu0 0.0
        %3396 = vmatprep.subr.mxu0 0.0
        %3397 = vmatpush1.xpose.msra.mxu0 0.0
        %3398 = vmatprep.subr.mxu0 0.0
        %3399 = vmatpush1.xpose.msra.mxu0 0.0
        %3400 = vmatprep.subr.mxu0 0.0
        %3401 = vmatpush1.xpose.msra.mxu0 0.0
        %3402 = vmatprep.subr.mxu0 0.0
        %3403 = vmatpush1.xpose.msra.mxu0 0.0
        %3404 = vmatprep.subr.mxu0 0.0
        %3405 = vmatpush1.xpose.msra.mxu0 0.0
        %3406 = vmatprep.subr.mxu0 0.0
        %3407 = vmatpush1.xpose.msra.mxu0 0.0
        %3408 = vmatprep.subr.mxu0 0.0
        %3409 = vmatpush1.xpose.msra.mxu0 0.0
        %3410 = vmatprep.subr.mxu0 0.0
        %3411 = vmatpush1.xpose.msra.mxu0 0.0
        %3412 = vmatprep.subr.mxu0 0.0
        %3413 = vmatpush1.xpose.msra.mxu0 0.0
        %3414 = vmatprep.subr.mxu0 0.0
        %3415 = vmatpush1.xpose.msra.mxu0 0.0
        %3416 = vmatprep.subr.mxu0 0.0
        %3417 = vmatpush1.xpose.msra.mxu0 0.0
        %3418 = vmatprep.subr.mxu0 0.0
        %3419 = vmatpush1.xpose.msra.mxu0 0.0
        %3420 = vmatprep.subr.mxu0 0.0
        %3421 = vmatpush1.xpose.msra.mxu0 0.0
        %3422 = vmatprep.subr.mxu0 0.0
        %3423 = vmatpush1.xpose.msra.mxu0 0.0
        %3424 = vmatprep.subr.mxu0 0.0
        %3425 = vmatpush1.xpose.msra.mxu0 0.0
        %3426 = vmatprep.mubr.f32.mxu0 0.0
        %3427 = vmatmul.mubr.f32.gmra.mrb[0].mxu0 %v3354
        %v3428 = vpop.f32.mrb[0].mxu0
        %v3429 = vadd.f32 0.0, %v3428
        %v3430 = vpop.f32.mrb[0].mxu0
        %3431 = vdwg.mxu0
        %v3433 = vsel %vm1631, %v3238, 0
        %v3436 = vsel %vm1631, %v3345, 0
        %v3439 = vsel %vm1631, %v3350, 0
        %3441 = vmatprep.subr.mxu0 0.0
        %3442 = vmatpush1.xpose.msra.mxu0 %v3436
        %3443 = vmatprep.subr.mxu0 0.0
        %3444 = vmatpush1.xpose.msra.mxu0 %v3439
        %3445 = vmatprep.subr.mxu0 0.0
        %3446 = vmatpush1.xpose.msra.mxu0 0.0
        %3447 = vmatprep.subr.mxu0 0.0
        %3448 = vmatpush1.xpose.msra.mxu0 0.0
        %3449 = vmatprep.subr.mxu0 0.0
        %3450 = vmatpush1.xpose.msra.mxu0 0.0
        %3451 = vmatprep.subr.mxu0 0.0
        %3452 = vmatpush1.xpose.msra.mxu0 0.0
        %3453 = vmatprep.subr.mxu0 0.0
        %3454 = vmatpush1.xpose.msra.mxu0 0.0
        %3455 = vmatprep.subr.mxu0 0.0
        %3456 = vmatpush1.xpose.msra.mxu0 0.0
        %3457 = vmatprep.subr.mxu0 0.0
        %3458 = vmatpush1.xpose.msra.mxu0 0.0
        %3459 = vmatprep.subr.mxu0 0.0
        %3460 = vmatpush1.xpose.msra.mxu0 0.0
        %3461 = vmatprep.subr.mxu0 0.0
        %3462 = vmatpush1.xpose.msra.mxu0 0.0
        %3463 = vmatprep.subr.mxu0 0.0
        %3464 = vmatpush1.xpose.msra.mxu0 0.0
        %3465 = vmatprep.subr.mxu0 0.0
        %3466 = vmatpush1.xpose.msra.mxu0 0.0
        %3467 = vmatprep.subr.mxu0 0.0
        %3468 = vmatpush1.xpose.msra.mxu0 0.0
        %3469 = vmatprep.subr.mxu0 0.0
        %3470 = vmatpush1.xpose.msra.mxu0 0.0
        %3471 = vmatprep.subr.mxu0 0.0
        %3472 = vmatpush1.xpose.msra.mxu0 0.0
        %3473 = vmatprep.subr.mxu0 0.0
        %3474 = vmatpush1.xpose.msra.mxu0 0.0
        %3475 = vmatprep.subr.mxu0 0.0
        %3476 = vmatpush1.xpose.msra.mxu0 0.0
        %3477 = vmatprep.subr.mxu0 0.0
        %3478 = vmatpush1.xpose.msra.mxu0 0.0
        %3479 = vmatprep.subr.mxu0 0.0
        %3480 = vmatpush1.xpose.msra.mxu0 0.0
        %3481 = vmatprep.subr.mxu0 0.0
        %3482 = vmatpush1.xpose.msra.mxu0 0.0
        %3483 = vmatprep.subr.mxu0 0.0
        %3484 = vmatpush1.xpose.msra.mxu0 0.0
        %3485 = vmatprep.subr.mxu0 0.0
        %3486 = vmatpush1.xpose.msra.mxu0 0.0
        %3487 = vmatprep.subr.mxu0 0.0
        %3488 = vmatpush1.xpose.msra.mxu0 0.0
        %3489 = vmatprep.subr.mxu0 0.0
        %3490 = vmatpush1.xpose.msra.mxu0 0.0
        %3491 = vmatprep.subr.mxu0 0.0
        %3492 = vmatpush1.xpose.msra.mxu0 0.0
        %3493 = vmatprep.subr.mxu0 0.0
        %3494 = vmatpush1.xpose.msra.mxu0 0.0
        %3495 = vmatprep.subr.mxu0 0.0
        %3496 = vmatpush1.xpose.msra.mxu0 0.0
        %3497 = vmatprep.subr.mxu0 0.0
        %3498 = vmatpush1.xpose.msra.mxu0 0.0
        %3499 = vmatprep.subr.mxu0 0.0
        %3500 = vmatpush1.xpose.msra.mxu0 0.0
        %3501 = vmatprep.subr.mxu0 0.0
        %3502 = vmatpush1.xpose.msra.mxu0 0.0
        %3503 = vmatprep.subr.mxu0 0.0
        %3504 = vmatpush1.xpose.msra.mxu0 0.0
        %3505 = vmatprep.mubr.f32.mxu0 0.0
        %3506 = vmatmul.mubr.f32.gmra.mrb[0].mxu0 %v3433
        %v3507 = vpop.f32.mrb[0].mxu0
        %v3508 = vadd.f32 0.0, %v3507
        %v3509 = vpop.f32.mrb[0].mxu0
        %3510 = vdwg.mxu0
        %v3511 = vmul.f32 %v3429, 0.35355338
        %v3512 = vmul.f32 %v3508, 0.35355338
        %v3515 = vlaneseq
        %v3516 = vshrl.u32 %v3515, 7
        %v3517 = vsub.s32 0, %v3516
        %v3518 = vrot.slane %v1473, %v3517
        %v3519 = vlaneseq
        %v3520 = vshrl.u32 %v3519, 7
        %v3521 = vsub.s32 0, %v3520
        %v3522 = vrot.slane %v1474, %v3521
        %v3525 = vadd.f32 %v3511, %v3518
        %v3526 = vadd.f32 %v3512, %v3522
        %v3527 = vsel %vm2989, %v3525, -inf
        %3528 = vmax.xlane.f32.xlu0 %v3527
        %v3529 = vpop.xlane.xlu0 %3528
        %v3530 = vsel %vm2989, %v3526, -inf
        %3531 = vmax.xlane.f32.xlu0 %v3530
        %v3532 = vpop.xlane.xlu0 %3531
        %v3533 = vsub.f32 %v3525, %v3529
        %v3534 = vsub.f32 %v3526, %v3532
        %v3535 = vmul.f32 %v3533, 1.442695
        %v3536 = vpow.pop %v3535
        %v3537 = vmul.f32 %v3534, 1.442695
        %v3538 = vpow.pop %v3537
        %v3539 = vsel %vm2989, %v3536, 0.0
        %3540 = vadd.xlane.f32.xlu0 %v3539
        %v3541 = vpop.xlane.xlu0 %3540
        %v3542 = vsel %vm2989, %v3538, 0.0
        %3543 = vadd.xlane.f32.xlu0 %v3542
        %v3544 = vpop.xlane.xlu0 %3543
        %v3545 = vrcp.pop %v3541
        %v3546 = vrcp.pop %v3544
        %v3547 = vmul.f32 %v3536, %v3545
        %v3548 = vmul.f32 %v3538, %v3546
        %v3549 = vld [vmem:[#allocation3] sm:$0xff]
        %v3550 = vld [vmem:[#allocation3 + $0x8] sm:$0xff]
        %v3551 = vadd.f32 %v3549, %v3547
        %v3552 = vadd.f32 %v3550, %v3548
        %3553 = vst.msk [vmem:[#allocation3] sm:$0xff] %vm2989, %v3551
        %3554 = vst.msk [vmem:[#allocation3 + $0x8] sm:$0xff] %vm2989, %v3552
        %3555 = vrot.lane.b32.xlu0 %v3335, 96
        %v3556 = vpop.permute.xlu0 %3555
        %3557 = vrot.lane.b32.xlu0 %v3340, 96
        %v3558 = vpop.permute.xlu0 %3557
        %v3562 = vsel %vm2989, %v3547, 0
        %3564 = vmatprep.subr.mxu0 0.0
        %3565 = vmatpush1.msra.mxu0 %v3556
        %3566 = vmatprep.subr.mxu0 0.0
        %3567 = vmatpush1.msra.mxu0 %v3558
        %3568 = vmatprep.subr.mxu0 0.0
        %3569 = vmatpush1.msra.mxu0 0.0
        %3570 = vmatprep.subr.mxu0 0.0
        %3571 = vmatpush1.msra.mxu0 0.0
        %3572 = vmatprep.subr.mxu0 0.0
        %3573 = vmatpush1.msra.mxu0 0.0
        %3574 = vmatprep.subr.mxu0 0.0
        %3575 = vmatpush1.msra.mxu0 0.0
        %3576 = vmatprep.subr.mxu0 0.0
        %3577 = vmatpush1.msra.mxu0 0.0
        %3578 = vmatprep.subr.mxu0 0.0
        %3579 = vmatpush1.msra.mxu0 0.0
        %3580 = vmatprep.subr.mxu0 0.0
        %3581 = vmatpush1.msra.mxu0 0.0
        %3582 = vmatprep.subr.mxu0 0.0
        %3583 = vmatpush1.msra.mxu0 0.0
        %3584 = vmatprep.subr.mxu0 0.0
        %3585 = vmatpush1.msra.mxu0 0.0
        %3586 = vmatprep.subr.mxu0 0.0
        %3587 = vmatpush1.msra.mxu0 0.0
        %3588 = vmatprep.subr.mxu0 0.0
        %3589 = vmatpush1.msra.mxu0 0.0
        %3590 = vmatprep.subr.mxu0 0.0
        %3591 = vmatpush1.msra.mxu0 0.0
        %3592 = vmatprep.subr.mxu0 0.0
        %3593 = vmatpush1.msra.mxu0 0.0
        %3594 = vmatprep.subr.mxu0 0.0
        %3595 = vmatpush1.msra.mxu0 0.0
        %3596 = vmatprep.subr.mxu0 0.0
        %3597 = vmatpush1.msra.mxu0 0.0
        %3598 = vmatprep.subr.mxu0 0.0
        %3599 = vmatpush1.msra.mxu0 0.0
        %3600 = vmatprep.subr.mxu0 0.0
        %3601 = vmatpush1.msra.mxu0 0.0
        %3602 = vmatprep.subr.mxu0 0.0
        %3603 = vmatpush1.msra.mxu0 0.0
        %3604 = vmatprep.subr.mxu0 0.0
        %3605 = vmatpush1.msra.mxu0 0.0
        %3606 = vmatprep.subr.mxu0 0.0
        %3607 = vmatpush1.msra.mxu0 0.0
        %3608 = vmatprep.subr.mxu0 0.0
        %3609 = vmatpush1.msra.mxu0 0.0
        %3610 = vmatprep.subr.mxu0 0.0
        %3611 = vmatpush1.msra.mxu0 0.0
        %3612 = vmatprep.subr.mxu0 0.0
        %3613 = vmatpush1.msra.mxu0 0.0
        %3614 = vmatprep.subr.mxu0 0.0
        %3615 = vmatpush1.msra.mxu0 0.0
        %3616 = vmatprep.subr.mxu0 0.0
        %3617 = vmatpush1.msra.mxu0 0.0
        %3618 = vmatprep.subr.mxu0 0.0
        %3619 = vmatpush1.msra.mxu0 0.0
        %3620 = vmatprep.subr.mxu0 0.0
        %3621 = vmatpush1.msra.mxu0 0.0
        %3622 = vmatprep.subr.mxu0 0.0
        %3623 = vmatpush1.msra.mxu0 0.0
        %3624 = vmatprep.subr.mxu0 0.0
        %3625 = vmatpush1.msra.mxu0 0.0
        %3626 = vmatprep.subr.mxu0 0.0
        %3627 = vmatpush1.msra.mxu0 0.0
        %3628 = vmatprep.mubr.f32.mxu0 0.0
        %3629 = vmatmul.mubr.f32.gmra.mrb[0].mxu0 %v3562
        %v3630 = vpop.f32.mrb[0].mxu0
        %v3631 = vadd.f32 0.0, %v3630
        %v3632 = vpop.f32.mrb[0].mxu0
        %3633 = vdwg.mxu0
        %3634 = vrot.lane.b32.xlu0 %v3345, 96
        %v3635 = vpop.permute.xlu0 %3634
        %3636 = vrot.lane.b32.xlu0 %v3350, 96
        %v3637 = vpop.permute.xlu0 %3636
        %v3641 = vsel %vm2989, %v3548, 0
        %3643 = vmatprep.subr.mxu0 0.0
        %3644 = vmatpush1.msra.mxu0 %v3635
        %3645 = vmatprep.subr.mxu0 0.0
        %3646 = vmatpush1.msra.mxu0 %v3637
        %3647 = vmatprep.subr.mxu0 0.0
        %3648 = vmatpush1.msra.mxu0 0.0
        %3649 = vmatprep.subr.mxu0 0.0
        %3650 = vmatpush1.msra.mxu0 0.0
        %3651 = vmatprep.subr.mxu0 0.0
        %3652 = vmatpush1.msra.mxu0 0.0
        %3653 = vmatprep.subr.mxu0 0.0
        %3654 = vmatpush1.msra.mxu0 0.0
        %3655 = vmatprep.subr.mxu0 0.0
        %3656 = vmatpush1.msra.mxu0 0.0
        %3657 = vmatprep.subr.mxu0 0.0
        %3658 = vmatpush1.msra.mxu0 0.0
        %3659 = vmatprep.subr.mxu0 0.0
        %3660 = vmatpush1.msra.mxu0 0.0
        %3661 = vmatprep.subr.mxu0 0.0
        %3662 = vmatpush1.msra.mxu0 0.0
        %3663 = vmatprep.subr.mxu0 0.0
        %3664 = vmatpush1.msra.mxu0 0.0
        %3665 = vmatprep.subr.mxu0 0.0
        %3666 = vmatpush1.msra.mxu0 0.0
        %3667 = vmatprep.subr.mxu0 0.0
        %3668 = vmatpush1.msra.mxu0 0.0
        %3669 = vmatprep.subr.mxu0 0.0
        %3670 = vmatpush1.msra.mxu0 0.0
        %3671 = vmatprep.subr.mxu0 0.0
        %3672 = vmatpush1.msra.mxu0 0.0
        %3673 = vmatprep.subr.mxu0 0.0
        %3674 = vmatpush1.msra.mxu0 0.0
        %3675 = vmatprep.subr.mxu0 0.0
        %3676 = vmatpush1.msra.mxu0 0.0
        %3677 = vmatprep.subr.mxu0 0.0
        %3678 = vmatpush1.msra.mxu0 0.0
        %3679 = vmatprep.subr.mxu0 0.0
        %3680 = vmatpush1.msra.mxu0 0.0
        %3681 = vmatprep.subr.mxu0 0.0
        %3682 = vmatpush1.msra.mxu0 0.0
        %3683 = vmatprep.subr.mxu0 0.0
        %3684 = vmatpush1.msra.mxu0 0.0
        %3685 = vmatprep.subr.mxu0 0.0
        %3686 = vmatpush1.msra.mxu0 0.0
        %3687 = vmatprep.subr.mxu0 0.0
        %3688 = vmatpush1.msra.mxu0 0.0
        %3689 = vmatprep.subr.mxu0 0.0
        %3690 = vmatpush1.msra.mxu0 0.0
        %3691 = vmatprep.subr.mxu0 0.0
        %3692 = vmatpush1.msra.mxu0 0.0
        %3693 = vmatprep.subr.mxu0 0.0
        %3694 = vmatpush1.msra.mxu0 0.0
        %3695 = vmatprep.subr.mxu0 0.0
        %3696 = vmatpush1.msra.mxu0 0.0
        %3697 = vmatprep.subr.mxu0 0.0
        %3698 = vmatpush1.msra.mxu0 0.0
        %3699 = vmatprep.subr.mxu0 0.0
        %3700 = vmatpush1.msra.mxu0 0.0
        %3701 = vmatprep.subr.mxu0 0.0
        %3702 = vmatpush1.msra.mxu0 0.0
        %3703 = vmatprep.subr.mxu0 0.0
        %3704 = vmatpush1.msra.mxu0 0.0
        %3705 = vmatprep.subr.mxu0 0.0
        %3706 = vmatpush1.msra.mxu0 0.0
        %3707 = vmatprep.mubr.f32.mxu0 0.0
        %3708 = vmatmul.mubr.f32.gmra.mrb[0].mxu0 %v3641
        %v3709 = vpop.f32.mrb[0].mxu0
        %v3710 = vadd.f32 0.0, %v3709
        %v3711 = vpop.f32.mrb[0].mxu0
        %3712 = vdwg.mxu0
        %3713 = vrot.lane.b32.xlu0 %v3233, 120
        %v3714 = vpop.permute.xlu0 %3713
        %3715 = vrot.lane.b32.xlu0 %v3335, 120
        %v3716 = vpop.permute.xlu0 %3715
        %3717 = vrot.lane.b32.xlu0 %v3340, 120
        %v3718 = vpop.permute.xlu0 %3717
        %v3719 = vsel %vm1631, %v3714, 0
        %v3721 = vsel %vm1631, %v3716, 0
        %v3723 = vsel %vm1631, %v3718, 0
        %3725 = vmatprep.subr.mxu0 0.0
        %3726 = vmatpush1.xpose.msra.mxu0 %v3721
        %3727 = vmatprep.subr.mxu0 0.0
        %3728 = vmatpush1.xpose.msra.mxu0 %v3723
        %3729 = vmatprep.subr.mxu0 0.0
        %3730 = vmatpush1.xpose.msra.mxu0 0.0
        %3731 = vmatprep.subr.mxu0 0.0
        %3732 = vmatpush1.xpose.msra.mxu0 0.0
        %3733 = vmatprep.subr.mxu0 0.0
        %3734 = vmatpush1.xpose.msra.mxu0 0.0
        %3735 = vmatprep.subr.mxu0 0.0
        %3736 = vmatpush1.xpose.msra.mxu0 0.0
        %3737 = vmatprep.subr.mxu0 0.0
        %3738 = vmatpush1.xpose.msra.mxu0 0.0
        %3739 = vmatprep.subr.mxu0 0.0
        %3740 = vmatpush1.xpose.msra.mxu0 0.0
        %3741 = vmatprep.subr.mxu0 0.0
        %3742 = vmatpush1.xpose.msra.mxu0 0.0
        %3743 = vmatprep.subr.mxu0 0.0
        %3744 = vmatpush1.xpose.msra.mxu0 0.0
        %3745 = vmatprep.subr.mxu0 0.0
        %3746 = vmatpush1.xpose.msra.mxu0 0.0
        %3747 = vmatprep.subr.mxu0 0.0
        %3748 = vmatpush1.xpose.msra.mxu0 0.0
        %3749 = vmatprep.subr.mxu0 0.0
        %3750 = vmatpush1.xpose.msra.mxu0 0.0
        %3751 = vmatprep.subr.mxu0 0.0
        %3752 = vmatpush1.xpose.msra.mxu0 0.0
        %3753 = vmatprep.subr.mxu0 0.0
        %3754 = vmatpush1.xpose.msra.mxu0 0.0
        %3755 = vmatprep.subr.mxu0 0.0
        %3756 = vmatpush1.xpose.msra.mxu0 0.0
        %3757 = vmatprep.subr.mxu0 0.0
        %3758 = vmatpush1.xpose.msra.mxu0 0.0
        %3759 = vmatprep.subr.mxu0 0.0
        %3760 = vmatpush1.xpose.msra.mxu0 0.0
        %3761 = vmatprep.subr.mxu0 0.0
        %3762 = vmatpush1.xpose.msra.mxu0 0.0
        %3763 = vmatprep.subr.mxu0 0.0
        %3764 = vmatpush1.xpose.msra.mxu0 0.0
        %3765 = vmatprep.subr.mxu0 0.0
        %3766 = vmatpush1.xpose.msra.mxu0 0.0
        %3767 = vmatprep.subr.mxu0 0.0
        %3768 = vmatpush1.xpose.msra.mxu0 0.0
        %3769 = vmatprep.subr.mxu0 0.0
        %3770 = vmatpush1.xpose.msra.mxu0 0.0
        %3771 = vmatprep.subr.mxu0 0.0
        %3772 = vmatpush1.xpose.msra.mxu0 0.0
        %3773 = vmatprep.subr.mxu0 0.0
        %3774 = vmatpush1.xpose.msra.mxu0 0.0
        %3775 = vmatprep.subr.mxu0 0.0
        %3776 = vmatpush1.xpose.msra.mxu0 0.0
        %3777 = vmatprep.subr.mxu0 0.0
        %3778 = vmatpush1.xpose.msra.mxu0 0.0
        %3779 = vmatprep.subr.mxu0 0.0
        %3780 = vmatpush1.xpose.msra.mxu0 0.0
        %3781 = vmatprep.subr.mxu0 0.0
        %3782 = vmatpush1.xpose.msra.mxu0 0.0
        %3783 = vmatprep.subr.mxu0 0.0
        %3784 = vmatpush1.xpose.msra.mxu0 0.0
        %3785 = vmatprep.subr.mxu0 0.0
        %3786 = vmatpush1.xpose.msra.mxu0 0.0
        %3787 = vmatprep.subr.mxu0 0.0
        %3788 = vmatpush1.xpose.msra.mxu0 0.0
        %3789 = vmatprep.mubr.f32.mxu0 0.0
        %3790 = vmatmul.mubr.f32.gmra.mrb[0].mxu0 %v3719
        %v3791 = vpop.f32.mrb[0].mxu0
        %v3792 = vadd.f32 0.0, %v3791
        %v3793 = vpop.f32.mrb[0].mxu0
        %3794 = vdwg.mxu0
        %3795 = vrot.lane.b32.xlu0 %v3238, 120
        %v3796 = vpop.permute.xlu0 %3795
        %3797 = vrot.lane.b32.xlu0 %v3345, 120
        %v3798 = vpop.permute.xlu0 %3797
        %3799 = vrot.lane.b32.xlu0 %v3350, 120
        %v3800 = vpop.permute.xlu0 %3799
        %v3801 = vsel %vm1631, %v3796, 0
        %v3803 = vsel %vm1631, %v3798, 0
        %v3805 = vsel %vm1631, %v3800, 0
        %3807 = vmatprep.subr.mxu0 0.0
        %3808 = vmatpush1.xpose.msra.mxu0 %v3803
        %3809 = vmatprep.subr.mxu0 0.0
        %3810 = vmatpush1.xpose.msra.mxu0 %v3805
        %3811 = vmatprep.subr.mxu0 0.0
        %3812 = vmatpush1.xpose.msra.mxu0 0.0
        %3813 = vmatprep.subr.mxu0 0.0
        %3814 = vmatpush1.xpose.msra.mxu0 0.0
        %3815 = vmatprep.subr.mxu0 0.0
        %3816 = vmatpush1.xpose.msra.mxu0 0.0
        %3817 = vmatprep.subr.mxu0 0.0
        %3818 = vmatpush1.xpose.msra.mxu0 0.0
        %3819 = vmatprep.subr.mxu0 0.0
        %3820 = vmatpush1.xpose.msra.mxu0 0.0
        %3821 = vmatprep.subr.mxu0 0.0
        %3822 = vmatpush1.xpose.msra.mxu0 0.0
        %3823 = vmatprep.subr.mxu0 0.0
        %3824 = vmatpush1.xpose.msra.mxu0 0.0
        %3825 = vmatprep.subr.mxu0 0.0
        %3826 = vmatpush1.xpose.msra.mxu0 0.0
        %3827 = vmatprep.subr.mxu0 0.0
        %3828 = vmatpush1.xpose.msra.mxu0 0.0
        %3829 = vmatprep.subr.mxu0 0.0
        %3830 = vmatpush1.xpose.msra.mxu0 0.0
        %3831 = vmatprep.subr.mxu0 0.0
        %3832 = vmatpush1.xpose.msra.mxu0 0.0
        %3833 = vmatprep.subr.mxu0 0.0
        %3834 = vmatpush1.xpose.msra.mxu0 0.0
        %3835 = vmatprep.subr.mxu0 0.0
        %3836 = vmatpush1.xpose.msra.mxu0 0.0
        %3837 = vmatprep.subr.mxu0 0.0
        %3838 = vmatpush1.xpose.msra.mxu0 0.0
        %3839 = vmatprep.subr.mxu0 0.0
        %3840 = vmatpush1.xpose.msra.mxu0 0.0
        %3841 = vmatprep.subr.mxu0 0.0
        %3842 = vmatpush1.xpose.msra.mxu0 0.0
        %3843 = vmatprep.subr.mxu0 0.0
        %3844 = vmatpush1.xpose.msra.mxu0 0.0
        %3845 = vmatprep.subr.mxu0 0.0
        %3846 = vmatpush1.xpose.msra.mxu0 0.0
        %3847 = vmatprep.subr.mxu0 0.0
        %3848 = vmatpush1.xpose.msra.mxu0 0.0
        %3849 = vmatprep.subr.mxu0 0.0
        %3850 = vmatpush1.xpose.msra.mxu0 0.0
        %3851 = vmatprep.subr.mxu0 0.0
        %3852 = vmatpush1.xpose.msra.mxu0 0.0
        %3853 = vmatprep.subr.mxu0 0.0
        %3854 = vmatpush1.xpose.msra.mxu0 0.0
        %3855 = vmatprep.subr.mxu0 0.0
        %3856 = vmatpush1.xpose.msra.mxu0 0.0
        %3857 = vmatprep.subr.mxu0 0.0
        %3858 = vmatpush1.xpose.msra.mxu0 0.0
        %3859 = vmatprep.subr.mxu0 0.0
        %3860 = vmatpush1.xpose.msra.mxu0 0.0
        %3861 = vmatprep.subr.mxu0 0.0
        %3862 = vmatpush1.xpose.msra.mxu0 0.0
        %3863 = vmatprep.subr.mxu0 0.0
        %3864 = vmatpush1.xpose.msra.mxu0 0.0
        %3865 = vmatprep.subr.mxu0 0.0
        %3866 = vmatpush1.xpose.msra.mxu0 0.0
        %3867 = vmatprep.subr.mxu0 0.0
        %3868 = vmatpush1.xpose.msra.mxu0 0.0
        %3869 = vmatprep.subr.mxu0 0.0
        %3870 = vmatpush1.xpose.msra.mxu0 0.0
        %3871 = vmatprep.mubr.f32.mxu0 0.0
        %3872 = vmatmul.mubr.f32.gmra.mrb[0].mxu0 %v3801
        %v3873 = vpop.f32.mrb[0].mxu0
        %v3874 = vadd.f32 0.0, %v3873
        %v3875 = vpop.f32.mrb[0].mxu0
        %3876 = vdwg.mxu0
        %v3877 = vmul.f32 %v3792, 0.35355338
        %v3878 = vmul.f32 %v3874, 0.35355338
        %v3879 = vadd.f32 %v3877, %v3518
        %v3880 = vadd.f32 %v3878, %v3522
        %v3881 = vsel %vm2989, %v3879, -inf
        %3882 = vmax.xlane.f32.xlu0 %v3881
        %v3883 = vpop.xlane.xlu0 %3882
        %v3884 = vsel %vm2989, %v3880, -inf
        %3885 = vmax.xlane.f32.xlu0 %v3884
        %v3886 = vpop.xlane.xlu0 %3885
        %v3887 = vsub.f32 %v3879, %v3883
        %v3888 = vsub.f32 %v3880, %v3886
        %v3889 = vmul.f32 %v3887, 1.442695
        %v3890 = vpow.pop %v3889
        %v3891 = vmul.f32 %v3888, 1.442695
        %v3892 = vpow.pop %v3891
        %v3893 = vsel %vm2989, %v3890, 0.0
        %3894 = vadd.xlane.f32.xlu0 %v3893
        %v3895 = vpop.xlane.xlu0 %3894
        %v3896 = vsel %vm2989, %v3892, 0.0
        %3897 = vadd.xlane.f32.xlu0 %v3896
        %v3898 = vpop.xlane.xlu0 %3897
        %v3899 = vrcp.pop %v3895
        %v3900 = vrcp.pop %v3898
        %v3901 = vmul.f32 %v3890, %v3899
        %v3902 = vmul.f32 %v3892, %v3900
        %s3903 = scalar_lea.vmem [#allocation3], 16
        %v3904 = vld [vmem:[%s3903] sm:$0xff]
        %v3905 = vld [vmem:[%s3903 + $0x8] sm:$0xff]
        %v3906 = vadd.f32 %v3904, %v3901
        %v3907 = vadd.f32 %v3905, %v3902
        %3908 = vst.msk [vmem:[%s3903] sm:$0xff] %vm2989, %v3906
        %3909 = vst.msk [vmem:[%s3903 + $0x8] sm:$0xff] %vm2989, %v3907
        %3910 = vrot.lane.b32.xlu0 %v3335, 88
        %v3911 = vpop.permute.xlu0 %3910
        %3912 = vrot.lane.b32.xlu0 %v3340, 88
        %v3913 = vpop.permute.xlu0 %3912
        %v3917 = vsel %vm2989, %v3901, 0
        %3919 = vmatprep.subr.mxu0 0.0
        %3920 = vmatpush1.msra.mxu0 %v3911
        %3921 = vmatprep.subr.mxu0 0.0
        %3922 = vmatpush1.msra.mxu0 %v3913
        %3923 = vmatprep.subr.mxu0 0.0
        %3924 = vmatpush1.msra.mxu0 0.0
        %3925 = vmatprep.subr.mxu0 0.0
        %3926 = vmatpush1.msra.mxu0 0.0
        %3927 = vmatprep.subr.mxu0 0.0
        %3928 = vmatpush1.msra.mxu0 0.0
        %3929 = vmatprep.subr.mxu0 0.0
        %3930 = vmatpush1.msra.mxu0 0.0
        %3931 = vmatprep.subr.mxu0 0.0
        %3932 = vmatpush1.msra.mxu0 0.0
        %3933 = vmatprep.subr.mxu0 0.0
        %3934 = vmatpush1.msra.mxu0 0.0
        %3935 = vmatprep.subr.mxu0 0.0
        %3936 = vmatpush1.msra.mxu0 0.0
        %3937 = vmatprep.subr.mxu0 0.0
        %3938 = vmatpush1.msra.mxu0 0.0
        %3939 = vmatprep.subr.mxu0 0.0
        %3940 = vmatpush1.msra.mxu0 0.0
        %3941 = vmatprep.subr.mxu0 0.0
        %3942 = vmatpush1.msra.mxu0 0.0
        %3943 = vmatprep.subr.mxu0 0.0
        %3944 = vmatpush1.msra.mxu0 0.0
        %3945 = vmatprep.subr.mxu0 0.0
        %3946 = vmatpush1.msra.mxu0 0.0
        %3947 = vmatprep.subr.mxu0 0.0
        %3948 = vmatpush1.msra.mxu0 0.0
        %3949 = vmatprep.subr.mxu0 0.0
        %3950 = vmatpush1.msra.mxu0 0.0
        %3951 = vmatprep.subr.mxu0 0.0
        %3952 = vmatpush1.msra.mxu0 0.0
        %3953 = vmatprep.subr.mxu0 0.0
        %3954 = vmatpush1.msra.mxu0 0.0
        %3955 = vmatprep.subr.mxu0 0.0
        %3956 = vmatpush1.msra.mxu0 0.0
        %3957 = vmatprep.subr.mxu0 0.0
        %3958 = vmatpush1.msra.mxu0 0.0
        %3959 = vmatprep.subr.mxu0 0.0
        %3960 = vmatpush1.msra.mxu0 0.0
        %3961 = vmatprep.subr.mxu0 0.0
        %3962 = vmatpush1.msra.mxu0 0.0
        %3963 = vmatprep.subr.mxu0 0.0
        %3964 = vmatpush1.msra.mxu0 0.0
        %3965 = vmatprep.subr.mxu0 0.0
        %3966 = vmatpush1.msra.mxu0 0.0
        %3967 = vmatprep.subr.mxu0 0.0
        %3968 = vmatpush1.msra.mxu0 0.0
        %3969 = vmatprep.subr.mxu0 0.0
        %3970 = vmatpush1.msra.mxu0 0.0
        %3971 = vmatprep.subr.mxu0 0.0
        %3972 = vmatpush1.msra.mxu0 0.0
        %3973 = vmatprep.subr.mxu0 0.0
        %3974 = vmatpush1.msra.mxu0 0.0
        %3975 = vmatprep.subr.mxu0 0.0
        %3976 = vmatpush1.msra.mxu0 0.0
        %3977 = vmatprep.subr.mxu0 0.0
        %3978 = vmatpush1.msra.mxu0 0.0
        %3979 = vmatprep.subr.mxu0 0.0
        %3980 = vmatpush1.msra.mxu0 0.0
        %3981 = vmatprep.subr.mxu0 0.0
        %3982 = vmatpush1.msra.mxu0 0.0
        %3983 = vmatprep.mubr.f32.mxu0 0.0
        %3984 = vmatmul.mubr.f32.gmra.mrb[0].mxu0 %v3917
        %v3985 = vpop.f32.mrb[0].mxu0
        %v3986 = vadd.f32 0.0, %v3985
        %v3987 = vpop.f32.mrb[0].mxu0
        %3988 = vdwg.mxu0
        %3989 = vrot.lane.b32.xlu0 %v3345, 88
        %v3990 = vpop.permute.xlu0 %3989
        %3991 = vrot.lane.b32.xlu0 %v3350, 88
        %v3992 = vpop.permute.xlu0 %3991
        %v3996 = vsel %vm2989, %v3902, 0
        %3998 = vmatprep.subr.mxu0 0.0
        %3999 = vmatpush1.msra.mxu0 %v3990
        %4000 = vmatprep.subr.mxu0 0.0
        %4001 = vmatpush1.msra.mxu0 %v3992
        %4002 = vmatprep.subr.mxu0 0.0
        %4003 = vmatpush1.msra.mxu0 0.0
        %4004 = vmatprep.subr.mxu0 0.0
        %4005 = vmatpush1.msra.mxu0 0.0
        %4006 = vmatprep.subr.mxu0 0.0
        %4007 = vmatpush1.msra.mxu0 0.0
        %4008 = vmatprep.subr.mxu0 0.0
        %4009 = vmatpush1.msra.mxu0 0.0
        %4010 = vmatprep.subr.mxu0 0.0
        %4011 = vmatpush1.msra.mxu0 0.0
        %4012 = vmatprep.subr.mxu0 0.0
        %4013 = vmatpush1.msra.mxu0 0.0
        %4014 = vmatprep.subr.mxu0 0.0
        %4015 = vmatpush1.msra.mxu0 0.0
        %4016 = vmatprep.subr.mxu0 0.0
        %4017 = vmatpush1.msra.mxu0 0.0
        %4018 = vmatprep.subr.mxu0 0.0
        %4019 = vmatpush1.msra.mxu0 0.0
        %4020 = vmatprep.subr.mxu0 0.0
        %4021 = vmatpush1.msra.mxu0 0.0
        %4022 = vmatprep.subr.mxu0 0.0
        %4023 = vmatpush1.msra.mxu0 0.0
        %4024 = vmatprep.subr.mxu0 0.0
        %4025 = vmatpush1.msra.mxu0 0.0
        %4026 = vmatprep.subr.mxu0 0.0
        %4027 = vmatpush1.msra.mxu0 0.0
        %4028 = vmatprep.subr.mxu0 0.0
        %4029 = vmatpush1.msra.mxu0 0.0
        %4030 = vmatprep.subr.mxu0 0.0
        %4031 = vmatpush1.msra.mxu0 0.0
        %4032 = vmatprep.subr.mxu0 0.0
        %4033 = vmatpush1.msra.mxu0 0.0
        %4034 = vmatprep.subr.mxu0 0.0
        %4035 = vmatpush1.msra.mxu0 0.0
        %4036 = vmatprep.subr.mxu0 0.0
        %4037 = vmatpush1.msra.mxu0 0.0
        %4038 = vmatprep.subr.mxu0 0.0
        %4039 = vmatpush1.msra.mxu0 0.0
        %4040 = vmatprep.subr.mxu0 0.0
        %4041 = vmatpush1.msra.mxu0 0.0
        %4042 = vmatprep.subr.mxu0 0.0
        %4043 = vmatpush1.msra.mxu0 0.0
        %4044 = vmatprep.subr.mxu0 0.0
        %4045 = vmatpush1.msra.mxu0 0.0
        %4046 = vmatprep.subr.mxu0 0.0
        %4047 = vmatpush1.msra.mxu0 0.0
        %4048 = vmatprep.subr.mxu0 0.0
        %4049 = vmatpush1.msra.mxu0 0.0
        %4050 = vmatprep.subr.mxu0 0.0
        %4051 = vmatpush1.msra.mxu0 0.0
        %4052 = vmatprep.subr.mxu0 0.0
        %4053 = vmatpush1.msra.mxu0 0.0
        %4054 = vmatprep.subr.mxu0 0.0
        %4055 = vmatpush1.msra.mxu0 0.0
        %4056 = vmatprep.subr.mxu0 0.0
        %4057 = vmatpush1.msra.mxu0 0.0
        %4058 = vmatprep.subr.mxu0 0.0
        %4059 = vmatpush1.msra.mxu0 0.0
        %4060 = vmatprep.subr.mxu0 0.0
        %4061 = vmatpush1.msra.mxu0 0.0
        %4062 = vmatprep.mubr.f32.mxu0 0.0
        %4063 = vmatmul.mubr.f32.gmra.mrb[0].mxu0 %v3996
        %v4064 = vpop.f32.mrb[0].mxu0
        %v4065 = vadd.f32 0.0, %v4064
        %v4066 = vpop.f32.mrb[0].mxu0
        %4067 = vdwg.mxu0
        %4068 = vrot.lane.b32.xlu0 %v3233, 112
        %v4069 = vpop.permute.xlu0 %4068
        %4070 = vrot.lane.b32.xlu0 %v3335, 112
        %v4071 = vpop.permute.xlu0 %4070
        %4072 = vrot.lane.b32.xlu0 %v3340, 112
        %v4073 = vpop.permute.xlu0 %4072
        %v4074 = vsel %vm1631, %v4069, 0
        %v4076 = vsel %vm1631, %v4071, 0
        %v4078 = vsel %vm1631, %v4073, 0
        %4080 = vmatprep.subr.mxu0 0.0
        %4081 = vmatpush1.xpose.msra.mxu0 %v4076
        %4082 = vmatprep.subr.mxu0 0.0
        %4083 = vmatpush1.xpose.msra.mxu0 %v4078
        %4084 = vmatprep.subr.mxu0 0.0
        %4085 = vmatpush1.xpose.msra.mxu0 0.0
        %4086 = vmatprep.subr.mxu0 0.0
        %4087 = vmatpush1.xpose.msra.mxu0 0.0
        %4088 = vmatprep.subr.mxu0 0.0
        %4089 = vmatpush1.xpose.msra.mxu0 0.0
        %4090 = vmatprep.subr.mxu0 0.0
        %4091 = vmatpush1.xpose.msra.mxu0 0.0
        %4092 = vmatprep.subr.mxu0 0.0
        %4093 = vmatpush1.xpose.msra.mxu0 0.0
        %4094 = vmatprep.subr.mxu0 0.0
        %4095 = vmatpush1.xpose.msra.mxu0 0.0
        %4096 = vmatprep.subr.mxu0 0.0
        %4097 = vmatpush1.xpose.msra.mxu0 0.0
        %4098 = vmatprep.subr.mxu0 0.0
        %4099 = vmatpush1.xpose.msra.mxu0 0.0
        %4100 = vmatprep.subr.mxu0 0.0
        %4101 = vmatpush1.xpose.msra.mxu0 0.0
        %4102 = vmatprep.subr.mxu0 0.0
        %4103 = vmatpush1.xpose.msra.mxu0 0.0
        %4104 = vmatprep.subr.mxu0 0.0
        %4105 = vmatpush1.xpose.msra.mxu0 0.0
        %4106 = vmatprep.subr.mxu0 0.0
        %4107 = vmatpush1.xpose.msra.mxu0 0.0
        %4108 = vmatprep.subr.mxu0 0.0
        %4109 = vmatpush1.xpose.msra.mxu0 0.0
        %4110 = vmatprep.subr.mxu0 0.0
        %4111 = vmatpush1.xpose.msra.mxu0 0.0
        %4112 = vmatprep.subr.mxu0 0.0
        %4113 = vmatpush1.xpose.msra.mxu0 0.0
        %4114 = vmatprep.subr.mxu0 0.0
        %4115 = vmatpush1.xpose.msra.mxu0 0.0
        %4116 = vmatprep.subr.mxu0 0.0
        %4117 = vmatpush1.xpose.msra.mxu0 0.0
        %4118 = vmatprep.subr.mxu0 0.0
        %4119 = vmatpush1.xpose.msra.mxu0 0.0
        %4120 = vmatprep.subr.mxu0 0.0
        %4121 = vmatpush1.xpose.msra.mxu0 0.0
        %4122 = vmatprep.subr.mxu0 0.0
        %4123 = vmatpush1.xpose.msra.mxu0 0.0
        %4124 = vmatprep.subr.mxu0 0.0
        %4125 = vmatpush1.xpose.msra.mxu0 0.0
        %4126 = vmatprep.subr.mxu0 0.0
        %4127 = vmatpush1.xpose.msra.mxu0 0.0
        %4128 = vmatprep.subr.mxu0 0.0
        %4129 = vmatpush1.xpose.msra.mxu0 0.0
        %4130 = vmatprep.subr.mxu0 0.0
        %4131 = vmatpush1.xpose.msra.mxu0 0.0
        %4132 = vmatprep.subr.mxu0 0.0
        %4133 = vmatpush1.xpose.msra.mxu0 0.0
        %4134 = vmatprep.subr.mxu0 0.0
        %4135 = vmatpush1.xpose.msra.mxu0 0.0
        %4136 = vmatprep.subr.mxu0 0.0
        %4137 = vmatpush1.xpose.msra.mxu0 0.0
        %4138 = vmatprep.subr.mxu0 0.0
        %4139 = vmatpush1.xpose.msra.mxu0 0.0
        %4140 = vmatprep.subr.mxu0 0.0
        %4141 = vmatpush1.xpose.msra.mxu0 0.0
        %4142 = vmatprep.subr.mxu0 0.0
        %4143 = vmatpush1.xpose.msra.mxu0 0.0
        %4144 = vmatprep.mubr.f32.mxu0 0.0
        %4145 = vmatmul.mubr.f32.gmra.mrb[0].mxu0 %v4074
        %v4146 = vpop.f32.mrb[0].mxu0
        %v4147 = vadd.f32 0.0, %v4146
        %v4148 = vpop.f32.mrb[0].mxu0
        %4149 = vdwg.mxu0
        %4150 = vrot.lane.b32.xlu0 %v3238, 112
        %v4151 = vpop.permute.xlu0 %4150
        %4152 = vrot.lane.b32.xlu0 %v3345, 112
        %v4153 = vpop.permute.xlu0 %4152
        %4154 = vrot.lane.b32.xlu0 %v3350, 112
        %v4155 = vpop.permute.xlu0 %4154
        %v4156 = vsel %vm1631, %v4151, 0
        %v4158 = vsel %vm1631, %v4153, 0
        %v4160 = vsel %vm1631, %v4155, 0
        %4162 = vmatprep.subr.mxu0 0.0
        %4163 = vmatpush1.xpose.msra.mxu0 %v4158
        %4164 = vmatprep.subr.mxu0 0.0
        %4165 = vmatpush1.xpose.msra.mxu0 %v4160
        %4166 = vmatprep.subr.mxu0 0.0
        %4167 = vmatpush1.xpose.msra.mxu0 0.0
        %4168 = vmatprep.subr.mxu0 0.0
        %4169 = vmatpush1.xpose.msra.mxu0 0.0
        %4170 = vmatprep.subr.mxu0 0.0
        %4171 = vmatpush1.xpose.msra.mxu0 0.0
        %4172 = vmatprep.subr.mxu0 0.0
        %4173 = vmatpush1.xpose.msra.mxu0 0.0
        %4174 = vmatprep.subr.mxu0 0.0
        %4175 = vmatpush1.xpose.msra.mxu0 0.0
        %4176 = vmatprep.subr.mxu0 0.0
        %4177 = vmatpush1.xpose.msra.mxu0 0.0
        %4178 = vmatprep.subr.mxu0 0.0
        %4179 = vmatpush1.xpose.msra.mxu0 0.0
        %4180 = vmatprep.subr.mxu0 0.0
        %4181 = vmatpush1.xpose.msra.mxu0 0.0
        %4182 = vmatprep.subr.mxu0 0.0
        %4183 = vmatpush1.xpose.msra.mxu0 0.0
        %4184 = vmatprep.subr.mxu0 0.0
        %4185 = vmatpush1.xpose.msra.mxu0 0.0
        %4186 = vmatprep.subr.mxu0 0.0
        %4187 = vmatpush1.xpose.msra.mxu0 0.0
        %4188 = vmatprep.subr.mxu0 0.0
        %4189 = vmatpush1.xpose.msra.mxu0 0.0
        %4190 = vmatprep.subr.mxu0 0.0
        %4191 = vmatpush1.xpose.msra.mxu0 0.0
        %4192 = vmatprep.subr.mxu0 0.0
        %4193 = vmatpush1.xpose.msra.mxu0 0.0
        %4194 = vmatprep.subr.mxu0 0.0
        %4195 = vmatpush1.xpose.msra.mxu0 0.0
        %4196 = vmatprep.subr.mxu0 0.0
        %4197 = vmatpush1.xpose.msra.mxu0 0.0
        %4198 = vmatprep.subr.mxu0 0.0
        %4199 = vmatpush1.xpose.msra.mxu0 0.0
        %4200 = vmatprep.subr.mxu0 0.0
        %4201 = vmatpush1.xpose.msra.mxu0 0.0
        %4202 = vmatprep.subr.mxu0 0.0
        %4203 = vmatpush1.xpose.msra.mxu0 0.0
        %4204 = vmatprep.subr.mxu0 0.0
        %4205 = vmatpush1.xpose.msra.mxu0 0.0
        %4206 = vmatprep.subr.mxu0 0.0
        %4207 = vmatpush1.xpose.msra.mxu0 0.0
        %4208 = vmatprep.subr.mxu0 0.0
        %4209 = vmatpush1.xpose.msra.mxu0 0.0
        %4210 = vmatprep.subr.mxu0 0.0
        %4211 = vmatpush1.xpose.msra.mxu0 0.0
        %4212 = vmatprep.subr.mxu0 0.0
        %4213 = vmatpush1.xpose.msra.mxu0 0.0
        %4214 = vmatprep.subr.mxu0 0.0
        %4215 = vmatpush1.xpose.msra.mxu0 0.0
        %4216 = vmatprep.subr.mxu0 0.0
        %4217 = vmatpush1.xpose.msra.mxu0 0.0
        %4218 = vmatprep.subr.mxu0 0.0
        %4219 = vmatpush1.xpose.msra.mxu0 0.0
        %4220 = vmatprep.subr.mxu0 0.0
        %4221 = vmatpush1.xpose.msra.mxu0 0.0
        %4222 = vmatprep.subr.mxu0 0.0
        %4223 = vmatpush1.xpose.msra.mxu0 0.0
        %4224 = vmatprep.subr.mxu0 0.0
        %4225 = vmatpush1.xpose.msra.mxu0 0.0
        %4226 = vmatprep.mubr.f32.mxu0 0.0
        %4227 = vmatmul.mubr.f32.gmra.mrb[0].mxu0 %v4156
        %v4228 = vpop.f32.mrb[0].mxu0
        %v4229 = vadd.f32 0.0, %v4228
        %v4230 = vpop.f32.mrb[0].mxu0
        %4231 = vdwg.mxu0
        %v4232 = vmul.f32 %v4147, 0.35355338
        %v4233 = vmul.f32 %v4229, 0.35355338
        %v4234 = vadd.f32 %v4232, %v3518
        %v4235 = vadd.f32 %v4233, %v3522
        %v4236 = vsel %vm2989, %v4234, -inf
        %4237 = vmax.xlane.f32.xlu0 %v4236
        %v4238 = vpop.xlane.xlu0 %4237
        %v4239 = vsel %vm2989, %v4235, -inf
        %4240 = vmax.xlane.f32.xlu0 %v4239
        %v4241 = vpop.xlane.xlu0 %4240
        %v4242 = vsub.f32 %v4234, %v4238
        %v4243 = vsub.f32 %v4235, %v4241
        %v4244 = vmul.f32 %v4242, 1.442695
        %v4245 = vpow.pop %v4244
        %v4246 = vmul.f32 %v4243, 1.442695
        %v4247 = vpow.pop %v4246
        %v4248 = vsel %vm2989, %v4245, 0.0
        %4249 = vadd.xlane.f32.xlu0 %v4248
        %v4250 = vpop.xlane.xlu0 %4249
        %v4251 = vsel %vm2989, %v4247, 0.0
        %4252 = vadd.xlane.f32.xlu0 %v4251
        %v4253 = vpop.xlane.xlu0 %4252
        %v4254 = vrcp.pop %v4250
        %v4255 = vrcp.pop %v4253
        %v4256 = vmul.f32 %v4245, %v4254
        %v4257 = vmul.f32 %v4247, %v4255
        %s4258 = scalar_lea.vmem [#allocation3], 32
        %v4259 = vld [vmem:[%s4258] sm:$0xff]
        %v4260 = vld [vmem:[%s4258 + $0x8] sm:$0xff]
        %v4261 = vadd.f32 %v4259, %v4256
        %v4262 = vadd.f32 %v4260, %v4257
        %4263 = vst.msk [vmem:[%s4258] sm:$0xff] %vm2989, %v4261
        %4264 = vst.msk [vmem:[%s4258 + $0x8] sm:$0xff] %vm2989, %v4262
        %4265 = vrot.lane.b32.xlu0 %v3335, 80
        %v4266 = vpop.permute.xlu0 %4265
        %4267 = vrot.lane.b32.xlu0 %v3340, 80
        %v4268 = vpop.permute.xlu0 %4267
        %v4272 = vsel %vm2989, %v4256, 0
        %4274 = vmatprep.subr.mxu0 0.0
        %4275 = vmatpush1.msra.mxu0 %v4266
        %4276 = vmatprep.subr.mxu0 0.0
        %4277 = vmatpush1.msra.mxu0 %v4268
        %4278 = vmatprep.subr.mxu0 0.0
        %4279 = vmatpush1.msra.mxu0 0.0
        %4280 = vmatprep.subr.mxu0 0.0
        %4281 = vmatpush1.msra.mxu0 0.0
        %4282 = vmatprep.subr.mxu0 0.0
        %4283 = vmatpush1.msra.mxu0 0.0
        %4284 = vmatprep.subr.mxu0 0.0
        %4285 = vmatpush1.msra.mxu0 0.0
        %4286 = vmatprep.subr.mxu0 0.0
        %4287 = vmatpush1.msra.mxu0 0.0
        %4288 = vmatprep.subr.mxu0 0.0
        %4289 = vmatpush1.msra.mxu0 0.0
        %4290 = vmatprep.subr.mxu0 0.0
        %4291 = vmatpush1.msra.mxu0 0.0
        %4292 = vmatprep.subr.mxu0 0.0
        %4293 = vmatpush1.msra.mxu0 0.0
        %4294 = vmatprep.subr.mxu0 0.0
        %4295 = vmatpush1.msra.mxu0 0.0
        %4296 = vmatprep.subr.mxu0 0.0
        %4297 = vmatpush1.msra.mxu0 0.0
        %4298 = vmatprep.subr.mxu0 0.0
        %4299 = vmatpush1.msra.mxu0 0.0
        %4300 = vmatprep.subr.mxu0 0.0
        %4301 = vmatpush1.msra.mxu0 0.0
        %4302 = vmatprep.subr.mxu0 0.0
        %4303 = vmatpush1.msra.mxu0 0.0
        %4304 = vmatprep.subr.mxu0 0.0
        %4305 = vmatpush1.msra.mxu0 0.0
        %4306 = vmatprep.subr.mxu0 0.0
        %4307 = vmatpush1.msra.mxu0 0.0
        %4308 = vmatprep.subr.mxu0 0.0
        %4309 = vmatpush1.msra.mxu0 0.0
        %4310 = vmatprep.subr.mxu0 0.0
        %4311 = vmatpush1.msra.mxu0 0.0
        %4312 = vmatprep.subr.mxu0 0.0
        %4313 = vmatpush1.msra.mxu0 0.0
        %4314 = vmatprep.subr.mxu0 0.0
        %4315 = vmatpush1.msra.mxu0 0.0
        %4316 = vmatprep.subr.mxu0 0.0
        %4317 = vmatpush1.msra.mxu0 0.0
        %4318 = vmatprep.subr.mxu0 0.0
        %4319 = vmatpush1.msra.mxu0 0.0
        %4320 = vmatprep.subr.mxu0 0.0
        %4321 = vmatpush1.msra.mxu0 0.0
        %4322 = vmatprep.subr.mxu0 0.0
        %4323 = vmatpush1.msra.mxu0 0.0
        %4324 = vmatprep.subr.mxu0 0.0
        %4325 = vmatpush1.msra.mxu0 0.0
        %4326 = vmatprep.subr.mxu0 0.0
        %4327 = vmatpush1.msra.mxu0 0.0
        %4328 = vmatprep.subr.mxu0 0.0
        %4329 = vmatpush1.msra.mxu0 0.0
        %4330 = vmatprep.subr.mxu0 0.0
        %4331 = vmatpush1.msra.mxu0 0.0
        %4332 = vmatprep.subr.mxu0 0.0
        %4333 = vmatpush1.msra.mxu0 0.0
        %4334 = vmatprep.subr.mxu0 0.0
        %4335 = vmatpush1.msra.mxu0 0.0
        %4336 = vmatprep.subr.mxu0 0.0
        %4337 = vmatpush1.msra.mxu0 0.0
        %4338 = vmatprep.mubr.f32.mxu0 0.0
        %4339 = vmatmul.mubr.f32.gmra.mrb[0].mxu0 %v4272
        %v4340 = vpop.f32.mrb[0].mxu0
        %v4341 = vadd.f32 0.0, %v4340
        %v4342 = vpop.f32.mrb[0].mxu0
        %4343 = vdwg.mxu0
        %4344 = vrot.lane.b32.xlu0 %v3345, 80
        %v4345 = vpop.permute.xlu0 %4344
        %4346 = vrot.lane.b32.xlu0 %v3350, 80
        %v4347 = vpop.permute.xlu0 %4346
        %v4351 = vsel %vm2989, %v4257, 0
        %4353 = vmatprep.subr.mxu0 0.0
        %4354 = vmatpush1.msra.mxu0 %v4345
        %4355 = vmatprep.subr.mxu0 0.0
        %4356 = vmatpush1.msra.mxu0 %v4347
        %4357 = vmatprep.subr.mxu0 0.0
        %4358 = vmatpush1.msra.mxu0 0.0
        %4359 = vmatprep.subr.mxu0 0.0
        %4360 = vmatpush1.msra.mxu0 0.0
        %4361 = vmatprep.subr.mxu0 0.0
        %4362 = vmatpush1.msra.mxu0 0.0
        %4363 = vmatprep.subr.mxu0 0.0
        %4364 = vmatpush1.msra.mxu0 0.0
        %4365 = vmatprep.subr.mxu0 0.0
        %4366 = vmatpush1.msra.mxu0 0.0
        %4367 = vmatprep.subr.mxu0 0.0
        %4368 = vmatpush1.msra.mxu0 0.0
        %4369 = vmatprep.subr.mxu0 0.0
        %4370 = vmatpush1.msra.mxu0 0.0
        %4371 = vmatprep.subr.mxu0 0.0
        %4372 = vmatpush1.msra.mxu0 0.0
        %4373 = vmatprep.subr.mxu0 0.0
        %4374 = vmatpush1.msra.mxu0 0.0
        %4375 = vmatprep.subr.mxu0 0.0
        %4376 = vmatpush1.msra.mxu0 0.0
        %4377 = vmatprep.subr.mxu0 0.0
        %4378 = vmatpush1.msra.mxu0 0.0
        %4379 = vmatprep.subr.mxu0 0.0
        %4380 = vmatpush1.msra.mxu0 0.0
        %4381 = vmatprep.subr.mxu0 0.0
        %4382 = vmatpush1.msra.mxu0 0.0
        %4383 = vmatprep.subr.mxu0 0.0
        %4384 = vmatpush1.msra.mxu0 0.0
        %4385 = vmatprep.subr.mxu0 0.0
        %4386 = vmatpush1.msra.mxu0 0.0
        %4387 = vmatprep.subr.mxu0 0.0
        %4388 = vmatpush1.msra.mxu0 0.0
        %4389 = vmatprep.subr.mxu0 0.0
        %4390 = vmatpush1.msra.mxu0 0.0
        %4391 = vmatprep.subr.mxu0 0.0
        %4392 = vmatpush1.msra.mxu0 0.0
        %4393 = vmatprep.subr.mxu0 0.0
        %4394 = vmatpush1.msra.mxu0 0.0
        %4395 = vmatprep.subr.mxu0 0.0
        %4396 = vmatpush1.msra.mxu0 0.0
        %4397 = vmatprep.subr.mxu0 0.0
        %4398 = vmatpush1.msra.mxu0 0.0
        %4399 = vmatprep.subr.mxu0 0.0
        %4400 = vmatpush1.msra.mxu0 0.0
        %4401 = vmatprep.subr.mxu0 0.0
        %4402 = vmatpush1.msra.mxu0 0.0
        %4403 = vmatprep.subr.mxu0 0.0
        %4404 = vmatpush1.msra.mxu0 0.0
        %4405 = vmatprep.subr.mxu0 0.0
        %4406 = vmatpush1.msra.mxu0 0.0
        %4407 = vmatprep.subr.mxu0 0.0
        %4408 = vmatpush1.msra.mxu0 0.0
        %4409 = vmatprep.subr.mxu0 0.0
        %4410 = vmatpush1.msra.mxu0 0.0
        %4411 = vmatprep.subr.mxu0 0.0
        %4412 = vmatpush1.msra.mxu0 0.0
        %4413 = vmatprep.subr.mxu0 0.0
        %4414 = vmatpush1.msra.mxu0 0.0
        %4415 = vmatprep.subr.mxu0 0.0
        %4416 = vmatpush1.msra.mxu0 0.0
        %4417 = vmatprep.mubr.f32.mxu0 0.0
        %4418 = vmatmul.mubr.f32.gmra.mrb[0].mxu0 %v4351
        %v4419 = vpop.f32.mrb[0].mxu0
        %v4420 = vadd.f32 0.0, %v4419
        %v4421 = vpop.f32.mrb[0].mxu0
        %4422 = vdwg.mxu0
        %4423 = vrot.lane.b32.xlu0 %v3233, 104
        %v4424 = vpop.permute.xlu0 %4423
        %4425 = vrot.lane.b32.xlu0 %v3335, 104
        %v4426 = vpop.permute.xlu0 %4425
        %4427 = vrot.lane.b32.xlu0 %v3340, 104
        %v4428 = vpop.permute.xlu0 %4427
        %v4429 = vsel %vm1631, %v4424, 0
        %v4431 = vsel %vm1631, %v4426, 0
        %v4433 = vsel %vm1631, %v4428, 0
        %4435 = vmatprep.subr.mxu0 0.0
        %4436 = vmatpush1.xpose.msra.mxu0 %v4431
        %4437 = vmatprep.subr.mxu0 0.0
        %4438 = vmatpush1.xpose.msra.mxu0 %v4433
        %4439 = vmatprep.subr.mxu0 0.0
        %4440 = vmatpush1.xpose.msra.mxu0 0.0
        %4441 = vmatprep.subr.mxu0 0.0
        %4442 = vmatpush1.xpose.msra.mxu0 0.0
        %4443 = vmatprep.subr.mxu0 0.0
        %4444 = vmatpush1.xpose.msra.mxu0 0.0
        %4445 = vmatprep.subr.mxu0 0.0
        %4446 = vmatpush1.xpose.msra.mxu0 0.0
        %4447 = vmatprep.subr.mxu0 0.0
        %4448 = vmatpush1.xpose.msra.mxu0 0.0
        %4449 = vmatprep.subr.mxu0 0.0
        %4450 = vmatpush1.xpose.msra.mxu0 0.0
        %4451 = vmatprep.subr.mxu0 0.0
        %4452 = vmatpush1.xpose.msra.mxu0 0.0
        %4453 = vmatprep.subr.mxu0 0.0
        %4454 = vmatpush1.xpose.msra.mxu0 0.0
        %4455 = vmatprep.subr.mxu0 0.0
        %4456 = vmatpush1.xpose.msra.mxu0 0.0
        %4457 = vmatprep.subr.mxu0 0.0
        %4458 = vmatpush1.xpose.msra.mxu0 0.0
        %4459 = vmatprep.subr.mxu0 0.0
        %4460 = vmatpush1.xpose.msra.mxu0 0.0
        %4461 = vmatprep.subr.mxu0 0.0
        %4462 = vmatpush1.xpose.msra.mxu0 0.0
        %4463 = vmatprep.subr.mxu0 0.0
        %4464 = vmatpush1.xpose.msra.mxu0 0.0
        %4465 = vmatprep.subr.mxu0 0.0
        %4466 = vmatpush1.xpose.msra.mxu0 0.0
        %4467 = vmatprep.subr.mxu0 0.0
        %4468 = vmatpush1.xpose.msra.mxu0 0.0
        %4469 = vmatprep.subr.mxu0 0.0
        %4470 = vmatpush1.xpose.msra.mxu0 0.0
        %4471 = vmatprep.subr.mxu0 0.0
        %4472 = vmatpush1.xpose.msra.mxu0 0.0
        %4473 = vmatprep.subr.mxu0 0.0
        %4474 = vmatpush1.xpose.msra.mxu0 0.0
        %4475 = vmatprep.subr.mxu0 0.0
        %4476 = vmatpush1.xpose.msra.mxu0 0.0
        %4477 = vmatprep.subr.mxu0 0.0
        %4478 = vmatpush1.xpose.msra.mxu0 0.0
        %4479 = vmatprep.subr.mxu0 0.0
        %4480 = vmatpush1.xpose.msra.mxu0 0.0
        %4481 = vmatprep.subr.mxu0 0.0
        %4482 = vmatpush1.xpose.msra.mxu0 0.0
        %4483 = vmatprep.subr.mxu0 0.0
        %4484 = vmatpush1.xpose.msra.mxu0 0.0
        %4485 = vmatprep.subr.mxu0 0.0
        %4486 = vmatpush1.xpose.msra.mxu0 0.0
        %4487 = vmatprep.subr.mxu0 0.0
        %4488 = vmatpush1.xpose.msra.mxu0 0.0
        %4489 = vmatprep.subr.mxu0 0.0
        %4490 = vmatpush1.xpose.msra.mxu0 0.0
        %4491 = vmatprep.subr.mxu0 0.0
        %4492 = vmatpush1.xpose.msra.mxu0 0.0
        %4493 = vmatprep.subr.mxu0 0.0
        %4494 = vmatpush1.xpose.msra.mxu0 0.0
        %4495 = vmatprep.subr.mxu0 0.0
        %4496 = vmatpush1.xpose.msra.mxu0 0.0
        %4497 = vmatprep.subr.mxu0 0.0
        %4498 = vmatpush1.xpose.msra.mxu0 0.0
        %4499 = vmatprep.mubr.f32.mxu0 0.0
        %4500 = vmatmul.mubr.f32.gmra.mrb[0].mxu0 %v4429
        %v4501 = vpop.f32.mrb[0].mxu0
        %v4502 = vadd.f32 0.0, %v4501
        %v4503 = vpop.f32.mrb[0].mxu0
        %4504 = vdwg.mxu0
        %4505 = vrot.lane.b32.xlu0 %v3238, 104
        %v4506 = vpop.permute.xlu0 %4505
        %4507 = vrot.lane.b32.xlu0 %v3345, 104
        %v4508 = vpop.permute.xlu0 %4507
        %4509 = vrot.lane.b32.xlu0 %v3350, 104
        %v4510 = vpop.permute.xlu0 %4509
        %v4511 = vsel %vm1631, %v4506, 0
        %v4513 = vsel %vm1631, %v4508, 0
        %v4515 = vsel %vm1631, %v4510, 0
        %4517 = vmatprep.subr.mxu0 0.0
        %4518 = vmatpush1.xpose.msra.mxu0 %v4513
        %4519 = vmatprep.subr.mxu0 0.0
        %4520 = vmatpush1.xpose.msra.mxu0 %v4515
        %4521 = vmatprep.subr.mxu0 0.0
        %4522 = vmatpush1.xpose.msra.mxu0 0.0
        %4523 = vmatprep.subr.mxu0 0.0
        %4524 = vmatpush1.xpose.msra.mxu0 0.0
        %4525 = vmatprep.subr.mxu0 0.0
        %4526 = vmatpush1.xpose.msra.mxu0 0.0
        %4527 = vmatprep.subr.mxu0 0.0
        %4528 = vmatpush1.xpose.msra.mxu0 0.0
        %4529 = vmatprep.subr.mxu0 0.0
        %4530 = vmatpush1.xpose.msra.mxu0 0.0
        %4531 = vmatprep.subr.mxu0 0.0
        %4532 = vmatpush1.xpose.msra.mxu0 0.0
        %4533 = vmatprep.subr.mxu0 0.0
        %4534 = vmatpush1.xpose.msra.mxu0 0.0
        %4535 = vmatprep.subr.mxu0 0.0
        %4536 = vmatpush1.xpose.msra.mxu0 0.0
        %4537 = vmatprep.subr.mxu0 0.0
        %4538 = vmatpush1.xpose.msra.mxu0 0.0
        %4539 = vmatprep.subr.mxu0 0.0
        %4540 = vmatpush1.xpose.msra.mxu0 0.0
        %4541 = vmatprep.subr.mxu0 0.0
        %4542 = vmatpush1.xpose.msra.mxu0 0.0
        %4543 = vmatprep.subr.mxu0 0.0
        %4544 = vmatpush1.xpose.msra.mxu0 0.0
        %4545 = vmatprep.subr.mxu0 0.0
        %4546 = vmatpush1.xpose.msra.mxu0 0.0
        %4547 = vmatprep.subr.mxu0 0.0
        %4548 = vmatpush1.xpose.msra.mxu0 0.0
        %4549 = vmatprep.subr.mxu0 0.0
        %4550 = vmatpush1.xpose.msra.mxu0 0.0
        %4551 = vmatprep.subr.mxu0 0.0
        %4552 = vmatpush1.xpose.msra.mxu0 0.0
        %4553 = vmatprep.subr.mxu0 0.0
        %4554 = vmatpush1.xpose.msra.mxu0 0.0
        %4555 = vmatprep.subr.mxu0 0.0
        %4556 = vmatpush1.xpose.msra.mxu0 0.0
        %4557 = vmatprep.subr.mxu0 0.0
        %4558 = vmatpush1.xpose.msra.mxu0 0.0
        %4559 = vmatprep.subr.mxu0 0.0
        %4560 = vmatpush1.xpose.msra.mxu0 0.0
        %4561 = vmatprep.subr.mxu0 0.0
        %4562 = vmatpush1.xpose.msra.mxu0 0.0
        %4563 = vmatprep.subr.mxu0 0.0
        %4564 = vmatpush1.xpose.msra.mxu0 0.0
        %4565 = vmatprep.subr.mxu0 0.0
        %4566 = vmatpush1.xpose.msra.mxu0 0.0
        %4567 = vmatprep.subr.mxu0 0.0
        %4568 = vmatpush1.xpose.msra.mxu0 0.0
        %4569 = vmatprep.subr.mxu0 0.0
        %4570 = vmatpush1.xpose.msra.mxu0 0.0
        %4571 = vmatprep.subr.mxu0 0.0
        %4572 = vmatpush1.xpose.msra.mxu0 0.0
        %4573 = vmatprep.subr.mxu0 0.0
        %4574 = vmatpush1.xpose.msra.mxu0 0.0
        %4575 = vmatprep.subr.mxu0 0.0
        %4576 = vmatpush1.xpose.msra.mxu0 0.0
        %4577 = vmatprep.subr.mxu0 0.0
        %4578 = vmatpush1.xpose.msra.mxu0 0.0
        %4579 = vmatprep.subr.mxu0 0.0
        %4580 = vmatpush1.xpose.msra.mxu0 0.0
        %4581 = vmatprep.mubr.f32.mxu0 0.0
        %4582 = vmatmul.mubr.f32.gmra.mrb[0].mxu0 %v4511
        %v4583 = vpop.f32.mrb[0].mxu0
        %v4584 = vadd.f32 0.0, %v4583
        %v4585 = vpop.f32.mrb[0].mxu0
        %4586 = vdwg.mxu0
        %v4587 = vmul.f32 %v4502, 0.35355338
        %v4588 = vmul.f32 %v4584, 0.35355338
        %v4589 = vadd.f32 %v4587, %v3518
        %v4590 = vadd.f32 %v4588, %v3522
        %v4591 = vsel %vm2989, %v4589, -inf
        %4592 = vmax.xlane.f32.xlu0 %v4591
        %v4593 = vpop.xlane.xlu0 %4592
        %v4594 = vsel %vm2989, %v4590, -inf
        %4595 = vmax.xlane.f32.xlu0 %v4594
        %v4596 = vpop.xlane.xlu0 %4595
        %v4597 = vsub.f32 %v4589, %v4593
        %v4598 = vsub.f32 %v4590, %v4596
        %v4599 = vmul.f32 %v4597, 1.442695
        %v4600 = vpow.pop %v4599
        %v4601 = vmul.f32 %v4598, 1.442695
        %v4602 = vpow.pop %v4601
        %v4603 = vsel %vm2989, %v4600, 0.0
        %4604 = vadd.xlane.f32.xlu0 %v4603
        %v4605 = vpop.xlane.xlu0 %4604
        %v4606 = vsel %vm2989, %v4602, 0.0
        %4607 = vadd.xlane.f32.xlu0 %v4606
        %v4608 = vpop.xlane.xlu0 %4607
        %v4609 = vrcp.pop %v4605
        %v4610 = vrcp.pop %v4608
        %v4611 = vmul.f32 %v4600, %v4609
        %v4612 = vmul.f32 %v4602, %v4610
        %s4613 = scalar_lea.vmem [#allocation3], 48
        %v4614 = vld [vmem:[%s4613] sm:$0xff]
        %v4615 = vld [vmem:[%s4613 + $0x8] sm:$0xff]
        %v4616 = vadd.f32 %v4614, %v4611
        %v4617 = vadd.f32 %v4615, %v4612
        %4618 = vst.msk [vmem:[%s4613] sm:$0xff] %vm2989, %v4616
        %4619 = vst.msk [vmem:[%s4613 + $0x8] sm:$0xff] %vm2989, %v4617
        %4620 = vrot.lane.b32.xlu0 %v3335, 72
        %v4621 = vpop.permute.xlu0 %4620
        %4622 = vrot.lane.b32.xlu0 %v3340, 72
        %v4623 = vpop.permute.xlu0 %4622
        %v4627 = vsel %vm2989, %v4611, 0
        %4629 = vmatprep.subr.mxu0 0.0
        %4630 = vmatpush1.msra.mxu0 %v4621
        %4631 = vmatprep.subr.mxu0 0.0
        %4632 = vmatpush1.msra.mxu0 %v4623
        %4633 = vmatprep.subr.mxu0 0.0
        %4634 = vmatpush1.msra.mxu0 0.0
        %4635 = vmatprep.subr.mxu0 0.0
        %4636 = vmatpush1.msra.mxu0 0.0
        %4637 = vmatprep.subr.mxu0 0.0
        %4638 = vmatpush1.msra.mxu0 0.0
        %4639 = vmatprep.subr.mxu0 0.0
        %4640 = vmatpush1.msra.mxu0 0.0
        %4641 = vmatprep.subr.mxu0 0.0
        %4642 = vmatpush1.msra.mxu0 0.0
        %4643 = vmatprep.subr.mxu0 0.0
        %4644 = vmatpush1.msra.mxu0 0.0
        %4645 = vmatprep.subr.mxu0 0.0
        %4646 = vmatpush1.msra.mxu0 0.0
        %4647 = vmatprep.subr.mxu0 0.0
        %4648 = vmatpush1.msra.mxu0 0.0
        %4649 = vmatprep.subr.mxu0 0.0
        %4650 = vmatpush1.msra.mxu0 0.0
        %4651 = vmatprep.subr.mxu0 0.0
        %4652 = vmatpush1.msra.mxu0 0.0
        %4653 = vmatprep.subr.mxu0 0.0
        %4654 = vmatpush1.msra.mxu0 0.0
        %4655 = vmatprep.subr.mxu0 0.0
        %4656 = vmatpush1.msra.mxu0 0.0
        %4657 = vmatprep.subr.mxu0 0.0
        %4658 = vmatpush1.msra.mxu0 0.0
        %4659 = vmatprep.subr.mxu0 0.0
        %4660 = vmatpush1.msra.mxu0 0.0
        %4661 = vmatprep.subr.mxu0 0.0
        %4662 = vmatpush1.msra.mxu0 0.0
        %4663 = vmatprep.subr.mxu0 0.0
        %4664 = vmatpush1.msra.mxu0 0.0
        %4665 = vmatprep.subr.mxu0 0.0
        %4666 = vmatpush1.msra.mxu0 0.0
        %4667 = vmatprep.subr.mxu0 0.0
        %4668 = vmatpush1.msra.mxu0 0.0
        %4669 = vmatprep.subr.mxu0 0.0
        %4670 = vmatpush1.msra.mxu0 0.0
        %4671 = vmatprep.subr.mxu0 0.0
        %4672 = vmatpush1.msra.mxu0 0.0
        %4673 = vmatprep.subr.mxu0 0.0
        %4674 = vmatpush1.msra.mxu0 0.0
        %4675 = vmatprep.subr.mxu0 0.0
        %4676 = vmatpush1.msra.mxu0 0.0
        %4677 = vmatprep.subr.mxu0 0.0
        %4678 = vmatpush1.msra.mxu0 0.0
        %4679 = vmatprep.subr.mxu0 0.0
        %4680 = vmatpush1.msra.mxu0 0.0
        %4681 = vmatprep.subr.mxu0 0.0
        %4682 = vmatpush1.msra.mxu0 0.0
        %4683 = vmatprep.subr.mxu0 0.0
        %4684 = vmatpush1.msra.mxu0 0.0
        %4685 = vmatprep.subr.mxu0 0.0
        %4686 = vmatpush1.msra.mxu0 0.0
        %4687 = vmatprep.subr.mxu0 0.0
        %4688 = vmatpush1.msra.mxu0 0.0
        %4689 = vmatprep.subr.mxu0 0.0
        %4690 = vmatpush1.msra.mxu0 0.0
        %4691 = vmatprep.subr.mxu0 0.0
        %4692 = vmatpush1.msra.mxu0 0.0
        %4693 = vmatprep.mubr.f32.mxu0 0.0
        %4694 = vmatmul.mubr.f32.gmra.mrb[0].mxu0 %v4627
        %v4695 = vpop.f32.mrb[0].mxu0
        %v4696 = vadd.f32 0.0, %v4695
        %v4697 = vpop.f32.mrb[0].mxu0
        %4698 = vdwg.mxu0
        %4699 = vrot.lane.b32.xlu0 %v3345, 72
        %v4700 = vpop.permute.xlu0 %4699
        %4701 = vrot.lane.b32.xlu0 %v3350, 72
        %v4702 = vpop.permute.xlu0 %4701
        %v4706 = vsel %vm2989, %v4612, 0
        %4708 = vmatprep.subr.mxu0 0.0
        %4709 = vmatpush1.msra.mxu0 %v4700
        %4710 = vmatprep.subr.mxu0 0.0
        %4711 = vmatpush1.msra.mxu0 %v4702
        %4712 = vmatprep.subr.mxu0 0.0
        %4713 = vmatpush1.msra.mxu0 0.0
        %4714 = vmatprep.subr.mxu0 0.0
        %4715 = vmatpush1.msra.mxu0 0.0
        %4716 = vmatprep.subr.mxu0 0.0
        %4717 = vmatpush1.msra.mxu0 0.0
        %4718 = vmatprep.subr.mxu0 0.0
        %4719 = vmatpush1.msra.mxu0 0.0
        %4720 = vmatprep.subr.mxu0 0.0
        %4721 = vmatpush1.msra.mxu0 0.0
        %4722 = vmatprep.subr.mxu0 0.0
        %4723 = vmatpush1.msra.mxu0 0.0
        %4724 = vmatprep.subr.mxu0 0.0
        %4725 = vmatpush1.msra.mxu0 0.0
        %4726 = vmatprep.subr.mxu0 0.0
        %4727 = vmatpush1.msra.mxu0 0.0
        %4728 = vmatprep.subr.mxu0 0.0
        %4729 = vmatpush1.msra.mxu0 0.0
        %4730 = vmatprep.subr.mxu0 0.0
        %4731 = vmatpush1.msra.mxu0 0.0
        %4732 = vmatprep.subr.mxu0 0.0
        %4733 = vmatpush1.msra.mxu0 0.0
        %4734 = vmatprep.subr.mxu0 0.0
        %4735 = vmatpush1.msra.mxu0 0.0
        %4736 = vmatprep.subr.mxu0 0.0
        %4737 = vmatpush1.msra.mxu0 0.0
        %4738 = vmatprep.subr.mxu0 0.0
        %4739 = vmatpush1.msra.mxu0 0.0
        %4740 = vmatprep.subr.mxu0 0.0
        %4741 = vmatpush1.msra.mxu0 0.0
        %4742 = vmatprep.subr.mxu0 0.0
        %4743 = vmatpush1.msra.mxu0 0.0
        %4744 = vmatprep.subr.mxu0 0.0
        %4745 = vmatpush1.msra.mxu0 0.0
        %4746 = vmatprep.subr.mxu0 0.0
        %4747 = vmatpush1.msra.mxu0 0.0
        %4748 = vmatprep.subr.mxu0 0.0
        %4749 = vmatpush1.msra.mxu0 0.0
        %4750 = vmatprep.subr.mxu0 0.0
        %4751 = vmatpush1.msra.mxu0 0.0
        %4752 = vmatprep.subr.mxu0 0.0
        %4753 = vmatpush1.msra.mxu0 0.0
        %4754 = vmatprep.subr.mxu0 0.0
        %4755 = vmatpush1.msra.mxu0 0.0
        %4756 = vmatprep.subr.mxu0 0.0
        %4757 = vmatpush1.msra.mxu0 0.0
        %4758 = vmatprep.subr.mxu0 0.0
        %4759 = vmatpush1.msra.mxu0 0.0
        %4760 = vmatprep.subr.mxu0 0.0
        %4761 = vmatpush1.msra.mxu0 0.0
        %4762 = vmatprep.subr.mxu0 0.0
        %4763 = vmatpush1.msra.mxu0 0.0
        %4764 = vmatprep.subr.mxu0 0.0
        %4765 = vmatpush1.msra.mxu0 0.0
        %4766 = vmatprep.subr.mxu0 0.0
        %4767 = vmatpush1.msra.mxu0 0.0
        %4768 = vmatprep.subr.mxu0 0.0
        %4769 = vmatpush1.msra.mxu0 0.0
        %4770 = vmatprep.subr.mxu0 0.0
        %4771 = vmatpush1.msra.mxu0 0.0
        %4772 = vmatprep.mubr.f32.mxu0 0.0
        %4773 = vmatmul.mubr.f32.gmra.mrb[0].mxu0 %v4706
        %v4774 = vpop.f32.mrb[0].mxu0
        %v4775 = vadd.f32 0.0, %v4774
        %v4776 = vpop.f32.mrb[0].mxu0
        %4777 = vdwg.mxu0
        %4780 = vrot.lane.b32.xlu0 %v3986, 8
        %v4781 = vpop.permute.xlu0 %4780
        %4782 = vrot.lane.b32.xlu0 %v4065, 8
        %v4783 = vpop.permute.xlu0 %4782
        %4788 = vrot.lane.b32.xlu0 %v4341, 16
        %v4789 = vpop.permute.xlu0 %4788
        %4790 = vrot.lane.b32.xlu0 %v4420, 16
        %v4791 = vpop.permute.xlu0 %4790
        %4796 = vrot.lane.b32.xlu0 %v4696, 24
        %v4797 = vpop.permute.xlu0 %4796
        %4798 = vrot.lane.b32.xlu0 %v4775, 24
        %v4799 = vpop.permute.xlu0 %4798
        %v4802 = vsel %vm1631, %v3631, %v4781
        %v4803 = vsel %vm1631, %v3710, %v4783
        %v4804 = vsel %vm2989, %v4802, %v4789
        %v4805 = vsel %vm2989, %v4803, %v4791
        %v4806 = vsel %vm2992, %v4804, %v4797
        %v4807 = vsel %vm2992, %v4805, %v4799
        %v4808 = vld [vmem:[%s1443] sm:$0xff]
        %v4809 = vld [vmem:[%s1443 + $0x8] sm:$0xff]
        %v4810 = vld [vmem:[%s1443 + $0x10] sm:$0xff]
        %v4811 = vld [vmem:[%s1443 + $0x18] sm:$0xff]
        %v4813 = vsel %vm1477, %v4806, 0
        %v4816 = vsel %vm1477, %v4807, 0
        %4818 = vmatprep.subr.mxu0 0.0
        %4819 = vmatpush1.msra.mxu0 %v4808
        %4820 = vmatprep.subr.mxu0 0.0
        %4821 = vmatpush1.msra.mxu0 %v4809
        %4822 = vmatprep.subr.mxu0 0.0
        %4823 = vmatpush1.msra.mxu0 %v4810
        %4824 = vmatprep.subr.mxu0 0.0
        %4825 = vmatpush1.msra.mxu0 %v4811
        %4826 = vmatprep.subr.mxu0 0.0
        %4827 = vmatpush1.msra.mxu0 0.0
        %4828 = vmatprep.subr.mxu0 0.0
        %4829 = vmatpush1.msra.mxu0 0.0
        %4830 = vmatprep.subr.mxu0 0.0
        %4831 = vmatpush1.msra.mxu0 0.0
        %4832 = vmatprep.subr.mxu0 0.0
        %4833 = vmatpush1.msra.mxu0 0.0
        %4834 = vmatprep.subr.mxu0 0.0
        %4835 = vmatpush1.msra.mxu0 0.0
        %4836 = vmatprep.subr.mxu0 0.0
        %4837 = vmatpush1.msra.mxu0 0.0
        %4838 = vmatprep.subr.mxu0 0.0
        %4839 = vmatpush1.msra.mxu0 0.0
        %4840 = vmatprep.subr.mxu0 0.0
        %4841 = vmatpush1.msra.mxu0 0.0
        %4842 = vmatprep.subr.mxu0 0.0
        %4843 = vmatpush1.msra.mxu0 0.0
        %4844 = vmatprep.subr.mxu0 0.0
        %4845 = vmatpush1.msra.mxu0 0.0
        %4846 = vmatprep.subr.mxu0 0.0
        %4847 = vmatpush1.msra.mxu0 0.0
        %4848 = vmatprep.subr.mxu0 0.0
        %4849 = vmatpush1.msra.mxu0 0.0
        %4850 = vmatprep.subr.mxu0 0.0
        %4851 = vmatpush1.msra.mxu0 0.0
        %4852 = vmatprep.subr.mxu0 0.0
        %4853 = vmatpush1.msra.mxu0 0.0
        %4854 = vmatprep.subr.mxu0 0.0
        %4855 = vmatpush1.msra.mxu0 0.0
        %4856 = vmatprep.subr.mxu0 0.0
        %4857 = vmatpush1.msra.mxu0 0.0
        %4858 = vmatprep.subr.mxu0 0.0
        %4859 = vmatpush1.msra.mxu0 0.0
        %4860 = vmatprep.subr.mxu0 0.0
        %4861 = vmatpush1.msra.mxu0 0.0
        %4862 = vmatprep.subr.mxu0 0.0
        %4863 = vmatpush1.msra.mxu0 0.0
        %4864 = vmatprep.subr.mxu0 0.0
        %4865 = vmatpush1.msra.mxu0 0.0
        %4866 = vmatprep.subr.mxu0 0.0
        %4867 = vmatpush1.msra.mxu0 0.0
        %4868 = vmatprep.subr.mxu0 0.0
        %4869 = vmatpush1.msra.mxu0 0.0
        %4870 = vmatprep.subr.mxu0 0.0
        %4871 = vmatpush1.msra.mxu0 0.0
        %4872 = vmatprep.subr.mxu0 0.0
        %4873 = vmatpush1.msra.mxu0 0.0
        %4874 = vmatprep.subr.mxu0 0.0
        %4875 = vmatpush1.msra.mxu0 0.0
        %4876 = vmatprep.subr.mxu0 0.0
        %4877 = vmatpush1.msra.mxu0 0.0
        %4878 = vmatprep.subr.mxu0 0.0
        %4879 = vmatpush1.msra.mxu0 0.0
        %4880 = vmatprep.subr.mxu0 0.0
        %4881 = vmatpush1.msra.mxu0 0.0
        %4882 = vmatprep.mubr.f32.mxu0 0.0
        %4883 = vmatmul.mubr.f32.gmra.mrb[0].mxu0 %v4813
        %v4884 = vpop.f32.mrb[0].mxu0
        %v4885 = vadd.f32 0.0, %v4884
        %v4886 = vpop.f32.mrb[0].mxu0
        %4887 = vmatprep.mubr.f32.mxu0 0.0
        %4888 = vmatmul.mubr.f32.gmra.mrb[0].mxu0 %v4816
        %v4889 = vpop.f32.mrb[0].mxu0
        %v4890 = vadd.f32 0.0, %v4889
        %v4891 = vpop.f32.mrb[0].mxu0
        %4892 = vdwg.mxu0
        %v4893 = vadd.f32 %v3089, %v4885
        %v4894 = vadd.f32 %v3090, %v4890
        %v4895 = vld [vmem:[%s1446] sm:$0x1]
        %v4897 = vlaneseq
        %v4898 = vshrl.u32 %v4897, 7
        %v4899 = vsub.s32 0, %v4898
        %v4900 = vrot.slane %v4895, %v4899
        %v4902 = vadd.f32 %v4893, %v4900
        %v4903 = vadd.f32 %v4894, %v4900
        %v4904 = vld [vmem:[%s1187] sm:$0x1]
        %v4905 = vld [vmem:[%s1195] sm:$0x1]
        %v4906 = vsel %vm1477, %v4902, 0.0
        %4907 = vadd.xlane.f32.xlu0 %v4906
        %v4908 = vpop.xlane.xlu0 %4907
        %v4909 = vsel %vm1477, %v4903, 0.0
        %4910 = vadd.xlane.f32.xlu0 %v4909
        %v4911 = vpop.xlane.xlu0 %4910
        %v4912 = vmul.f32 %v4908, %v1484
        %v4913 = vmul.f32 %v4911, %v1484
        %v4914 = vsub.f32 %v4902, %v4912
        %v4915 = vsub.f32 %v4903, %v4913
        %v4916 = vmul.f32 %v4914, %v4914
        %v4917 = vmul.f32 %v4915, %v4915
        %v4918 = vsel %vm1477, %v4916, 0.0
        %4919 = vadd.xlane.f32.xlu0 %v4918
        %v4920 = vpop.xlane.xlu0 %4919
        %v4921 = vsel %vm1477, %v4917, 0.0
        %4922 = vadd.xlane.f32.xlu0 %v4921
        %v4923 = vpop.xlane.xlu0 %4922
        %v4924 = vmul.f32 %v4920, %v1497
        %v4925 = vmul.f32 %v4923, %v1497
        %v4926 = vrsqrt.pop %v4924
        %v4927 = vmul.f32 %v4924, %v4926
        %vm4928 = vcmp.eq.f32.partialorder %v4924, inf
        %v4929 = vsel %vm4928, %v4924, %v4927
        %vm4930 = vcmp.eq.f32.partialorder %v4924, 0.0
        %v4931 = vand.u32 %v4924, 2147483648
        %v4932 = vsel %vm4930, %v4931, %v4929
        %v4933 = vrsqrt.pop %v4925
        %v4934 = vmul.f32 %v4925, %v4933
        %vm4935 = vcmp.eq.f32.partialorder %v4925, inf
        %v4936 = vsel %vm4935, %v4925, %v4934
        %vm4937 = vcmp.eq.f32.partialorder %v4925, 0.0
        %v4938 = vand.u32 %v4925, 2147483648
        %v4939 = vsel %vm4937, %v4938, %v4936
        %v4940 = vadd.f32 %v4932, 1e-06
        %v4941 = vadd.f32 %v4939, 1e-06
        %v4942 = vrcp.pop %v4940
        %v4943 = vrcp.pop %v4941
        %v4945 = vlaneseq
        %v4946 = vshrl.u32 %v4945, 7
        %v4947 = vsub.s32 0, %v4946
        %v4948 = vrot.slane %v4904, %v4947
        %v4950 = vmul.f32 %v4948, %v4914
        %v4951 = vmul.f32 %v4948, %v4915
        %v4952 = vmul.f32 %v4950, %v4942
        %v4953 = vmul.f32 %v4951, %v4943
        %v4955 = vlaneseq
        %v4956 = vshrl.u32 %v4955, 7
        %v4957 = vsub.s32 0, %v4956
        %v4958 = vrot.slane %v4905, %v4957
        %v4960 = vadd.f32 %v4952, %v4958
        %v4961 = vadd.f32 %v4953, %v4958
        %v4962 = vpack.c.bf16 %v4961, %v4960
        %v4963 = vld [vmem:[%s1272] sm:$0xff]
        %v4964 = vld [vmem:[%s1272 + $0x8] sm:$0xff]
        %v4965 = vld [vmem:[%s1272 + $0x10] sm:$0xff]
        %v4966 = vld [vmem:[%s1272 + $0x18] sm:$0xff]
        %v4967 = vld [vmem:[%s1272 + $0x20] sm:$0xff]
        %v4968 = vld [vmem:[%s1272 + $0x28] sm:$0xff]
        %v4969 = vld [vmem:[%s1272 + $0x30] sm:$0xff]
        %v4970 = vld [vmem:[%s1272 + $0x38] sm:$0xff]
        %v4971 = vld [vmem:[%s1272 + $0x40] sm:$0xff]
        %v4972 = vld [vmem:[%s1272 + $0x48] sm:$0xff]
        %v4973 = vld [vmem:[%s1272 + $0x50] sm:$0xff]
        %v4974 = vld [vmem:[%s1272 + $0x58] sm:$0xff]
        %v4975 = vld [vmem:[%s1272 + $0x60] sm:$0xff]
        %v4976 = vld [vmem:[%s1272 + $0x68] sm:$0xff]
        %v4977 = vld [vmem:[%s1272 + $0x70] sm:$0xff]
        %v4978 = vld [vmem:[%s1272 + $0x78] sm:$0xff]
        %v4979 = vld [vmem:[%s1272 + $0x80] sm:$0xff]
        %v4980 = vld [vmem:[%s1272 + $0x88] sm:$0xff]
        %v4981 = vld [vmem:[%s1272 + $0x90] sm:$0xff]
        %v4982 = vld [vmem:[%s1272 + $0x98] sm:$0xff]
        %v4983 = vld [vmem:[%s1272 + $0xa0] sm:$0xff]
        %v4984 = vld [vmem:[%s1272 + $0xa8] sm:$0xff]
        %v4985 = vld [vmem:[%s1272 + $0xb0] sm:$0xff]
        %v4986 = vld [vmem:[%s1272 + $0xb8] sm:$0xff]
        %v4987 = vld [vmem:[%s1272 + $0xc0] sm:$0xff]
        %v4988 = vld [vmem:[%s1272 + $0xc8] sm:$0xff]
        %v4989 = vld [vmem:[%s1272 + $0xd0] sm:$0xff]
        %v4990 = vld [vmem:[%s1272 + $0xd8] sm:$0xff]
        %v4991 = vld [vmem:[%s1272 + $0xe0] sm:$0xff]
        %v4992 = vld [vmem:[%s1272 + $0xe8] sm:$0xff]
        %v4993 = vld [vmem:[%s1272 + $0xf0] sm:$0xff]
        %v4994 = vld [vmem:[%s1272 + $0xf8] sm:$0xff]
        %v4995 = vld [vmem:[%s1281] sm:$0xff]
        %v4996 = vld [vmem:[%s1281 + $0x8] sm:$0xff]
        %v4999 = vlaneseq
        %v5000 = vshrl.u32 %v4999, 7
        %v5001 = vsub.s32 0, %v5000
        %v5002 = vrot.slane %v4995, %v5001
        %v5003 = vlaneseq
        %v5004 = vshrl.u32 %v5003, 7
        %v5005 = vsub.s32 1, %v5004
        %v5006 = vrot.slane %v4995, %v5005
        %v5007 = vlaneseq
        %v5008 = vshrl.u32 %v5007, 7
        %v5009 = vsub.s32 2, %v5008
        %v5010 = vrot.slane %v4995, %v5009
        %v5011 = vlaneseq
        %v5012 = vshrl.u32 %v5011, 7
        %v5013 = vsub.s32 3, %v5012
        %v5014 = vrot.slane %v4995, %v5013
        %v5015 = vlaneseq
        %v5016 = vshrl.u32 %v5015, 7
        %v5017 = vsub.s32 4, %v5016
        %v5018 = vrot.slane %v4995, %v5017
        %v5019 = vlaneseq
        %v5020 = vshrl.u32 %v5019, 7
        %v5021 = vsub.s32 5, %v5020
        %v5022 = vrot.slane %v4995, %v5021
        %v5023 = vlaneseq
        %v5024 = vshrl.u32 %v5023, 7
        %v5025 = vsub.s32 6, %v5024
        %v5026 = vrot.slane %v4995, %v5025
        %v5027 = vlaneseq
        %v5028 = vshrl.u32 %v5027, 7
        %v5029 = vsub.s32 7, %v5028
        %v5030 = vrot.slane %v4995, %v5029
        %v5031 = vlaneseq
        %v5032 = vshrl.u32 %v5031, 7
        %v5033 = vsub.s32 0, %v5032
        %v5034 = vrot.slane %v4996, %v5033
        %v5035 = vlaneseq
        %v5036 = vshrl.u32 %v5035, 7
        %v5037 = vsub.s32 1, %v5036
        %v5038 = vrot.slane %v4996, %v5037
        %v5039 = vlaneseq
        %v5040 = vshrl.u32 %v5039, 7
        %v5041 = vsub.s32 2, %v5040
        %v5042 = vrot.slane %v4996, %v5041
        %v5043 = vlaneseq
        %v5044 = vshrl.u32 %v5043, 7
        %v5045 = vsub.s32 3, %v5044
        %v5046 = vrot.slane %v4996, %v5045
        %v5047 = vlaneseq
        %v5048 = vshrl.u32 %v5047, 7
        %v5049 = vsub.s32 4, %v5048
        %v5050 = vrot.slane %v4996, %v5049
        %v5051 = vlaneseq
        %v5052 = vshrl.u32 %v5051, 7
        %v5053 = vsub.s32 5, %v5052
        %v5054 = vrot.slane %v4996, %v5053
        %v5055 = vlaneseq
        %v5056 = vshrl.u32 %v5055, 7
        %v5057 = vsub.s32 6, %v5056
        %v5058 = vrot.slane %v4996, %v5057
        %v5059 = vlaneseq
        %v5060 = vshrl.u32 %v5059, 7
        %v5061 = vsub.s32 7, %v5060
        %v5062 = vrot.slane %v4996, %v5061
        %v5111 = vunpack.c.l.b16 %v4963
        %v5112 = vunpack.c.h.b16 %v4963
        %v5113 = vunpack.c.l.b16 %v4964
        %v5114 = vunpack.c.h.b16 %v4964
        %v5115 = vunpack.c.l.b16 %v4965
        %v5116 = vunpack.c.h.b16 %v4965
        %v5117 = vunpack.c.l.b16 %v4966
        %v5118 = vunpack.c.h.b16 %v4966
        %v5119 = vunpack.c.l.b16 %v4967
        %v5120 = vunpack.c.h.b16 %v4967
        %v5121 = vunpack.c.l.b16 %v4968
        %v5122 = vunpack.c.h.b16 %v4968
        %v5123 = vunpack.c.l.b16 %v4969
        %v5124 = vunpack.c.h.b16 %v4969
        %v5125 = vunpack.c.l.b16 %v4970
        %v5126 = vunpack.c.h.b16 %v4970
        %v5127 = vunpack.c.l.b16 %v4971
        %v5128 = vunpack.c.h.b16 %v4971
        %v5129 = vunpack.c.l.b16 %v4972
        %v5130 = vunpack.c.h.b16 %v4972
        %v5131 = vunpack.c.l.b16 %v4973
        %v5132 = vunpack.c.h.b16 %v4973
        %v5133 = vunpack.c.l.b16 %v4974
        %v5134 = vunpack.c.h.b16 %v4974
        %v5135 = vunpack.c.l.b16 %v4975
        %v5136 = vunpack.c.h.b16 %v4975
        %v5137 = vunpack.c.l.b16 %v4976
        %v5138 = vunpack.c.h.b16 %v4976
        %v5139 = vunpack.c.l.b16 %v4977
        %v5140 = vunpack.c.h.b16 %v4977
        %v5141 = vunpack.c.l.b16 %v4978
        %v5142 = vunpack.c.h.b16 %v4978
        %v5143 = vunpack.c.l.b16 %v4979
        %v5144 = vunpack.c.h.b16 %v4979
        %v5145 = vunpack.c.l.b16 %v4980
        %v5146 = vunpack.c.h.b16 %v4980
        %v5147 = vunpack.c.l.b16 %v4981
        %v5148 = vunpack.c.h.b16 %v4981
        %v5149 = vunpack.c.l.b16 %v4982
        %v5150 = vunpack.c.h.b16 %v4982
        %v5151 = vunpack.c.l.b16 %v4983
        %v5152 = vunpack.c.h.b16 %v4983
        %v5153 = vunpack.c.l.b16 %v4984
        %v5154 = vunpack.c.h.b16 %v4984
        %v5155 = vunpack.c.l.b16 %v4985
        %v5156 = vunpack.c.h.b16 %v4985
        %v5157 = vunpack.c.l.b16 %v4986
        %v5158 = vunpack.c.h.b16 %v4986
        %v5159 = vunpack.c.l.b16 %v4987
        %v5160 = vunpack.c.h.b16 %v4987
        %v5161 = vunpack.c.l.b16 %v4988
        %v5162 = vunpack.c.h.b16 %v4988
        %v5163 = vunpack.c.l.b16 %v4989
        %v5164 = vunpack.c.h.b16 %v4989
        %v5165 = vunpack.c.l.b16 %v4990
        %v5166 = vunpack.c.h.b16 %v4990
        %v5167 = vunpack.c.l.b16 %v4991
        %v5168 = vunpack.c.h.b16 %v4991
        %v5169 = vunpack.c.l.b16 %v4992
        %v5170 = vunpack.c.h.b16 %v4992
        %v5171 = vunpack.c.l.b16 %v4993
        %v5172 = vunpack.c.h.b16 %v4993
        %v5173 = vunpack.c.l.b16 %v4994
        %v5174 = vunpack.c.h.b16 %v4994
        %v5175 = vpack.c.b16 %v5127, %v5111
        %v5176 = vpack.c.b16 %v5128, %v5112
        %v5177 = vpack.c.b16 %v5129, %v5113
        %v5178 = vpack.c.b16 %v5130, %v5114
        %v5179 = vpack.c.b16 %v5131, %v5115
        %v5180 = vpack.c.b16 %v5132, %v5116
        %v5181 = vpack.c.b16 %v5133, %v5117
        %v5182 = vpack.c.b16 %v5134, %v5118
        %v5183 = vpack.c.b16 %v5135, %v5119
        %v5184 = vpack.c.b16 %v5136, %v5120
        %v5185 = vpack.c.b16 %v5137, %v5121
        %v5186 = vpack.c.b16 %v5138, %v5122
        %v5187 = vpack.c.b16 %v5139, %v5123
        %v5188 = vpack.c.b16 %v5140, %v5124
        %v5189 = vpack.c.b16 %v5141, %v5125
        %v5190 = vpack.c.b16 %v5142, %v5126
        %v5191 = vpack.c.b16 %v5159, %v5143
        %v5192 = vpack.c.b16 %v5160, %v5144
        %v5193 = vpack.c.b16 %v5161, %v5145
        %v5194 = vpack.c.b16 %v5162, %v5146
        %v5195 = vpack.c.b16 %v5163, %v5147
        %v5196 = vpack.c.b16 %v5164, %v5148
        %v5197 = vpack.c.b16 %v5165, %v5149
        %v5198 = vpack.c.b16 %v5166, %v5150
        %v5199 = vpack.c.b16 %v5167, %v5151
        %v5200 = vpack.c.b16 %v5168, %v5152
        %v5201 = vpack.c.b16 %v5169, %v5153
        %v5202 = vpack.c.b16 %v5170, %v5154
        %v5203 = vpack.c.b16 %v5171, %v5155
        %v5204 = vpack.c.b16 %v5172, %v5156
        %v5205 = vpack.c.b16 %v5173, %v5157
        %v5206 = vpack.c.b16 %v5174, %v5158
        %v5240 = vsel %vm1477, %v4962, 0
        %5242 = vmatprep.subr.bf16.mxu0 %v5176
        %5243 = vmatpush1.bf16.msra.mxu0 %v5175
        %5244 = vmatprep.subr.bf16.mxu0 %v5192
        %5245 = vmatpush1.bf16.msra.mxu0 %v5191
        %5246 = vmatprep.subr.bf16.mxu0 0
        %5247 = vmatpush1.bf16.msra.mxu0 0
        %5248 = vmatprep.subr.bf16.mxu0 0
        %5249 = vmatpush1.bf16.msra.mxu0 0
        %5250 = vmatprep.subr.bf16.mxu0 0
        %5251 = vmatpush1.bf16.msra.mxu0 0
        %5252 = vmatprep.subr.bf16.mxu0 0
        %5253 = vmatpush1.bf16.msra.mxu0 0
        %5254 = vmatprep.subr.bf16.mxu0 0
        %5255 = vmatpush1.bf16.msra.mxu0 0
        %5256 = vmatprep.subr.bf16.mxu0 0
        %5257 = vmatpush1.bf16.msra.mxu0 0
        %5258 = vmatprep.subr.bf16.mxu0 0
        %5259 = vmatpush1.bf16.msra.mxu0 0
        %5260 = vmatprep.subr.bf16.mxu0 0
        %5261 = vmatpush1.bf16.msra.mxu0 0
        %5262 = vmatprep.subr.bf16.mxu0 0
        %5263 = vmatpush1.bf16.msra.mxu0 0
        %5264 = vmatprep.subr.bf16.mxu0 0
        %5265 = vmatpush1.bf16.msra.mxu0 0
        %5266 = vmatprep.subr.bf16.mxu0 0
        %5267 = vmatpush1.bf16.msra.mxu0 0
        %5268 = vmatprep.subr.bf16.mxu0 0
        %5269 = vmatpush1.bf16.msra.mxu0 0
        %5270 = vmatprep.subr.bf16.mxu0 0
        %5271 = vmatpush1.bf16.msra.mxu0 0
        %5272 = vmatprep.subr.bf16.mxu0 0
        %5273 = vmatpush1.bf16.msra.mxu0 0
        %5274 = vmatprep.mubr.bf16.mxu0 0
        %5275 = vmatmul.mubr.bf16.gmra.mrb[0].mxu0 %v5240
        %v5276 = vpop.f32.mrb[0].mxu0
        %v5277 = vadd.f32 %v5002, %v5276
        %v5278 = vpop.f32.mrb[0].mxu0
        %v5279 = vadd.f32 %v5006, %v5278
        %v5280 = vpop.f32.mrb[0].mxu0
        %v5281 = vadd.f32 %v5002, %v5280
        %v5282 = vpop.f32.mrb[0].mxu0
        %v5283 = vadd.f32 %v5006, %v5282
        %5284 = vdwg.mxu0
        %5285 = vmatprep.subr.bf16.mxu0 %v5178
        %5286 = vmatpush1.bf16.msra.mxu0 %v5177
        %5287 = vmatprep.subr.bf16.mxu0 %v5194
        %5288 = vmatpush1.bf16.msra.mxu0 %v5193
        %5289 = vmatprep.subr.bf16.mxu0 0
        %5290 = vmatpush1.bf16.msra.mxu0 0
        %5291 = vmatprep.subr.bf16.mxu0 0
        %5292 = vmatpush1.bf16.msra.mxu0 0
        %5293 = vmatprep.subr.bf16.mxu0 0
        %5294 = vmatpush1.bf16.msra.mxu0 0
        %5295 = vmatprep.subr.bf16.mxu0 0
        %5296 = vmatpush1.bf16.msra.mxu0 0
        %5297 = vmatprep.subr.bf16.mxu0 0
        %5298 = vmatpush1.bf16.msra.mxu0 0
        %5299 = vmatprep.subr.bf16.mxu0 0
        %5300 = vmatpush1.bf16.msra.mxu0 0
        %5301 = vmatprep.subr.bf16.mxu0 0
        %5302 = vmatpush1.bf16.msra.mxu0 0
        %5303 = vmatprep.subr.bf16.mxu0 0
        %5304 = vmatpush1.bf16.msra.mxu0 0
        %5305 = vmatprep.subr.bf16.mxu0 0
        %5306 = vmatpush1.bf16.msra.mxu0 0
        %5307 = vmatprep.subr.bf16.mxu0 0
        %5308 = vmatpush1.bf16.msra.mxu0 0
        %5309 = vmatprep.subr.bf16.mxu0 0
        %5310 = vmatpush1.bf16.msra.mxu0 0
        %5311 = vmatprep.subr.bf16.mxu0 0
        %5312 = vmatpush1.bf16.msra.mxu0 0
        %5313 = vmatprep.subr.bf16.mxu0 0
        %5314 = vmatpush1.bf16.msra.mxu0 0
        %5315 = vmatprep.subr.bf16.mxu0 0
        %5316 = vmatpush1.bf16.msra.mxu0 0
        %5317 = vmatprep.mubr.bf16.mxu0 0
        %5318 = vmatmul.mubr.bf16.gmra.mrb[0].mxu0 %v5240
        %v5319 = vpop.f32.mrb[0].mxu0
        %v5320 = vadd.f32 %v5010, %v5319
        %v5321 = vpop.f32.mrb[0].mxu0
        %v5322 = vadd.f32 %v5014, %v5321
        %v5323 = vpop.f32.mrb[0].mxu0
        %v5324 = vadd.f32 %v5010, %v5323
        %v5325 = vpop.f32.mrb[0].mxu0
        %v5326 = vadd.f32 %v5014, %v5325
        %5327 = vdwg.mxu0
        %5328 = vmatprep.subr.bf16.mxu0 %v5180
        %5329 = vmatpush1.bf16.msra.mxu0 %v5179
        %5330 = vmatprep.subr.bf16.mxu0 %v5196
        %5331 = vmatpush1.bf16.msra.mxu0 %v5195
        %5332 = vmatprep.subr.bf16.mxu0 0
        %5333 = vmatpush1.bf16.msra.mxu0 0
        %5334 = vmatprep.subr.bf16.mxu0 0
        %5335 = vmatpush1.bf16.msra.mxu0 0
        %5336 = vmatprep.subr.bf16.mxu0 0
        %5337 = vmatpush1.bf16.msra.mxu0 0
        %5338 = vmatprep.subr.bf16.mxu0 0
        %5339 = vmatpush1.bf16.msra.mxu0 0
        %5340 = vmatprep.subr.bf16.mxu0 0
        %5341 = vmatpush1.bf16.msra.mxu0 0
        %5342 = vmatprep.subr.bf16.mxu0 0
        %5343 = vmatpush1.bf16.msra.mxu0 0
        %5344 = vmatprep.subr.bf16.mxu0 0
        %5345 = vmatpush1.bf16.msra.mxu0 0
        %5346 = vmatprep.subr.bf16.mxu0 0
        %5347 = vmatpush1.bf16.msra.mxu0 0
        %5348 = vmatprep.subr.bf16.mxu0 0
        %5349 = vmatpush1.bf16.msra.mxu0 0
        %5350 = vmatprep.subr.bf16.mxu0 0
        %5351 = vmatpush1.bf16.msra.mxu0 0
        %5352 = vmatprep.subr.bf16.mxu0 0
        %5353 = vmatpush1.bf16.msra.mxu0 0
        %5354 = vmatprep.subr.bf16.mxu0 0
        %5355 = vmatpush1.bf16.msra.mxu0 0
        %5356 = vmatprep.subr.bf16.mxu0 0
        %5357 = vmatpush1.bf16.msra.mxu0 0
        %5358 = vmatprep.subr.bf16.mxu0 0
        %5359 = vmatpush1.bf16.msra.mxu0 0
        %5360 = vmatprep.mubr.bf16.mxu0 0
        %5361 = vmatmul.mubr.bf16.gmra.mrb[0].mxu0 %v5240
        %v5362 = vpop.f32.mrb[0].mxu0
        %v5363 = vadd.f32 %v5018, %v5362
        %v5364 = vpop.f32.mrb[0].mxu0
        %v5365 = vadd.f32 %v5022, %v5364
        %v5366 = vpop.f32.mrb[0].mxu0
        %v5367 = vadd.f32 %v5018, %v5366
        %v5368 = vpop.f32.mrb[0].mxu0
        %v5369 = vadd.f32 %v5022, %v5368
        %5370 = vdwg.mxu0
        %5371 = vmatprep.subr.bf16.mxu0 %v5182
        %5372 = vmatpush1.bf16.msra.mxu0 %v5181
        %5373 = vmatprep.subr.bf16.mxu0 %v5198
        %5374 = vmatpush1.bf16.msra.mxu0 %v5197
        %5375 = vmatprep.subr.bf16.mxu0 0
        %5376 = vmatpush1.bf16.msra.mxu0 0
        %5377 = vmatprep.subr.bf16.mxu0 0
        %5378 = vmatpush1.bf16.msra.mxu0 0
        %5379 = vmatprep.subr.bf16.mxu0 0
        %5380 = vmatpush1.bf16.msra.mxu0 0
        %5381 = vmatprep.subr.bf16.mxu0 0
        %5382 = vmatpush1.bf16.msra.mxu0 0
        %5383 = vmatprep.subr.bf16.mxu0 0
        %5384 = vmatpush1.bf16.msra.mxu0 0
        %5385 = vmatprep.subr.bf16.mxu0 0
        %5386 = vmatpush1.bf16.msra.mxu0 0
        %5387 = vmatprep.subr.bf16.mxu0 0
        %5388 = vmatpush1.bf16.msra.mxu0 0
        %5389 = vmatprep.subr.bf16.mxu0 0
        %5390 = vmatpush1.bf16.msra.mxu0 0
        %5391 = vmatprep.subr.bf16.mxu0 0
        %5392 = vmatpush1.bf16.msra.mxu0 0
        %5393 = vmatprep.subr.bf16.mxu0 0
        %5394 = vmatpush1.bf16.msra.mxu0 0
        %5395 = vmatprep.subr.bf16.mxu0 0
        %5396 = vmatpush1.bf16.msra.mxu0 0
        %5397 = vmatprep.subr.bf16.mxu0 0
        %5398 = vmatpush1.bf16.msra.mxu0 0
        %5399 = vmatprep.subr.bf16.mxu0 0
        %5400 = vmatpush1.bf16.msra.mxu0 0
        %5401 = vmatprep.subr.bf16.mxu0 0
        %5402 = vmatpush1.bf16.msra.mxu0 0
        %5403 = vmatprep.mubr.bf16.mxu0 0
        %5404 = vmatmul.mubr.bf16.gmra.mrb[0].mxu0 %v5240
        %v5405 = vpop.f32.mrb[0].mxu0
        %v5406 = vadd.f32 %v5026, %v5405
        %v5407 = vpop.f32.mrb[0].mxu0
        %v5408 = vadd.f32 %v5030, %v5407
        %v5409 = vpop.f32.mrb[0].mxu0
        %v5410 = vadd.f32 %v5026, %v5409
        %v5411 = vpop.f32.mrb[0].mxu0
        %v5412 = vadd.f32 %v5030, %v5411
        %5413 = vdwg.mxu0
        %5414 = vmatprep.subr.bf16.mxu0 %v5184
        %5415 = vmatpush1.bf16.msra.mxu0 %v5183
        %5416 = vmatprep.subr.bf16.mxu0 %v5200
        %5417 = vmatpush1.bf16.msra.mxu0 %v5199
        %5418 = vmatprep.subr.bf16.mxu0 0
        %5419 = vmatpush1.bf16.msra.mxu0 0
        %5420 = vmatprep.subr.bf16.mxu0 0
        %5421 = vmatpush1.bf16.msra.mxu0 0
        %5422 = vmatprep.subr.bf16.mxu0 0
        %5423 = vmatpush1.bf16.msra.mxu0 0
        %5424 = vmatprep.subr.bf16.mxu0 0
        %5425 = vmatpush1.bf16.msra.mxu0 0
        %5426 = vmatprep.subr.bf16.mxu0 0
        %5427 = vmatpush1.bf16.msra.mxu0 0
        %5428 = vmatprep.subr.bf16.mxu0 0
        %5429 = vmatpush1.bf16.msra.mxu0 0
        %5430 = vmatprep.subr.bf16.mxu0 0
        %5431 = vmatpush1.bf16.msra.mxu0 0
        %5432 = vmatprep.subr.bf16.mxu0 0
        %5433 = vmatpush1.bf16.msra.mxu0 0
        %5434 = vmatprep.subr.bf16.mxu0 0
        %5435 = vmatpush1.bf16.msra.mxu0 0
        %5436 = vmatprep.subr.bf16.mxu0 0
        %5437 = vmatpush1.bf16.msra.mxu0 0
        %5438 = vmatprep.subr.bf16.mxu0 0
        %5439 = vmatpush1.bf16.msra.mxu0 0
        %5440 = vmatprep.subr.bf16.mxu0 0
        %5441 = vmatpush1.bf16.msra.mxu0 0
        %5442 = vmatprep.subr.bf16.mxu0 0
        %5443 = vmatpush1.bf16.msra.mxu0 0
        %5444 = vmatprep.subr.bf16.mxu0 0
        %5445 = vmatpush1.bf16.msra.mxu0 0
        %5446 = vmatprep.mubr.bf16.mxu0 0
        %5447 = vmatmul.mubr.bf16.gmra.mrb[0].mxu0 %v5240
        %v5448 = vpop.f32.mrb[0].mxu0
        %v5449 = vadd.f32 %v5034, %v5448
        %v5450 = vpop.f32.mrb[0].mxu0
        %v5451 = vadd.f32 %v5038, %v5450
        %v5452 = vpop.f32.mrb[0].mxu0
        %v5453 = vadd.f32 %v5034, %v5452
        %v5454 = vpop.f32.mrb[0].mxu0
        %v5455 = vadd.f32 %v5038, %v5454
        %5456 = vdwg.mxu0
        %5457 = vmatprep.subr.bf16.mxu0 %v5186
        %5458 = vmatpush1.bf16.msra.mxu0 %v5185
        %5459 = vmatprep.subr.bf16.mxu0 %v5202
        %5460 = vmatpush1.bf16.msra.mxu0 %v5201
        %5461 = vmatprep.subr.bf16.mxu0 0
        %5462 = vmatpush1.bf16.msra.mxu0 0
        %5463 = vmatprep.subr.bf16.mxu0 0
        %5464 = vmatpush1.bf16.msra.mxu0 0
        %5465 = vmatprep.subr.bf16.mxu0 0
        %5466 = vmatpush1.bf16.msra.mxu0 0
        %5467 = vmatprep.subr.bf16.mxu0 0
        %5468 = vmatpush1.bf16.msra.mxu0 0
        %5469 = vmatprep.subr.bf16.mxu0 0
        %5470 = vmatpush1.bf16.msra.mxu0 0
        %5471 = vmatprep.subr.bf16.mxu0 0
        %5472 = vmatpush1.bf16.msra.mxu0 0
        %5473 = vmatprep.subr.bf16.mxu0 0
        %5474 = vmatpush1.bf16.msra.mxu0 0
        %5475 = vmatprep.subr.bf16.mxu0 0
        %5476 = vmatpush1.bf16.msra.mxu0 0
        %5477 = vmatprep.subr.bf16.mxu0 0
        %5478 = vmatpush1.bf16.msra.mxu0 0
        %5479 = vmatprep.subr.bf16.mxu0 0
        %5480 = vmatpush1.bf16.msra.mxu0 0
        %5481 = vmatprep.subr.bf16.mxu0 0
        %5482 = vmatpush1.bf16.msra.mxu0 0
        %5483 = vmatprep.subr.bf16.mxu0 0
        %5484 = vmatpush1.bf16.msra.mxu0 0
        %5485 = vmatprep.subr.bf16.mxu0 0
        %5486 = vmatpush1.bf16.msra.mxu0 0
        %5487 = vmatprep.subr.bf16.mxu0 0
        %5488 = vmatpush1.bf16.msra.mxu0 0
        %5489 = vmatprep.mubr.bf16.mxu0 0
        %5490 = vmatmul.mubr.bf16.gmra.mrb[0].mxu0 %v5240
        %v5491 = vpop.f32.mrb[0].mxu0
        %v5492 = vadd.f32 %v5042, %v5491
        %v5493 = vpop.f32.mrb[0].mxu0
        %v5494 = vadd.f32 %v5046, %v5493
        %v5495 = vpop.f32.mrb[0].mxu0
        %v5496 = vadd.f32 %v5042, %v5495
        %v5497 = vpop.f32.mrb[0].mxu0
        %v5498 = vadd.f32 %v5046, %v5497
        %5499 = vdwg.mxu0
        %5500 = vmatprep.subr.bf16.mxu0 %v5188
        %5501 = vmatpush1.bf16.msra.mxu0 %v5187
        %5502 = vmatprep.subr.bf16.mxu0 %v5204
        %5503 = vmatpush1.bf16.msra.mxu0 %v5203
        %5504 = vmatprep.subr.bf16.mxu0 0
        %5505 = vmatpush1.bf16.msra.mxu0 0
        %5506 = vmatprep.subr.bf16.mxu0 0
        %5507 = vmatpush1.bf16.msra.mxu0 0
        %5508 = vmatprep.subr.bf16.mxu0 0
        %5509 = vmatpush1.bf16.msra.mxu0 0
        %5510 = vmatprep.subr.bf16.mxu0 0
        %5511 = vmatpush1.bf16.msra.mxu0 0
        %5512 = vmatprep.subr.bf16.mxu0 0
        %5513 = vmatpush1.bf16.msra.mxu0 0
        %5514 = vmatprep.subr.bf16.mxu0 0
        %5515 = vmatpush1.bf16.msra.mxu0 0
        %5516 = vmatprep.subr.bf16.mxu0 0
        %5517 = vmatpush1.bf16.msra.mxu0 0
        %5518 = vmatprep.subr.bf16.mxu0 0
        %5519 = vmatpush1.bf16.msra.mxu0 0
        %5520 = vmatprep.subr.bf16.mxu0 0
        %5521 = vmatpush1.bf16.msra.mxu0 0
        %5522 = vmatprep.subr.bf16.mxu0 0
        %5523 = vmatpush1.bf16.msra.mxu0 0
        %5524 = vmatprep.subr.bf16.mxu0 0
        %5525 = vmatpush1.bf16.msra.mxu0 0
        %5526 = vmatprep.subr.bf16.mxu0 0
        %5527 = vmatpush1.bf16.msra.mxu0 0
        %5528 = vmatprep.subr.bf16.mxu0 0
        %5529 = vmatpush1.bf16.msra.mxu0 0
        %5530 = vmatprep.subr.bf16.mxu0 0
        %5531 = vmatpush1.bf16.msra.mxu0 0
        %5532 = vmatprep.mubr.bf16.mxu0 0
        %5533 = vmatmul.mubr.bf16.gmra.mrb[0].mxu0 %v5240
        %v5534 = vpop.f32.mrb[0].mxu0
        %v5535 = vadd.f32 %v5050, %v5534
        %v5536 = vpop.f32.mrb[0].mxu0
        %v5537 = vadd.f32 %v5054, %v5536
        %v5538 = vpop.f32.mrb[0].mxu0
        %v5539 = vadd.f32 %v5050, %v5538
        %v5540 = vpop.f32.mrb[0].mxu0
        %v5541 = vadd.f32 %v5054, %v5540
        %5542 = vdwg.mxu0
        %5543 = vmatprep.subr.bf16.mxu0 %v5190
        %5544 = vmatpush1.bf16.msra.mxu0 %v5189
        %5545 = vmatprep.subr.bf16.mxu0 %v5206
        %5546 = vmatpush1.bf16.msra.mxu0 %v5205
        %5547 = vmatprep.subr.bf16.mxu0 0
        %5548 = vmatpush1.bf16.msra.mxu0 0
        %5549 = vmatprep.subr.bf16.mxu0 0
        %5550 = vmatpush1.bf16.msra.mxu0 0
        %5551 = vmatprep.subr.bf16.mxu0 0
        %5552 = vmatpush1.bf16.msra.mxu0 0
        %5553 = vmatprep.subr.bf16.mxu0 0
        %5554 = vmatpush1.bf16.msra.mxu0 0
        %5555 = vmatprep.subr.bf16.mxu0 0
        %5556 = vmatpush1.bf16.msra.mxu0 0
        %5557 = vmatprep.subr.bf16.mxu0 0
        %5558 = vmatpush1.bf16.msra.mxu0 0
        %5559 = vmatprep.subr.bf16.mxu0 0
        %5560 = vmatpush1.bf16.msra.mxu0 0
        %5561 = vmatprep.subr.bf16.mxu0 0
        %5562 = vmatpush1.bf16.msra.mxu0 0
        %5563 = vmatprep.subr.bf16.mxu0 0
        %5564 = vmatpush1.bf16.msra.mxu0 0
        %5565 = vmatprep.subr.bf16.mxu0 0
        %5566 = vmatpush1.bf16.msra.mxu0 0
        %5567 = vmatprep.subr.bf16.mxu0 0
        %5568 = vmatpush1.bf16.msra.mxu0 0
        %5569 = vmatprep.subr.bf16.mxu0 0
        %5570 = vmatpush1.bf16.msra.mxu0 0
        %5571 = vmatprep.subr.bf16.mxu0 0
        %5572 = vmatpush1.bf16.msra.mxu0 0
        %5573 = vmatprep.subr.bf16.mxu0 0
        %5574 = vmatpush1.bf16.msra.mxu0 0
        %5575 = vmatprep.mubr.bf16.mxu0 0
        %5576 = vmatmul.mubr.bf16.gmra.mrb[0].mxu0 %v5240
        %v5577 = vpop.f32.mrb[0].mxu0
        %v5578 = vadd.f32 %v5058, %v5577
        %v5579 = vpop.f32.mrb[0].mxu0
        %v5580 = vadd.f32 %v5062, %v5579
        %v5581 = vpop.f32.mrb[0].mxu0
        %v5582 = vadd.f32 %v5058, %v5581
        %v5583 = vpop.f32.mrb[0].mxu0
        %v5584 = vadd.f32 %v5062, %v5583
        %5585 = vdwg.mxu0
        %v5586 = vmax.f32 %v5277, 0.0
        %v5587 = vmax.f32 %v5279, 0.0
        %v5588 = vmax.f32 %v5320, 0.0
        %v5589 = vmax.f32 %v5322, 0.0
        %v5590 = vmax.f32 %v5363, 0.0
        %v5591 = vmax.f32 %v5365, 0.0
        %v5592 = vmax.f32 %v5406, 0.0
        %v5593 = vmax.f32 %v5408, 0.0
        %v5594 = vmax.f32 %v5449, 0.0
        %v5595 = vmax.f32 %v5451, 0.0
        %v5596 = vmax.f32 %v5492, 0.0
        %v5597 = vmax.f32 %v5494, 0.0
        %v5598 = vmax.f32 %v5535, 0.0
        %v5599 = vmax.f32 %v5537, 0.0
        %v5600 = vmax.f32 %v5578, 0.0
        %v5601 = vmax.f32 %v5580, 0.0
        %v5602 = vmax.f32 %v5281, 0.0
        %v5603 = vmax.f32 %v5283, 0.0
        %v5604 = vmax.f32 %v5324, 0.0
        %v5605 = vmax.f32 %v5326, 0.0
        %v5606 = vmax.f32 %v5367, 0.0
        %v5607 = vmax.f32 %v5369, 0.0
        %v5608 = vmax.f32 %v5410, 0.0
        %v5609 = vmax.f32 %v5412, 0.0
        %v5610 = vmax.f32 %v5453, 0.0
        %v5611 = vmax.f32 %v5455, 0.0
        %v5612 = vmax.f32 %v5496, 0.0
        %v5613 = vmax.f32 %v5498, 0.0
        %v5614 = vmax.f32 %v5539, 0.0
        %v5615 = vmax.f32 %v5541, 0.0
        %v5616 = vmax.f32 %v5582, 0.0
        %v5617 = vmax.f32 %v5584, 0.0
        %v5618 = vpack.c.bf16 %v5602, %v5586
        %v5619 = vpack.c.bf16 %v5603, %v5587
        %v5620 = vpack.c.bf16 %v5604, %v5588
        %v5621 = vpack.c.bf16 %v5605, %v5589
        %v5622 = vpack.c.bf16 %v5606, %v5590
        %v5623 = vpack.c.bf16 %v5607, %v5591
        %v5624 = vpack.c.bf16 %v5608, %v5592
        %v5625 = vpack.c.bf16 %v5609, %v5593
        %v5626 = vpack.c.bf16 %v5610, %v5594
        %v5627 = vpack.c.bf16 %v5611, %v5595
        %v5628 = vpack.c.bf16 %v5612, %v5596
        %v5629 = vpack.c.bf16 %v5613, %v5597
        %v5630 = vpack.c.bf16 %v5614, %v5598
        %v5631 = vpack.c.bf16 %v5615, %v5599
        %v5632 = vpack.c.bf16 %v5616, %v5600
        %v5633 = vpack.c.bf16 %v5617, %v5601
        %v5634 = vld [vmem:[%s1290] sm:$0xff]
        %v5635 = vld [vmem:[%s1290 + $0x8] sm:$0xff]
        %v5636 = vld [vmem:[%s1290 + $0x10] sm:$0xff]
        %v5637 = vld [vmem:[%s1290 + $0x18] sm:$0xff]
        %v5638 = vld [vmem:[%s1290 + $0x20] sm:$0xff]
        %v5639 = vld [vmem:[%s1290 + $0x28] sm:$0xff]
        %v5640 = vld [vmem:[%s1290 + $0x30] sm:$0xff]
        %v5641 = vld [vmem:[%s1290 + $0x38] sm:$0xff]
        %v5642 = vld [vmem:[%s1290 + $0x40] sm:$0xff]
        %v5643 = vld [vmem:[%s1290 + $0x48] sm:$0xff]
        %v5644 = vld [vmem:[%s1290 + $0x50] sm:$0xff]
        %v5645 = vld [vmem:[%s1290 + $0x58] sm:$0xff]
        %v5646 = vld [vmem:[%s1290 + $0x60] sm:$0xff]
        %v5647 = vld [vmem:[%s1290 + $0x68] sm:$0xff]
        %v5648 = vld [vmem:[%s1290 + $0x70] sm:$0xff]
        %v5649 = vld [vmem:[%s1290 + $0x78] sm:$0xff]
        %v5650 = vld [vmem:[%s1290 + $0x80] sm:$0xff]
        %v5651 = vld [vmem:[%s1290 + $0x88] sm:$0xff]
        %v5652 = vld [vmem:[%s1290 + $0x90] sm:$0xff]
        %v5653 = vld [vmem:[%s1290 + $0x98] sm:$0xff]
        %v5654 = vld [vmem:[%s1290 + $0xa0] sm:$0xff]
        %v5655 = vld [vmem:[%s1290 + $0xa8] sm:$0xff]
        %v5656 = vld [vmem:[%s1290 + $0xb0] sm:$0xff]
        %v5657 = vld [vmem:[%s1290 + $0xb8] sm:$0xff]
        %v5658 = vld [vmem:[%s1290 + $0xc0] sm:$0xff]
        %v5659 = vld [vmem:[%s1290 + $0xc8] sm:$0xff]
        %v5660 = vld [vmem:[%s1290 + $0xd0] sm:$0xff]
        %v5661 = vld [vmem:[%s1290 + $0xd8] sm:$0xff]
        %v5662 = vld [vmem:[%s1290 + $0xe0] sm:$0xff]
        %v5663 = vld [vmem:[%s1290 + $0xe8] sm:$0xff]
        %v5664 = vld [vmem:[%s1290 + $0xf0] sm:$0xff]
        %v5665 = vld [vmem:[%s1290 + $0xf8] sm:$0xff]
        %v5666 = vld [vmem:[%s1449] sm:$0x1]
        %v5668 = vlaneseq
        %v5669 = vshrl.u32 %v5668, 7
        %v5670 = vsub.s32 0, %v5669
        %v5671 = vrot.slane %v5666, %v5670
        %v5705 = vunpack.c.l.b16 %v5634
        %v5706 = vunpack.c.h.b16 %v5634
        %v5707 = vunpack.c.l.b16 %v5635
        %v5708 = vunpack.c.h.b16 %v5635
        %v5709 = vunpack.c.l.b16 %v5636
        %v5710 = vunpack.c.h.b16 %v5636
        %v5711 = vunpack.c.l.b16 %v5637
        %v5712 = vunpack.c.h.b16 %v5637
        %v5713 = vunpack.c.l.b16 %v5638
        %v5714 = vunpack.c.h.b16 %v5638
        %v5715 = vunpack.c.l.b16 %v5639
        %v5716 = vunpack.c.h.b16 %v5639
        %v5717 = vunpack.c.l.b16 %v5640
        %v5718 = vunpack.c.h.b16 %v5640
        %v5719 = vunpack.c.l.b16 %v5641
        %v5720 = vunpack.c.h.b16 %v5641
        %v5721 = vunpack.c.l.b16 %v5642
        %v5722 = vunpack.c.h.b16 %v5642
        %v5723 = vunpack.c.l.b16 %v5643
        %v5724 = vunpack.c.h.b16 %v5643
        %v5725 = vunpack.c.l.b16 %v5644
        %v5726 = vunpack.c.h.b16 %v5644
        %v5727 = vunpack.c.l.b16 %v5645
        %v5728 = vunpack.c.h.b16 %v5645
        %v5729 = vunpack.c.l.b16 %v5646
        %v5730 = vunpack.c.h.b16 %v5646
        %v5731 = vunpack.c.l.b16 %v5647
        %v5732 = vunpack.c.h.b16 %v5647
        %v5733 = vunpack.c.l.b16 %v5648
        %v5734 = vunpack.c.h.b16 %v5648
        %v5735 = vunpack.c.l.b16 %v5649
        %v5736 = vunpack.c.h.b16 %v5649
        %v5737 = vunpack.c.l.b16 %v5650
        %v5738 = vunpack.c.h.b16 %v5650
        %v5739 = vunpack.c.l.b16 %v5651
        %v5740 = vunpack.c.h.b16 %v5651
        %v5741 = vunpack.c.l.b16 %v5652
        %v5742 = vunpack.c.h.b16 %v5652
        %v5743 = vunpack.c.l.b16 %v5653
        %v5744 = vunpack.c.h.b16 %v5653
        %v5745 = vunpack.c.l.b16 %v5654
        %v5746 = vunpack.c.h.b16 %v5654
        %v5747 = vunpack.c.l.b16 %v5655
        %v5748 = vunpack.c.h.b16 %v5655
        %v5749 = vunpack.c.l.b16 %v5656
        %v5750 = vunpack.c.h.b16 %v5656
        %v5751 = vunpack.c.l.b16 %v5657
        %v5752 = vunpack.c.h.b16 %v5657
        %v5753 = vunpack.c.l.b16 %v5658
        %v5754 = vunpack.c.h.b16 %v5658
        %v5755 = vunpack.c.l.b16 %v5659
        %v5756 = vunpack.c.h.b16 %v5659
        %v5757 = vunpack.c.l.b16 %v5660
        %v5758 = vunpack.c.h.b16 %v5660
        %v5759 = vunpack.c.l.b16 %v5661
        %v5760 = vunpack.c.h.b16 %v5661
        %v5761 = vunpack.c.l.b16 %v5662
        %v5762 = vunpack.c.h.b16 %v5662
        %v5763 = vunpack.c.l.b16 %v5663
        %v5764 = vunpack.c.h.b16 %v5663
        %v5765 = vunpack.c.l.b16 %v5664
        %v5766 = vunpack.c.h.b16 %v5664
        %v5767 = vunpack.c.l.b16 %v5665
        %v5768 = vunpack.c.h.b16 %v5665
        %v5769 = vpack.c.b16 %v5721, %v5705
        %v5770 = vpack.c.b16 %v5722, %v5706
        %v5771 = vpack.c.b16 %v5723, %v5707
        %v5772 = vpack.c.b16 %v5724, %v5708
        %v5773 = vpack.c.b16 %v5725, %v5709
        %v5774 = vpack.c.b16 %v5726, %v5710
        %v5775 = vpack.c.b16 %v5727, %v5711
        %v5776 = vpack.c.b16 %v5728, %v5712
        %v5777 = vpack.c.b16 %v5729, %v5713
        %v5778 = vpack.c.b16 %v5730, %v5714
        %v5779 = vpack.c.b16 %v5731, %v5715
        %v5780 = vpack.c.b16 %v5732, %v5716
        %v5781 = vpack.c.b16 %v5733, %v5717
        %v5782 = vpack.c.b16 %v5734, %v5718
        %v5783 = vpack.c.b16 %v5735, %v5719
        %v5784 = vpack.c.b16 %v5736, %v5720
        %v5785 = vpack.c.b16 %v5753, %v5737
        %v5786 = vpack.c.b16 %v5754, %v5738
        %v5787 = vpack.c.b16 %v5755, %v5739
        %v5788 = vpack.c.b16 %v5756, %v5740
        %v5789 = vpack.c.b16 %v5757, %v5741
        %v5790 = vpack.c.b16 %v5758, %v5742
        %v5791 = vpack.c.b16 %v5759, %v5743
        %v5792 = vpack.c.b16 %v5760, %v5744
        %v5793 = vpack.c.b16 %v5761, %v5745
        %v5794 = vpack.c.b16 %v5762, %v5746
        %v5795 = vpack.c.b16 %v5763, %v5747
        %v5796 = vpack.c.b16 %v5764, %v5748
        %v5797 = vpack.c.b16 %v5765, %v5749
        %v5798 = vpack.c.b16 %v5766, %v5750
        %v5799 = vpack.c.b16 %v5767, %v5751
        %v5800 = vpack.c.b16 %v5768, %v5752
        %5833 = vmatprep.subr.bf16.mxu0 %v5770
        %5834 = vmatpush1.bf16.xpose.msra.mxu0 %v5769
        %5835 = vmatprep.subr.bf16.mxu0 %v5786
        %5836 = vmatpush1.bf16.xpose.msra.mxu0 %v5785
        %5837 = vmatprep.subr.bf16.mxu0 0
        %5838 = vmatpush1.bf16.xpose.msra.mxu0 0
        %5839 = vmatprep.subr.bf16.mxu0 0
        %5840 = vmatpush1.bf16.xpose.msra.mxu0 0
        %5841 = vmatprep.subr.bf16.mxu0 0
        %5842 = vmatpush1.bf16.xpose.msra.mxu0 0
        %5843 = vmatprep.subr.bf16.mxu0 0
        %5844 = vmatpush1.bf16.xpose.msra.mxu0 0
        %5845 = vmatprep.subr.bf16.mxu0 0
        %5846 = vmatpush1.bf16.xpose.msra.mxu0 0
        %5847 = vmatprep.subr.bf16.mxu0 0
        %5848 = vmatpush1.bf16.xpose.msra.mxu0 0
        %5849 = vmatprep.subr.bf16.mxu0 0
        %5850 = vmatpush1.bf16.xpose.msra.mxu0 0
        %5851 = vmatprep.subr.bf16.mxu0 0
        %5852 = vmatpush1.bf16.xpose.msra.mxu0 0
        %5853 = vmatprep.subr.bf16.mxu0 0
        %5854 = vmatpush1.bf16.xpose.msra.mxu0 0
        %5855 = vmatprep.subr.bf16.mxu0 0
        %5856 = vmatpush1.bf16.xpose.msra.mxu0 0
        %5857 = vmatprep.subr.bf16.mxu0 0
        %5858 = vmatpush1.bf16.xpose.msra.mxu0 0
        %5859 = vmatprep.subr.bf16.mxu0 0
        %5860 = vmatpush1.bf16.xpose.msra.mxu0 0
        %5861 = vmatprep.subr.bf16.mxu0 0
        %5862 = vmatpush1.bf16.xpose.msra.mxu0 0
        %5863 = vmatprep.subr.bf16.mxu0 0
        %5864 = vmatpush1.bf16.xpose.msra.mxu0 0
        %5865 = vmatprep.mubr.bf16.mxu0 %v5619
        %5866 = vmatmul.mubr.bf16.gmra.mrb[0].mxu0 %v5618
        %v5867 = vpop.f32.mrb[0].mxu0
        %v5868 = vadd.f32 %v5671, %v5867
        %v5869 = vpop.f32.mrb[0].mxu0
        %v5870 = vpop.f32.mrb[0].mxu0
        %v5871 = vadd.f32 %v5671, %v5870
        %v5872 = vpop.f32.mrb[0].mxu0
        %5873 = vdwg.mxu0
        %5874 = vmatprep.subr.bf16.mxu0 %v5772
        %5875 = vmatpush1.bf16.xpose.msra.mxu0 %v5771
        %5876 = vmatprep.subr.bf16.mxu0 %v5788
        %5877 = vmatpush1.bf16.xpose.msra.mxu0 %v5787
        %5878 = vmatprep.subr.bf16.mxu0 0
        %5879 = vmatpush1.bf16.xpose.msra.mxu0 0
        %5880 = vmatprep.subr.bf16.mxu0 0
        %5881 = vmatpush1.bf16.xpose.msra.mxu0 0
        %5882 = vmatprep.subr.bf16.mxu0 0
        %5883 = vmatpush1.bf16.xpose.msra.mxu0 0
        %5884 = vmatprep.subr.bf16.mxu0 0
        %5885 = vmatpush1.bf16.xpose.msra.mxu0 0
        %5886 = vmatprep.subr.bf16.mxu0 0
        %5887 = vmatpush1.bf16.xpose.msra.mxu0 0
        %5888 = vmatprep.subr.bf16.mxu0 0
        %5889 = vmatpush1.bf16.xpose.msra.mxu0 0
        %5890 = vmatprep.subr.bf16.mxu0 0
        %5891 = vmatpush1.bf16.xpose.msra.mxu0 0
        %5892 = vmatprep.subr.bf16.mxu0 0
        %5893 = vmatpush1.bf16.xpose.msra.mxu0 0
        %5894 = vmatprep.subr.bf16.mxu0 0
        %5895 = vmatpush1.bf16.xpose.msra.mxu0 0
        %5896 = vmatprep.subr.bf16.mxu0 0
        %5897 = vmatpush1.bf16.xpose.msra.mxu0 0
        %5898 = vmatprep.subr.bf16.mxu0 0
        %5899 = vmatpush1.bf16.xpose.msra.mxu0 0
        %5900 = vmatprep.subr.bf16.mxu0 0
        %5901 = vmatpush1.bf16.xpose.msra.mxu0 0
        %5902 = vmatprep.subr.bf16.mxu0 0
        %5903 = vmatpush1.bf16.xpose.msra.mxu0 0
        %5904 = vmatprep.subr.bf16.mxu0 0
        %5905 = vmatpush1.bf16.xpose.msra.mxu0 0
        %5906 = vmatprep.mubr.bf16.mxu0 %v5621
        %5907 = vmatmul.mubr.bf16.gmra.mrb[0].mxu0 %v5620
        %v5908 = vpop.f32.mrb[0].mxu0
        %v5909 = vadd.f32 %v5868, %v5908
        %v5910 = vpop.f32.mrb[0].mxu0
        %v5911 = vpop.f32.mrb[0].mxu0
        %v5912 = vadd.f32 %v5871, %v5911
        %v5913 = vpop.f32.mrb[0].mxu0
        %5914 = vdwg.mxu0
        %5915 = vmatprep.subr.bf16.mxu0 %v5774
        %5916 = vmatpush1.bf16.xpose.msra.mxu0 %v5773
        %5917 = vmatprep.subr.bf16.mxu0 %v5790
        %5918 = vmatpush1.bf16.xpose.msra.mxu0 %v5789
        %5919 = vmatprep.subr.bf16.mxu0 0
        %5920 = vmatpush1.bf16.xpose.msra.mxu0 0
        %5921 = vmatprep.subr.bf16.mxu0 0
        %5922 = vmatpush1.bf16.xpose.msra.mxu0 0
        %5923 = vmatprep.subr.bf16.mxu0 0
        %5924 = vmatpush1.bf16.xpose.msra.mxu0 0
        %5925 = vmatprep.subr.bf16.mxu0 0
        %5926 = vmatpush1.bf16.xpose.msra.mxu0 0
        %5927 = vmatprep.subr.bf16.mxu0 0
        %5928 = vmatpush1.bf16.xpose.msra.mxu0 0
        %5929 = vmatprep.subr.bf16.mxu0 0
        %5930 = vmatpush1.bf16.xpose.msra.mxu0 0
        %5931 = vmatprep.subr.bf16.mxu0 0
        %5932 = vmatpush1.bf16.xpose.msra.mxu0 0
        %5933 = vmatprep.subr.bf16.mxu0 0
        %5934 = vmatpush1.bf16.xpose.msra.mxu0 0
        %5935 = vmatprep.subr.bf16.mxu0 0
        %5936 = vmatpush1.bf16.xpose.msra.mxu0 0
        %5937 = vmatprep.subr.bf16.mxu0 0
        %5938 = vmatpush1.bf16.xpose.msra.mxu0 0
        %5939 = vmatprep.subr.bf16.mxu0 0
        %5940 = vmatpush1.bf16.xpose.msra.mxu0 0
        %5941 = vmatprep.subr.bf16.mxu0 0
        %5942 = vmatpush1.bf16.xpose.msra.mxu0 0
        %5943 = vmatprep.subr.bf16.mxu0 0
        %5944 = vmatpush1.bf16.xpose.msra.mxu0 0
        %5945 = vmatprep.subr.bf16.mxu0 0
        %5946 = vmatpush1.bf16.xpose.msra.mxu0 0
        %5947 = vmatprep.mubr.bf16.mxu0 %v5623
        %5948 = vmatmul.mubr.bf16.gmra.mrb[0].mxu0 %v5622
        %v5949 = vpop.f32.mrb[0].mxu0
        %v5950 = vadd.f32 %v5909, %v5949
        %v5951 = vpop.f32.mrb[0].mxu0
        %v5952 = vpop.f32.mrb[0].mxu0
        %v5953 = vadd.f32 %v5912, %v5952
        %v5954 = vpop.f32.mrb[0].mxu0
        %5955 = vdwg.mxu0
        %5956 = vmatprep.subr.bf16.mxu0 %v5776
        %5957 = vmatpush1.bf16.xpose.msra.mxu0 %v5775
        %5958 = vmatprep.subr.bf16.mxu0 %v5792
        %5959 = vmatpush1.bf16.xpose.msra.mxu0 %v5791
        %5960 = vmatprep.subr.bf16.mxu0 0
        %5961 = vmatpush1.bf16.xpose.msra.mxu0 0
        %5962 = vmatprep.subr.bf16.mxu0 0
        %5963 = vmatpush1.bf16.xpose.msra.mxu0 0
        %5964 = vmatprep.subr.bf16.mxu0 0
        %5965 = vmatpush1.bf16.xpose.msra.mxu0 0
        %5966 = vmatprep.subr.bf16.mxu0 0
        %5967 = vmatpush1.bf16.xpose.msra.mxu0 0
        %5968 = vmatprep.subr.bf16.mxu0 0
        %5969 = vmatpush1.bf16.xpose.msra.mxu0 0
        %5970 = vmatprep.subr.bf16.mxu0 0
        %5971 = vmatpush1.bf16.xpose.msra.mxu0 0
        %5972 = vmatprep.subr.bf16.mxu0 0
        %5973 = vmatpush1.bf16.xpose.msra.mxu0 0
        %5974 = vmatprep.subr.bf16.mxu0 0
        %5975 = vmatpush1.bf16.xpose.msra.mxu0 0
        %5976 = vmatprep.subr.bf16.mxu0 0
        %5977 = vmatpush1.bf16.xpose.msra.mxu0 0
        %5978 = vmatprep.subr.bf16.mxu0 0
        %5979 = vmatpush1.bf16.xpose.msra.mxu0 0
        %5980 = vmatprep.subr.bf16.mxu0 0
        %5981 = vmatpush1.bf16.xpose.msra.mxu0 0
        %5982 = vmatprep.subr.bf16.mxu0 0
        %5983 = vmatpush1.bf16.xpose.msra.mxu0 0
        %5984 = vmatprep.subr.bf16.mxu0 0
        %5985 = vmatpush1.bf16.xpose.msra.mxu0 0
        %5986 = vmatprep.subr.bf16.mxu0 0
        %5987 = vmatpush1.bf16.xpose.msra.mxu0 0
        %5988 = vmatprep.mubr.bf16.mxu0 %v5625
        %5989 = vmatmul.mubr.bf16.gmra.mrb[0].mxu0 %v5624
        %v5990 = vpop.f32.mrb[0].mxu0
        %v5991 = vadd.f32 %v5950, %v5990
        %v5992 = vpop.f32.mrb[0].mxu0
        %v5993 = vpop.f32.mrb[0].mxu0
        %v5994 = vadd.f32 %v5953, %v5993
        %v5995 = vpop.f32.mrb[0].mxu0
        %5996 = vdwg.mxu0
        %5997 = vmatprep.subr.bf16.mxu0 %v5778
        %5998 = vmatpush1.bf16.xpose.msra.mxu0 %v5777
        %5999 = vmatprep.subr.bf16.mxu0 %v5794
        %6000 = vmatpush1.bf16.xpose.msra.mxu0 %v5793
        %6001 = vmatprep.subr.bf16.mxu0 0
        %6002 = vmatpush1.bf16.xpose.msra.mxu0 0
        %6003 = vmatprep.subr.bf16.mxu0 0
        %6004 = vmatpush1.bf16.xpose.msra.mxu0 0
        %6005 = vmatprep.subr.bf16.mxu0 0
        %6006 = vmatpush1.bf16.xpose.msra.mxu0 0
        %6007 = vmatprep.subr.bf16.mxu0 0
        %6008 = vmatpush1.bf16.xpose.msra.mxu0 0
        %6009 = vmatprep.subr.bf16.mxu0 0
        %6010 = vmatpush1.bf16.xpose.msra.mxu0 0
        %6011 = vmatprep.subr.bf16.mxu0 0
        %6012 = vmatpush1.bf16.xpose.msra.mxu0 0
        %6013 = vmatprep.subr.bf16.mxu0 0
        %6014 = vmatpush1.bf16.xpose.msra.mxu0 0
        %6015 = vmatprep.subr.bf16.mxu0 0
        %6016 = vmatpush1.bf16.xpose.msra.mxu0 0
        %6017 = vmatprep.subr.bf16.mxu0 0
        %6018 = vmatpush1.bf16.xpose.msra.mxu0 0
        %6019 = vmatprep.subr.bf16.mxu0 0
        %6020 = vmatpush1.bf16.xpose.msra.mxu0 0
        %6021 = vmatprep.subr.bf16.mxu0 0
        %6022 = vmatpush1.bf16.xpose.msra.mxu0 0
        %6023 = vmatprep.subr.bf16.mxu0 0
        %6024 = vmatpush1.bf16.xpose.msra.mxu0 0
        %6025 = vmatprep.subr.bf16.mxu0 0
        %6026 = vmatpush1.bf16.xpose.msra.mxu0 0
        %6027 = vmatprep.subr.bf16.mxu0 0
        %6028 = vmatpush1.bf16.xpose.msra.mxu0 0
        %6029 = vmatprep.mubr.bf16.mxu0 %v5627
        %6030 = vmatmul.mubr.bf16.gmra.mrb[0].mxu0 %v5626
        %v6031 = vpop.f32.mrb[0].mxu0
        %v6032 = vadd.f32 %v5991, %v6031
        %v6033 = vpop.f32.mrb[0].mxu0
        %v6034 = vpop.f32.mrb[0].mxu0
        %v6035 = vadd.f32 %v5994, %v6034
        %v6036 = vpop.f32.mrb[0].mxu0
        %6037 = vdwg.mxu0
        %6038 = vmatprep.subr.bf16.mxu0 %v5780
        %6039 = vmatpush1.bf16.xpose.msra.mxu0 %v5779
        %6040 = vmatprep.subr.bf16.mxu0 %v5796
        %6041 = vmatpush1.bf16.xpose.msra.mxu0 %v5795
        %6042 = vmatprep.subr.bf16.mxu0 0
        %6043 = vmatpush1.bf16.xpose.msra.mxu0 0
        %6044 = vmatprep.subr.bf16.mxu0 0
        %6045 = vmatpush1.bf16.xpose.msra.mxu0 0
        %6046 = vmatprep.subr.bf16.mxu0 0
        %6047 = vmatpush1.bf16.xpose.msra.mxu0 0
        %6048 = vmatprep.subr.bf16.mxu0 0
        %6049 = vmatpush1.bf16.xpose.msra.mxu0 0
        %6050 = vmatprep.subr.bf16.mxu0 0
        %6051 = vmatpush1.bf16.xpose.msra.mxu0 0
        %6052 = vmatprep.subr.bf16.mxu0 0
        %6053 = vmatpush1.bf16.xpose.msra.mxu0 0
        %6054 = vmatprep.subr.bf16.mxu0 0
        %6055 = vmatpush1.bf16.xpose.msra.mxu0 0
        %6056 = vmatprep.subr.bf16.mxu0 0
        %6057 = vmatpush1.bf16.xpose.msra.mxu0 0
        %6058 = vmatprep.subr.bf16.mxu0 0
        %6059 = vmatpush1.bf16.xpose.msra.mxu0 0
        %6060 = vmatprep.subr.bf16.mxu0 0
        %6061 = vmatpush1.bf16.xpose.msra.mxu0 0
        %6062 = vmatprep.subr.bf16.mxu0 0
        %6063 = vmatpush1.bf16.xpose.msra.mxu0 0
        %6064 = vmatprep.subr.bf16.mxu0 0
        %6065 = vmatpush1.bf16.xpose.msra.mxu0 0
        %6066 = vmatprep.subr.bf16.mxu0 0
        %6067 = vmatpush1.bf16.xpose.msra.mxu0 0
        %6068 = vmatprep.subr.bf16.mxu0 0
        %6069 = vmatpush1.bf16.xpose.msra.mxu0 0
        %6070 = vmatprep.mubr.bf16.mxu0 %v5629
        %6071 = vmatmul.mubr.bf16.gmra.mrb[0].mxu0 %v5628
        %v6072 = vpop.f32.mrb[0].mxu0
        %v6073 = vadd.f32 %v6032, %v6072
        %v6074 = vpop.f32.mrb[0].mxu0
        %v6075 = vpop.f32.mrb[0].mxu0
        %v6076 = vadd.f32 %v6035, %v6075
        %v6077 = vpop.f32.mrb[0].mxu0
        %6078 = vdwg.mxu0
        %6079 = vmatprep.subr.bf16.mxu0 %v5782
        %6080 = vmatpush1.bf16.xpose.msra.mxu0 %v5781
        %6081 = vmatprep.subr.bf16.mxu0 %v5798
        %6082 = vmatpush1.bf16.xpose.msra.mxu0 %v5797
        %6083 = vmatprep.subr.bf16.mxu0 0
        %6084 = vmatpush1.bf16.xpose.msra.mxu0 0
        %6085 = vmatprep.subr.bf16.mxu0 0
        %6086 = vmatpush1.bf16.xpose.msra.mxu0 0
        %6087 = vmatprep.subr.bf16.mxu0 0
        %6088 = vmatpush1.bf16.xpose.msra.mxu0 0
        %6089 = vmatprep.subr.bf16.mxu0 0
        %6090 = vmatpush1.bf16.xpose.msra.mxu0 0
        %6091 = vmatprep.subr.bf16.mxu0 0
        %6092 = vmatpush1.bf16.xpose.msra.mxu0 0
        %6093 = vmatprep.subr.bf16.mxu0 0
        %6094 = vmatpush1.bf16.xpose.msra.mxu0 0
        %6095 = vmatprep.subr.bf16.mxu0 0
        %6096 = vmatpush1.bf16.xpose.msra.mxu0 0
        %6097 = vmatprep.subr.bf16.mxu0 0
        %6098 = vmatpush1.bf16.xpose.msra.mxu0 0
        %6099 = vmatprep.subr.bf16.mxu0 0
        %6100 = vmatpush1.bf16.xpose.msra.mxu0 0
        %6101 = vmatprep.subr.bf16.mxu0 0
        %6102 = vmatpush1.bf16.xpose.msra.mxu0 0
        %6103 = vmatprep.subr.bf16.mxu0 0
        %6104 = vmatpush1.bf16.xpose.msra.mxu0 0
        %6105 = vmatprep.subr.bf16.mxu0 0
        %6106 = vmatpush1.bf16.xpose.msra.mxu0 0
        %6107 = vmatprep.subr.bf16.mxu0 0
        %6108 = vmatpush1.bf16.xpose.msra.mxu0 0
        %6109 = vmatprep.subr.bf16.mxu0 0
        %6110 = vmatpush1.bf16.xpose.msra.mxu0 0
        %6111 = vmatprep.mubr.bf16.mxu0 %v5631
        %6112 = vmatmul.mubr.bf16.gmra.mrb[0].mxu0 %v5630
        %v6113 = vpop.f32.mrb[0].mxu0
        %v6114 = vadd.f32 %v6073, %v6113
        %v6115 = vpop.f32.mrb[0].mxu0
        %v6116 = vpop.f32.mrb[0].mxu0
        %v6117 = vadd.f32 %v6076, %v6116
        %v6118 = vpop.f32.mrb[0].mxu0
        %6119 = vdwg.mxu0
        %6120 = vmatprep.subr.bf16.mxu0 %v5784
        %6121 = vmatpush1.bf16.xpose.msra.mxu0 %v5783
        %6122 = vmatprep.subr.bf16.mxu0 %v5800
        %6123 = vmatpush1.bf16.xpose.msra.mxu0 %v5799
        %6124 = vmatprep.subr.bf16.mxu0 0
        %6125 = vmatpush1.bf16.xpose.msra.mxu0 0
        %6126 = vmatprep.subr.bf16.mxu0 0
        %6127 = vmatpush1.bf16.xpose.msra.mxu0 0
        %6128 = vmatprep.subr.bf16.mxu0 0
        %6129 = vmatpush1.bf16.xpose.msra.mxu0 0
        %6130 = vmatprep.subr.bf16.mxu0 0
        %6131 = vmatpush1.bf16.xpose.msra.mxu0 0
        %6132 = vmatprep.subr.bf16.mxu0 0
        %6133 = vmatpush1.bf16.xpose.msra.mxu0 0
        %6134 = vmatprep.subr.bf16.mxu0 0
        %6135 = vmatpush1.bf16.xpose.msra.mxu0 0
        %6136 = vmatprep.subr.bf16.mxu0 0
        %6137 = vmatpush1.bf16.xpose.msra.mxu0 0
        %6138 = vmatprep.subr.bf16.mxu0 0
        %6139 = vmatpush1.bf16.xpose.msra.mxu0 0
        %6140 = vmatprep.subr.bf16.mxu0 0
        %6141 = vmatpush1.bf16.xpose.msra.mxu0 0
        %6142 = vmatprep.subr.bf16.mxu0 0
        %6143 = vmatpush1.bf16.xpose.msra.mxu0 0
        %6144 = vmatprep.subr.bf16.mxu0 0
        %6145 = vmatpush1.bf16.xpose.msra.mxu0 0
        %6146 = vmatprep.subr.bf16.mxu0 0
        %6147 = vmatpush1.bf16.xpose.msra.mxu0 0
        %6148 = vmatprep.subr.bf16.mxu0 0
        %6149 = vmatpush1.bf16.xpose.msra.mxu0 0
        %6150 = vmatprep.subr.bf16.mxu0 0
        %6151 = vmatpush1.bf16.xpose.msra.mxu0 0
        %6152 = vmatprep.mubr.bf16.mxu0 %v5633
        %6153 = vmatmul.mubr.bf16.gmra.mrb[0].mxu0 %v5632
        %v6154 = vpop.f32.mrb[0].mxu0
        %v6155 = vadd.f32 %v6114, %v6154
        %v6156 = vpop.f32.mrb[0].mxu0
        %v6157 = vpop.f32.mrb[0].mxu0
        %v6158 = vadd.f32 %v6117, %v6157
        %v6159 = vpop.f32.mrb[0].mxu0
        %6160 = vdwg.mxu0
        %v6161 = vadd.f32 %v4902, %v6155
        %v6162 = vadd.f32 %v4903, %v6158
        %6163 = vst.msk [vmem:[#allocation2] sm:$0xff] %vm1477, %v6161
        %6164 = vst.msk [vmem:[#allocation2 + $0x8] sm:$0xff] %vm1477, %v6162
        %p6165 = scmp.eq.s32.totalorder %s67, 1
        // Predicated region
        $region205: #{tpu_custom_call.1} parent=123 // pred_check
          %p6166 = pneg %p6165
        $region206: #{tpu_custom_call.1} parent=123 // pred_check_branch
          %6168 = sbr.rel (%p6166) target = $region208
        $region207: #{tpu_custom_call.1} parent=123 // pred_region
          %v6169 = vld [vmem:[%s24] sm:$0x1]
          %v6170 = vld [vmem:[%s25] sm:$0x1]
          %v6171 = vsel %vm1477, %v6161, 0.0
          %6172 = vadd.xlane.f32.xlu0 %v6171
          %v6173 = vpop.xlane.xlu0 %6172
          %v6174 = vsel %vm1477, %v6162, 0.0
          %6175 = vadd.xlane.f32.xlu0 %v6174
          %v6176 = vpop.xlane.xlu0 %6175
          %v6177 = vmul.f32 %v6173, %v1484
          %v6178 = vmul.f32 %v6176, %v1484
          %v6179 = vsub.f32 %v6161, %v6177
          %v6180 = vsub.f32 %v6162, %v6178
          %v6181 = vmul.f32 %v6179, %v6179
          %v6182 = vmul.f32 %v6180, %v6180
          %v6183 = vsel %vm1477, %v6181, 0.0
          %6184 = vadd.xlane.f32.xlu0 %v6183
          %v6185 = vpop.xlane.xlu0 %6184
          %v6186 = vsel %vm1477, %v6182, 0.0
          %6187 = vadd.xlane.f32.xlu0 %v6186
          %v6188 = vpop.xlane.xlu0 %6187
          %v6189 = vmul.f32 %v6185, %v1497
          %v6190 = vmul.f32 %v6188, %v1497
          %v6191 = vrsqrt.pop %v6189
          %v6192 = vmul.f32 %v6189, %v6191
          %vm6193 = vcmp.eq.f32.partialorder %v6189, inf
          %v6194 = vsel %vm6193, %v6189, %v6192
          %vm6195 = vcmp.eq.f32.partialorder %v6189, 0.0
          %v6196 = vand.u32 %v6189, 2147483648
          %v6197 = vsel %vm6195, %v6196, %v6194
          %v6198 = vrsqrt.pop %v6190
          %v6199 = vmul.f32 %v6190, %v6198
          %vm6200 = vcmp.eq.f32.partialorder %v6190, inf
          %v6201 = vsel %vm6200, %v6190, %v6199
          %vm6202 = vcmp.eq.f32.partialorder %v6190, 0.0
          %v6203 = vand.u32 %v6190, 2147483648
          %v6204 = vsel %vm6202, %v6203, %v6201
          %v6205 = vadd.f32 %v6197, 1e-06
          %v6206 = vadd.f32 %v6204, 1e-06
          %v6207 = vrcp.pop %v6205
          %v6208 = vrcp.pop %v6206
          %v6210 = vlaneseq
          %v6211 = vshrl.u32 %v6210, 7
          %v6212 = vsub.s32 0, %v6211
          %v6213 = vrot.slane %v6169, %v6212
          %v6215 = vmul.f32 %v6213, %v6179
          %v6216 = vmul.f32 %v6213, %v6180
          %v6217 = vmul.f32 %v6215, %v6207
          %v6218 = vmul.f32 %v6216, %v6208
          %v6220 = vlaneseq
          %v6221 = vshrl.u32 %v6220, 7
          %v6222 = vsub.s32 0, %v6221
          %v6223 = vrot.slane %v6170, %v6222
          %v6225 = vadd.f32 %v6217, %v6223
          %v6226 = vadd.f32 %v6218, %v6223
          %6227 = vst.msk [vmem:[#allocation34] sm:$0xff] %vm1477, %v6225
          %6228 = vst.msk [vmem:[#allocation34 + $0x8] sm:$0xff] %vm1477, %v6226
          %v6229 = vld [vmem:[#allocation3] sm:$0xff]
          %v6230 = vld [vmem:[#allocation3 + $0x8] sm:$0xff]
          %v6231 = vld [vmem:[#allocation3 + $0x10] sm:$0xff]
          %v6232 = vld [vmem:[#allocation3 + $0x18] sm:$0xff]
          %v6233 = vld [vmem:[#allocation3 + $0x20] sm:$0xff]
          %v6234 = vld [vmem:[#allocation3 + $0x28] sm:$0xff]
          %v6235 = vld [vmem:[#allocation3 + $0x30] sm:$0xff]
          %v6236 = vld [vmem:[#allocation3 + $0x38] sm:$0xff]
          %v6237 = vmul.f32 %v6229, 0.5
          %v6238 = vmul.f32 %v6230, 0.5
          %v6239 = vmul.f32 %v6231, 0.5
          %v6240 = vmul.f32 %v6232, 0.5
          %v6241 = vmul.f32 %v6233, 0.5
          %v6242 = vmul.f32 %v6234, 0.5
          %v6243 = vmul.f32 %v6235, 0.5
          %v6244 = vmul.f32 %v6236, 0.5
          %6245 = vst.msk [vmem:[#allocation35] sm:$0xff] %vm2989, %v6237
          %6246 = vst.msk [vmem:[#allocation35 + $0x8] sm:$0xff] %vm2989, %v6238
          %6247 = vst.msk [vmem:[#allocation35 + $0x10] sm:$0xff] %vm2989, %v6239
          %6248 = vst.msk [vmem:[#allocation35 + $0x18] sm:$0xff] %vm2989, %v6240
          %6249 = vst.msk [vmem:[#allocation35 + $0x20] sm:$0xff] %vm2989, %v6241
          %6250 = vst.msk [vmem:[#allocation35 + $0x28] sm:$0xff] %vm2989, %v6242
          %6251 = vst.msk [vmem:[#allocation35 + $0x30] sm:$0xff] %vm2989, %v6243
          %6252 = vst.msk [vmem:[#allocation35 + $0x38] sm:$0xff] %vm2989, %v6244
        $region208: #{tpu_custom_call.1} parent=123 // pred_fallthru
          _
        // Predicated region
        $region209: #{tpu_custom_call.1} parent=123 // pred_check
          %p6253 = pneg %p726
        $region210: #{tpu_custom_call.1} parent=123 // pred_check_branch
          %6255 = sbr.rel (%p6253) target = $region212
        $region211: #{tpu_custom_call.1} parent=123 // pred_region
          %s6257 = ssub.s32 256, 256
          %6258 = vsyncadd [#allocation6], %s6257
          %s6259 = sshll.u32 [#allocation34], 4
          %s6260 = int_to_ptr.vmem [resolvable:$true] %s6259
          %6265 = dma.vmem_to_hbm [thread:$0]  %s6260, 256, %s26, [#allocation6], 128, 128, 8
        $region212: #{tpu_custom_call.1} parent=123 // pred_fallthru
          _
        // Predicated region
        $region213: #{tpu_custom_call.1} parent=123 // pred_check
          %p6266 = pneg %p747
        $region214: #{tpu_custom_call.1} parent=123 // pred_check_branch
          %6268 = sbr.rel (%p6266) target = $region216
        $region215: #{tpu_custom_call.1} parent=123 // pred_region
          %s6270 = ssub.s32 1024, 1024
          %6271 = vsyncadd [#allocation36], %s6270
          %s6272 = sshll.u32 [#allocation35], 4
          %s6273 = int_to_ptr.vmem [resolvable:$true] %s6272
          %6278 = dma.vmem_to_hbm [thread:$0]  %s6273, 1024, %s27, [#allocation36], 128, 128, 8
        $region216: #{tpu_custom_call.1} parent=123 // pred_fallthru
          _
        // Predicated region
        $region217: #{tpu_custom_call.1} parent=123 // pred_check
          %p6279 = pneg %p726
        $region218: #{tpu_custom_call.1} parent=123 // pred_check_branch
          %6281 = sbr.rel (%p6279) target = $region220
        $region219: #{tpu_custom_call.1} parent=123 // pred_region
          %6282 = dma.done [#allocation6], 256
        $region220: #{tpu_custom_call.1} parent=123 // pred_fallthru
          _
        // Predicated region
        $region221: #{tpu_custom_call.1} parent=123 // pred_check
          %p6283 = pneg %p747
        $region222: #{tpu_custom_call.1} parent=123 // pred_check_branch
          %6285 = sbr.rel (%p6283) target = $region224
        $region223: #{tpu_custom_call.1} parent=123 // pred_region
          %6286 = dma.done [#allocation36], 1024
        $region224: #{tpu_custom_call.1} parent=123 // pred_fallthru
          _
      $region124: #{tpu_custom_call.1} parent=5 // pred_fallthru
        _
      %p6287 = scmp.le.s32.totalorder 2, %s62
      // Predicated region
      $region225: #{tpu_custom_call.1} parent=5 // pred_check
        %p6288 = pneg %p6287
      $region226: #{tpu_custom_call.1} parent=5 // pred_check_branch
        %6290 = sbr.rel (%p6288) target = $region228
      $region227: #{tpu_custom_call.1} parent=5 // pred_region
        %s6291 = ssub.s32 %s62, 2
      $region228: #{tpu_custom_call.1} parent=5 // pred_fallthru
        _
    $region6: #{tpu_custom_call.1} parent=1 // loop_footer
      %s66 = sadd.s32 1, %s62
    $region7: #{tpu_custom_call.1} parent=1 // loop_footer_branch
      %61 = sbr.rel target = $region3
    $region8: #{tpu_custom_call.1} parent=1 // loop_exit
      _
    %6292 = vsyncpa [#allocation5], 1
    %s6293 = scalar_lea.sflag [#allocation5], 1
    %6294 = vsyncpa %s6293, 1
    %6295 = vsyncpa [#allocation8], 1
    %6296 = vsyncpa [#allocation11], 1
    %s6297 = scalar_lea.sflag [#allocation11], 1
    %6298 = vsyncpa %s6297, 1
    %6299 = vsyncpa [#allocation14], 1
    %s6300 = scalar_lea.sflag [#allocation14], 1
    %6301 = vsyncpa %s6300, 1
    %6302 = vsyncpa [#allocation17], 1
    %s6303 = scalar_lea.sflag [#allocation17], 1
    %6304 = vsyncpa %s6303, 1
    %6305 = vsyncpa [#allocation20], 1
    %s6306 = scalar_lea.sflag [#allocation20], 1
    %6307 = vsyncpa %s6306, 1
    %6308 = vsyncpa [#allocation23], 1
    %s6309 = scalar_lea.sflag [#allocation23], 1
    %6310 = vsyncpa %s6309, 1
    %6311 = vsyncpa [#allocation26], 1
    %s6312 = scalar_lea.sflag [#allocation26], 1
    %6313 = vsyncpa %s6312, 1
    %6314 = vsyncpa [#allocation29], 1
    %s6315 = scalar_lea.sflag [#allocation29], 1
    %6316 = vsyncpa %s6315, 1
    %6317 = vsyncpa [#allocation32], 1
    %s6318 = scalar_lea.sflag [#allocation32], 1
    %6319 = vsyncpa %s6318, 1
    %6320 = vsyncpa [#allocation6], 1
    %s6321 = scalar_lea.sflag [#allocation6], 1
    %6322 = vsyncpa %s6321, 1
    %6323 = vsyncpa [#allocation36], 1

</llo_original>
